<compile_context>
chip_gen: v6e
topology: v6e:2x2x1
jax: 0.10.0
libtpu: 0.0.40
codegen_flags: <defaults>
</compile_context>

<pallas_src>
import numpy as np
import jax
import jax.numpy as jnp
from jax import lax
from jax.experimental import pallas as pl
from jax.experimental.pallas import tpu as pltpu

# Model config: FlexibleCNN(conv_layers=2, linear_layers=2, dropout_rate=0.25, hidden_units=32)
HIDDEN = 32
C1, C2 = 16, 32          # out_channels = 16*(i+1)
H0 = 28                  # input H = W
H1 = 14                  # after pool1
H2 = 7                   # after pool2
HALF = 256               # lane half-width of the even|odd x packing (valid: 14*16 = 7*32 = 224)
SLAB = 2 * HALF          # 512-lane conv output slabs
NCLS = 10
NCLS_PAD = 128           # lane-dense padded class dim
BTILE = 32               # images per grid step (multiple of 8)


# ----------------------------------------------------------------------------
# Fused per-batch-tile kernel (rows are planar: row index = y * BTILE + image)
# ----------------------------------------------------------------------------
def fused_cnn_kernel(x_ref, cb1_ref, bb1_ref, cb2_ref, bb2_ref,
                     wf1_ref, bf1_ref, wf2_ref, bf2_ref, wf3_ref, bf3_ref, o_ref):
    f32, bf16 = jnp.float32, jnp.bfloat16
    BT = BTILE
    M0, M1 = H0 * BT, H1 * BT

    # conv1 (3x3, 1->16, pad=1) + ReLU.  The three dy bands are BT-row shifted views of the
    # zero-row-padded planar slab, so image boundaries never leak across the batch.
    X = x_ref[...]                                               # (28*BT, 28) f32
    zb = jnp.zeros((BT, H0), f32)
    Xp = jnp.concatenate([zb, X, zb], axis=0).astype(bf16)       # (30*BT, 28)
    s1 = jnp.dot(Xp[0:M0], cb1_ref[0], preferred_element_type=f32)
    s1 = s1 + jnp.dot(Xp[BT:BT + M0], cb1_ref[1], preferred_element_type=f32)
    s1 = s1 + jnp.dot(Xp[2 * BT:2 * BT + M0], cb1_ref[2], preferred_element_type=f32)
    s1 = jnp.maximum(s1 + bb1_ref[...], 0.0)                     # (28*BT, 512) f32

    # maxpool 2x2 (#1): W-pool = max of the two 256-lane halves (even|odd x interleave is baked
    # into the banded weights); H-pool = max of adjacent BT-row blocks (conv rows 2k / 2k+1).
    s1 = jnp.maximum(s1[:, :HALF], s1[:, HALF:])                 # (28*BT, 256)
    p1 = jnp.concatenate(
        [jnp.maximum(s1[(2 * k) * BT:(2 * k + 1) * BT], s1[(2 * k + 1) * BT:(2 * k + 2) * BT])
         for k in range(H1)], axis=0)                            # (14*BT, 256), rows (y1, image)

    # conv2 (3x3, 16->32, pad=1) + ReLU: three dy bands fused along K into one
    # (14*BT, 768) @ (768, 512) matmul (256-lane-aligned concat).
    zb2 = jnp.zeros((BT, HALF), f32)
    p1p = jnp.concatenate([zb2, p1, zb2], axis=0).astype(bf16)   # (16*BT, 256)
    a2 = jnp.concatenate([p1p[0:M1], p1p[BT:BT + M1], p1p[2 * BT:2 * BT + M1]], axis=1)
    s2 = jnp.dot(a2, cb2_ref[...], preferred_element_type=f32)   # (14*BT, 512)
    s2 = jnp.maximum(s2 + bb2_ref[...], 0.0)

    # maxpool 2x2 (#2)
    s2 = jnp.maximum(s2[:, :HALF], s2[:, HALF:])                 # (14*BT, 256)
    p2 = jnp.concatenate(
        [jnp.maximum(s2[(2 * k) * BT:(2 * k + 1) * BT], s2[(2 * k + 1) * BT:(2 * k + 2) * BT])
         for k in range(H2)], axis=0)                            # (7*BT, 256), rows (y2, image)

    # fc1 as 7 accumulating (BT,256)@(256,32) matmuls (torch NCHW flatten folded into wf1 rows;
    # dropout before fc1 is identity in eval), then fc2 + ReLU (module's outer activation),
    # final_layer, and log_softmax over the padded 128-lane class dim.
    wf1 = wf1_ref[...]                                           # (1792, 32) bf16
    h = jnp.dot(p2[0:BT].astype(bf16), wf1[0:HALF], preferred_element_type=f32)
    for y in range(1, H2):
        h = h + jnp.dot(p2[y * BT:(y + 1) * BT].astype(bf16),
                        wf1[y * HALF:(y + 1) * HALF], preferred_element_type=f32)
    h = jnp.maximum(h + bf1_ref[...], 0.0)                       # fc1 + relu1
    h = jnp.dot(h.astype(bf16), wf2_ref[...], preferred_element_type=f32) + bf2_ref[...]
    h = jnp.maximum(h, 0.0)                                      # fc2 + self.activation
    logits = jnp.dot(h.astype(bf16), wf3_ref[...], preferred_element_type=f32) + bf3_ref[...]
    m = jnp.max(logits, axis=-1, keepdims=True)                  # pad lanes are -1e30 -> ignored
    lse = m + jnp.log(jnp.sum(jnp.exp(logits - m), axis=-1, keepdims=True))
    o_ref[...] = (logits - lse).astype(o_ref.dtype)              # (BT, 128) lane-dense store


# ----------------------------------------------------------------------------
# Forward wrapper (one pallas_call for the whole network)
# ----------------------------------------------------------------------------
def flexible_cnn_forward(x_nchw, kp):
    n = x_nchw.shape[0]
    ngrid = max(1, -(-n // BTILE))
    npad = ngrid * BTILE
    x = x_nchw.reshape(n, H0, H0).astype(jnp.float32)            # Cin = 1
    if npad != n:
        x = jnp.pad(x, ((0, npad - n), (0, 0), (0, 0)))
    # Planar layout: row = (step, y, image-in-step).  One cheap wrapper transpose of the tiny
    # input makes every in-kernel band shift / pool / flatten a contiguous aligned slice.
    xp = (x.reshape(ngrid, BTILE, H0, H0)
           .transpose(0, 2, 1, 3)
           .reshape(ngrid * H0 * BTILE, H0))

    out = pl.pallas_call(
        fused_cnn_kernel,
        out_shape=jax.ShapeDtypeStruct((npad, NCLS_PAD), jnp.float32),
        grid_spec=pltpu.PrefetchScalarGridSpec(
            num_scalar_prefetch=0,
            grid=(ngrid,),
            in_specs=[
                pl.BlockSpec((H0 * BTILE, H0), lambda i: (i, 0)),     # planar input rows
                pl.BlockSpec((3, H0, SLAB), lambda i: (0, 0, 0)),     # conv1 banded weights (resident)
                pl.BlockSpec((1, SLAB), lambda i: (0, 0)),            # conv1 bias row
                pl.BlockSpec((3 * HALF, SLAB), lambda i: (0, 0)),     # conv2 fused banded weights
                pl.BlockSpec((1, SLAB), lambda i: (0, 0)),            # conv2 bias row
                pl.BlockSpec((H2 * HALF, HIDDEN), lambda i: (0, 0)),  # fc1 (flatten folded into rows)
                pl.BlockSpec((1, HIDDEN), lambda i: (0, 0)),
                pl.BlockSpec((HIDDEN, HIDDEN), lambda i: (0, 0)),     # fc2
                pl.BlockSpec((1, HIDDEN), lambda i: (0, 0)),
                pl.BlockSpec((HIDDEN, NCLS_PAD), lambda i: (0, 0)),   # final layer (classes padded)
                pl.BlockSpec((1, NCLS_PAD), lambda i: (0, 0)),
            ],
            out_specs=pl.BlockSpec((BTILE, NCLS_PAD), lambda i: (i, 0)),
        ),
        compiler_params=pltpu.CompilerParams(
            dimension_semantics=("parallel",),
            vmem_limit_bytes=32 * 1024 * 1024),
    )(xp, kp["cb1"], kp["bb1"], kp["cb2"], kp["bb2"],
      kp["wf1"], kp["bf1"], kp["wf2"], kp["bf2"], kp["wf3"], kp["bf3"])
    return out[:n, :NCLS]


# ----------------------------------------------------------------------------
# Parameter construction: synthetic PyTorch-layout params + kernel-layout transforms
# ----------------------------------------------------------------------------
def init_torch_params(key):
    ks = jax.random.split(key, 10)
    flat_dim = C2 * H2 * H2                                       # 1568 = module's self.flat_dim
    return dict(
        w1c=0.1 * jax.random.normal(ks[0], (C1, 1, 3, 3), jnp.float32),   # Conv2d weight (O,I,3,3)
        b1c=0.1 * jax.random.normal(ks[1], (C1,), jnp.float32),
        w2c=0.1 * jax.random.normal(ks[2], (C2, C1, 3, 3), jnp.float32),
        b2c=0.1 * jax.random.normal(ks[3], (C2,), jnp.float32),
        wf1=0.05 * jax.random.normal(ks[4], (HIDDEN, flat_dim), jnp.float32),  # Linear (out, in)
        bf1=0.05 * jax.random.normal(ks[5], (HIDDEN,), jnp.float32),
        wf2=0.05 * jax.random.normal(ks[6], (HIDDEN, HIDDEN), jnp.float32),
        bf2=0.05 * jax.random.normal(ks[7], (HIDDEN,), jnp.float32),
        wf3=0.05 * jax.random.normal(ks[8], (NCLS, HIDDEN), jnp.float32),
        bf3=0.05 * jax.random.normal(ks[9], (NCLS,), jnp.float32),
    )


def build_kernel_params(tp):
    """Fold conv band structure, even|odd pooling interleave, NCHW flatten and class padding
    into the (bf16) weights.  Pad lanes [224,256) of every 256-lane half stay exactly zero."""
    w1c, b1c = np.asarray(tp["w1c"], np.float32), np.asarray(tp["b1c"], np.float32)
    w2c, b2c = np.asarray(tp["w2c"], np.float32), np.asarray(tp["b2c"], np.float32)

    # conv1 banded weights: cb1[dy, xi, L1(x,co)] = w1c[co,0,dy,dx], xi = x+dx-1 (OOB omitted),
    # output lane L1(x,co) = (x//2)*16 + co + (x%2)*256.
    cb1 = np.zeros((3, H0, SLAB), np.float32)
    bb1 = np.zeros((1, SLAB), np.float32)
    for x in range(H0):
        lane = (x // 2) * C1 + (x % 2) * HALF
        bb1[0, lane:lane + C1] = b1c
        for dy in range(3):
            for dx in range(3):
                xi = x + dx - 1
                if 0 <= xi < H0:
                    cb1[dy, xi, lane:lane + C1] = w1c[:, 0, dy, dx]

    # conv2 fused banded weights: K = dy*256 + xi*16 + ci, lane L2(x,co) = (x//2)*32+co+(x%2)*256.
    cb2 = np.zeros((3 * HALF, SLAB), np.float32)
    bb2 = np.zeros((1, SLAB), np.float32)
    for x in range(H1):
        lane = (x // 2) * C2 + (x % 2) * HALF
        bb2[0, lane:lane + C2] = b2c
        for dy in range(3):
            for dx in range(3):
                xi = x + dx - 1
                if 0 <= xi < H1:
                    k0 = dy * HALF + xi * C1
                    cb2[k0:k0 + C1, lane:lane + C2] = w2c[:, :, dy, dx].T   # [ci, co]

    # fc1: kernel feature index y2*256 + x2*32 + co  <->  torch flatten index co*49 + y2*7 + x2.
    wf1 = np.asarray(tp["wf1"], np.float32)                       # (32, 1568)
    wf1k = np.zeros((H2, HALF, HIDDEN), np.float32)
    wf1k[:, :H2 * C2, :] = (wf1.reshape(HIDDEN, C2, H2, H2)
                                .transpose(2, 3, 1, 0)
                                .reshape(H2, H2 * C2, HIDDEN))
    wf1k = wf1k.reshape(H2 * HALF, HIDDEN)

    # final layer: class dim padded to 128 lanes; pad logits pinned to -1e30 via the bias row.
    wf3 = np.zeros((HIDDEN, NCLS_PAD), np.float32)
    wf3[:, :NCLS] = np.asarray(tp["wf3"], np.float32).T
    bf3 = np.full((1, NCLS_PAD), -1e30, np.float32)
    bf3[0, :NCLS] = np.asarray(tp["bf3"], np.float32)

    bf16 = jnp.bfloat16
    return dict(
        cb1=jnp.asarray(cb1, bf16), bb1=jnp.asarray(bb1),
        cb2=jnp.asarray(cb2, bf16), bb2=jnp.asarray(bb2),
        wf1=jnp.asarray(wf1k, bf16),
        bf1=jnp.asarray(np.asarray(tp["bf1"], np.float32).reshape(1, HIDDEN)),
        wf2=jnp.asarray(np.asarray(tp["wf2"], np.float32).T, bf16),
        bf2=jnp.asarray(np.asarray(tp["bf2"], np.float32).reshape(1, HIDDEN)),
        wf3=jnp.asarray(wf3, bf16),
        bf3=jnp.asarray(bf3),
    )


# ----------------------------------------------------------------------------
# Pure-JAX f32 reference (mirrors the PyTorch module in eval mode) for validation
# ----------------------------------------------------------------------------
def ref_forward(x_nchw, tp):
    x = x_nchw.astype(jnp.float32)
    for wc, bc in ((tp["w1c"], tp["b1c"]), (tp["w2c"], tp["b2c"])):
        x = lax.conv_general_dilated(x, wc, window_strides=(1, 1), padding=((1, 1), (1, 1)),
                                     dimension_numbers=("NCHW", "OIHW", "NCHW"))
        x = jnp.maximum(x + bc[None, :, None, None], 0.0)
        x = lax.reduce_window(x, -jnp.inf, lax.max, (1, 1, 2, 2), (1, 1, 2, 2), "VALID")
    x = x.reshape(x.shape[0], -1)                                 # torch x.view(N, -1) on NCHW
    x = jnp.maximum(x @ tp["wf1"].T + tp["bf1"], 0.0)             # fc1 + relu1 (dropout = identity)
    x = x @ tp["wf2"].T + tp["bf2"]                               # fc2
    x = jnp.maximum(x, 0.0)                                       # self.activation
    logits = x @ tp["wf3"].T + tp["bf3"]                          # final_layer
    return jax.nn.log_softmax(logits, axis=-1)


if __name__ == "__main__":
    key = jax.random.PRNGKey(0)
    pkey, xkey = jax.random.split(key)
    tp = init_torch_params(pkey)
    kp = build_kernel_params(tp)

    # batch = 2*BTILE single-channel 28x28 images (FashionMNIST-sized), NCHW like PyTorch.
    # 2 grid steps so v7x can shard the "parallel" grid across both TensorCores.
    x = jax.random.normal(xkey, (2 * BTILE, 1, H0, H0), jnp.float32)

    fwd = jax.jit(lambda xi: flexible_cnn_forward(xi, kp))
    out = jax.block_until_ready(fwd(x))

    assert out.shape == (2 * BTILE, NCLS), out.shape
    assert bool(jnp.all(jnp.isfinite(out)))
    # log_softmax rows must sum to ~1 in probability space
    assert bool(jnp.allclose(jnp.sum(jnp.exp(out), axis=1), 1.0, atol=1e-3))
    # match the pure-f32 JAX reference of the PyTorch module (eval mode); tolerance accounts
    # for bf16 MXU operands with f32 accumulation.
    ref = jax.block_until_ready(ref_forward(x, tp))
    assert bool(jnp.allclose(out, ref, rtol=3e-2, atol=3e-2)), float(jnp.max(jnp.abs(out - ref)))
    print("KERNEL_OK")
</pallas_src>

<mosaic_0001>
module attributes {stable_mosaic.version = 11 : i64} {
  func.func @fused_cnn_kernel(%arg0: i32, %arg1: memref<896x28xf32, #tpu.memory_space<vmem>>, %arg2: memref<3x28x512xbf16, #tpu.memory_space<vmem>>, %arg3: memref<1x512xf32, #tpu.memory_space<vmem>>, %arg4: memref<768x512xbf16, #tpu.memory_space<vmem>>, %arg5: memref<1x512xf32, #tpu.memory_space<vmem>>, %arg6: memref<1792x32xbf16, #tpu.memory_space<vmem>>, %arg7: memref<1x32xf32, #tpu.memory_space<vmem>>, %arg8: memref<32x32xbf16, #tpu.memory_space<vmem>>, %arg9: memref<1x32xf32, #tpu.memory_space<vmem>>, %arg10: memref<32x128xbf16, #tpu.memory_space<vmem>>, %arg11: memref<1x128xf32, #tpu.memory_space<vmem>>, %arg12: memref<32x128xf32, #tpu.memory_space<vmem>>) attributes {dimension_semantics = [#tpu.dimension_semantics<parallel>], iteration_bounds = array<i64: 2>, scalar_prefetch = 0 : i64, scratch_operands = 0 : i64, tpu.core_type = #tpu.core_type<tc>, window_params = [{transform_indices = @transform_0, window_bounds = array<i64: 896, 28>}, {pipeline_mode = #tpu.pipeline_mode<synchronous>, transform_indices = @transform_1, window_bounds = array<i64: 3, 28, 512>}, {pipeline_mode = #tpu.pipeline_mode<synchronous>, transform_indices = @transform_2, window_bounds = array<i64: 1, 512>}, {pipeline_mode = #tpu.pipeline_mode<synchronous>, transform_indices = @transform_3, window_bounds = array<i64: 768, 512>}, {pipeline_mode = #tpu.pipeline_mode<synchronous>, transform_indices = @transform_4, window_bounds = array<i64: 1, 512>}, {pipeline_mode = #tpu.pipeline_mode<synchronous>, transform_indices = @transform_5, window_bounds = array<i64: 1792, 32>}, {pipeline_mode = #tpu.pipeline_mode<synchronous>, transform_indices = @transform_6, window_bounds = array<i64: 1, 32>}, {pipeline_mode = #tpu.pipeline_mode<synchronous>, transform_indices = @transform_7, window_bounds = array<i64: 32, 32>}, {pipeline_mode = #tpu.pipeline_mode<synchronous>, transform_indices = @transform_8, window_bounds = array<i64: 1, 32>}, {pipeline_mode = #tpu.pipeline_mode<synchronous>, transform_indices = @transform_9, window_bounds = array<i64: 32, 128>}, {pipeline_mode = #tpu.pipeline_mode<synchronous>, transform_indices = @transform_10, window_bounds = array<i64: 1, 128>}, {transform_indices = @transform_11, window_bounds = array<i64: 32, 128>}]} {
    %c0 = arith.constant 0 : index
    %c0_0 = arith.constant 0 : index
    %0 = vector.load %arg1[%c0, %c0_0] : memref<896x28xf32, #tpu.memory_space<vmem>>, vector<896x28xf32>
    %cst = arith.constant 0.000000e+00 : f32
    %1 = vector.broadcast %cst : f32 to vector<32x28xf32>
    %2 = tpu.concatenate %1, %0, %1 in 0 : vector<32x28xf32>, vector<896x28xf32>, vector<32x28xf32> -> vector<960x28xf32>
    %3 = arith.truncf %2 : vector<960x28xf32> to vector<960x28xbf16>
    %4 = vector.extract_strided_slice %3 {offsets = [0, 0], sizes = [896, 28], strides = [1, 1]} : vector<960x28xbf16> to vector<896x28xbf16>
    %c0_1 = arith.constant 0 : index
    %c0_2 = arith.constant 0 : index
    %c0_3 = arith.constant 0 : index
    %5 = vector.load %arg2[%c0_1, %c0_2, %c0_3] : memref<3x28x512xbf16, #tpu.memory_space<vmem>>, vector<1x28x512xbf16>
    %6 = vector.shape_cast %5 : vector<1x28x512xbf16> to vector<28x512xbf16>
    %cst_4 = arith.constant dense<0.000000e+00> : vector<896x512xf32>
    %7 = tpu.matmul %4, %6, %cst_4 {dimension_numbers = #tpu.dot_dimension_numbers<[1], [0], [0], [1], [0, 0, 1, 1], [], []>} : vector<896x28xbf16>, vector<28x512xbf16>, vector<896x512xf32> -> vector<896x512xf32>
    %8 = vector.extract_strided_slice %3 {offsets = [32, 0], sizes = [896, 28], strides = [1, 1]} : vector<960x28xbf16> to vector<896x28xbf16>
    %c1 = arith.constant 1 : index
    %c0_5 = arith.constant 0 : index
    %c0_6 = arith.constant 0 : index
    %9 = vector.load %arg2[%c1, %c0_5, %c0_6] : memref<3x28x512xbf16, #tpu.memory_space<vmem>>, vector<1x28x512xbf16>
    %10 = vector.shape_cast %9 : vector<1x28x512xbf16> to vector<28x512xbf16>
    %cst_7 = arith.constant dense<0.000000e+00> : vector<896x512xf32>
    %11 = tpu.matmul %8, %10, %cst_7 {dimension_numbers = #tpu.dot_dimension_numbers<[1], [0], [0], [1], [0, 0, 1, 1], [], []>} : vector<896x28xbf16>, vector<28x512xbf16>, vector<896x512xf32> -> vector<896x512xf32>
    %12 = arith.addf %7, %11 : vector<896x512xf32>
    %13 = vector.extract_strided_slice %3 {offsets = [64, 0], sizes = [896, 28], strides = [1, 1]} : vector<960x28xbf16> to vector<896x28xbf16>
    %c2 = arith.constant 2 : index
    %c0_8 = arith.constant 0 : index
    %c0_9 = arith.constant 0 : index
    %14 = vector.load %arg2[%c2, %c0_8, %c0_9] : memref<3x28x512xbf16, #tpu.memory_space<vmem>>, vector<1x28x512xbf16>
    %15 = vector.shape_cast %14 : vector<1x28x512xbf16> to vector<28x512xbf16>
    %cst_10 = arith.constant dense<0.000000e+00> : vector<896x512xf32>
    %16 = tpu.matmul %13, %15, %cst_10 {dimension_numbers = #tpu.dot_dimension_numbers<[1], [0], [0], [1], [0, 0, 1, 1], [], []>} : vector<896x28xbf16>, vector<28x512xbf16>, vector<896x512xf32> -> vector<896x512xf32>
    %17 = arith.addf %12, %16 : vector<896x512xf32>
    %c0_11 = arith.constant 0 : index
    %c0_12 = arith.constant 0 : index
    %18 = vector.load %arg3[%c0_11, %c0_12] : memref<1x512xf32, #tpu.memory_space<vmem>>, vector<1x512xf32>
    %19 = vector.broadcast %18 : vector<1x512xf32> to vector<896x512xf32>
    %20 = arith.addf %17, %19 : vector<896x512xf32>
    %cst_13 = arith.constant 0.000000e+00 : f32
    %21 = vector.broadcast %cst_13 : f32 to vector<896x512xf32>
    %22 = arith.maximumf %20, %21 : vector<896x512xf32>
    %23 = vector.extract_strided_slice %22 {offsets = [0, 0], sizes = [896, 256], strides = [1, 1]} : vector<896x512xf32> to vector<896x256xf32>
    %24 = vector.extract_strided_slice %22 {offsets = [0, 256], sizes = [896, 256], strides = [1, 1]} : vector<896x512xf32> to vector<896x256xf32>
    %25 = arith.maximumf %23, %24 : vector<896x256xf32>
    %26 = vector.extract_strided_slice %25 {offsets = [0, 0], sizes = [32, 256], strides = [1, 1]} : vector<896x256xf32> to vector<32x256xf32>
    %27 = vector.extract_strided_slice %25 {offsets = [32, 0], sizes = [32, 256], strides = [1, 1]} : vector<896x256xf32> to vector<32x256xf32>
    %28 = arith.maximumf %26, %27 : vector<32x256xf32>
    %29 = vector.extract_strided_slice %25 {offsets = [64, 0], sizes = [32, 256], strides = [1, 1]} : vector<896x256xf32> to vector<32x256xf32>
    %30 = vector.extract_strided_slice %25 {offsets = [96, 0], sizes = [32, 256], strides = [1, 1]} : vector<896x256xf32> to vector<32x256xf32>
    %31 = arith.maximumf %29, %30 : vector<32x256xf32>
    %32 = vector.extract_strided_slice %25 {offsets = [128, 0], sizes = [32, 256], strides = [1, 1]} : vector<896x256xf32> to vector<32x256xf32>
    %33 = vector.extract_strided_slice %25 {offsets = [160, 0], sizes = [32, 256], strides = [1, 1]} : vector<896x256xf32> to vector<32x256xf32>
    %34 = arith.maximumf %32, %33 : vector<32x256xf32>
    %35 = vector.extract_strided_slice %25 {offsets = [192, 0], sizes = [32, 256], strides = [1, 1]} : vector<896x256xf32> to vector<32x256xf32>
    %36 = vector.extract_strided_slice %25 {offsets = [224, 0], sizes = [32, 256], strides = [1, 1]} : vector<896x256xf32> to vector<32x256xf32>
    %37 = arith.maximumf %35, %36 : vector<32x256xf32>
    %38 = vector.extract_strided_slice %25 {offsets = [256, 0], sizes = [32, 256], strides = [1, 1]} : vector<896x256xf32> to vector<32x256xf32>
    %39 = vector.extract_strided_slice %25 {offsets = [288, 0], sizes = [32, 256], strides = [1, 1]} : vector<896x256xf32> to vector<32x256xf32>
    %40 = arith.maximumf %38, %39 : vector<32x256xf32>
    %41 = vector.extract_strided_slice %25 {offsets = [320, 0], sizes = [32, 256], strides = [1, 1]} : vector<896x256xf32> to vector<32x256xf32>
    %42 = vector.extract_strided_slice %25 {offsets = [352, 0], sizes = [32, 256], strides = [1, 1]} : vector<896x256xf32> to vector<32x256xf32>
    %43 = arith.maximumf %41, %42 : vector<32x256xf32>
    %44 = vector.extract_strided_slice %25 {offsets = [384, 0], sizes = [32, 256], strides = [1, 1]} : vector<896x256xf32> to vector<32x256xf32>
    %45 = vector.extract_strided_slice %25 {offsets = [416, 0], sizes = [32, 256], strides = [1, 1]} : vector<896x256xf32> to vector<32x256xf32>
    %46 = arith.maximumf %44, %45 : vector<32x256xf32>
    %47 = vector.extract_strided_slice %25 {offsets = [448, 0], sizes = [32, 256], strides = [1, 1]} : vector<896x256xf32> to vector<32x256xf32>
    %48 = vector.extract_strided_slice %25 {offsets = [480, 0], sizes = [32, 256], strides = [1, 1]} : vector<896x256xf32> to vector<32x256xf32>
    %49 = arith.maximumf %47, %48 : vector<32x256xf32>
    %50 = vector.extract_strided_slice %25 {offsets = [512, 0], sizes = [32, 256], strides = [1, 1]} : vector<896x256xf32> to vector<32x256xf32>
    %51 = vector.extract_strided_slice %25 {offsets = [544, 0], sizes = [32, 256], strides = [1, 1]} : vector<896x256xf32> to vector<32x256xf32>
    %52 = arith.maximumf %50, %51 : vector<32x256xf32>
    %53 = vector.extract_strided_slice %25 {offsets = [576, 0], sizes = [32, 256], strides = [1, 1]} : vector<896x256xf32> to vector<32x256xf32>
    %54 = vector.extract_strided_slice %25 {offsets = [608, 0], sizes = [32, 256], strides = [1, 1]} : vector<896x256xf32> to vector<32x256xf32>
    %55 = arith.maximumf %53, %54 : vector<32x256xf32>
    %56 = vector.extract_strided_slice %25 {offsets = [640, 0], sizes = [32, 256], strides = [1, 1]} : vector<896x256xf32> to vector<32x256xf32>
    %57 = vector.extract_strided_slice %25 {offsets = [672, 0], sizes = [32, 256], strides = [1, 1]} : vector<896x256xf32> to vector<32x256xf32>
    %58 = arith.maximumf %56, %57 : vector<32x256xf32>
    %59 = vector.extract_strided_slice %25 {offsets = [704, 0], sizes = [32, 256], strides = [1, 1]} : vector<896x256xf32> to vector<32x256xf32>
    %60 = vector.extract_strided_slice %25 {offsets = [736, 0], sizes = [32, 256], strides = [1, 1]} : vector<896x256xf32> to vector<32x256xf32>
    %61 = arith.maximumf %59, %60 : vector<32x256xf32>
    %62 = vector.extract_strided_slice %25 {offsets = [768, 0], sizes = [32, 256], strides = [1, 1]} : vector<896x256xf32> to vector<32x256xf32>
    %63 = vector.extract_strided_slice %25 {offsets = [800, 0], sizes = [32, 256], strides = [1, 1]} : vector<896x256xf32> to vector<32x256xf32>
    %64 = arith.maximumf %62, %63 : vector<32x256xf32>
    %65 = vector.extract_strided_slice %25 {offsets = [832, 0], sizes = [32, 256], strides = [1, 1]} : vector<896x256xf32> to vector<32x256xf32>
    %66 = vector.extract_strided_slice %25 {offsets = [864, 0], sizes = [32, 256], strides = [1, 1]} : vector<896x256xf32> to vector<32x256xf32>
    %67 = arith.maximumf %65, %66 : vector<32x256xf32>
    %68 = tpu.concatenate %28, %31, %34, %37, %40, %43, %46, %49, %52, %55, %58, %61, %64, %67 in 0 : vector<32x256xf32>, vector<32x256xf32>, vector<32x256xf32>, vector<32x256xf32>, vector<32x256xf32>, vector<32x256xf32>, vector<32x256xf32>, vector<32x256xf32>, vector<32x256xf32>, vector<32x256xf32>, vector<32x256xf32>, vector<32x256xf32>, vector<32x256xf32>, vector<32x256xf32> -> vector<448x256xf32>
    %cst_14 = arith.constant 0.000000e+00 : f32
    %69 = vector.broadcast %cst_14 : f32 to vector<32x256xf32>
    %70 = tpu.concatenate %69, %68, %69 in 0 : vector<32x256xf32>, vector<448x256xf32>, vector<32x256xf32> -> vector<512x256xf32>
    %71 = arith.truncf %70 : vector<512x256xf32> to vector<512x256xbf16>
    %72 = vector.extract_strided_slice %71 {offsets = [0, 0], sizes = [448, 256], strides = [1, 1]} : vector<512x256xbf16> to vector<448x256xbf16>
    %73 = vector.extract_strided_slice %71 {offsets = [32, 0], sizes = [448, 256], strides = [1, 1]} : vector<512x256xbf16> to vector<448x256xbf16>
    %74 = vector.extract_strided_slice %71 {offsets = [64, 0], sizes = [448, 256], strides = [1, 1]} : vector<512x256xbf16> to vector<448x256xbf16>
    %75 = tpu.concatenate %72, %73, %74 in 1 : vector<448x256xbf16>, vector<448x256xbf16>, vector<448x256xbf16> -> vector<448x768xbf16>
    %c0_15 = arith.constant 0 : index
    %c0_16 = arith.constant 0 : index
    %76 = vector.load %arg4[%c0_15, %c0_16] : memref<768x512xbf16, #tpu.memory_space<vmem>>, vector<768x512xbf16>
    %cst_17 = arith.constant dense<0.000000e+00> : vector<448x512xf32>
    %77 = tpu.matmul %75, %76, %cst_17 {dimension_numbers = #tpu.dot_dimension_numbers<[1], [0], [0], [1], [0, 0, 1, 1], [], []>} : vector<448x768xbf16>, vector<768x512xbf16>, vector<448x512xf32> -> vector<448x512xf32>
    %c0_18 = arith.constant 0 : index
    %c0_19 = arith.constant 0 : index
    %78 = vector.load %arg5[%c0_18, %c0_19] : memref<1x512xf32, #tpu.memory_space<vmem>>, vector<1x512xf32>
    %79 = vector.broadcast %78 : vector<1x512xf32> to vector<448x512xf32>
    %80 = arith.addf %77, %79 : vector<448x512xf32>
    %cst_20 = arith.constant 0.000000e+00 : f32
    %81 = vector.broadcast %cst_20 : f32 to vector<448x512xf32>
    %82 = arith.maximumf %80, %81 : vector<448x512xf32>
    %83 = vector.extract_strided_slice %82 {offsets = [0, 0], sizes = [448, 256], strides = [1, 1]} : vector<448x512xf32> to vector<448x256xf32>
    %84 = vector.extract_strided_slice %82 {offsets = [0, 256], sizes = [448, 256], strides = [1, 1]} : vector<448x512xf32> to vector<448x256xf32>
    %85 = arith.maximumf %83, %84 : vector<448x256xf32>
    %86 = vector.extract_strided_slice %85 {offsets = [0, 0], sizes = [32, 256], strides = [1, 1]} : vector<448x256xf32> to vector<32x256xf32>
    %87 = vector.extract_strided_slice %85 {offsets = [32, 0], sizes = [32, 256], strides = [1, 1]} : vector<448x256xf32> to vector<32x256xf32>
    %88 = arith.maximumf %86, %87 : vector<32x256xf32>
    %89 = vector.extract_strided_slice %85 {offsets = [64, 0], sizes = [32, 256], strides = [1, 1]} : vector<448x256xf32> to vector<32x256xf32>
    %90 = vector.extract_strided_slice %85 {offsets = [96, 0], sizes = [32, 256], strides = [1, 1]} : vector<448x256xf32> to vector<32x256xf32>
    %91 = arith.maximumf %89, %90 : vector<32x256xf32>
    %92 = vector.extract_strided_slice %85 {offsets = [128, 0], sizes = [32, 256], strides = [1, 1]} : vector<448x256xf32> to vector<32x256xf32>
    %93 = vector.extract_strided_slice %85 {offsets = [160, 0], sizes = [32, 256], strides = [1, 1]} : vector<448x256xf32> to vector<32x256xf32>
    %94 = arith.maximumf %92, %93 : vector<32x256xf32>
    %95 = vector.extract_strided_slice %85 {offsets = [192, 0], sizes = [32, 256], strides = [1, 1]} : vector<448x256xf32> to vector<32x256xf32>
    %96 = vector.extract_strided_slice %85 {offsets = [224, 0], sizes = [32, 256], strides = [1, 1]} : vector<448x256xf32> to vector<32x256xf32>
    %97 = arith.maximumf %95, %96 : vector<32x256xf32>
    %98 = vector.extract_strided_slice %85 {offsets = [256, 0], sizes = [32, 256], strides = [1, 1]} : vector<448x256xf32> to vector<32x256xf32>
    %99 = vector.extract_strided_slice %85 {offsets = [288, 0], sizes = [32, 256], strides = [1, 1]} : vector<448x256xf32> to vector<32x256xf32>
    %100 = arith.maximumf %98, %99 : vector<32x256xf32>
    %101 = vector.extract_strided_slice %85 {offsets = [320, 0], sizes = [32, 256], strides = [1, 1]} : vector<448x256xf32> to vector<32x256xf32>
    %102 = vector.extract_strided_slice %85 {offsets = [352, 0], sizes = [32, 256], strides = [1, 1]} : vector<448x256xf32> to vector<32x256xf32>
    %103 = arith.maximumf %101, %102 : vector<32x256xf32>
    %104 = vector.extract_strided_slice %85 {offsets = [384, 0], sizes = [32, 256], strides = [1, 1]} : vector<448x256xf32> to vector<32x256xf32>
    %105 = vector.extract_strided_slice %85 {offsets = [416, 0], sizes = [32, 256], strides = [1, 1]} : vector<448x256xf32> to vector<32x256xf32>
    %106 = arith.maximumf %104, %105 : vector<32x256xf32>
    %107 = tpu.concatenate %88, %91, %94, %97, %100, %103, %106 in 0 : vector<32x256xf32>, vector<32x256xf32>, vector<32x256xf32>, vector<32x256xf32>, vector<32x256xf32>, vector<32x256xf32>, vector<32x256xf32> -> vector<224x256xf32>
    %c0_21 = arith.constant 0 : index
    %c0_22 = arith.constant 0 : index
    %108 = vector.load %arg6[%c0_21, %c0_22] : memref<1792x32xbf16, #tpu.memory_space<vmem>>, vector<1792x32xbf16>
    %109 = vector.extract_strided_slice %107 {offsets = [0, 0], sizes = [32, 256], strides = [1, 1]} : vector<224x256xf32> to vector<32x256xf32>
    %110 = arith.truncf %109 : vector<32x256xf32> to vector<32x256xbf16>
    %111 = vector.extract_strided_slice %108 {offsets = [0, 0], sizes = [256, 32], strides = [1, 1]} : vector<1792x32xbf16> to vector<256x32xbf16>
    %cst_23 = arith.constant dense<0.000000e+00> : vector<32x32xf32>
    %112 = tpu.matmul %110, %111, %cst_23 {dimension_numbers = #tpu.dot_dimension_numbers<[1], [0], [0], [1], [0, 0, 1, 1], [], []>} : vector<32x256xbf16>, vector<256x32xbf16>, vector<32x32xf32> -> vector<32x32xf32>
    %113 = vector.extract_strided_slice %107 {offsets = [32, 0], sizes = [32, 256], strides = [1, 1]} : vector<224x256xf32> to vector<32x256xf32>
    %114 = arith.truncf %113 : vector<32x256xf32> to vector<32x256xbf16>
    %115 = vector.extract_strided_slice %108 {offsets = [256, 0], sizes = [256, 32], strides = [1, 1]} : vector<1792x32xbf16> to vector<256x32xbf16>
    %cst_24 = arith.constant dense<0.000000e+00> : vector<32x32xf32>
    %116 = tpu.matmul %114, %115, %cst_24 {dimension_numbers = #tpu.dot_dimension_numbers<[1], [0], [0], [1], [0, 0, 1, 1], [], []>} : vector<32x256xbf16>, vector<256x32xbf16>, vector<32x32xf32> -> vector<32x32xf32>
    %117 = arith.addf %112, %116 : vector<32x32xf32>
    %118 = vector.extract_strided_slice %107 {offsets = [64, 0], sizes = [32, 256], strides = [1, 1]} : vector<224x256xf32> to vector<32x256xf32>
    %119 = arith.truncf %118 : vector<32x256xf32> to vector<32x256xbf16>
    %120 = vector.extract_strided_slice %108 {offsets = [512, 0], sizes = [256, 32], strides = [1, 1]} : vector<1792x32xbf16> to vector<256x32xbf16>
    %cst_25 = arith.constant dense<0.000000e+00> : vector<32x32xf32>
    %121 = tpu.matmul %119, %120, %cst_25 {dimension_numbers = #tpu.dot_dimension_numbers<[1], [0], [0], [1], [0, 0, 1, 1], [], []>} : vector<32x256xbf16>, vector<256x32xbf16>, vector<32x32xf32> -> vector<32x32xf32>
    %122 = arith.addf %117, %121 : vector<32x32xf32>
    %123 = vector.extract_strided_slice %107 {offsets = [96, 0], sizes = [32, 256], strides = [1, 1]} : vector<224x256xf32> to vector<32x256xf32>
    %124 = arith.truncf %123 : vector<32x256xf32> to vector<32x256xbf16>
    %125 = vector.extract_strided_slice %108 {offsets = [768, 0], sizes = [256, 32], strides = [1, 1]} : vector<1792x32xbf16> to vector<256x32xbf16>
    %cst_26 = arith.constant dense<0.000000e+00> : vector<32x32xf32>
    %126 = tpu.matmul %124, %125, %cst_26 {dimension_numbers = #tpu.dot_dimension_numbers<[1], [0], [0], [1], [0, 0, 1, 1], [], []>} : vector<32x256xbf16>, vector<256x32xbf16>, vector<32x32xf32> -> vector<32x32xf32>
    %127 = arith.addf %122, %126 : vector<32x32xf32>
    %128 = vector.extract_strided_slice %107 {offsets = [128, 0], sizes = [32, 256], strides = [1, 1]} : vector<224x256xf32> to vector<32x256xf32>
    %129 = arith.truncf %128 : vector<32x256xf32> to vector<32x256xbf16>
    %130 = vector.extract_strided_slice %108 {offsets = [1024, 0], sizes = [256, 32], strides = [1, 1]} : vector<1792x32xbf16> to vector<256x32xbf16>
    %cst_27 = arith.constant dense<0.000000e+00> : vector<32x32xf32>
    %131 = tpu.matmul %129, %130, %cst_27 {dimension_numbers = #tpu.dot_dimension_numbers<[1], [0], [0], [1], [0, 0, 1, 1], [], []>} : vector<32x256xbf16>, vector<256x32xbf16>, vector<32x32xf32> -> vector<32x32xf32>
    %132 = arith.addf %127, %131 : vector<32x32xf32>
    %133 = vector.extract_strided_slice %107 {offsets = [160, 0], sizes = [32, 256], strides = [1, 1]} : vector<224x256xf32> to vector<32x256xf32>
    %134 = arith.truncf %133 : vector<32x256xf32> to vector<32x256xbf16>
    %135 = vector.extract_strided_slice %108 {offsets = [1280, 0], sizes = [256, 32], strides = [1, 1]} : vector<1792x32xbf16> to vector<256x32xbf16>
    %cst_28 = arith.constant dense<0.000000e+00> : vector<32x32xf32>
    %136 = tpu.matmul %134, %135, %cst_28 {dimension_numbers = #tpu.dot_dimension_numbers<[1], [0], [0], [1], [0, 0, 1, 1], [], []>} : vector<32x256xbf16>, vector<256x32xbf16>, vector<32x32xf32> -> vector<32x32xf32>
    %137 = arith.addf %132, %136 : vector<32x32xf32>
    %138 = vector.extract_strided_slice %107 {offsets = [192, 0], sizes = [32, 256], strides = [1, 1]} : vector<224x256xf32> to vector<32x256xf32>
    %139 = arith.truncf %138 : vector<32x256xf32> to vector<32x256xbf16>
    %140 = vector.extract_strided_slice %108 {offsets = [1536, 0], sizes = [256, 32], strides = [1, 1]} : vector<1792x32xbf16> to vector<256x32xbf16>
    %cst_29 = arith.constant dense<0.000000e+00> : vector<32x32xf32>
    %141 = tpu.matmul %139, %140, %cst_29 {dimension_numbers = #tpu.dot_dimension_numbers<[1], [0], [0], [1], [0, 0, 1, 1], [], []>} : vector<32x256xbf16>, vector<256x32xbf16>, vector<32x32xf32> -> vector<32x32xf32>
    %142 = arith.addf %137, %141 : vector<32x32xf32>
    %c0_30 = arith.constant 0 : index
    %c0_31 = arith.constant 0 : index
    %143 = vector.load %arg7[%c0_30, %c0_31] : memref<1x32xf32, #tpu.memory_space<vmem>>, vector<1x32xf32>
    %144 = vector.broadcast %143 : vector<1x32xf32> to vector<32x32xf32>
    %145 = arith.addf %142, %144 : vector<32x32xf32>
    %cst_32 = arith.constant 0.000000e+00 : f32
    %146 = vector.broadcast %cst_32 : f32 to vector<32x32xf32>
    %147 = arith.maximumf %145, %146 : vector<32x32xf32>
    %148 = arith.truncf %147 : vector<32x32xf32> to vector<32x32xbf16>
    %c0_33 = arith.constant 0 : index
    %c0_34 = arith.constant 0 : index
    %149 = vector.load %arg8[%c0_33, %c0_34] : memref<32x32xbf16, #tpu.memory_space<vmem>>, vector<32x32xbf16>
    %cst_35 = arith.constant dense<0.000000e+00> : vector<32x32xf32>
    %150 = tpu.matmul %148, %149, %cst_35 {dimension_numbers = #tpu.dot_dimension_numbers<[1], [0], [0], [1], [0, 0, 1, 1], [], []>} : vector<32x32xbf16>, vector<32x32xbf16>, vector<32x32xf32> -> vector<32x32xf32>
    %c0_36 = arith.constant 0 : index
    %c0_37 = arith.constant 0 : index
    %151 = vector.load %arg9[%c0_36, %c0_37] : memref<1x32xf32, #tpu.memory_space<vmem>>, vector<1x32xf32>
    %152 = vector.broadcast %151 : vector<1x32xf32> to vector<32x32xf32>
    %153 = arith.addf %150, %152 : vector<32x32xf32>
    %cst_38 = arith.constant 0.000000e+00 : f32
    %154 = vector.broadcast %cst_38 : f32 to vector<32x32xf32>
    %155 = arith.maximumf %153, %154 : vector<32x32xf32>
    %156 = arith.truncf %155 : vector<32x32xf32> to vector<32x32xbf16>
    %c0_39 = arith.constant 0 : index
    %c0_40 = arith.constant 0 : index
    %157 = vector.load %arg10[%c0_39, %c0_40] : memref<32x128xbf16, #tpu.memory_space<vmem>>, vector<32x128xbf16>
    %cst_41 = arith.constant dense<0.000000e+00> : vector<32x128xf32>
    %158 = tpu.matmul %156, %157, %cst_41 {dimension_numbers = #tpu.dot_dimension_numbers<[1], [0], [0], [1], [0, 0, 1, 1], [], []>} : vector<32x32xbf16>, vector<32x128xbf16>, vector<32x128xf32> -> vector<32x128xf32>
    %c0_42 = arith.constant 0 : index
    %c0_43 = arith.constant 0 : index
    %159 = vector.load %arg11[%c0_42, %c0_43] : memref<1x128xf32, #tpu.memory_space<vmem>>, vector<1x128xf32>
    %160 = vector.broadcast %159 : vector<1x128xf32> to vector<32x128xf32>
    %161 = arith.addf %158, %160 : vector<32x128xf32>
    %cst_44 = arith.constant dense<0xFF800000> : vector<32xf32>
    %162 = vector.multi_reduction <maximumf>, %161, %cst_44 [1] : vector<32x128xf32> to vector<32xf32>
    %163 = vector.shape_cast %162 : vector<32xf32> to vector<32x1xf32>
    %164 = vector.broadcast %163 : vector<32x1xf32> to vector<32x128xf32>
    %165 = arith.subf %161, %164 : vector<32x128xf32>
    %166 = math.exp %165 : vector<32x128xf32>
    %cst_45 = arith.constant dense<0.000000e+00> : vector<32xf32>
    %167 = vector.multi_reduction <add>, %166, %cst_45 [1] : vector<32x128xf32> to vector<32xf32>
    %168 = vector.shape_cast %167 : vector<32xf32> to vector<32x1xf32>
    %169 = math.log %168 : vector<32x1xf32>
    %170 = arith.addf %163, %169 : vector<32x1xf32>
    %171 = vector.broadcast %170 : vector<32x1xf32> to vector<32x128xf32>
    %172 = arith.subf %161, %171 : vector<32x128xf32>
    %c0_46 = arith.constant 0 : index
    %c0_47 = arith.constant 0 : index
    %173 = vector.load %arg12[%c0_46, %c0_47] : memref<32x128xf32, #tpu.memory_space<vmem>>, vector<32x128xf32>
    tpu.vector_store %arg12[%c0_46, %c0_47], %172 {strides = array<i32>} : memref<32x128xf32, #tpu.memory_space<vmem>>, vector<32x128xf32>,
    return
  }
  func.func @transform_0(%arg0: i32) -> (i32, i32) {
    %c0_i32 = arith.constant 0 : i32
    %c0_i32_0 = arith.constant 0 : i32
    return %arg0, %c0_i32 : i32, i32
  }
  func.func @transform_1(%arg0: i32) -> (i32, i32, i32) {
    %c0_i32 = arith.constant 0 : i32
    %c0_i32_0 = arith.constant 0 : i32
    %c0_i32_1 = arith.constant 0 : i32
    %c0_i32_2 = arith.constant 0 : i32
    return %c0_i32, %c0_i32_0, %c0_i32_1 : i32, i32, i32
  }
  func.func @transform_2(%arg0: i32) -> (i32, i32) {
    %c0_i32 = arith.constant 0 : i32
    %c0_i32_0 = arith.constant 0 : i32
    %c0_i32_1 = arith.constant 0 : i32
    return %c0_i32, %c0_i32_0 : i32, i32
  }
  func.func @transform_3(%arg0: i32) -> (i32, i32) {
    %c0_i32 = arith.constant 0 : i32
    %c0_i32_0 = arith.constant 0 : i32
    %c0_i32_1 = arith.constant 0 : i32
    return %c0_i32, %c0_i32_0 : i32, i32
  }
  func.func @transform_4(%arg0: i32) -> (i32, i32) {
    %c0_i32 = arith.constant 0 : i32
    %c0_i32_0 = arith.constant 0 : i32
    %c0_i32_1 = arith.constant 0 : i32
    return %c0_i32, %c0_i32_0 : i32, i32
  }
  func.func @transform_5(%arg0: i32) -> (i32, i32) {
    %c0_i32 = arith.constant 0 : i32
    %c0_i32_0 = arith.constant 0 : i32
    %c0_i32_1 = arith.constant 0 : i32
    return %c0_i32, %c0_i32_0 : i32, i32
  }
  func.func @transform_6(%arg0: i32) -> (i32, i32) {
    %c0_i32 = arith.constant 0 : i32
    %c0_i32_0 = arith.constant 0 : i32
    %c0_i32_1 = arith.constant 0 : i32
    return %c0_i32, %c0_i32_0 : i32, i32
  }
  func.func @transform_7(%arg0: i32) -> (i32, i32) {
    %c0_i32 = arith.constant 0 : i32
    %c0_i32_0 = arith.constant 0 : i32
    %c0_i32_1 = arith.constant 0 : i32
    return %c0_i32, %c0_i32_0 : i32, i32
  }
  func.func @transform_8(%arg0: i32) -> (i32, i32) {
    %c0_i32 = arith.constant 0 : i32
    %c0_i32_0 = arith.constant 0 : i32
    %c0_i32_1 = arith.constant 0 : i32
    return %c0_i32, %c0_i32_0 : i32, i32
  }
  func.func @transform_9(%arg0: i32) -> (i32, i32) {
    %c0_i32 = arith.constant 0 : i32
    %c0_i32_0 = arith.constant 0 : i32
    %c0_i32_1 = arith.constant 0 : i32
    return %c0_i32, %c0_i32_0 : i32, i32
  }
  func.func @transform_10(%arg0: i32) -> (i32, i32) {
    %c0_i32 = arith.constant 0 : i32
    %c0_i32_0 = arith.constant 0 : i32
    %c0_i32_1 = arith.constant 0 : i32
    return %c0_i32, %c0_i32_0 : i32, i32
  }
  func.func @transform_11(%arg0: i32) -> (i32, i32) {
    %c0_i32 = arith.constant 0 : i32
    %c0_i32_0 = arith.constant 0 : i32
    return %arg0, %c0_i32 : i32, i32
  }
}

</mosaic_0001>

<llo_original>
// kernel: _lambda_.1
$region0: #{_lambda_.1}
  #allocation0 [shape = 'u32[]', space=smem, size = 0x4, offset = 0x4, fixed_abs, tag = 'smem constant byte address 0x4 - core index']
  #allocation1 [shape = 'u32[144,128]{1,0:T(1,128)}', space=vmem, size = 0x12000, scoped, tag = 'internal scratch']
  %s0 = inlined_call_operand.vmem [shape: f32[1792,28], index: 0, kind: input, shape index: {}]
  %s1 = inlined_call_operand.vmem [shape: bf16[3,28,512], index: 1, kind: input, shape index: {}]
  %s2 = inlined_call_operand.vmem [shape: f32[1,512], index: 2, kind: input, shape index: {}]
  %s3 = inlined_call_operand.vmem [shape: bf16[768,512], index: 3, kind: input, shape index: {}]
  %s4 = inlined_call_operand.vmem [shape: f32[1,512], index: 4, kind: input, shape index: {}]
  %s5 = inlined_call_operand.vmem [shape: bf16[1792,32], index: 5, kind: input, shape index: {}]
  %s6 = inlined_call_operand.vmem [shape: f32[1,32], index: 6, kind: input, shape index: {}]
  %s7 = inlined_call_operand.vmem [shape: bf16[32,32], index: 7, kind: input, shape index: {}]
  %s8 = inlined_call_operand.vmem [shape: f32[1,32], index: 8, kind: input, shape index: {}]
  %s9 = inlined_call_operand.vmem [shape: bf16[32,128], index: 9, kind: input, shape index: {}]
  %s10 = inlined_call_operand.vmem [shape: f32[1,128], index: 10, kind: input, shape index: {}]
  %s11 = inlined_call_operand.vmem [shape: f32[64,128], index: 11, kind: output, shape index: {}]
  %s12 = sld [smem:[#allocation0]]
  $region77: #{_lambda_.1} parent=0
    _
  %s14 = ssub.s32 1, %s12
  %s15 = scalar_select 0, %s14, %s12
  loop: start=0, step=1, limit=4
  $region2: #{_lambda_.1} parent=0 // loop_pre_header
    _
  $region3: #{_lambda_.1} parent=0 // loop_header
    %s17 = sphi 0, %s21
    %p18 = scmp.ge.s32.totalorder %s17, 4
    %s27 = sphi 0, %s29
    %s30 = sphi 0, %s27
    %s31 = sphi 0, %s30
    %s47 = sphi 0, %s31
    %s51 = sphi 0, %s51
    %s53 = sphi 0, %s51
    %s54 = sphi 0, %s53
    %s68 = sphi 0, %s54
    %s72 = sphi 0, %s72
    %s74 = sphi 0, %s72
    %s75 = sphi 0, %s74
    %s89 = sphi 0, %s75
    %s93 = sphi 0, %s93
    %s95 = sphi 0, %s93
    %s96 = sphi 0, %s95
    %s110 = sphi 0, %s96
    %s114 = sphi 0, %s114
    %s116 = sphi 0, %s114
    %s117 = sphi 0, %s116
    %s131 = sphi 0, %s117
    %s135 = sphi 0, %s135
    %s137 = sphi 0, %s135
    %s138 = sphi 0, %s137
    %s152 = sphi 0, %s138
    %s156 = sphi 0, %s156
    %s158 = sphi 0, %s156
    %s159 = sphi 0, %s158
    %s173 = sphi 0, %s159
    %s177 = sphi 0, %s177
    %s179 = sphi 0, %s177
    %s180 = sphi 0, %s179
    %s194 = sphi 0, %s180
    %s198 = sphi 0, %s198
    %s200 = sphi 0, %s198
    %s201 = sphi 0, %s200
    %s215 = sphi 0, %s201
    %s219 = sphi 0, %s219
    %s221 = sphi 0, %s219
    %s222 = sphi 0, %s221
    %s236 = sphi 0, %s222
    %s240 = sphi 0, %s240
    %s242 = sphi 0, %s240
    %s243 = sphi 0, %s242
    %s257 = sphi 0, %s243
    %s263 = sphi 0, %s265
    %s266 = sphi 0, %s263
    %s267 = sphi 0, %s266
    %s283 = sphi 0, %s267
  $region4: #{_lambda_.1} parent=0 // loop_header_branch
    %20 = sbr.rel (%p18) target = $region8
  $region5: #{_lambda_.1} parent=0 // loop_body
    %s22 = ssub.s32 %s17, 1
    %s23 = ssub.s32 %s17, 2
    %s24 = sadd.s32 %s17, 1
    %s25 = ssub.s32 %s17, %s24
    %p26 = scmp.eq.s32.totalorder %s25, 0
    %s28 = sadd.s32 %s27, 1
    %s29 = scalar_select %p26, %s27, %s28
    %p32 = pneg %p26
    %p33 = scmp.eq.s32.totalorder %s17, 1
    %p34 = por %p32, %p33
    %p35 = scmp.ne.s32.totalorder %s27, %s30
    %p36 = scmp.eq.s32.totalorder %s17, 0
    %p37 = por %p35, %p36
    %p38 = scmp.ne.s32.totalorder %s27, %s30
    %p39 = scmp.eq.s32.totalorder %s22, 1
    %p40 = por %p38, %p39
    %p41 = scmp.ne.s32.totalorder %s30, %s31
    %p42 = scmp.eq.s32.totalorder %s22, 0
    %p43 = por %p41, %p42
    %p44 = scmp.ne.s32.totalorder %s30, %s31
    %p45 = scmp.eq.s32.totalorder %s23, 1
    %p46 = por %p44, %p45
    %p48 = scmp.ne.s32.totalorder %s31, %s47
    %p49 = scmp.eq.s32.totalorder %s23, 0
    %p50 = por %p48, %p49
    %s52 = sadd.s32 %s51, 1
    %p55 = scmp.eq.s32.totalorder %s17, 1
    %p56 = scmp.ne.s32.totalorder %s51, %s53
    %p57 = scmp.eq.s32.totalorder %s17, 0
    %p58 = por %p56, %p57
    %p59 = scmp.ne.s32.totalorder %s51, %s53
    %p60 = scmp.eq.s32.totalorder %s22, 1
    %p61 = por %p59, %p60
    %p62 = scmp.ne.s32.totalorder %s53, %s54
    %p63 = scmp.eq.s32.totalorder %s22, 0
    %p64 = por %p62, %p63
    %p65 = scmp.ne.s32.totalorder %s53, %s54
    %p66 = scmp.eq.s32.totalorder %s23, 1
    %p67 = por %p65, %p66
    %p69 = scmp.ne.s32.totalorder %s54, %s68
    %p70 = scmp.eq.s32.totalorder %s23, 0
    %p71 = por %p69, %p70
    %s73 = sadd.s32 %s72, 1
    %p76 = scmp.eq.s32.totalorder %s17, 1
    %p77 = scmp.ne.s32.totalorder %s72, %s74
    %p78 = scmp.eq.s32.totalorder %s17, 0
    %p79 = por %p77, %p78
    %p80 = scmp.ne.s32.totalorder %s72, %s74
    %p81 = scmp.eq.s32.totalorder %s22, 1
    %p82 = por %p80, %p81
    %p83 = scmp.ne.s32.totalorder %s74, %s75
    %p84 = scmp.eq.s32.totalorder %s22, 0
    %p85 = por %p83, %p84
    %p86 = scmp.ne.s32.totalorder %s74, %s75
    %p87 = scmp.eq.s32.totalorder %s23, 1
    %p88 = por %p86, %p87
    %p90 = scmp.ne.s32.totalorder %s75, %s89
    %p91 = scmp.eq.s32.totalorder %s23, 0
    %p92 = por %p90, %p91
    %s94 = sadd.s32 %s93, 1
    %p97 = scmp.eq.s32.totalorder %s17, 1
    %p98 = scmp.ne.s32.totalorder %s93, %s95
    %p99 = scmp.eq.s32.totalorder %s17, 0
    %p100 = por %p98, %p99
    %p101 = scmp.ne.s32.totalorder %s93, %s95
    %p102 = scmp.eq.s32.totalorder %s22, 1
    %p103 = por %p101, %p102
    %p104 = scmp.ne.s32.totalorder %s95, %s96
    %p105 = scmp.eq.s32.totalorder %s22, 0
    %p106 = por %p104, %p105
    %p107 = scmp.ne.s32.totalorder %s95, %s96
    %p108 = scmp.eq.s32.totalorder %s23, 1
    %p109 = por %p107, %p108
    %p111 = scmp.ne.s32.totalorder %s96, %s110
    %p112 = scmp.eq.s32.totalorder %s23, 0
    %p113 = por %p111, %p112
    %s115 = sadd.s32 %s114, 1
    %p118 = scmp.eq.s32.totalorder %s17, 1
    %p119 = scmp.ne.s32.totalorder %s114, %s116
    %p120 = scmp.eq.s32.totalorder %s17, 0
    %p121 = por %p119, %p120
    %p122 = scmp.ne.s32.totalorder %s114, %s116
    %p123 = scmp.eq.s32.totalorder %s22, 1
    %p124 = por %p122, %p123
    %p125 = scmp.ne.s32.totalorder %s116, %s117
    %p126 = scmp.eq.s32.totalorder %s22, 0
    %p127 = por %p125, %p126
    %p128 = scmp.ne.s32.totalorder %s116, %s117
    %p129 = scmp.eq.s32.totalorder %s23, 1
    %p130 = por %p128, %p129
    %p132 = scmp.ne.s32.totalorder %s117, %s131
    %p133 = scmp.eq.s32.totalorder %s23, 0
    %p134 = por %p132, %p133
    %s136 = sadd.s32 %s135, 1
    %p139 = scmp.eq.s32.totalorder %s17, 1
    %p140 = scmp.ne.s32.totalorder %s135, %s137
    %p141 = scmp.eq.s32.totalorder %s17, 0
    %p142 = por %p140, %p141
    %p143 = scmp.ne.s32.totalorder %s135, %s137
    %p144 = scmp.eq.s32.totalorder %s22, 1
    %p145 = por %p143, %p144
    %p146 = scmp.ne.s32.totalorder %s137, %s138
    %p147 = scmp.eq.s32.totalorder %s22, 0
    %p148 = por %p146, %p147
    %p149 = scmp.ne.s32.totalorder %s137, %s138
    %p150 = scmp.eq.s32.totalorder %s23, 1
    %p151 = por %p149, %p150
    %p153 = scmp.ne.s32.totalorder %s138, %s152
    %p154 = scmp.eq.s32.totalorder %s23, 0
    %p155 = por %p153, %p154
    %s157 = sadd.s32 %s156, 1
    %p160 = scmp.eq.s32.totalorder %s17, 1
    %p161 = scmp.ne.s32.totalorder %s156, %s158
    %p162 = scmp.eq.s32.totalorder %s17, 0
    %p163 = por %p161, %p162
    %p164 = scmp.ne.s32.totalorder %s156, %s158
    %p165 = scmp.eq.s32.totalorder %s22, 1
    %p166 = por %p164, %p165
    %p167 = scmp.ne.s32.totalorder %s158, %s159
    %p168 = scmp.eq.s32.totalorder %s22, 0
    %p169 = por %p167, %p168
    %p170 = scmp.ne.s32.totalorder %s158, %s159
    %p171 = scmp.eq.s32.totalorder %s23, 1
    %p172 = por %p170, %p171
    %p174 = scmp.ne.s32.totalorder %s159, %s173
    %p175 = scmp.eq.s32.totalorder %s23, 0
    %p176 = por %p174, %p175
    %s178 = sadd.s32 %s177, 1
    %p181 = scmp.eq.s32.totalorder %s17, 1
    %p182 = scmp.ne.s32.totalorder %s177, %s179
    %p183 = scmp.eq.s32.totalorder %s17, 0
    %p184 = por %p182, %p183
    %p185 = scmp.ne.s32.totalorder %s177, %s179
    %p186 = scmp.eq.s32.totalorder %s22, 1
    %p187 = por %p185, %p186
    %p188 = scmp.ne.s32.totalorder %s179, %s180
    %p189 = scmp.eq.s32.totalorder %s22, 0
    %p190 = por %p188, %p189
    %p191 = scmp.ne.s32.totalorder %s179, %s180
    %p192 = scmp.eq.s32.totalorder %s23, 1
    %p193 = por %p191, %p192
    %p195 = scmp.ne.s32.totalorder %s180, %s194
    %p196 = scmp.eq.s32.totalorder %s23, 0
    %p197 = por %p195, %p196
    %s199 = sadd.s32 %s198, 1
    %p202 = scmp.eq.s32.totalorder %s17, 1
    %p203 = scmp.ne.s32.totalorder %s198, %s200
    %p204 = scmp.eq.s32.totalorder %s17, 0
    %p205 = por %p203, %p204
    %p206 = scmp.ne.s32.totalorder %s198, %s200
    %p207 = scmp.eq.s32.totalorder %s22, 1
    %p208 = por %p206, %p207
    %p209 = scmp.ne.s32.totalorder %s200, %s201
    %p210 = scmp.eq.s32.totalorder %s22, 0
    %p211 = por %p209, %p210
    %p212 = scmp.ne.s32.totalorder %s200, %s201
    %p213 = scmp.eq.s32.totalorder %s23, 1
    %p214 = por %p212, %p213
    %p216 = scmp.ne.s32.totalorder %s201, %s215
    %p217 = scmp.eq.s32.totalorder %s23, 0
    %p218 = por %p216, %p217
    %s220 = sadd.s32 %s219, 1
    %p223 = scmp.eq.s32.totalorder %s17, 1
    %p224 = scmp.ne.s32.totalorder %s219, %s221
    %p225 = scmp.eq.s32.totalorder %s17, 0
    %p226 = por %p224, %p225
    %p227 = scmp.ne.s32.totalorder %s219, %s221
    %p228 = scmp.eq.s32.totalorder %s22, 1
    %p229 = por %p227, %p228
    %p230 = scmp.ne.s32.totalorder %s221, %s222
    %p231 = scmp.eq.s32.totalorder %s22, 0
    %p232 = por %p230, %p231
    %p233 = scmp.ne.s32.totalorder %s221, %s222
    %p234 = scmp.eq.s32.totalorder %s23, 1
    %p235 = por %p233, %p234
    %p237 = scmp.ne.s32.totalorder %s222, %s236
    %p238 = scmp.eq.s32.totalorder %s23, 0
    %p239 = por %p237, %p238
    %s241 = sadd.s32 %s240, 1
    %p244 = scmp.eq.s32.totalorder %s17, 1
    %p245 = scmp.ne.s32.totalorder %s240, %s242
    %p246 = scmp.eq.s32.totalorder %s17, 0
    %p247 = por %p245, %p246
    %p248 = scmp.ne.s32.totalorder %s240, %s242
    %p249 = scmp.eq.s32.totalorder %s22, 1
    %p250 = por %p248, %p249
    %p251 = scmp.ne.s32.totalorder %s242, %s243
    %p252 = scmp.eq.s32.totalorder %s22, 0
    %p253 = por %p251, %p252
    %p254 = scmp.ne.s32.totalorder %s242, %s243
    %p255 = scmp.eq.s32.totalorder %s23, 1
    %p256 = por %p254, %p255
    %p258 = scmp.ne.s32.totalorder %s243, %s257
    %p259 = scmp.eq.s32.totalorder %s23, 0
    %p260 = por %p258, %p259
    %s261 = ssub.s32 %s17, %s24
    %p262 = scmp.eq.s32.totalorder %s261, 0
    %s264 = sadd.s32 %s263, 1
    %s265 = scalar_select %p262, %s263, %s264
    %p268 = pneg %p262
    %p269 = scmp.eq.s32.totalorder %s17, 1
    %p270 = por %p268, %p269
    %p271 = scmp.ne.s32.totalorder %s263, %s266
    %p272 = scmp.eq.s32.totalorder %s17, 0
    %p273 = por %p271, %p272
    %p274 = scmp.ne.s32.totalorder %s263, %s266
    %p275 = scmp.eq.s32.totalorder %s22, 1
    %p276 = por %p274, %p275
    %p277 = scmp.ne.s32.totalorder %s266, %s267
    %p278 = scmp.eq.s32.totalorder %s22, 0
    %p279 = por %p277, %p278
    %p280 = scmp.ne.s32.totalorder %s266, %s267
    %p281 = scmp.eq.s32.totalorder %s23, 1
    %p282 = por %p280, %p281
    %p284 = scmp.ne.s32.totalorder %s267, %s283
    %p285 = scmp.eq.s32.totalorder %s23, 0
    %p286 = por %p284, %p285
    %p287 = scmp.le.s32.totalorder 1, %s17
    %p288 = scmp.lt.s32.totalorder %s17, 3
    %p289 = pnand %p287, %p288
    %p290 = pneg %p289
    // Predicated region
    $region9: #{_lambda_.1} parent=5 // pred_check
      _
    $region10: #{_lambda_.1} parent=5 // pred_check_branch
      %292 = sbr.rel (%p289) target = $region12
    $region11: #{_lambda_.1} parent=5 // pred_region
      %s293 = ssub.s32 %s17, 1
      // Predicated region
      $region13: #{_lambda_.1} parent=11 // pred_check
        %p294 = pneg %p64
      $region14: #{_lambda_.1} parent=11 // pred_check_branch
        %296 = sbr.rel (%p294) target = $region16
      $region15: #{_lambda_.1} parent=11 // pred_region
        _
      $region16: #{_lambda_.1} parent=11 // pred_fallthru
        _
      // Predicated region
      $region17: #{_lambda_.1} parent=11 // pred_check
        %p297 = pneg %p85
      $region18: #{_lambda_.1} parent=11 // pred_check_branch
        %299 = sbr.rel (%p297) target = $region20
      $region19: #{_lambda_.1} parent=11 // pred_region
        _
      $region20: #{_lambda_.1} parent=11 // pred_fallthru
        _
      // Predicated region
      $region21: #{_lambda_.1} parent=11 // pred_check
        %p300 = pneg %p106
      $region22: #{_lambda_.1} parent=11 // pred_check_branch
        %302 = sbr.rel (%p300) target = $region24
      $region23: #{_lambda_.1} parent=11 // pred_region
        _
      $region24: #{_lambda_.1} parent=11 // pred_fallthru
        _
      // Predicated region
      $region25: #{_lambda_.1} parent=11 // pred_check
        %p303 = pneg %p127
      $region26: #{_lambda_.1} parent=11 // pred_check_branch
        %305 = sbr.rel (%p303) target = $region28
      $region27: #{_lambda_.1} parent=11 // pred_region
        _
      $region28: #{_lambda_.1} parent=11 // pred_fallthru
        _
      // Predicated region
      $region29: #{_lambda_.1} parent=11 // pred_check
        %p306 = pneg %p148
      $region30: #{_lambda_.1} parent=11 // pred_check_branch
        %308 = sbr.rel (%p306) target = $region32
      $region31: #{_lambda_.1} parent=11 // pred_region
        _
      $region32: #{_lambda_.1} parent=11 // pred_fallthru
        _
      // Predicated region
      $region33: #{_lambda_.1} parent=11 // pred_check
        %p309 = pneg %p169
      $region34: #{_lambda_.1} parent=11 // pred_check_branch
        %311 = sbr.rel (%p309) target = $region36
      $region35: #{_lambda_.1} parent=11 // pred_region
        _
      $region36: #{_lambda_.1} parent=11 // pred_fallthru
        _
      // Predicated region
      $region37: #{_lambda_.1} parent=11 // pred_check
        %p312 = pneg %p190
      $region38: #{_lambda_.1} parent=11 // pred_check_branch
        %314 = sbr.rel (%p312) target = $region40
      $region39: #{_lambda_.1} parent=11 // pred_region
        _
      $region40: #{_lambda_.1} parent=11 // pred_fallthru
        _
      // Predicated region
      $region41: #{_lambda_.1} parent=11 // pred_check
        %p315 = pneg %p211
      $region42: #{_lambda_.1} parent=11 // pred_check_branch
        %317 = sbr.rel (%p315) target = $region44
      $region43: #{_lambda_.1} parent=11 // pred_region
        _
      $region44: #{_lambda_.1} parent=11 // pred_fallthru
        _
      // Predicated region
      $region45: #{_lambda_.1} parent=11 // pred_check
        %p318 = pneg %p232
      $region46: #{_lambda_.1} parent=11 // pred_check_branch
        %320 = sbr.rel (%p318) target = $region48
      $region47: #{_lambda_.1} parent=11 // pred_region
        _
      $region48: #{_lambda_.1} parent=11 // pred_fallthru
        _
      // Predicated region
      $region49: #{_lambda_.1} parent=11 // pred_check
        %p321 = pneg %p253
      $region50: #{_lambda_.1} parent=11 // pred_check_branch
        %323 = sbr.rel (%p321) target = $region52
      $region51: #{_lambda_.1} parent=11 // pred_region
        _
      $region52: #{_lambda_.1} parent=11 // pred_fallthru
        _
    $region12: #{_lambda_.1} parent=5 // pred_fallthru
      _
    %p324 = scmp.lt.s32.totalorder %s17, 2
    // Predicated region
    $region53: #{_lambda_.1} parent=5 // pred_check
      %p325 = pneg %p324
    $region54: #{_lambda_.1} parent=5 // pred_check_branch
      %327 = sbr.rel (%p325) target = $region56
    $region55: #{_lambda_.1} parent=5 // pred_region
      // Predicated region
      $region57: #{_lambda_.1} parent=55 // pred_check
        %p328 = pneg %p37
      $region58: #{_lambda_.1} parent=55 // pred_check_branch
        %330 = sbr.rel (%p328) target = $region60
      $region59: #{_lambda_.1} parent=55 // pred_region
        %s331 = smul.u32 112, %s17
        %p332 = scmp.lt.s32.totalorder %s331, 223
        %s333 = scalar_select %p332, %s331, 223
        %s334 = smul.addr %s333, 8
        %s335 = scalar_lea.vmem %s0, %s334
        %s336 = smul.u32 112, %s17
      $region60: #{_lambda_.1} parent=55 // pred_fallthru
        _
    $region56: #{_lambda_.1} parent=5 // pred_fallthru
      _
    %p337 = scmp.le.s32.totalorder 1, %s17
    %p338 = scmp.lt.s32.totalorder %s17, 3
    %p339 = pnand %p337, %p338
    %p340 = pneg %p339
    // Predicated region
    $region61: #{_lambda_.1} parent=5 // pred_check
      _
    $region62: #{_lambda_.1} parent=5 // pred_check_branch
      %342 = sbr.rel (%p339) target = $region64
    $region63: #{_lambda_.1} parent=5 // pred_region
      %s343 = ssub.s32 %s17, 1
      %s344 = smul.u32 112, %s22
      %p345 = scmp.lt.s32.totalorder %s344, 223
      %s346 = scalar_select %p345, %s344, 223
      %s347 = smul.addr %s346, 8
      %s348 = scalar_lea.vmem %s0, %s347
      %p349 = pneg %p43
      %p350 = pneg %p40
      %p351 = pneg %p64
      %p352 = pneg %p61
      %p353 = pneg %p85
      %p354 = pneg %p82
      %p355 = pneg %p106
      %p356 = pneg %p103
      %p357 = pneg %p127
      %p358 = pneg %p124
      %p359 = pneg %p148
      %p360 = pneg %p145
      %p361 = pneg %p169
      %p362 = pneg %p166
      %p363 = pneg %p190
      %p364 = pneg %p187
      %p365 = pneg %p211
      %p366 = pneg %p208
      %p367 = pneg %p232
      %p368 = pneg %p229
      %p369 = pneg %p253
      %p370 = pneg %p250
      %p371 = pneg %p279
      %p372 = pneg %p276
      %s373 = smul.u32 4, %s22
      %p374 = scmp.lt.s32.totalorder %s373, 7
      %s375 = scalar_select %p374, %s373, 7
      %s376 = smul.addr %s375, 8
      %s377 = scalar_lea.vmem %s11, %s376
      %s378 = smul.u32 112, %s22
      %p379 = scmp.lt.s32.totalorder %s378, 223
      %s380 = scalar_select %p379, %s378, 223
      %s381 = smul.addr %s380, 8
      %s382 = scalar_lea.vmem %s0, %s381
      %s383 = smul.u32 112, %s22
      %s384 = smul.u32 4, %s22
      %p385 = scmp.lt.s32.totalorder %s384, 7
      %s386 = scalar_select %p385, %s384, 7
      %s387 = smul.addr %s386, 8
      %s388 = scalar_lea.vmem %s11, %s387
      %s389 = smul.u32 4, %s22
      %v391 = vld [vmem:[%s382] sm:$0xff]
      %v392 = vld [vmem:[%s382 + $0x8] sm:$0xff]
      %v393 = vld [vmem:[%s382 + $0x10] sm:$0xff]
      %v394 = vld [vmem:[%s382 + $0x18] sm:$0xff]
      %v395 = vld [vmem:[%s382 + $0x20] sm:$0xff]
      %v396 = vld [vmem:[%s382 + $0x28] sm:$0xff]
      %v397 = vld [vmem:[%s382 + $0x30] sm:$0xff]
      %v398 = vld [vmem:[%s382 + $0x38] sm:$0xff]
      %v399 = vld [vmem:[%s382 + $0x40] sm:$0xff]
      %v400 = vld [vmem:[%s382 + $0x48] sm:$0xff]
      %v401 = vld [vmem:[%s382 + $0x50] sm:$0xff]
      %v402 = vld [vmem:[%s382 + $0x58] sm:$0xff]
      %v403 = vld [vmem:[%s382 + $0x60] sm:$0xff]
      %v404 = vld [vmem:[%s382 + $0x68] sm:$0xff]
      %v405 = vld [vmem:[%s382 + $0x70] sm:$0xff]
      %v406 = vld [vmem:[%s382 + $0x78] sm:$0xff]
      %v407 = vld [vmem:[%s382 + $0x80] sm:$0xff]
      %v408 = vld [vmem:[%s382 + $0x88] sm:$0xff]
      %v409 = vld [vmem:[%s382 + $0x90] sm:$0xff]
      %v410 = vld [vmem:[%s382 + $0x98] sm:$0xff]
      %v411 = vld [vmem:[%s382 + $0xa0] sm:$0xff]
      %v412 = vld [vmem:[%s382 + $0xa8] sm:$0xff]
      %v413 = vld [vmem:[%s382 + $0xb0] sm:$0xff]
      %v414 = vld [vmem:[%s382 + $0xb8] sm:$0xff]
      %v415 = vld [vmem:[%s382 + $0xc0] sm:$0xff]
      %v416 = vld [vmem:[%s382 + $0xc8] sm:$0xff]
      %v417 = vld [vmem:[%s382 + $0xd0] sm:$0xff]
      %v418 = vld [vmem:[%s382 + $0xd8] sm:$0xff]
      %v419 = vld [vmem:[%s382 + $0xe0] sm:$0xff]
      %v420 = vld [vmem:[%s382 + $0xe8] sm:$0xff]
      %v421 = vld [vmem:[%s382 + $0xf0] sm:$0xff]
      %v422 = vld [vmem:[%s382 + $0xf8] sm:$0xff]
      %v423 = vld [vmem:[%s382 + $0x100] sm:$0xff]
      %v424 = vld [vmem:[%s382 + $0x108] sm:$0xff]
      %v425 = vld [vmem:[%s382 + $0x110] sm:$0xff]
      %v426 = vld [vmem:[%s382 + $0x118] sm:$0xff]
      %v427 = vld [vmem:[%s382 + $0x120] sm:$0xff]
      %v428 = vld [vmem:[%s382 + $0x128] sm:$0xff]
      %v429 = vld [vmem:[%s382 + $0x130] sm:$0xff]
      %v430 = vld [vmem:[%s382 + $0x138] sm:$0xff]
      %v431 = vld [vmem:[%s382 + $0x140] sm:$0xff]
      %v432 = vld [vmem:[%s382 + $0x148] sm:$0xff]
      %v433 = vld [vmem:[%s382 + $0x150] sm:$0xff]
      %v434 = vld [vmem:[%s382 + $0x158] sm:$0xff]
      %v435 = vld [vmem:[%s382 + $0x160] sm:$0xff]
      %v436 = vld [vmem:[%s382 + $0x168] sm:$0xff]
      %v437 = vld [vmem:[%s382 + $0x170] sm:$0xff]
      %v438 = vld [vmem:[%s382 + $0x178] sm:$0xff]
      %v439 = vld [vmem:[%s382 + $0x180] sm:$0xff]
      %v440 = vld [vmem:[%s382 + $0x188] sm:$0xff]
      %v441 = vld [vmem:[%s382 + $0x190] sm:$0xff]
      %v442 = vld [vmem:[%s382 + $0x198] sm:$0xff]
      %v443 = vld [vmem:[%s382 + $0x1a0] sm:$0xff]
      %v444 = vld [vmem:[%s382 + $0x1a8] sm:$0xff]
      %v445 = vld [vmem:[%s382 + $0x1b0] sm:$0xff]
      %v446 = vld [vmem:[%s382 + $0x1b8] sm:$0xff]
      %v447 = vld [vmem:[%s382 + $0x1c0] sm:$0xff]
      %v448 = vld [vmem:[%s382 + $0x1c8] sm:$0xff]
      %v449 = vld [vmem:[%s382 + $0x1d0] sm:$0xff]
      %v450 = vld [vmem:[%s382 + $0x1d8] sm:$0xff]
      %v451 = vld [vmem:[%s382 + $0x1e0] sm:$0xff]
      %v452 = vld [vmem:[%s382 + $0x1e8] sm:$0xff]
      %v453 = vld [vmem:[%s382 + $0x1f0] sm:$0xff]
      %v454 = vld [vmem:[%s382 + $0x1f8] sm:$0xff]
      %v455 = vld [vmem:[%s382 + $0x200] sm:$0xff]
      %v456 = vld [vmem:[%s382 + $0x208] sm:$0xff]
      %v457 = vld [vmem:[%s382 + $0x210] sm:$0xff]
      %v458 = vld [vmem:[%s382 + $0x218] sm:$0xff]
      %v459 = vld [vmem:[%s382 + $0x220] sm:$0xff]
      %v460 = vld [vmem:[%s382 + $0x228] sm:$0xff]
      %v461 = vld [vmem:[%s382 + $0x230] sm:$0xff]
      %v462 = vld [vmem:[%s382 + $0x238] sm:$0xff]
      %v463 = vld [vmem:[%s382 + $0x240] sm:$0xff]
      %v464 = vld [vmem:[%s382 + $0x248] sm:$0xff]
      %v465 = vld [vmem:[%s382 + $0x250] sm:$0xff]
      %v466 = vld [vmem:[%s382 + $0x258] sm:$0xff]
      %v467 = vld [vmem:[%s382 + $0x260] sm:$0xff]
      %v468 = vld [vmem:[%s382 + $0x268] sm:$0xff]
      %v469 = vld [vmem:[%s382 + $0x270] sm:$0xff]
      %v470 = vld [vmem:[%s382 + $0x278] sm:$0xff]
      %v471 = vld [vmem:[%s382 + $0x280] sm:$0xff]
      %v472 = vld [vmem:[%s382 + $0x288] sm:$0xff]
      %v473 = vld [vmem:[%s382 + $0x290] sm:$0xff]
      %v474 = vld [vmem:[%s382 + $0x298] sm:$0xff]
      %v475 = vld [vmem:[%s382 + $0x2a0] sm:$0xff]
      %v476 = vld [vmem:[%s382 + $0x2a8] sm:$0xff]
      %v477 = vld [vmem:[%s382 + $0x2b0] sm:$0xff]
      %v478 = vld [vmem:[%s382 + $0x2b8] sm:$0xff]
      %v479 = vld [vmem:[%s382 + $0x2c0] sm:$0xff]
      %v480 = vld [vmem:[%s382 + $0x2c8] sm:$0xff]
      %v481 = vld [vmem:[%s382 + $0x2d0] sm:$0xff]
      %v482 = vld [vmem:[%s382 + $0x2d8] sm:$0xff]
      %v483 = vld [vmem:[%s382 + $0x2e0] sm:$0xff]
      %v484 = vld [vmem:[%s382 + $0x2e8] sm:$0xff]
      %v485 = vld [vmem:[%s382 + $0x2f0] sm:$0xff]
      %v486 = vld [vmem:[%s382 + $0x2f8] sm:$0xff]
      %v487 = vld [vmem:[%s382 + $0x300] sm:$0xff]
      %v488 = vld [vmem:[%s382 + $0x308] sm:$0xff]
      %v489 = vld [vmem:[%s382 + $0x310] sm:$0xff]
      %v490 = vld [vmem:[%s382 + $0x318] sm:$0xff]
      %v491 = vld [vmem:[%s382 + $0x320] sm:$0xff]
      %v492 = vld [vmem:[%s382 + $0x328] sm:$0xff]
      %v493 = vld [vmem:[%s382 + $0x330] sm:$0xff]
      %v494 = vld [vmem:[%s382 + $0x338] sm:$0xff]
      %v495 = vld [vmem:[%s382 + $0x340] sm:$0xff]
      %v496 = vld [vmem:[%s382 + $0x348] sm:$0xff]
      %v497 = vld [vmem:[%s382 + $0x350] sm:$0xff]
      %v498 = vld [vmem:[%s382 + $0x358] sm:$0xff]
      %v499 = vld [vmem:[%s382 + $0x360] sm:$0xff]
      %v500 = vld [vmem:[%s382 + $0x368] sm:$0xff]
      %v501 = vld [vmem:[%s382 + $0x370] sm:$0xff]
      %v502 = vld [vmem:[%s382 + $0x378] sm:$0xff]
      %v503 = vpack.c.bf16 0.0, 0.0
      %v504 = vpack.c.bf16 %v392, %v391
      %v505 = vpack.c.bf16 %v394, %v393
      %v506 = vpack.c.bf16 %v396, %v395
      %v507 = vpack.c.bf16 %v398, %v397
      %v508 = vpack.c.bf16 %v400, %v399
      %v509 = vpack.c.bf16 %v402, %v401
      %v510 = vpack.c.bf16 %v404, %v403
      %v511 = vpack.c.bf16 %v406, %v405
      %v512 = vpack.c.bf16 %v408, %v407
      %v513 = vpack.c.bf16 %v410, %v409
      %v514 = vpack.c.bf16 %v412, %v411
      %v515 = vpack.c.bf16 %v414, %v413
      %v516 = vpack.c.bf16 %v416, %v415
      %v517 = vpack.c.bf16 %v418, %v417
      %v518 = vpack.c.bf16 %v420, %v419
      %v519 = vpack.c.bf16 %v422, %v421
      %v520 = vpack.c.bf16 %v424, %v423
      %v521 = vpack.c.bf16 %v426, %v425
      %v522 = vpack.c.bf16 %v428, %v427
      %v523 = vpack.c.bf16 %v430, %v429
      %v524 = vpack.c.bf16 %v432, %v431
      %v525 = vpack.c.bf16 %v434, %v433
      %v526 = vpack.c.bf16 %v436, %v435
      %v527 = vpack.c.bf16 %v438, %v437
      %v528 = vpack.c.bf16 %v440, %v439
      %v529 = vpack.c.bf16 %v442, %v441
      %v530 = vpack.c.bf16 %v444, %v443
      %v531 = vpack.c.bf16 %v446, %v445
      %v532 = vpack.c.bf16 %v448, %v447
      %v533 = vpack.c.bf16 %v450, %v449
      %v534 = vpack.c.bf16 %v452, %v451
      %v535 = vpack.c.bf16 %v454, %v453
      %v536 = vpack.c.bf16 %v456, %v455
      %v537 = vpack.c.bf16 %v458, %v457
      %v538 = vpack.c.bf16 %v460, %v459
      %v539 = vpack.c.bf16 %v462, %v461
      %v540 = vpack.c.bf16 %v464, %v463
      %v541 = vpack.c.bf16 %v466, %v465
      %v542 = vpack.c.bf16 %v468, %v467
      %v543 = vpack.c.bf16 %v470, %v469
      %v544 = vpack.c.bf16 %v472, %v471
      %v545 = vpack.c.bf16 %v474, %v473
      %v546 = vpack.c.bf16 %v476, %v475
      %v547 = vpack.c.bf16 %v478, %v477
      %v548 = vpack.c.bf16 %v480, %v479
      %v549 = vpack.c.bf16 %v482, %v481
      %v550 = vpack.c.bf16 %v484, %v483
      %v551 = vpack.c.bf16 %v486, %v485
      %v552 = vpack.c.bf16 %v488, %v487
      %v553 = vpack.c.bf16 %v490, %v489
      %v554 = vpack.c.bf16 %v492, %v491
      %v555 = vpack.c.bf16 %v494, %v493
      %v556 = vpack.c.bf16 %v496, %v495
      %v557 = vpack.c.bf16 %v498, %v497
      %v558 = vpack.c.bf16 %v500, %v499
      %v559 = vpack.c.bf16 %v502, %v501
      %v560 = vld [vmem:[%s1] sm:$0xff]
      %v561 = vld [vmem:[%s1 + $0x8] sm:$0xff]
      %v562 = vld [vmem:[%s1 + $0x10] sm:$0xff]
      %v563 = vld [vmem:[%s1 + $0x18] sm:$0xff]
      %v564 = vld [vmem:[%s1 + $0x20] sm:$0xff]
      %v565 = vld [vmem:[%s1 + $0x28] sm:$0xff]
      %v566 = vld [vmem:[%s1 + $0x30] sm:$0x33]
      %v567 = vld [vmem:[%s1 + $0x38] sm:$0x33]
      %s568 = scalar_lea.vmem %s1, 64
      %v569 = vld [vmem:[%s568] sm:$0xff]
      %v570 = vld [vmem:[%s568 + $0x8] sm:$0xff]
      %v571 = vld [vmem:[%s568 + $0x10] sm:$0xff]
      %v572 = vld [vmem:[%s568 + $0x18] sm:$0xff]
      %v573 = vld [vmem:[%s568 + $0x20] sm:$0xff]
      %v574 = vld [vmem:[%s568 + $0x28] sm:$0xff]
      %v575 = vld [vmem:[%s568 + $0x30] sm:$0x33]
      %v576 = vld [vmem:[%s568 + $0x38] sm:$0x33]
      %v585 = vunpack.c.l.b16 %v569
      %v586 = vunpack.c.h.b16 %v569
      %v587 = vunpack.c.l.b16 %v570
      %v588 = vunpack.c.h.b16 %v570
      %v589 = vunpack.c.l.b16 %v571
      %v590 = vunpack.c.h.b16 %v571
      %v591 = vunpack.c.l.b16 %v572
      %v592 = vunpack.c.h.b16 %v572
      %v593 = vunpack.c.l.b16 %v573
      %v594 = vunpack.c.h.b16 %v573
      %v595 = vunpack.c.l.b16 %v574
      %v596 = vunpack.c.h.b16 %v574
      %v597 = vunpack.c.l.b16 %v575
      %v598 = vunpack.c.h.b16 %v575
      %v599 = vunpack.c.l.b16 %v576
      %v600 = vunpack.c.h.b16 %v576
      %v601 = vpack.c.b16 %v589, %v585
      %v602 = vpack.c.b16 %v590, %v586
      %v603 = vpack.c.b16 %v591, %v587
      %v604 = vpack.c.b16 %v592, %v588
      %v605 = vpack.c.b16 %v597, %v593
      %v606 = vpack.c.b16 %v598, %v594
      %v607 = vpack.c.b16 %v599, %v595
      %v608 = vpack.c.b16 %v600, %v596
      %vm613 = vcmask 228352
      %v615 = vsel %vm613, %v504, 0
      %v618 = vsel %vm613, %v505, 0
      %v621 = vsel %vm613, %v506, 0
      %v624 = vsel %vm613, %v507, 0
      %v627 = vsel %vm613, %v508, 0
      %v630 = vsel %vm613, %v509, 0
      %v633 = vsel %vm613, %v510, 0
      %v636 = vsel %vm613, %v511, 0
      %v639 = vsel %vm613, %v512, 0
      %v642 = vsel %vm613, %v513, 0
      %v645 = vsel %vm613, %v514, 0
      %v648 = vsel %vm613, %v515, 0
      %v651 = vsel %vm613, %v516, 0
      %v654 = vsel %vm613, %v517, 0
      %v657 = vsel %vm613, %v518, 0
      %v660 = vsel %vm613, %v519, 0
      %v663 = vsel %vm613, %v520, 0
      %v666 = vsel %vm613, %v521, 0
      %v669 = vsel %vm613, %v522, 0
      %v672 = vsel %vm613, %v523, 0
      %v675 = vsel %vm613, %v524, 0
      %v678 = vsel %vm613, %v525, 0
      %v681 = vsel %vm613, %v526, 0
      %v684 = vsel %vm613, %v527, 0
      %v687 = vsel %vm613, %v528, 0
      %v690 = vsel %vm613, %v529, 0
      %v693 = vsel %vm613, %v530, 0
      %v696 = vsel %vm613, %v531, 0
      %v699 = vsel %vm613, %v532, 0
      %v702 = vsel %vm613, %v533, 0
      %v705 = vsel %vm613, %v534, 0
      %v708 = vsel %vm613, %v535, 0
      %v711 = vsel %vm613, %v536, 0
      %v714 = vsel %vm613, %v537, 0
      %v717 = vsel %vm613, %v538, 0
      %v720 = vsel %vm613, %v539, 0
      %v723 = vsel %vm613, %v540, 0
      %v726 = vsel %vm613, %v541, 0
      %v729 = vsel %vm613, %v542, 0
      %v732 = vsel %vm613, %v543, 0
      %v735 = vsel %vm613, %v544, 0
      %v738 = vsel %vm613, %v545, 0
      %v741 = vsel %vm613, %v546, 0
      %v744 = vsel %vm613, %v547, 0
      %v747 = vsel %vm613, %v548, 0
      %v750 = vsel %vm613, %v549, 0
      %v753 = vsel %vm613, %v550, 0
      %v756 = vsel %vm613, %v551, 0
      %v759 = vsel %vm613, %v552, 0
      %v762 = vsel %vm613, %v553, 0
      %v765 = vsel %vm613, %v554, 0
      %v768 = vsel %vm613, %v555, 0
      %v771 = vsel %vm613, %v556, 0
      %v774 = vsel %vm613, %v557, 0
      %v777 = vsel %vm613, %v558, 0
      %v780 = vsel %vm613, %v559, 0
      %vm782 = vcmask 1045504
      %v784 = vsel %vm782, %v605, 0
      %v787 = vsel %vm782, %v606, 0
      %v790 = vsel %vm782, %v607, 0
      %v793 = vsel %vm782, %v608, 0
      %795 = vmatprep.subr.bf16.mxu0 0
      %796 = vmatpush1.bf16.msra.mxu0 0
      %797 = vmatprep.subr.bf16.mxu0 0
      %798 = vmatpush1.bf16.msra.mxu0 0
      %799 = vmatprep.subr.bf16.mxu0 0
      %800 = vmatpush1.bf16.msra.mxu0 0
      %801 = vmatprep.subr.bf16.mxu0 0
      %802 = vmatpush1.bf16.msra.mxu0 0
      %803 = vmatprep.subr.bf16.mxu0 0
      %804 = vmatpush1.bf16.msra.mxu0 0
      %805 = vmatprep.subr.bf16.mxu0 0
      %806 = vmatpush1.bf16.msra.mxu0 0
      %807 = vmatprep.subr.bf16.mxu0 %v787
      %808 = vmatpush1.bf16.msra.mxu0 %v784
      %809 = vmatprep.subr.bf16.mxu0 %v602
      %810 = vmatpush1.bf16.msra.mxu0 %v601
      %811 = vmatprep.subr.bf16.mxu0 0
      %812 = vmatpush2.bf16.msra.mxu0 0
      %813 = vmatprep.subr.bf16.mxu0 0
      %814 = vmatpush2.bf16.msra.mxu0 0
      %815 = vmatprep.subr.bf16.mxu0 0
      %816 = vmatpush2.bf16.msra.mxu0 0
      %817 = vmatprep.subr.bf16.mxu0 0
      %818 = vmatpush2.bf16.msra.mxu0 0
      %819 = vmatprep.subr.bf16.mxu0 0
      %820 = vmatpush2.bf16.msra.mxu0 0
      %821 = vmatprep.subr.bf16.mxu0 0
      %822 = vmatpush2.bf16.msra.mxu0 0
      %823 = vmatprep.subr.bf16.mxu0 0
      %824 = vmatpush2.bf16.msra.mxu0 0
      %825 = vmatprep.subr.bf16.mxu0 0
      %826 = vmatpush2.bf16.msra.mxu0 0
      %827 = vmatprep.mubr.bf16.mxu0 0
      %828 = vmatmul.mubr.bf16.gmra.mxu0 %v615
      %v829 = vpop.f32.mrf.mxu0
      %v830 = vadd.f32 0.0, %v829
      %v831 = vpop.f32.mrf.mxu0
      %v832 = vadd.f32 0.0, %v831
      %v833 = vpop.f32.mrf.mxu0
      %v834 = vadd.f32 0.0, %v833
      %v835 = vpop.f32.mrf.mxu0
      %v836 = vadd.f32 0.0, %v835
      %837 = vmatprep.mubr.bf16.mxu0 0
      %838 = vmatmul.mubr.bf16.gmra.mxu0 %v618
      %v839 = vpop.f32.mrf.mxu0
      %v840 = vadd.f32 0.0, %v839
      %v841 = vpop.f32.mrf.mxu0
      %v842 = vadd.f32 0.0, %v841
      %v843 = vpop.f32.mrf.mxu0
      %v844 = vadd.f32 0.0, %v843
      %v845 = vpop.f32.mrf.mxu0
      %v846 = vadd.f32 0.0, %v845
      %847 = vmatprep.mubr.bf16.mxu0 0
      %848 = vmatmul.mubr.bf16.gmra.mxu0 %v621
      %v849 = vpop.f32.mrf.mxu0
      %v850 = vadd.f32 0.0, %v849
      %v851 = vpop.f32.mrf.mxu0
      %v852 = vadd.f32 0.0, %v851
      %v853 = vpop.f32.mrf.mxu0
      %v854 = vadd.f32 0.0, %v853
      %v855 = vpop.f32.mrf.mxu0
      %v856 = vadd.f32 0.0, %v855
      %857 = vmatprep.mubr.bf16.mxu0 0
      %858 = vmatmul.mubr.bf16.gmra.mxu0 %v624
      %v859 = vpop.f32.mrf.mxu0
      %v860 = vadd.f32 0.0, %v859
      %v861 = vpop.f32.mrf.mxu0
      %v862 = vadd.f32 0.0, %v861
      %v863 = vpop.f32.mrf.mxu0
      %v864 = vadd.f32 0.0, %v863
      %v865 = vpop.f32.mrf.mxu0
      %v866 = vadd.f32 0.0, %v865
      %867 = vmatprep.mubr.bf16.mxu0 0
      %868 = vmatmul.mubr.bf16.gmra.mxu0 %v627
      %v869 = vpop.f32.mrf.mxu0
      %v870 = vadd.f32 0.0, %v869
      %v871 = vpop.f32.mrf.mxu0
      %v872 = vadd.f32 0.0, %v871
      %v873 = vpop.f32.mrf.mxu0
      %v874 = vadd.f32 0.0, %v873
      %v875 = vpop.f32.mrf.mxu0
      %v876 = vadd.f32 0.0, %v875
      %877 = vmatprep.mubr.bf16.mxu0 0
      %878 = vmatmul.mubr.bf16.gmra.mxu0 %v630
      %v879 = vpop.f32.mrf.mxu0
      %v880 = vadd.f32 0.0, %v879
      %v881 = vpop.f32.mrf.mxu0
      %v882 = vadd.f32 0.0, %v881
      %v883 = vpop.f32.mrf.mxu0
      %v884 = vadd.f32 0.0, %v883
      %v885 = vpop.f32.mrf.mxu0
      %v886 = vadd.f32 0.0, %v885
      %887 = vmatprep.mubr.bf16.mxu0 0
      %888 = vmatmul.mubr.bf16.gmra.mxu0 %v633
      %v889 = vpop.f32.mrf.mxu0
      %v890 = vadd.f32 0.0, %v889
      %v891 = vpop.f32.mrf.mxu0
      %v892 = vadd.f32 0.0, %v891
      %v893 = vpop.f32.mrf.mxu0
      %v894 = vadd.f32 0.0, %v893
      %v895 = vpop.f32.mrf.mxu0
      %v896 = vadd.f32 0.0, %v895
      %897 = vmatprep.mubr.bf16.mxu0 0
      %898 = vmatmul.mubr.bf16.gmra.mxu0 %v636
      %v899 = vpop.f32.mrf.mxu0
      %v900 = vadd.f32 0.0, %v899
      %v901 = vpop.f32.mrf.mxu0
      %v902 = vadd.f32 0.0, %v901
      %v903 = vpop.f32.mrf.mxu0
      %v904 = vadd.f32 0.0, %v903
      %v905 = vpop.f32.mrf.mxu0
      %v906 = vadd.f32 0.0, %v905
      %907 = vmatprep.mubr.bf16.mxu0 0
      %908 = vmatmul.mubr.bf16.gmra.mxu0 %v639
      %v909 = vpop.f32.mrf.mxu0
      %v910 = vadd.f32 0.0, %v909
      %v911 = vpop.f32.mrf.mxu0
      %v912 = vadd.f32 0.0, %v911
      %v913 = vpop.f32.mrf.mxu0
      %v914 = vadd.f32 0.0, %v913
      %v915 = vpop.f32.mrf.mxu0
      %v916 = vadd.f32 0.0, %v915
      %917 = vmatprep.mubr.bf16.mxu0 0
      %918 = vmatmul.mubr.bf16.gmra.mxu0 %v642
      %v919 = vpop.f32.mrf.mxu0
      %v920 = vadd.f32 0.0, %v919
      %v921 = vpop.f32.mrf.mxu0
      %v922 = vadd.f32 0.0, %v921
      %v923 = vpop.f32.mrf.mxu0
      %v924 = vadd.f32 0.0, %v923
      %v925 = vpop.f32.mrf.mxu0
      %v926 = vadd.f32 0.0, %v925
      %927 = vmatprep.mubr.bf16.mxu0 0
      %928 = vmatmul.mubr.bf16.gmra.mxu0 %v645
      %v929 = vpop.f32.mrf.mxu0
      %v930 = vadd.f32 0.0, %v929
      %v931 = vpop.f32.mrf.mxu0
      %v932 = vadd.f32 0.0, %v931
      %v933 = vpop.f32.mrf.mxu0
      %v934 = vadd.f32 0.0, %v933
      %v935 = vpop.f32.mrf.mxu0
      %v936 = vadd.f32 0.0, %v935
      %937 = vmatprep.mubr.bf16.mxu0 0
      %938 = vmatmul.mubr.bf16.gmra.mxu0 %v648
      %v939 = vpop.f32.mrf.mxu0
      %v940 = vadd.f32 0.0, %v939
      %v941 = vpop.f32.mrf.mxu0
      %v942 = vadd.f32 0.0, %v941
      %v943 = vpop.f32.mrf.mxu0
      %v944 = vadd.f32 0.0, %v943
      %v945 = vpop.f32.mrf.mxu0
      %v946 = vadd.f32 0.0, %v945
      %947 = vmatprep.mubr.bf16.mxu0 0
      %948 = vmatmul.mubr.bf16.gmra.mxu0 %v651
      %v949 = vpop.f32.mrf.mxu0
      %v950 = vadd.f32 0.0, %v949
      %v951 = vpop.f32.mrf.mxu0
      %v952 = vadd.f32 0.0, %v951
      %v953 = vpop.f32.mrf.mxu0
      %v954 = vadd.f32 0.0, %v953
      %v955 = vpop.f32.mrf.mxu0
      %v956 = vadd.f32 0.0, %v955
      %957 = vmatprep.mubr.bf16.mxu0 0
      %958 = vmatmul.mubr.bf16.gmra.mxu0 %v654
      %v959 = vpop.f32.mrf.mxu0
      %v960 = vadd.f32 0.0, %v959
      %v961 = vpop.f32.mrf.mxu0
      %v962 = vadd.f32 0.0, %v961
      %v963 = vpop.f32.mrf.mxu0
      %v964 = vadd.f32 0.0, %v963
      %v965 = vpop.f32.mrf.mxu0
      %v966 = vadd.f32 0.0, %v965
      %967 = vmatprep.mubr.bf16.mxu0 0
      %968 = vmatmul.mubr.bf16.gmra.mxu0 %v657
      %v969 = vpop.f32.mrf.mxu0
      %v970 = vadd.f32 0.0, %v969
      %v971 = vpop.f32.mrf.mxu0
      %v972 = vadd.f32 0.0, %v971
      %v973 = vpop.f32.mrf.mxu0
      %v974 = vadd.f32 0.0, %v973
      %v975 = vpop.f32.mrf.mxu0
      %v976 = vadd.f32 0.0, %v975
      %977 = vmatprep.mubr.bf16.mxu0 0
      %978 = vmatmul.mubr.bf16.gmra.mxu0 %v660
      %v979 = vpop.f32.mrf.mxu0
      %v980 = vadd.f32 0.0, %v979
      %v981 = vpop.f32.mrf.mxu0
      %v982 = vadd.f32 0.0, %v981
      %v983 = vpop.f32.mrf.mxu0
      %v984 = vadd.f32 0.0, %v983
      %v985 = vpop.f32.mrf.mxu0
      %v986 = vadd.f32 0.0, %v985
      %987 = vmatprep.mubr.bf16.mxu0 0
      %988 = vmatmul.mubr.bf16.gmra.mxu0 %v663
      %v989 = vpop.f32.mrf.mxu0
      %v990 = vadd.f32 0.0, %v989
      %v991 = vpop.f32.mrf.mxu0
      %v992 = vadd.f32 0.0, %v991
      %v993 = vpop.f32.mrf.mxu0
      %v994 = vadd.f32 0.0, %v993
      %v995 = vpop.f32.mrf.mxu0
      %v996 = vadd.f32 0.0, %v995
      %997 = vmatprep.mubr.bf16.mxu0 0
      %998 = vmatmul.mubr.bf16.gmra.mxu0 %v666
      %v999 = vpop.f32.mrf.mxu0
      %v1000 = vadd.f32 0.0, %v999
      %v1001 = vpop.f32.mrf.mxu0
      %v1002 = vadd.f32 0.0, %v1001
      %v1003 = vpop.f32.mrf.mxu0
      %v1004 = vadd.f32 0.0, %v1003
      %v1005 = vpop.f32.mrf.mxu0
      %v1006 = vadd.f32 0.0, %v1005
      %1007 = vmatprep.mubr.bf16.mxu0 0
      %1008 = vmatmul.mubr.bf16.gmra.mxu0 %v669
      %v1009 = vpop.f32.mrf.mxu0
      %v1010 = vadd.f32 0.0, %v1009
      %v1011 = vpop.f32.mrf.mxu0
      %v1012 = vadd.f32 0.0, %v1011
      %v1013 = vpop.f32.mrf.mxu0
      %v1014 = vadd.f32 0.0, %v1013
      %v1015 = vpop.f32.mrf.mxu0
      %v1016 = vadd.f32 0.0, %v1015
      %1017 = vmatprep.mubr.bf16.mxu0 0
      %1018 = vmatmul.mubr.bf16.gmra.mxu0 %v672
      %v1019 = vpop.f32.mrf.mxu0
      %v1020 = vadd.f32 0.0, %v1019
      %v1021 = vpop.f32.mrf.mxu0
      %v1022 = vadd.f32 0.0, %v1021
      %v1023 = vpop.f32.mrf.mxu0
      %v1024 = vadd.f32 0.0, %v1023
      %v1025 = vpop.f32.mrf.mxu0
      %v1026 = vadd.f32 0.0, %v1025
      %1027 = vmatprep.mubr.bf16.mxu0 0
      %1028 = vmatmul.mubr.bf16.gmra.mxu0 %v675
      %v1029 = vpop.f32.mrf.mxu0
      %v1030 = vadd.f32 0.0, %v1029
      %v1031 = vpop.f32.mrf.mxu0
      %v1032 = vadd.f32 0.0, %v1031
      %v1033 = vpop.f32.mrf.mxu0
      %v1034 = vadd.f32 0.0, %v1033
      %v1035 = vpop.f32.mrf.mxu0
      %v1036 = vadd.f32 0.0, %v1035
      %1037 = vmatprep.mubr.bf16.mxu0 0
      %1038 = vmatmul.mubr.bf16.gmra.mxu0 %v678
      %v1039 = vpop.f32.mrf.mxu0
      %v1040 = vadd.f32 0.0, %v1039
      %v1041 = vpop.f32.mrf.mxu0
      %v1042 = vadd.f32 0.0, %v1041
      %v1043 = vpop.f32.mrf.mxu0
      %v1044 = vadd.f32 0.0, %v1043
      %v1045 = vpop.f32.mrf.mxu0
      %v1046 = vadd.f32 0.0, %v1045
      %1047 = vmatprep.mubr.bf16.mxu0 0
      %1048 = vmatmul.mubr.bf16.gmra.mxu0 %v681
      %v1049 = vpop.f32.mrf.mxu0
      %v1050 = vadd.f32 0.0, %v1049
      %v1051 = vpop.f32.mrf.mxu0
      %v1052 = vadd.f32 0.0, %v1051
      %v1053 = vpop.f32.mrf.mxu0
      %v1054 = vadd.f32 0.0, %v1053
      %v1055 = vpop.f32.mrf.mxu0
      %v1056 = vadd.f32 0.0, %v1055
      %1057 = vmatprep.mubr.bf16.mxu0 0
      %1058 = vmatmul.mubr.bf16.gmra.mxu0 %v684
      %v1059 = vpop.f32.mrf.mxu0
      %v1060 = vadd.f32 0.0, %v1059
      %v1061 = vpop.f32.mrf.mxu0
      %v1062 = vadd.f32 0.0, %v1061
      %v1063 = vpop.f32.mrf.mxu0
      %v1064 = vadd.f32 0.0, %v1063
      %v1065 = vpop.f32.mrf.mxu0
      %v1066 = vadd.f32 0.0, %v1065
      %1067 = vmatprep.mubr.bf16.mxu0 0
      %1068 = vmatmul.mubr.bf16.gmra.mxu0 %v687
      %v1069 = vpop.f32.mrf.mxu0
      %v1070 = vadd.f32 0.0, %v1069
      %v1071 = vpop.f32.mrf.mxu0
      %v1072 = vadd.f32 0.0, %v1071
      %v1073 = vpop.f32.mrf.mxu0
      %v1074 = vadd.f32 0.0, %v1073
      %v1075 = vpop.f32.mrf.mxu0
      %v1076 = vadd.f32 0.0, %v1075
      %1077 = vmatprep.mubr.bf16.mxu0 0
      %1078 = vmatmul.mubr.bf16.gmra.mxu0 %v690
      %v1079 = vpop.f32.mrf.mxu0
      %v1080 = vadd.f32 0.0, %v1079
      %v1081 = vpop.f32.mrf.mxu0
      %v1082 = vadd.f32 0.0, %v1081
      %v1083 = vpop.f32.mrf.mxu0
      %v1084 = vadd.f32 0.0, %v1083
      %v1085 = vpop.f32.mrf.mxu0
      %v1086 = vadd.f32 0.0, %v1085
      %1087 = vmatprep.mubr.bf16.mxu0 0
      %1088 = vmatmul.mubr.bf16.gmra.mxu0 %v693
      %v1089 = vpop.f32.mrf.mxu0
      %v1090 = vadd.f32 0.0, %v1089
      %v1091 = vpop.f32.mrf.mxu0
      %v1092 = vadd.f32 0.0, %v1091
      %v1093 = vpop.f32.mrf.mxu0
      %v1094 = vadd.f32 0.0, %v1093
      %v1095 = vpop.f32.mrf.mxu0
      %v1096 = vadd.f32 0.0, %v1095
      %1097 = vmatprep.mubr.bf16.mxu0 0
      %1098 = vmatmul.mubr.bf16.gmra.mxu0 %v696
      %v1099 = vpop.f32.mrf.mxu0
      %v1100 = vadd.f32 0.0, %v1099
      %v1101 = vpop.f32.mrf.mxu0
      %v1102 = vadd.f32 0.0, %v1101
      %v1103 = vpop.f32.mrf.mxu0
      %v1104 = vadd.f32 0.0, %v1103
      %v1105 = vpop.f32.mrf.mxu0
      %v1106 = vadd.f32 0.0, %v1105
      %1107 = vmatprep.mubr.bf16.mxu0 0
      %1108 = vmatmul.mubr.bf16.gmra.mxu0 %v699
      %v1109 = vpop.f32.mrf.mxu0
      %v1110 = vadd.f32 0.0, %v1109
      %v1111 = vpop.f32.mrf.mxu0
      %v1112 = vadd.f32 0.0, %v1111
      %v1113 = vpop.f32.mrf.mxu0
      %v1114 = vadd.f32 0.0, %v1113
      %v1115 = vpop.f32.mrf.mxu0
      %v1116 = vadd.f32 0.0, %v1115
      %1117 = vmatprep.mubr.bf16.mxu0 0
      %1118 = vmatmul.mubr.bf16.gmra.mxu0 %v702
      %v1119 = vpop.f32.mrf.mxu0
      %v1120 = vadd.f32 0.0, %v1119
      %v1121 = vpop.f32.mrf.mxu0
      %v1122 = vadd.f32 0.0, %v1121
      %v1123 = vpop.f32.mrf.mxu0
      %v1124 = vadd.f32 0.0, %v1123
      %v1125 = vpop.f32.mrf.mxu0
      %v1126 = vadd.f32 0.0, %v1125
      %1127 = vmatprep.mubr.bf16.mxu0 0
      %1128 = vmatmul.mubr.bf16.gmra.mxu0 %v705
      %v1129 = vpop.f32.mrf.mxu0
      %v1130 = vadd.f32 0.0, %v1129
      %v1131 = vpop.f32.mrf.mxu0
      %v1132 = vadd.f32 0.0, %v1131
      %v1133 = vpop.f32.mrf.mxu0
      %v1134 = vadd.f32 0.0, %v1133
      %v1135 = vpop.f32.mrf.mxu0
      %v1136 = vadd.f32 0.0, %v1135
      %1137 = vmatprep.mubr.bf16.mxu0 0
      %1138 = vmatmul.mubr.bf16.gmra.mxu0 %v708
      %v1139 = vpop.f32.mrf.mxu0
      %v1140 = vadd.f32 0.0, %v1139
      %v1141 = vpop.f32.mrf.mxu0
      %v1142 = vadd.f32 0.0, %v1141
      %v1143 = vpop.f32.mrf.mxu0
      %v1144 = vadd.f32 0.0, %v1143
      %v1145 = vpop.f32.mrf.mxu0
      %v1146 = vadd.f32 0.0, %v1145
      %1147 = vmatprep.mubr.bf16.mxu0 0
      %1148 = vmatmul.mubr.bf16.gmra.mxu0 %v711
      %v1149 = vpop.f32.mrf.mxu0
      %v1150 = vadd.f32 0.0, %v1149
      %v1151 = vpop.f32.mrf.mxu0
      %v1152 = vadd.f32 0.0, %v1151
      %v1153 = vpop.f32.mrf.mxu0
      %v1154 = vadd.f32 0.0, %v1153
      %v1155 = vpop.f32.mrf.mxu0
      %v1156 = vadd.f32 0.0, %v1155
      %1157 = vmatprep.mubr.bf16.mxu0 0
      %1158 = vmatmul.mubr.bf16.gmra.mxu0 %v714
      %v1159 = vpop.f32.mrf.mxu0
      %v1160 = vadd.f32 0.0, %v1159
      %v1161 = vpop.f32.mrf.mxu0
      %v1162 = vadd.f32 0.0, %v1161
      %v1163 = vpop.f32.mrf.mxu0
      %v1164 = vadd.f32 0.0, %v1163
      %v1165 = vpop.f32.mrf.mxu0
      %v1166 = vadd.f32 0.0, %v1165
      %1167 = vmatprep.mubr.bf16.mxu0 0
      %1168 = vmatmul.mubr.bf16.gmra.mxu0 %v717
      %v1169 = vpop.f32.mrf.mxu0
      %v1170 = vadd.f32 0.0, %v1169
      %v1171 = vpop.f32.mrf.mxu0
      %v1172 = vadd.f32 0.0, %v1171
      %v1173 = vpop.f32.mrf.mxu0
      %v1174 = vadd.f32 0.0, %v1173
      %v1175 = vpop.f32.mrf.mxu0
      %v1176 = vadd.f32 0.0, %v1175
      %1177 = vmatprep.mubr.bf16.mxu0 0
      %1178 = vmatmul.mubr.bf16.gmra.mxu0 %v720
      %v1179 = vpop.f32.mrf.mxu0
      %v1180 = vadd.f32 0.0, %v1179
      %v1181 = vpop.f32.mrf.mxu0
      %v1182 = vadd.f32 0.0, %v1181
      %v1183 = vpop.f32.mrf.mxu0
      %v1184 = vadd.f32 0.0, %v1183
      %v1185 = vpop.f32.mrf.mxu0
      %v1186 = vadd.f32 0.0, %v1185
      %1187 = vmatprep.mubr.bf16.mxu0 0
      %1188 = vmatmul.mubr.bf16.gmra.mxu0 %v723
      %v1189 = vpop.f32.mrf.mxu0
      %v1190 = vadd.f32 0.0, %v1189
      %v1191 = vpop.f32.mrf.mxu0
      %v1192 = vadd.f32 0.0, %v1191
      %v1193 = vpop.f32.mrf.mxu0
      %v1194 = vadd.f32 0.0, %v1193
      %v1195 = vpop.f32.mrf.mxu0
      %v1196 = vadd.f32 0.0, %v1195
      %1197 = vmatprep.mubr.bf16.mxu0 0
      %1198 = vmatmul.mubr.bf16.gmra.mxu0 %v726
      %v1199 = vpop.f32.mrf.mxu0
      %v1200 = vadd.f32 0.0, %v1199
      %v1201 = vpop.f32.mrf.mxu0
      %v1202 = vadd.f32 0.0, %v1201
      %v1203 = vpop.f32.mrf.mxu0
      %v1204 = vadd.f32 0.0, %v1203
      %v1205 = vpop.f32.mrf.mxu0
      %v1206 = vadd.f32 0.0, %v1205
      %1207 = vmatprep.mubr.bf16.mxu0 0
      %1208 = vmatmul.mubr.bf16.gmra.mxu0 %v729
      %v1209 = vpop.f32.mrf.mxu0
      %v1210 = vadd.f32 0.0, %v1209
      %v1211 = vpop.f32.mrf.mxu0
      %v1212 = vadd.f32 0.0, %v1211
      %v1213 = vpop.f32.mrf.mxu0
      %v1214 = vadd.f32 0.0, %v1213
      %v1215 = vpop.f32.mrf.mxu0
      %v1216 = vadd.f32 0.0, %v1215
      %1217 = vmatprep.mubr.bf16.mxu0 0
      %1218 = vmatmul.mubr.bf16.gmra.mxu0 %v732
      %v1219 = vpop.f32.mrf.mxu0
      %v1220 = vadd.f32 0.0, %v1219
      %v1221 = vpop.f32.mrf.mxu0
      %v1222 = vadd.f32 0.0, %v1221
      %v1223 = vpop.f32.mrf.mxu0
      %v1224 = vadd.f32 0.0, %v1223
      %v1225 = vpop.f32.mrf.mxu0
      %v1226 = vadd.f32 0.0, %v1225
      %1227 = vmatprep.mubr.bf16.mxu0 0
      %1228 = vmatmul.mubr.bf16.gmra.mxu0 %v735
      %v1229 = vpop.f32.mrf.mxu0
      %v1230 = vadd.f32 0.0, %v1229
      %v1231 = vpop.f32.mrf.mxu0
      %v1232 = vadd.f32 0.0, %v1231
      %v1233 = vpop.f32.mrf.mxu0
      %v1234 = vadd.f32 0.0, %v1233
      %v1235 = vpop.f32.mrf.mxu0
      %v1236 = vadd.f32 0.0, %v1235
      %1237 = vmatprep.mubr.bf16.mxu0 0
      %1238 = vmatmul.mubr.bf16.gmra.mxu0 %v738
      %v1239 = vpop.f32.mrf.mxu0
      %v1240 = vadd.f32 0.0, %v1239
      %v1241 = vpop.f32.mrf.mxu0
      %v1242 = vadd.f32 0.0, %v1241
      %v1243 = vpop.f32.mrf.mxu0
      %v1244 = vadd.f32 0.0, %v1243
      %v1245 = vpop.f32.mrf.mxu0
      %v1246 = vadd.f32 0.0, %v1245
      %1247 = vmatprep.mubr.bf16.mxu0 0
      %1248 = vmatmul.mubr.bf16.gmra.mxu0 %v741
      %v1249 = vpop.f32.mrf.mxu0
      %v1250 = vadd.f32 0.0, %v1249
      %v1251 = vpop.f32.mrf.mxu0
      %v1252 = vadd.f32 0.0, %v1251
      %v1253 = vpop.f32.mrf.mxu0
      %v1254 = vadd.f32 0.0, %v1253
      %v1255 = vpop.f32.mrf.mxu0
      %v1256 = vadd.f32 0.0, %v1255
      %1257 = vmatprep.mubr.bf16.mxu0 0
      %1258 = vmatmul.mubr.bf16.gmra.mxu0 %v744
      %v1259 = vpop.f32.mrf.mxu0
      %v1260 = vadd.f32 0.0, %v1259
      %v1261 = vpop.f32.mrf.mxu0
      %v1262 = vadd.f32 0.0, %v1261
      %v1263 = vpop.f32.mrf.mxu0
      %v1264 = vadd.f32 0.0, %v1263
      %v1265 = vpop.f32.mrf.mxu0
      %v1266 = vadd.f32 0.0, %v1265
      %1267 = vmatprep.mubr.bf16.mxu0 0
      %1268 = vmatmul.mubr.bf16.gmra.mxu0 %v747
      %v1269 = vpop.f32.mrf.mxu0
      %v1270 = vadd.f32 0.0, %v1269
      %v1271 = vpop.f32.mrf.mxu0
      %v1272 = vadd.f32 0.0, %v1271
      %v1273 = vpop.f32.mrf.mxu0
      %v1274 = vadd.f32 0.0, %v1273
      %v1275 = vpop.f32.mrf.mxu0
      %v1276 = vadd.f32 0.0, %v1275
      %1277 = vmatprep.mubr.bf16.mxu0 0
      %1278 = vmatmul.mubr.bf16.gmra.mxu0 %v750
      %v1279 = vpop.f32.mrf.mxu0
      %v1280 = vadd.f32 0.0, %v1279
      %v1281 = vpop.f32.mrf.mxu0
      %v1282 = vadd.f32 0.0, %v1281
      %v1283 = vpop.f32.mrf.mxu0
      %v1284 = vadd.f32 0.0, %v1283
      %v1285 = vpop.f32.mrf.mxu0
      %v1286 = vadd.f32 0.0, %v1285
      %1287 = vmatprep.mubr.bf16.mxu0 0
      %1288 = vmatmul.mubr.bf16.gmra.mxu0 %v753
      %v1289 = vpop.f32.mrf.mxu0
      %v1290 = vadd.f32 0.0, %v1289
      %v1291 = vpop.f32.mrf.mxu0
      %v1292 = vadd.f32 0.0, %v1291
      %v1293 = vpop.f32.mrf.mxu0
      %v1294 = vadd.f32 0.0, %v1293
      %v1295 = vpop.f32.mrf.mxu0
      %v1296 = vadd.f32 0.0, %v1295
      %1297 = vmatprep.mubr.bf16.mxu0 0
      %1298 = vmatmul.mubr.bf16.gmra.mxu0 %v756
      %v1299 = vpop.f32.mrf.mxu0
      %v1300 = vadd.f32 0.0, %v1299
      %v1301 = vpop.f32.mrf.mxu0
      %v1302 = vadd.f32 0.0, %v1301
      %v1303 = vpop.f32.mrf.mxu0
      %v1304 = vadd.f32 0.0, %v1303
      %v1305 = vpop.f32.mrf.mxu0
      %v1306 = vadd.f32 0.0, %v1305
      %1307 = vmatprep.mubr.bf16.mxu0 0
      %1308 = vmatmul.mubr.bf16.gmra.mxu0 %v759
      %v1309 = vpop.f32.mrf.mxu0
      %v1310 = vadd.f32 0.0, %v1309
      %v1311 = vpop.f32.mrf.mxu0
      %v1312 = vadd.f32 0.0, %v1311
      %v1313 = vpop.f32.mrf.mxu0
      %v1314 = vadd.f32 0.0, %v1313
      %v1315 = vpop.f32.mrf.mxu0
      %v1316 = vadd.f32 0.0, %v1315
      %1317 = vmatprep.mubr.bf16.mxu0 0
      %1318 = vmatmul.mubr.bf16.gmra.mxu0 %v762
      %v1319 = vpop.f32.mrf.mxu0
      %v1320 = vadd.f32 0.0, %v1319
      %v1321 = vpop.f32.mrf.mxu0
      %v1322 = vadd.f32 0.0, %v1321
      %v1323 = vpop.f32.mrf.mxu0
      %v1324 = vadd.f32 0.0, %v1323
      %v1325 = vpop.f32.mrf.mxu0
      %v1326 = vadd.f32 0.0, %v1325
      %1327 = vmatprep.mubr.bf16.mxu0 0
      %1328 = vmatmul.mubr.bf16.gmra.mxu0 %v765
      %v1329 = vpop.f32.mrf.mxu0
      %v1330 = vadd.f32 0.0, %v1329
      %v1331 = vpop.f32.mrf.mxu0
      %v1332 = vadd.f32 0.0, %v1331
      %v1333 = vpop.f32.mrf.mxu0
      %v1334 = vadd.f32 0.0, %v1333
      %v1335 = vpop.f32.mrf.mxu0
      %v1336 = vadd.f32 0.0, %v1335
      %1337 = vmatprep.mubr.bf16.mxu0 0
      %1338 = vmatmul.mubr.bf16.gmra.mxu0 %v768
      %v1339 = vpop.f32.mrf.mxu0
      %v1340 = vadd.f32 0.0, %v1339
      %v1341 = vpop.f32.mrf.mxu0
      %v1342 = vadd.f32 0.0, %v1341
      %v1343 = vpop.f32.mrf.mxu0
      %v1344 = vadd.f32 0.0, %v1343
      %v1345 = vpop.f32.mrf.mxu0
      %v1346 = vadd.f32 0.0, %v1345
      %1347 = vmatprep.mubr.bf16.mxu0 0
      %1348 = vmatmul.mubr.bf16.gmra.mxu0 %v771
      %v1349 = vpop.f32.mrf.mxu0
      %v1350 = vadd.f32 0.0, %v1349
      %v1351 = vpop.f32.mrf.mxu0
      %v1352 = vadd.f32 0.0, %v1351
      %v1353 = vpop.f32.mrf.mxu0
      %v1354 = vadd.f32 0.0, %v1353
      %v1355 = vpop.f32.mrf.mxu0
      %v1356 = vadd.f32 0.0, %v1355
      %1357 = vmatprep.mubr.bf16.mxu0 0
      %1358 = vmatmul.mubr.bf16.gmra.mxu0 %v774
      %v1359 = vpop.f32.mrf.mxu0
      %v1360 = vadd.f32 0.0, %v1359
      %v1361 = vpop.f32.mrf.mxu0
      %v1362 = vadd.f32 0.0, %v1361
      %v1363 = vpop.f32.mrf.mxu0
      %v1364 = vadd.f32 0.0, %v1363
      %v1365 = vpop.f32.mrf.mxu0
      %v1366 = vadd.f32 0.0, %v1365
      %1367 = vmatprep.mubr.bf16.mxu0 0
      %1368 = vmatmul.mubr.bf16.gmra.mxu0 %v777
      %v1369 = vpop.f32.mrf.mxu0
      %v1370 = vadd.f32 0.0, %v1369
      %v1371 = vpop.f32.mrf.mxu0
      %v1372 = vadd.f32 0.0, %v1371
      %v1373 = vpop.f32.mrf.mxu0
      %v1374 = vadd.f32 0.0, %v1373
      %v1375 = vpop.f32.mrf.mxu0
      %v1376 = vadd.f32 0.0, %v1375
      %1377 = vmatprep.mubr.bf16.mxu0 0
      %1378 = vmatmul.mubr.bf16.gmra.mxu0 %v780
      %v1379 = vpop.f32.mrf.mxu0
      %v1380 = vadd.f32 0.0, %v1379
      %v1381 = vpop.f32.mrf.mxu0
      %v1382 = vadd.f32 0.0, %v1381
      %v1383 = vpop.f32.mrf.mxu0
      %v1384 = vadd.f32 0.0, %v1383
      %v1385 = vpop.f32.mrf.mxu0
      %v1386 = vadd.f32 0.0, %v1385
      %1387 = vdwg.mxu0
      %1388 = vmatprep.subr.bf16.mxu0 0
      %1389 = vmatpush1.bf16.msra.mxu0 0
      %1390 = vmatprep.subr.bf16.mxu0 0
      %1391 = vmatpush1.bf16.msra.mxu0 0
      %1392 = vmatprep.subr.bf16.mxu0 0
      %1393 = vmatpush1.bf16.msra.mxu0 0
      %1394 = vmatprep.subr.bf16.mxu0 0
      %1395 = vmatpush1.bf16.msra.mxu0 0
      %1396 = vmatprep.subr.bf16.mxu0 0
      %1397 = vmatpush1.bf16.msra.mxu0 0
      %1398 = vmatprep.subr.bf16.mxu0 0
      %1399 = vmatpush1.bf16.msra.mxu0 0
      %1400 = vmatprep.subr.bf16.mxu0 %v793
      %1401 = vmatpush1.bf16.msra.mxu0 %v790
      %1402 = vmatprep.subr.bf16.mxu0 %v604
      %1403 = vmatpush1.bf16.msra.mxu0 %v603
      %1404 = vmatprep.subr.bf16.mxu0 0
      %1405 = vmatpush2.bf16.msra.mxu0 0
      %1406 = vmatprep.subr.bf16.mxu0 0
      %1407 = vmatpush2.bf16.msra.mxu0 0
      %1408 = vmatprep.subr.bf16.mxu0 0
      %1409 = vmatpush2.bf16.msra.mxu0 0
      %1410 = vmatprep.subr.bf16.mxu0 0
      %1411 = vmatpush2.bf16.msra.mxu0 0
      %1412 = vmatprep.subr.bf16.mxu0 0
      %1413 = vmatpush2.bf16.msra.mxu0 0
      %1414 = vmatprep.subr.bf16.mxu0 0
      %1415 = vmatpush2.bf16.msra.mxu0 0
      %1416 = vmatprep.subr.bf16.mxu0 0
      %1417 = vmatpush2.bf16.msra.mxu0 0
      %1418 = vmatprep.subr.bf16.mxu0 0
      %1419 = vmatpush2.bf16.msra.mxu0 0
      %1420 = vmatprep.mubr.bf16.mxu0 0
      %1421 = vmatmul.mubr.bf16.gmra.mxu0 %v615
      %v1422 = vpop.f32.mrf.mxu0
      %v1423 = vadd.f32 0.0, %v1422
      %v1424 = vpop.f32.mrf.mxu0
      %v1425 = vadd.f32 0.0, %v1424
      %v1426 = vpop.f32.mrf.mxu0
      %v1427 = vadd.f32 0.0, %v1426
      %v1428 = vpop.f32.mrf.mxu0
      %v1429 = vadd.f32 0.0, %v1428
      %1430 = vmatprep.mubr.bf16.mxu0 0
      %1431 = vmatmul.mubr.bf16.gmra.mxu0 %v618
      %v1432 = vpop.f32.mrf.mxu0
      %v1433 = vadd.f32 0.0, %v1432
      %v1434 = vpop.f32.mrf.mxu0
      %v1435 = vadd.f32 0.0, %v1434
      %v1436 = vpop.f32.mrf.mxu0
      %v1437 = vadd.f32 0.0, %v1436
      %v1438 = vpop.f32.mrf.mxu0
      %v1439 = vadd.f32 0.0, %v1438
      %1440 = vmatprep.mubr.bf16.mxu0 0
      %1441 = vmatmul.mubr.bf16.gmra.mxu0 %v621
      %v1442 = vpop.f32.mrf.mxu0
      %v1443 = vadd.f32 0.0, %v1442
      %v1444 = vpop.f32.mrf.mxu0
      %v1445 = vadd.f32 0.0, %v1444
      %v1446 = vpop.f32.mrf.mxu0
      %v1447 = vadd.f32 0.0, %v1446
      %v1448 = vpop.f32.mrf.mxu0
      %v1449 = vadd.f32 0.0, %v1448
      %1450 = vmatprep.mubr.bf16.mxu0 0
      %1451 = vmatmul.mubr.bf16.gmra.mxu0 %v624
      %v1452 = vpop.f32.mrf.mxu0
      %v1453 = vadd.f32 0.0, %v1452
      %v1454 = vpop.f32.mrf.mxu0
      %v1455 = vadd.f32 0.0, %v1454
      %v1456 = vpop.f32.mrf.mxu0
      %v1457 = vadd.f32 0.0, %v1456
      %v1458 = vpop.f32.mrf.mxu0
      %v1459 = vadd.f32 0.0, %v1458
      %1460 = vmatprep.mubr.bf16.mxu0 0
      %1461 = vmatmul.mubr.bf16.gmra.mxu0 %v627
      %v1462 = vpop.f32.mrf.mxu0
      %v1463 = vadd.f32 0.0, %v1462
      %v1464 = vpop.f32.mrf.mxu0
      %v1465 = vadd.f32 0.0, %v1464
      %v1466 = vpop.f32.mrf.mxu0
      %v1467 = vadd.f32 0.0, %v1466
      %v1468 = vpop.f32.mrf.mxu0
      %v1469 = vadd.f32 0.0, %v1468
      %1470 = vmatprep.mubr.bf16.mxu0 0
      %1471 = vmatmul.mubr.bf16.gmra.mxu0 %v630
      %v1472 = vpop.f32.mrf.mxu0
      %v1473 = vadd.f32 0.0, %v1472
      %v1474 = vpop.f32.mrf.mxu0
      %v1475 = vadd.f32 0.0, %v1474
      %v1476 = vpop.f32.mrf.mxu0
      %v1477 = vadd.f32 0.0, %v1476
      %v1478 = vpop.f32.mrf.mxu0
      %v1479 = vadd.f32 0.0, %v1478
      %1480 = vmatprep.mubr.bf16.mxu0 0
      %1481 = vmatmul.mubr.bf16.gmra.mxu0 %v633
      %v1482 = vpop.f32.mrf.mxu0
      %v1483 = vadd.f32 0.0, %v1482
      %v1484 = vpop.f32.mrf.mxu0
      %v1485 = vadd.f32 0.0, %v1484
      %v1486 = vpop.f32.mrf.mxu0
      %v1487 = vadd.f32 0.0, %v1486
      %v1488 = vpop.f32.mrf.mxu0
      %v1489 = vadd.f32 0.0, %v1488
      %1490 = vmatprep.mubr.bf16.mxu0 0
      %1491 = vmatmul.mubr.bf16.gmra.mxu0 %v636
      %v1492 = vpop.f32.mrf.mxu0
      %v1493 = vadd.f32 0.0, %v1492
      %v1494 = vpop.f32.mrf.mxu0
      %v1495 = vadd.f32 0.0, %v1494
      %v1496 = vpop.f32.mrf.mxu0
      %v1497 = vadd.f32 0.0, %v1496
      %v1498 = vpop.f32.mrf.mxu0
      %v1499 = vadd.f32 0.0, %v1498
      %1500 = vmatprep.mubr.bf16.mxu0 0
      %1501 = vmatmul.mubr.bf16.gmra.mxu0 %v639
      %v1502 = vpop.f32.mrf.mxu0
      %v1503 = vadd.f32 0.0, %v1502
      %v1504 = vpop.f32.mrf.mxu0
      %v1505 = vadd.f32 0.0, %v1504
      %v1506 = vpop.f32.mrf.mxu0
      %v1507 = vadd.f32 0.0, %v1506
      %v1508 = vpop.f32.mrf.mxu0
      %v1509 = vadd.f32 0.0, %v1508
      %1510 = vmatprep.mubr.bf16.mxu0 0
      %1511 = vmatmul.mubr.bf16.gmra.mxu0 %v642
      %v1512 = vpop.f32.mrf.mxu0
      %v1513 = vadd.f32 0.0, %v1512
      %v1514 = vpop.f32.mrf.mxu0
      %v1515 = vadd.f32 0.0, %v1514
      %v1516 = vpop.f32.mrf.mxu0
      %v1517 = vadd.f32 0.0, %v1516
      %v1518 = vpop.f32.mrf.mxu0
      %v1519 = vadd.f32 0.0, %v1518
      %1520 = vmatprep.mubr.bf16.mxu0 0
      %1521 = vmatmul.mubr.bf16.gmra.mxu0 %v645
      %v1522 = vpop.f32.mrf.mxu0
      %v1523 = vadd.f32 0.0, %v1522
      %v1524 = vpop.f32.mrf.mxu0
      %v1525 = vadd.f32 0.0, %v1524
      %v1526 = vpop.f32.mrf.mxu0
      %v1527 = vadd.f32 0.0, %v1526
      %v1528 = vpop.f32.mrf.mxu0
      %v1529 = vadd.f32 0.0, %v1528
      %1530 = vmatprep.mubr.bf16.mxu0 0
      %1531 = vmatmul.mubr.bf16.gmra.mxu0 %v648
      %v1532 = vpop.f32.mrf.mxu0
      %v1533 = vadd.f32 0.0, %v1532
      %v1534 = vpop.f32.mrf.mxu0
      %v1535 = vadd.f32 0.0, %v1534
      %v1536 = vpop.f32.mrf.mxu0
      %v1537 = vadd.f32 0.0, %v1536
      %v1538 = vpop.f32.mrf.mxu0
      %v1539 = vadd.f32 0.0, %v1538
      %1540 = vmatprep.mubr.bf16.mxu0 0
      %1541 = vmatmul.mubr.bf16.gmra.mxu0 %v651
      %v1542 = vpop.f32.mrf.mxu0
      %v1543 = vadd.f32 0.0, %v1542
      %v1544 = vpop.f32.mrf.mxu0
      %v1545 = vadd.f32 0.0, %v1544
      %v1546 = vpop.f32.mrf.mxu0
      %v1547 = vadd.f32 0.0, %v1546
      %v1548 = vpop.f32.mrf.mxu0
      %v1549 = vadd.f32 0.0, %v1548
      %1550 = vmatprep.mubr.bf16.mxu0 0
      %1551 = vmatmul.mubr.bf16.gmra.mxu0 %v654
      %v1552 = vpop.f32.mrf.mxu0
      %v1553 = vadd.f32 0.0, %v1552
      %v1554 = vpop.f32.mrf.mxu0
      %v1555 = vadd.f32 0.0, %v1554
      %v1556 = vpop.f32.mrf.mxu0
      %v1557 = vadd.f32 0.0, %v1556
      %v1558 = vpop.f32.mrf.mxu0
      %v1559 = vadd.f32 0.0, %v1558
      %1560 = vmatprep.mubr.bf16.mxu0 0
      %1561 = vmatmul.mubr.bf16.gmra.mxu0 %v657
      %v1562 = vpop.f32.mrf.mxu0
      %v1563 = vadd.f32 0.0, %v1562
      %v1564 = vpop.f32.mrf.mxu0
      %v1565 = vadd.f32 0.0, %v1564
      %v1566 = vpop.f32.mrf.mxu0
      %v1567 = vadd.f32 0.0, %v1566
      %v1568 = vpop.f32.mrf.mxu0
      %v1569 = vadd.f32 0.0, %v1568
      %1570 = vmatprep.mubr.bf16.mxu0 0
      %1571 = vmatmul.mubr.bf16.gmra.mxu0 %v660
      %v1572 = vpop.f32.mrf.mxu0
      %v1573 = vadd.f32 0.0, %v1572
      %v1574 = vpop.f32.mrf.mxu0
      %v1575 = vadd.f32 0.0, %v1574
      %v1576 = vpop.f32.mrf.mxu0
      %v1577 = vadd.f32 0.0, %v1576
      %v1578 = vpop.f32.mrf.mxu0
      %v1579 = vadd.f32 0.0, %v1578
      %1580 = vmatprep.mubr.bf16.mxu0 0
      %1581 = vmatmul.mubr.bf16.gmra.mxu0 %v663
      %v1582 = vpop.f32.mrf.mxu0
      %v1583 = vadd.f32 0.0, %v1582
      %v1584 = vpop.f32.mrf.mxu0
      %v1585 = vadd.f32 0.0, %v1584
      %v1586 = vpop.f32.mrf.mxu0
      %v1587 = vadd.f32 0.0, %v1586
      %v1588 = vpop.f32.mrf.mxu0
      %v1589 = vadd.f32 0.0, %v1588
      %1590 = vmatprep.mubr.bf16.mxu0 0
      %1591 = vmatmul.mubr.bf16.gmra.mxu0 %v666
      %v1592 = vpop.f32.mrf.mxu0
      %v1593 = vadd.f32 0.0, %v1592
      %v1594 = vpop.f32.mrf.mxu0
      %v1595 = vadd.f32 0.0, %v1594
      %v1596 = vpop.f32.mrf.mxu0
      %v1597 = vadd.f32 0.0, %v1596
      %v1598 = vpop.f32.mrf.mxu0
      %v1599 = vadd.f32 0.0, %v1598
      %1600 = vmatprep.mubr.bf16.mxu0 0
      %1601 = vmatmul.mubr.bf16.gmra.mxu0 %v669
      %v1602 = vpop.f32.mrf.mxu0
      %v1603 = vadd.f32 0.0, %v1602
      %v1604 = vpop.f32.mrf.mxu0
      %v1605 = vadd.f32 0.0, %v1604
      %v1606 = vpop.f32.mrf.mxu0
      %v1607 = vadd.f32 0.0, %v1606
      %v1608 = vpop.f32.mrf.mxu0
      %v1609 = vadd.f32 0.0, %v1608
      %1610 = vmatprep.mubr.bf16.mxu0 0
      %1611 = vmatmul.mubr.bf16.gmra.mxu0 %v672
      %v1612 = vpop.f32.mrf.mxu0
      %v1613 = vadd.f32 0.0, %v1612
      %v1614 = vpop.f32.mrf.mxu0
      %v1615 = vadd.f32 0.0, %v1614
      %v1616 = vpop.f32.mrf.mxu0
      %v1617 = vadd.f32 0.0, %v1616
      %v1618 = vpop.f32.mrf.mxu0
      %v1619 = vadd.f32 0.0, %v1618
      %1620 = vmatprep.mubr.bf16.mxu0 0
      %1621 = vmatmul.mubr.bf16.gmra.mxu0 %v675
      %v1622 = vpop.f32.mrf.mxu0
      %v1623 = vadd.f32 0.0, %v1622
      %v1624 = vpop.f32.mrf.mxu0
      %v1625 = vadd.f32 0.0, %v1624
      %v1626 = vpop.f32.mrf.mxu0
      %v1627 = vadd.f32 0.0, %v1626
      %v1628 = vpop.f32.mrf.mxu0
      %v1629 = vadd.f32 0.0, %v1628
      %1630 = vmatprep.mubr.bf16.mxu0 0
      %1631 = vmatmul.mubr.bf16.gmra.mxu0 %v678
      %v1632 = vpop.f32.mrf.mxu0
      %v1633 = vadd.f32 0.0, %v1632
      %v1634 = vpop.f32.mrf.mxu0
      %v1635 = vadd.f32 0.0, %v1634
      %v1636 = vpop.f32.mrf.mxu0
      %v1637 = vadd.f32 0.0, %v1636
      %v1638 = vpop.f32.mrf.mxu0
      %v1639 = vadd.f32 0.0, %v1638
      %1640 = vmatprep.mubr.bf16.mxu0 0
      %1641 = vmatmul.mubr.bf16.gmra.mxu0 %v681
      %v1642 = vpop.f32.mrf.mxu0
      %v1643 = vadd.f32 0.0, %v1642
      %v1644 = vpop.f32.mrf.mxu0
      %v1645 = vadd.f32 0.0, %v1644
      %v1646 = vpop.f32.mrf.mxu0
      %v1647 = vadd.f32 0.0, %v1646
      %v1648 = vpop.f32.mrf.mxu0
      %v1649 = vadd.f32 0.0, %v1648
      %1650 = vmatprep.mubr.bf16.mxu0 0
      %1651 = vmatmul.mubr.bf16.gmra.mxu0 %v684
      %v1652 = vpop.f32.mrf.mxu0
      %v1653 = vadd.f32 0.0, %v1652
      %v1654 = vpop.f32.mrf.mxu0
      %v1655 = vadd.f32 0.0, %v1654
      %v1656 = vpop.f32.mrf.mxu0
      %v1657 = vadd.f32 0.0, %v1656
      %v1658 = vpop.f32.mrf.mxu0
      %v1659 = vadd.f32 0.0, %v1658
      %1660 = vmatprep.mubr.bf16.mxu0 0
      %1661 = vmatmul.mubr.bf16.gmra.mxu0 %v687
      %v1662 = vpop.f32.mrf.mxu0
      %v1663 = vadd.f32 0.0, %v1662
      %v1664 = vpop.f32.mrf.mxu0
      %v1665 = vadd.f32 0.0, %v1664
      %v1666 = vpop.f32.mrf.mxu0
      %v1667 = vadd.f32 0.0, %v1666
      %v1668 = vpop.f32.mrf.mxu0
      %v1669 = vadd.f32 0.0, %v1668
      %1670 = vmatprep.mubr.bf16.mxu0 0
      %1671 = vmatmul.mubr.bf16.gmra.mxu0 %v690
      %v1672 = vpop.f32.mrf.mxu0
      %v1673 = vadd.f32 0.0, %v1672
      %v1674 = vpop.f32.mrf.mxu0
      %v1675 = vadd.f32 0.0, %v1674
      %v1676 = vpop.f32.mrf.mxu0
      %v1677 = vadd.f32 0.0, %v1676
      %v1678 = vpop.f32.mrf.mxu0
      %v1679 = vadd.f32 0.0, %v1678
      %1680 = vmatprep.mubr.bf16.mxu0 0
      %1681 = vmatmul.mubr.bf16.gmra.mxu0 %v693
      %v1682 = vpop.f32.mrf.mxu0
      %v1683 = vadd.f32 0.0, %v1682
      %v1684 = vpop.f32.mrf.mxu0
      %v1685 = vadd.f32 0.0, %v1684
      %v1686 = vpop.f32.mrf.mxu0
      %v1687 = vadd.f32 0.0, %v1686
      %v1688 = vpop.f32.mrf.mxu0
      %v1689 = vadd.f32 0.0, %v1688
      %1690 = vmatprep.mubr.bf16.mxu0 0
      %1691 = vmatmul.mubr.bf16.gmra.mxu0 %v696
      %v1692 = vpop.f32.mrf.mxu0
      %v1693 = vadd.f32 0.0, %v1692
      %v1694 = vpop.f32.mrf.mxu0
      %v1695 = vadd.f32 0.0, %v1694
      %v1696 = vpop.f32.mrf.mxu0
      %v1697 = vadd.f32 0.0, %v1696
      %v1698 = vpop.f32.mrf.mxu0
      %v1699 = vadd.f32 0.0, %v1698
      %1700 = vmatprep.mubr.bf16.mxu0 0
      %1701 = vmatmul.mubr.bf16.gmra.mxu0 %v699
      %v1702 = vpop.f32.mrf.mxu0
      %v1703 = vadd.f32 0.0, %v1702
      %v1704 = vpop.f32.mrf.mxu0
      %v1705 = vadd.f32 0.0, %v1704
      %v1706 = vpop.f32.mrf.mxu0
      %v1707 = vadd.f32 0.0, %v1706
      %v1708 = vpop.f32.mrf.mxu0
      %v1709 = vadd.f32 0.0, %v1708
      %1710 = vmatprep.mubr.bf16.mxu0 0
      %1711 = vmatmul.mubr.bf16.gmra.mxu0 %v702
      %v1712 = vpop.f32.mrf.mxu0
      %v1713 = vadd.f32 0.0, %v1712
      %v1714 = vpop.f32.mrf.mxu0
      %v1715 = vadd.f32 0.0, %v1714
      %v1716 = vpop.f32.mrf.mxu0
      %v1717 = vadd.f32 0.0, %v1716
      %v1718 = vpop.f32.mrf.mxu0
      %v1719 = vadd.f32 0.0, %v1718
      %1720 = vmatprep.mubr.bf16.mxu0 0
      %1721 = vmatmul.mubr.bf16.gmra.mxu0 %v705
      %v1722 = vpop.f32.mrf.mxu0
      %v1723 = vadd.f32 0.0, %v1722
      %v1724 = vpop.f32.mrf.mxu0
      %v1725 = vadd.f32 0.0, %v1724
      %v1726 = vpop.f32.mrf.mxu0
      %v1727 = vadd.f32 0.0, %v1726
      %v1728 = vpop.f32.mrf.mxu0
      %v1729 = vadd.f32 0.0, %v1728
      %1730 = vmatprep.mubr.bf16.mxu0 0
      %1731 = vmatmul.mubr.bf16.gmra.mxu0 %v708
      %v1732 = vpop.f32.mrf.mxu0
      %v1733 = vadd.f32 0.0, %v1732
      %v1734 = vpop.f32.mrf.mxu0
      %v1735 = vadd.f32 0.0, %v1734
      %v1736 = vpop.f32.mrf.mxu0
      %v1737 = vadd.f32 0.0, %v1736
      %v1738 = vpop.f32.mrf.mxu0
      %v1739 = vadd.f32 0.0, %v1738
      %1740 = vmatprep.mubr.bf16.mxu0 0
      %1741 = vmatmul.mubr.bf16.gmra.mxu0 %v711
      %v1742 = vpop.f32.mrf.mxu0
      %v1743 = vadd.f32 0.0, %v1742
      %v1744 = vpop.f32.mrf.mxu0
      %v1745 = vadd.f32 0.0, %v1744
      %v1746 = vpop.f32.mrf.mxu0
      %v1747 = vadd.f32 0.0, %v1746
      %v1748 = vpop.f32.mrf.mxu0
      %v1749 = vadd.f32 0.0, %v1748
      %1750 = vmatprep.mubr.bf16.mxu0 0
      %1751 = vmatmul.mubr.bf16.gmra.mxu0 %v714
      %v1752 = vpop.f32.mrf.mxu0
      %v1753 = vadd.f32 0.0, %v1752
      %v1754 = vpop.f32.mrf.mxu0
      %v1755 = vadd.f32 0.0, %v1754
      %v1756 = vpop.f32.mrf.mxu0
      %v1757 = vadd.f32 0.0, %v1756
      %v1758 = vpop.f32.mrf.mxu0
      %v1759 = vadd.f32 0.0, %v1758
      %1760 = vmatprep.mubr.bf16.mxu0 0
      %1761 = vmatmul.mubr.bf16.gmra.mxu0 %v717
      %v1762 = vpop.f32.mrf.mxu0
      %v1763 = vadd.f32 0.0, %v1762
      %v1764 = vpop.f32.mrf.mxu0
      %v1765 = vadd.f32 0.0, %v1764
      %v1766 = vpop.f32.mrf.mxu0
      %v1767 = vadd.f32 0.0, %v1766
      %v1768 = vpop.f32.mrf.mxu0
      %v1769 = vadd.f32 0.0, %v1768
      %1770 = vmatprep.mubr.bf16.mxu0 0
      %1771 = vmatmul.mubr.bf16.gmra.mxu0 %v720
      %v1772 = vpop.f32.mrf.mxu0
      %v1773 = vadd.f32 0.0, %v1772
      %v1774 = vpop.f32.mrf.mxu0
      %v1775 = vadd.f32 0.0, %v1774
      %v1776 = vpop.f32.mrf.mxu0
      %v1777 = vadd.f32 0.0, %v1776
      %v1778 = vpop.f32.mrf.mxu0
      %v1779 = vadd.f32 0.0, %v1778
      %1780 = vmatprep.mubr.bf16.mxu0 0
      %1781 = vmatmul.mubr.bf16.gmra.mxu0 %v723
      %v1782 = vpop.f32.mrf.mxu0
      %v1783 = vadd.f32 0.0, %v1782
      %v1784 = vpop.f32.mrf.mxu0
      %v1785 = vadd.f32 0.0, %v1784
      %v1786 = vpop.f32.mrf.mxu0
      %v1787 = vadd.f32 0.0, %v1786
      %v1788 = vpop.f32.mrf.mxu0
      %v1789 = vadd.f32 0.0, %v1788
      %1790 = vmatprep.mubr.bf16.mxu0 0
      %1791 = vmatmul.mubr.bf16.gmra.mxu0 %v726
      %v1792 = vpop.f32.mrf.mxu0
      %v1793 = vadd.f32 0.0, %v1792
      %v1794 = vpop.f32.mrf.mxu0
      %v1795 = vadd.f32 0.0, %v1794
      %v1796 = vpop.f32.mrf.mxu0
      %v1797 = vadd.f32 0.0, %v1796
      %v1798 = vpop.f32.mrf.mxu0
      %v1799 = vadd.f32 0.0, %v1798
      %1800 = vmatprep.mubr.bf16.mxu0 0
      %1801 = vmatmul.mubr.bf16.gmra.mxu0 %v729
      %v1802 = vpop.f32.mrf.mxu0
      %v1803 = vadd.f32 0.0, %v1802
      %v1804 = vpop.f32.mrf.mxu0
      %v1805 = vadd.f32 0.0, %v1804
      %v1806 = vpop.f32.mrf.mxu0
      %v1807 = vadd.f32 0.0, %v1806
      %v1808 = vpop.f32.mrf.mxu0
      %v1809 = vadd.f32 0.0, %v1808
      %1810 = vmatprep.mubr.bf16.mxu0 0
      %1811 = vmatmul.mubr.bf16.gmra.mxu0 %v732
      %v1812 = vpop.f32.mrf.mxu0
      %v1813 = vadd.f32 0.0, %v1812
      %v1814 = vpop.f32.mrf.mxu0
      %v1815 = vadd.f32 0.0, %v1814
      %v1816 = vpop.f32.mrf.mxu0
      %v1817 = vadd.f32 0.0, %v1816
      %v1818 = vpop.f32.mrf.mxu0
      %v1819 = vadd.f32 0.0, %v1818
      %1820 = vmatprep.mubr.bf16.mxu0 0
      %1821 = vmatmul.mubr.bf16.gmra.mxu0 %v735
      %v1822 = vpop.f32.mrf.mxu0
      %v1823 = vadd.f32 0.0, %v1822
      %v1824 = vpop.f32.mrf.mxu0
      %v1825 = vadd.f32 0.0, %v1824
      %v1826 = vpop.f32.mrf.mxu0
      %v1827 = vadd.f32 0.0, %v1826
      %v1828 = vpop.f32.mrf.mxu0
      %v1829 = vadd.f32 0.0, %v1828
      %1830 = vmatprep.mubr.bf16.mxu0 0
      %1831 = vmatmul.mubr.bf16.gmra.mxu0 %v738
      %v1832 = vpop.f32.mrf.mxu0
      %v1833 = vadd.f32 0.0, %v1832
      %v1834 = vpop.f32.mrf.mxu0
      %v1835 = vadd.f32 0.0, %v1834
      %v1836 = vpop.f32.mrf.mxu0
      %v1837 = vadd.f32 0.0, %v1836
      %v1838 = vpop.f32.mrf.mxu0
      %v1839 = vadd.f32 0.0, %v1838
      %1840 = vmatprep.mubr.bf16.mxu0 0
      %1841 = vmatmul.mubr.bf16.gmra.mxu0 %v741
      %v1842 = vpop.f32.mrf.mxu0
      %v1843 = vadd.f32 0.0, %v1842
      %v1844 = vpop.f32.mrf.mxu0
      %v1845 = vadd.f32 0.0, %v1844
      %v1846 = vpop.f32.mrf.mxu0
      %v1847 = vadd.f32 0.0, %v1846
      %v1848 = vpop.f32.mrf.mxu0
      %v1849 = vadd.f32 0.0, %v1848
      %1850 = vmatprep.mubr.bf16.mxu0 0
      %1851 = vmatmul.mubr.bf16.gmra.mxu0 %v744
      %v1852 = vpop.f32.mrf.mxu0
      %v1853 = vadd.f32 0.0, %v1852
      %v1854 = vpop.f32.mrf.mxu0
      %v1855 = vadd.f32 0.0, %v1854
      %v1856 = vpop.f32.mrf.mxu0
      %v1857 = vadd.f32 0.0, %v1856
      %v1858 = vpop.f32.mrf.mxu0
      %v1859 = vadd.f32 0.0, %v1858
      %1860 = vmatprep.mubr.bf16.mxu0 0
      %1861 = vmatmul.mubr.bf16.gmra.mxu0 %v747
      %v1862 = vpop.f32.mrf.mxu0
      %v1863 = vadd.f32 0.0, %v1862
      %v1864 = vpop.f32.mrf.mxu0
      %v1865 = vadd.f32 0.0, %v1864
      %v1866 = vpop.f32.mrf.mxu0
      %v1867 = vadd.f32 0.0, %v1866
      %v1868 = vpop.f32.mrf.mxu0
      %v1869 = vadd.f32 0.0, %v1868
      %1870 = vmatprep.mubr.bf16.mxu0 0
      %1871 = vmatmul.mubr.bf16.gmra.mxu0 %v750
      %v1872 = vpop.f32.mrf.mxu0
      %v1873 = vadd.f32 0.0, %v1872
      %v1874 = vpop.f32.mrf.mxu0
      %v1875 = vadd.f32 0.0, %v1874
      %v1876 = vpop.f32.mrf.mxu0
      %v1877 = vadd.f32 0.0, %v1876
      %v1878 = vpop.f32.mrf.mxu0
      %v1879 = vadd.f32 0.0, %v1878
      %1880 = vmatprep.mubr.bf16.mxu0 0
      %1881 = vmatmul.mubr.bf16.gmra.mxu0 %v753
      %v1882 = vpop.f32.mrf.mxu0
      %v1883 = vadd.f32 0.0, %v1882
      %v1884 = vpop.f32.mrf.mxu0
      %v1885 = vadd.f32 0.0, %v1884
      %v1886 = vpop.f32.mrf.mxu0
      %v1887 = vadd.f32 0.0, %v1886
      %v1888 = vpop.f32.mrf.mxu0
      %v1889 = vadd.f32 0.0, %v1888
      %1890 = vmatprep.mubr.bf16.mxu0 0
      %1891 = vmatmul.mubr.bf16.gmra.mxu0 %v756
      %v1892 = vpop.f32.mrf.mxu0
      %v1893 = vadd.f32 0.0, %v1892
      %v1894 = vpop.f32.mrf.mxu0
      %v1895 = vadd.f32 0.0, %v1894
      %v1896 = vpop.f32.mrf.mxu0
      %v1897 = vadd.f32 0.0, %v1896
      %v1898 = vpop.f32.mrf.mxu0
      %v1899 = vadd.f32 0.0, %v1898
      %1900 = vmatprep.mubr.bf16.mxu0 0
      %1901 = vmatmul.mubr.bf16.gmra.mxu0 %v759
      %v1902 = vpop.f32.mrf.mxu0
      %v1903 = vadd.f32 0.0, %v1902
      %v1904 = vpop.f32.mrf.mxu0
      %v1905 = vadd.f32 0.0, %v1904
      %v1906 = vpop.f32.mrf.mxu0
      %v1907 = vadd.f32 0.0, %v1906
      %v1908 = vpop.f32.mrf.mxu0
      %v1909 = vadd.f32 0.0, %v1908
      %1910 = vmatprep.mubr.bf16.mxu0 0
      %1911 = vmatmul.mubr.bf16.gmra.mxu0 %v762
      %v1912 = vpop.f32.mrf.mxu0
      %v1913 = vadd.f32 0.0, %v1912
      %v1914 = vpop.f32.mrf.mxu0
      %v1915 = vadd.f32 0.0, %v1914
      %v1916 = vpop.f32.mrf.mxu0
      %v1917 = vadd.f32 0.0, %v1916
      %v1918 = vpop.f32.mrf.mxu0
      %v1919 = vadd.f32 0.0, %v1918
      %1920 = vmatprep.mubr.bf16.mxu0 0
      %1921 = vmatmul.mubr.bf16.gmra.mxu0 %v765
      %v1922 = vpop.f32.mrf.mxu0
      %v1923 = vadd.f32 0.0, %v1922
      %v1924 = vpop.f32.mrf.mxu0
      %v1925 = vadd.f32 0.0, %v1924
      %v1926 = vpop.f32.mrf.mxu0
      %v1927 = vadd.f32 0.0, %v1926
      %v1928 = vpop.f32.mrf.mxu0
      %v1929 = vadd.f32 0.0, %v1928
      %1930 = vmatprep.mubr.bf16.mxu0 0
      %1931 = vmatmul.mubr.bf16.gmra.mxu0 %v768
      %v1932 = vpop.f32.mrf.mxu0
      %v1933 = vadd.f32 0.0, %v1932
      %v1934 = vpop.f32.mrf.mxu0
      %v1935 = vadd.f32 0.0, %v1934
      %v1936 = vpop.f32.mrf.mxu0
      %v1937 = vadd.f32 0.0, %v1936
      %v1938 = vpop.f32.mrf.mxu0
      %v1939 = vadd.f32 0.0, %v1938
      %1940 = vmatprep.mubr.bf16.mxu0 0
      %1941 = vmatmul.mubr.bf16.gmra.mxu0 %v771
      %v1942 = vpop.f32.mrf.mxu0
      %v1943 = vadd.f32 0.0, %v1942
      %v1944 = vpop.f32.mrf.mxu0
      %v1945 = vadd.f32 0.0, %v1944
      %v1946 = vpop.f32.mrf.mxu0
      %v1947 = vadd.f32 0.0, %v1946
      %v1948 = vpop.f32.mrf.mxu0
      %v1949 = vadd.f32 0.0, %v1948
      %1950 = vmatprep.mubr.bf16.mxu0 0
      %1951 = vmatmul.mubr.bf16.gmra.mxu0 %v774
      %v1952 = vpop.f32.mrf.mxu0
      %v1953 = vadd.f32 0.0, %v1952
      %v1954 = vpop.f32.mrf.mxu0
      %v1955 = vadd.f32 0.0, %v1954
      %v1956 = vpop.f32.mrf.mxu0
      %v1957 = vadd.f32 0.0, %v1956
      %v1958 = vpop.f32.mrf.mxu0
      %v1959 = vadd.f32 0.0, %v1958
      %1960 = vmatprep.mubr.bf16.mxu0 0
      %1961 = vmatmul.mubr.bf16.gmra.mxu0 %v777
      %v1962 = vpop.f32.mrf.mxu0
      %v1963 = vadd.f32 0.0, %v1962
      %v1964 = vpop.f32.mrf.mxu0
      %v1965 = vadd.f32 0.0, %v1964
      %v1966 = vpop.f32.mrf.mxu0
      %v1967 = vadd.f32 0.0, %v1966
      %v1968 = vpop.f32.mrf.mxu0
      %v1969 = vadd.f32 0.0, %v1968
      %1970 = vmatprep.mubr.bf16.mxu0 0
      %1971 = vmatmul.mubr.bf16.gmra.mxu0 %v780
      %v1972 = vpop.f32.mrf.mxu0
      %v1973 = vadd.f32 0.0, %v1972
      %v1974 = vpop.f32.mrf.mxu0
      %v1975 = vadd.f32 0.0, %v1974
      %v1976 = vpop.f32.mrf.mxu0
      %v1977 = vadd.f32 0.0, %v1976
      %v1978 = vpop.f32.mrf.mxu0
      %v1979 = vadd.f32 0.0, %v1978
      %1980 = vdwg.mxu0
      %v1989 = vunpack.c.l.b16 %v560
      %v1990 = vunpack.c.h.b16 %v560
      %v1991 = vunpack.c.l.b16 %v561
      %v1992 = vunpack.c.h.b16 %v561
      %v1993 = vunpack.c.l.b16 %v562
      %v1994 = vunpack.c.h.b16 %v562
      %v1995 = vunpack.c.l.b16 %v563
      %v1996 = vunpack.c.h.b16 %v563
      %v1997 = vunpack.c.l.b16 %v564
      %v1998 = vunpack.c.h.b16 %v564
      %v1999 = vunpack.c.l.b16 %v565
      %v2000 = vunpack.c.h.b16 %v565
      %v2001 = vunpack.c.l.b16 %v566
      %v2002 = vunpack.c.h.b16 %v566
      %v2003 = vunpack.c.l.b16 %v567
      %v2004 = vunpack.c.h.b16 %v567
      %v2005 = vpack.c.b16 %v1993, %v1989
      %v2006 = vpack.c.b16 %v1994, %v1990
      %v2007 = vpack.c.b16 %v1995, %v1991
      %v2008 = vpack.c.b16 %v1996, %v1992
      %v2009 = vpack.c.b16 %v2001, %v1997
      %v2010 = vpack.c.b16 %v2002, %v1998
      %v2011 = vpack.c.b16 %v2003, %v1999
      %v2012 = vpack.c.b16 %v2004, %v2000
      %v2018 = vsel %vm613, %v503, 0
      %v2021 = vsel %vm782, %v2009, 0
      %v2024 = vsel %vm782, %v2010, 0
      %v2027 = vsel %vm782, %v2011, 0
      %v2030 = vsel %vm782, %v2012, 0
      %2032 = vmatprep.subr.bf16.mxu0 0
      %2033 = vmatpush1.bf16.msra.mxu0 0
      %2034 = vmatprep.subr.bf16.mxu0 0
      %2035 = vmatpush1.bf16.msra.mxu0 0
      %2036 = vmatprep.subr.bf16.mxu0 0
      %2037 = vmatpush1.bf16.msra.mxu0 0
      %2038 = vmatprep.subr.bf16.mxu0 0
      %2039 = vmatpush1.bf16.msra.mxu0 0
      %2040 = vmatprep.subr.bf16.mxu0 0
      %2041 = vmatpush1.bf16.msra.mxu0 0
      %2042 = vmatprep.subr.bf16.mxu0 0
      %2043 = vmatpush1.bf16.msra.mxu0 0
      %2044 = vmatprep.subr.bf16.mxu0 %v2024
      %2045 = vmatpush1.bf16.msra.mxu0 %v2021
      %2046 = vmatprep.subr.bf16.mxu0 %v2006
      %2047 = vmatpush1.bf16.msra.mxu0 %v2005
      %2048 = vmatprep.subr.bf16.mxu0 0
      %2049 = vmatpush2.bf16.msra.mxu0 0
      %2050 = vmatprep.subr.bf16.mxu0 0
      %2051 = vmatpush2.bf16.msra.mxu0 0
      %2052 = vmatprep.subr.bf16.mxu0 0
      %2053 = vmatpush2.bf16.msra.mxu0 0
      %2054 = vmatprep.subr.bf16.mxu0 0
      %2055 = vmatpush2.bf16.msra.mxu0 0
      %2056 = vmatprep.subr.bf16.mxu0 0
      %2057 = vmatpush2.bf16.msra.mxu0 0
      %2058 = vmatprep.subr.bf16.mxu0 0
      %2059 = vmatpush2.bf16.msra.mxu0 0
      %2060 = vmatprep.subr.bf16.mxu0 0
      %2061 = vmatpush2.bf16.msra.mxu0 0
      %2062 = vmatprep.subr.bf16.mxu0 0
      %2063 = vmatpush2.bf16.msra.mxu0 0
      %2064 = vmatprep.mubr.bf16.mxu0 0
      %2065 = vmatmul.mubr.bf16.gmra.mxu0 %v2018
      %v2066 = vpop.f32.mrf.mxu0
      %v2067 = vadd.f32 %v830, %v2066
      %v2068 = vpop.f32.mrf.mxu0
      %v2069 = vadd.f32 %v832, %v2068
      %v2070 = vpop.f32.mrf.mxu0
      %v2071 = vadd.f32 %v834, %v2070
      %v2072 = vpop.f32.mrf.mxu0
      %v2073 = vadd.f32 %v836, %v2072
      %2074 = vmatprep.mubr.bf16.mxu0 0
      %2075 = vmatmul.mubr.bf16.gmra.mxu0 %v2018
      %v2076 = vpop.f32.mrf.mxu0
      %v2077 = vadd.f32 %v840, %v2076
      %v2078 = vpop.f32.mrf.mxu0
      %v2079 = vadd.f32 %v842, %v2078
      %v2080 = vpop.f32.mrf.mxu0
      %v2081 = vadd.f32 %v844, %v2080
      %v2082 = vpop.f32.mrf.mxu0
      %v2083 = vadd.f32 %v846, %v2082
      %2084 = vmatprep.mubr.bf16.mxu0 0
      %2085 = vmatmul.mubr.bf16.gmra.mxu0 %v615
      %v2086 = vpop.f32.mrf.mxu0
      %v2087 = vadd.f32 %v850, %v2086
      %v2088 = vpop.f32.mrf.mxu0
      %v2089 = vadd.f32 %v852, %v2088
      %v2090 = vpop.f32.mrf.mxu0
      %v2091 = vadd.f32 %v854, %v2090
      %v2092 = vpop.f32.mrf.mxu0
      %v2093 = vadd.f32 %v856, %v2092
      %2094 = vmatprep.mubr.bf16.mxu0 0
      %2095 = vmatmul.mubr.bf16.gmra.mxu0 %v618
      %v2096 = vpop.f32.mrf.mxu0
      %v2097 = vadd.f32 %v860, %v2096
      %v2098 = vpop.f32.mrf.mxu0
      %v2099 = vadd.f32 %v862, %v2098
      %v2100 = vpop.f32.mrf.mxu0
      %v2101 = vadd.f32 %v864, %v2100
      %v2102 = vpop.f32.mrf.mxu0
      %v2103 = vadd.f32 %v866, %v2102
      %2104 = vmatprep.mubr.bf16.mxu0 0
      %2105 = vmatmul.mubr.bf16.gmra.mxu0 %v621
      %v2106 = vpop.f32.mrf.mxu0
      %v2107 = vadd.f32 %v870, %v2106
      %v2108 = vpop.f32.mrf.mxu0
      %v2109 = vadd.f32 %v872, %v2108
      %v2110 = vpop.f32.mrf.mxu0
      %v2111 = vadd.f32 %v874, %v2110
      %v2112 = vpop.f32.mrf.mxu0
      %v2113 = vadd.f32 %v876, %v2112
      %2114 = vmatprep.mubr.bf16.mxu0 0
      %2115 = vmatmul.mubr.bf16.gmra.mxu0 %v624
      %v2116 = vpop.f32.mrf.mxu0
      %v2117 = vadd.f32 %v880, %v2116
      %v2118 = vpop.f32.mrf.mxu0
      %v2119 = vadd.f32 %v882, %v2118
      %v2120 = vpop.f32.mrf.mxu0
      %v2121 = vadd.f32 %v884, %v2120
      %v2122 = vpop.f32.mrf.mxu0
      %v2123 = vadd.f32 %v886, %v2122
      %2124 = vmatprep.mubr.bf16.mxu0 0
      %2125 = vmatmul.mubr.bf16.gmra.mxu0 %v627
      %v2126 = vpop.f32.mrf.mxu0
      %v2127 = vadd.f32 %v890, %v2126
      %v2128 = vpop.f32.mrf.mxu0
      %v2129 = vadd.f32 %v892, %v2128
      %v2130 = vpop.f32.mrf.mxu0
      %v2131 = vadd.f32 %v894, %v2130
      %v2132 = vpop.f32.mrf.mxu0
      %v2133 = vadd.f32 %v896, %v2132
      %2134 = vmatprep.mubr.bf16.mxu0 0
      %2135 = vmatmul.mubr.bf16.gmra.mxu0 %v630
      %v2136 = vpop.f32.mrf.mxu0
      %v2137 = vadd.f32 %v900, %v2136
      %v2138 = vpop.f32.mrf.mxu0
      %v2139 = vadd.f32 %v902, %v2138
      %v2140 = vpop.f32.mrf.mxu0
      %v2141 = vadd.f32 %v904, %v2140
      %v2142 = vpop.f32.mrf.mxu0
      %v2143 = vadd.f32 %v906, %v2142
      %2144 = vmatprep.mubr.bf16.mxu0 0
      %2145 = vmatmul.mubr.bf16.gmra.mxu0 %v633
      %v2146 = vpop.f32.mrf.mxu0
      %v2147 = vadd.f32 %v910, %v2146
      %v2148 = vpop.f32.mrf.mxu0
      %v2149 = vadd.f32 %v912, %v2148
      %v2150 = vpop.f32.mrf.mxu0
      %v2151 = vadd.f32 %v914, %v2150
      %v2152 = vpop.f32.mrf.mxu0
      %v2153 = vadd.f32 %v916, %v2152
      %2154 = vmatprep.mubr.bf16.mxu0 0
      %2155 = vmatmul.mubr.bf16.gmra.mxu0 %v636
      %v2156 = vpop.f32.mrf.mxu0
      %v2157 = vadd.f32 %v920, %v2156
      %v2158 = vpop.f32.mrf.mxu0
      %v2159 = vadd.f32 %v922, %v2158
      %v2160 = vpop.f32.mrf.mxu0
      %v2161 = vadd.f32 %v924, %v2160
      %v2162 = vpop.f32.mrf.mxu0
      %v2163 = vadd.f32 %v926, %v2162
      %2164 = vmatprep.mubr.bf16.mxu0 0
      %2165 = vmatmul.mubr.bf16.gmra.mxu0 %v639
      %v2166 = vpop.f32.mrf.mxu0
      %v2167 = vadd.f32 %v930, %v2166
      %v2168 = vpop.f32.mrf.mxu0
      %v2169 = vadd.f32 %v932, %v2168
      %v2170 = vpop.f32.mrf.mxu0
      %v2171 = vadd.f32 %v934, %v2170
      %v2172 = vpop.f32.mrf.mxu0
      %v2173 = vadd.f32 %v936, %v2172
      %2174 = vmatprep.mubr.bf16.mxu0 0
      %2175 = vmatmul.mubr.bf16.gmra.mxu0 %v642
      %v2176 = vpop.f32.mrf.mxu0
      %v2177 = vadd.f32 %v940, %v2176
      %v2178 = vpop.f32.mrf.mxu0
      %v2179 = vadd.f32 %v942, %v2178
      %v2180 = vpop.f32.mrf.mxu0
      %v2181 = vadd.f32 %v944, %v2180
      %v2182 = vpop.f32.mrf.mxu0
      %v2183 = vadd.f32 %v946, %v2182
      %2184 = vmatprep.mubr.bf16.mxu0 0
      %2185 = vmatmul.mubr.bf16.gmra.mxu0 %v645
      %v2186 = vpop.f32.mrf.mxu0
      %v2187 = vadd.f32 %v950, %v2186
      %v2188 = vpop.f32.mrf.mxu0
      %v2189 = vadd.f32 %v952, %v2188
      %v2190 = vpop.f32.mrf.mxu0
      %v2191 = vadd.f32 %v954, %v2190
      %v2192 = vpop.f32.mrf.mxu0
      %v2193 = vadd.f32 %v956, %v2192
      %2194 = vmatprep.mubr.bf16.mxu0 0
      %2195 = vmatmul.mubr.bf16.gmra.mxu0 %v648
      %v2196 = vpop.f32.mrf.mxu0
      %v2197 = vadd.f32 %v960, %v2196
      %v2198 = vpop.f32.mrf.mxu0
      %v2199 = vadd.f32 %v962, %v2198
      %v2200 = vpop.f32.mrf.mxu0
      %v2201 = vadd.f32 %v964, %v2200
      %v2202 = vpop.f32.mrf.mxu0
      %v2203 = vadd.f32 %v966, %v2202
      %2204 = vmatprep.mubr.bf16.mxu0 0
      %2205 = vmatmul.mubr.bf16.gmra.mxu0 %v651
      %v2206 = vpop.f32.mrf.mxu0
      %v2207 = vadd.f32 %v970, %v2206
      %v2208 = vpop.f32.mrf.mxu0
      %v2209 = vadd.f32 %v972, %v2208
      %v2210 = vpop.f32.mrf.mxu0
      %v2211 = vadd.f32 %v974, %v2210
      %v2212 = vpop.f32.mrf.mxu0
      %v2213 = vadd.f32 %v976, %v2212
      %2214 = vmatprep.mubr.bf16.mxu0 0
      %2215 = vmatmul.mubr.bf16.gmra.mxu0 %v654
      %v2216 = vpop.f32.mrf.mxu0
      %v2217 = vadd.f32 %v980, %v2216
      %v2218 = vpop.f32.mrf.mxu0
      %v2219 = vadd.f32 %v982, %v2218
      %v2220 = vpop.f32.mrf.mxu0
      %v2221 = vadd.f32 %v984, %v2220
      %v2222 = vpop.f32.mrf.mxu0
      %v2223 = vadd.f32 %v986, %v2222
      %2224 = vmatprep.mubr.bf16.mxu0 0
      %2225 = vmatmul.mubr.bf16.gmra.mxu0 %v657
      %v2226 = vpop.f32.mrf.mxu0
      %v2227 = vadd.f32 %v990, %v2226
      %v2228 = vpop.f32.mrf.mxu0
      %v2229 = vadd.f32 %v992, %v2228
      %v2230 = vpop.f32.mrf.mxu0
      %v2231 = vadd.f32 %v994, %v2230
      %v2232 = vpop.f32.mrf.mxu0
      %v2233 = vadd.f32 %v996, %v2232
      %2234 = vmatprep.mubr.bf16.mxu0 0
      %2235 = vmatmul.mubr.bf16.gmra.mxu0 %v660
      %v2236 = vpop.f32.mrf.mxu0
      %v2237 = vadd.f32 %v1000, %v2236
      %v2238 = vpop.f32.mrf.mxu0
      %v2239 = vadd.f32 %v1002, %v2238
      %v2240 = vpop.f32.mrf.mxu0
      %v2241 = vadd.f32 %v1004, %v2240
      %v2242 = vpop.f32.mrf.mxu0
      %v2243 = vadd.f32 %v1006, %v2242
      %2244 = vmatprep.mubr.bf16.mxu0 0
      %2245 = vmatmul.mubr.bf16.gmra.mxu0 %v663
      %v2246 = vpop.f32.mrf.mxu0
      %v2247 = vadd.f32 %v1010, %v2246
      %v2248 = vpop.f32.mrf.mxu0
      %v2249 = vadd.f32 %v1012, %v2248
      %v2250 = vpop.f32.mrf.mxu0
      %v2251 = vadd.f32 %v1014, %v2250
      %v2252 = vpop.f32.mrf.mxu0
      %v2253 = vadd.f32 %v1016, %v2252
      %2254 = vmatprep.mubr.bf16.mxu0 0
      %2255 = vmatmul.mubr.bf16.gmra.mxu0 %v666
      %v2256 = vpop.f32.mrf.mxu0
      %v2257 = vadd.f32 %v1020, %v2256
      %v2258 = vpop.f32.mrf.mxu0
      %v2259 = vadd.f32 %v1022, %v2258
      %v2260 = vpop.f32.mrf.mxu0
      %v2261 = vadd.f32 %v1024, %v2260
      %v2262 = vpop.f32.mrf.mxu0
      %v2263 = vadd.f32 %v1026, %v2262
      %2264 = vmatprep.mubr.bf16.mxu0 0
      %2265 = vmatmul.mubr.bf16.gmra.mxu0 %v669
      %v2266 = vpop.f32.mrf.mxu0
      %v2267 = vadd.f32 %v1030, %v2266
      %v2268 = vpop.f32.mrf.mxu0
      %v2269 = vadd.f32 %v1032, %v2268
      %v2270 = vpop.f32.mrf.mxu0
      %v2271 = vadd.f32 %v1034, %v2270
      %v2272 = vpop.f32.mrf.mxu0
      %v2273 = vadd.f32 %v1036, %v2272
      %2274 = vmatprep.mubr.bf16.mxu0 0
      %2275 = vmatmul.mubr.bf16.gmra.mxu0 %v672
      %v2276 = vpop.f32.mrf.mxu0
      %v2277 = vadd.f32 %v1040, %v2276
      %v2278 = vpop.f32.mrf.mxu0
      %v2279 = vadd.f32 %v1042, %v2278
      %v2280 = vpop.f32.mrf.mxu0
      %v2281 = vadd.f32 %v1044, %v2280
      %v2282 = vpop.f32.mrf.mxu0
      %v2283 = vadd.f32 %v1046, %v2282
      %2284 = vmatprep.mubr.bf16.mxu0 0
      %2285 = vmatmul.mubr.bf16.gmra.mxu0 %v675
      %v2286 = vpop.f32.mrf.mxu0
      %v2287 = vadd.f32 %v1050, %v2286
      %v2288 = vpop.f32.mrf.mxu0
      %v2289 = vadd.f32 %v1052, %v2288
      %v2290 = vpop.f32.mrf.mxu0
      %v2291 = vadd.f32 %v1054, %v2290
      %v2292 = vpop.f32.mrf.mxu0
      %v2293 = vadd.f32 %v1056, %v2292
      %2294 = vmatprep.mubr.bf16.mxu0 0
      %2295 = vmatmul.mubr.bf16.gmra.mxu0 %v678
      %v2296 = vpop.f32.mrf.mxu0
      %v2297 = vadd.f32 %v1060, %v2296
      %v2298 = vpop.f32.mrf.mxu0
      %v2299 = vadd.f32 %v1062, %v2298
      %v2300 = vpop.f32.mrf.mxu0
      %v2301 = vadd.f32 %v1064, %v2300
      %v2302 = vpop.f32.mrf.mxu0
      %v2303 = vadd.f32 %v1066, %v2302
      %2304 = vmatprep.mubr.bf16.mxu0 0
      %2305 = vmatmul.mubr.bf16.gmra.mxu0 %v681
      %v2306 = vpop.f32.mrf.mxu0
      %v2307 = vadd.f32 %v1070, %v2306
      %v2308 = vpop.f32.mrf.mxu0
      %v2309 = vadd.f32 %v1072, %v2308
      %v2310 = vpop.f32.mrf.mxu0
      %v2311 = vadd.f32 %v1074, %v2310
      %v2312 = vpop.f32.mrf.mxu0
      %v2313 = vadd.f32 %v1076, %v2312
      %2314 = vmatprep.mubr.bf16.mxu0 0
      %2315 = vmatmul.mubr.bf16.gmra.mxu0 %v684
      %v2316 = vpop.f32.mrf.mxu0
      %v2317 = vadd.f32 %v1080, %v2316
      %v2318 = vpop.f32.mrf.mxu0
      %v2319 = vadd.f32 %v1082, %v2318
      %v2320 = vpop.f32.mrf.mxu0
      %v2321 = vadd.f32 %v1084, %v2320
      %v2322 = vpop.f32.mrf.mxu0
      %v2323 = vadd.f32 %v1086, %v2322
      %2324 = vmatprep.mubr.bf16.mxu0 0
      %2325 = vmatmul.mubr.bf16.gmra.mxu0 %v687
      %v2326 = vpop.f32.mrf.mxu0
      %v2327 = vadd.f32 %v1090, %v2326
      %v2328 = vpop.f32.mrf.mxu0
      %v2329 = vadd.f32 %v1092, %v2328
      %v2330 = vpop.f32.mrf.mxu0
      %v2331 = vadd.f32 %v1094, %v2330
      %v2332 = vpop.f32.mrf.mxu0
      %v2333 = vadd.f32 %v1096, %v2332
      %2334 = vmatprep.mubr.bf16.mxu0 0
      %2335 = vmatmul.mubr.bf16.gmra.mxu0 %v690
      %v2336 = vpop.f32.mrf.mxu0
      %v2337 = vadd.f32 %v1100, %v2336
      %v2338 = vpop.f32.mrf.mxu0
      %v2339 = vadd.f32 %v1102, %v2338
      %v2340 = vpop.f32.mrf.mxu0
      %v2341 = vadd.f32 %v1104, %v2340
      %v2342 = vpop.f32.mrf.mxu0
      %v2343 = vadd.f32 %v1106, %v2342
      %2344 = vmatprep.mubr.bf16.mxu0 0
      %2345 = vmatmul.mubr.bf16.gmra.mxu0 %v693
      %v2346 = vpop.f32.mrf.mxu0
      %v2347 = vadd.f32 %v1110, %v2346
      %v2348 = vpop.f32.mrf.mxu0
      %v2349 = vadd.f32 %v1112, %v2348
      %v2350 = vpop.f32.mrf.mxu0
      %v2351 = vadd.f32 %v1114, %v2350
      %v2352 = vpop.f32.mrf.mxu0
      %v2353 = vadd.f32 %v1116, %v2352
      %2354 = vmatprep.mubr.bf16.mxu0 0
      %2355 = vmatmul.mubr.bf16.gmra.mxu0 %v696
      %v2356 = vpop.f32.mrf.mxu0
      %v2357 = vadd.f32 %v1120, %v2356
      %v2358 = vpop.f32.mrf.mxu0
      %v2359 = vadd.f32 %v1122, %v2358
      %v2360 = vpop.f32.mrf.mxu0
      %v2361 = vadd.f32 %v1124, %v2360
      %v2362 = vpop.f32.mrf.mxu0
      %v2363 = vadd.f32 %v1126, %v2362
      %2364 = vmatprep.mubr.bf16.mxu0 0
      %2365 = vmatmul.mubr.bf16.gmra.mxu0 %v699
      %v2366 = vpop.f32.mrf.mxu0
      %v2367 = vadd.f32 %v1130, %v2366
      %v2368 = vpop.f32.mrf.mxu0
      %v2369 = vadd.f32 %v1132, %v2368
      %v2370 = vpop.f32.mrf.mxu0
      %v2371 = vadd.f32 %v1134, %v2370
      %v2372 = vpop.f32.mrf.mxu0
      %v2373 = vadd.f32 %v1136, %v2372
      %2374 = vmatprep.mubr.bf16.mxu0 0
      %2375 = vmatmul.mubr.bf16.gmra.mxu0 %v702
      %v2376 = vpop.f32.mrf.mxu0
      %v2377 = vadd.f32 %v1140, %v2376
      %v2378 = vpop.f32.mrf.mxu0
      %v2379 = vadd.f32 %v1142, %v2378
      %v2380 = vpop.f32.mrf.mxu0
      %v2381 = vadd.f32 %v1144, %v2380
      %v2382 = vpop.f32.mrf.mxu0
      %v2383 = vadd.f32 %v1146, %v2382
      %2384 = vmatprep.mubr.bf16.mxu0 0
      %2385 = vmatmul.mubr.bf16.gmra.mxu0 %v705
      %v2386 = vpop.f32.mrf.mxu0
      %v2387 = vadd.f32 %v1150, %v2386
      %v2388 = vpop.f32.mrf.mxu0
      %v2389 = vadd.f32 %v1152, %v2388
      %v2390 = vpop.f32.mrf.mxu0
      %v2391 = vadd.f32 %v1154, %v2390
      %v2392 = vpop.f32.mrf.mxu0
      %v2393 = vadd.f32 %v1156, %v2392
      %2394 = vmatprep.mubr.bf16.mxu0 0
      %2395 = vmatmul.mubr.bf16.gmra.mxu0 %v708
      %v2396 = vpop.f32.mrf.mxu0
      %v2397 = vadd.f32 %v1160, %v2396
      %v2398 = vpop.f32.mrf.mxu0
      %v2399 = vadd.f32 %v1162, %v2398
      %v2400 = vpop.f32.mrf.mxu0
      %v2401 = vadd.f32 %v1164, %v2400
      %v2402 = vpop.f32.mrf.mxu0
      %v2403 = vadd.f32 %v1166, %v2402
      %2404 = vmatprep.mubr.bf16.mxu0 0
      %2405 = vmatmul.mubr.bf16.gmra.mxu0 %v711
      %v2406 = vpop.f32.mrf.mxu0
      %v2407 = vadd.f32 %v1170, %v2406
      %v2408 = vpop.f32.mrf.mxu0
      %v2409 = vadd.f32 %v1172, %v2408
      %v2410 = vpop.f32.mrf.mxu0
      %v2411 = vadd.f32 %v1174, %v2410
      %v2412 = vpop.f32.mrf.mxu0
      %v2413 = vadd.f32 %v1176, %v2412
      %2414 = vmatprep.mubr.bf16.mxu0 0
      %2415 = vmatmul.mubr.bf16.gmra.mxu0 %v714
      %v2416 = vpop.f32.mrf.mxu0
      %v2417 = vadd.f32 %v1180, %v2416
      %v2418 = vpop.f32.mrf.mxu0
      %v2419 = vadd.f32 %v1182, %v2418
      %v2420 = vpop.f32.mrf.mxu0
      %v2421 = vadd.f32 %v1184, %v2420
      %v2422 = vpop.f32.mrf.mxu0
      %v2423 = vadd.f32 %v1186, %v2422
      %2424 = vmatprep.mubr.bf16.mxu0 0
      %2425 = vmatmul.mubr.bf16.gmra.mxu0 %v717
      %v2426 = vpop.f32.mrf.mxu0
      %v2427 = vadd.f32 %v1190, %v2426
      %v2428 = vpop.f32.mrf.mxu0
      %v2429 = vadd.f32 %v1192, %v2428
      %v2430 = vpop.f32.mrf.mxu0
      %v2431 = vadd.f32 %v1194, %v2430
      %v2432 = vpop.f32.mrf.mxu0
      %v2433 = vadd.f32 %v1196, %v2432
      %2434 = vmatprep.mubr.bf16.mxu0 0
      %2435 = vmatmul.mubr.bf16.gmra.mxu0 %v720
      %v2436 = vpop.f32.mrf.mxu0
      %v2437 = vadd.f32 %v1200, %v2436
      %v2438 = vpop.f32.mrf.mxu0
      %v2439 = vadd.f32 %v1202, %v2438
      %v2440 = vpop.f32.mrf.mxu0
      %v2441 = vadd.f32 %v1204, %v2440
      %v2442 = vpop.f32.mrf.mxu0
      %v2443 = vadd.f32 %v1206, %v2442
      %2444 = vmatprep.mubr.bf16.mxu0 0
      %2445 = vmatmul.mubr.bf16.gmra.mxu0 %v723
      %v2446 = vpop.f32.mrf.mxu0
      %v2447 = vadd.f32 %v1210, %v2446
      %v2448 = vpop.f32.mrf.mxu0
      %v2449 = vadd.f32 %v1212, %v2448
      %v2450 = vpop.f32.mrf.mxu0
      %v2451 = vadd.f32 %v1214, %v2450
      %v2452 = vpop.f32.mrf.mxu0
      %v2453 = vadd.f32 %v1216, %v2452
      %2454 = vmatprep.mubr.bf16.mxu0 0
      %2455 = vmatmul.mubr.bf16.gmra.mxu0 %v726
      %v2456 = vpop.f32.mrf.mxu0
      %v2457 = vadd.f32 %v1220, %v2456
      %v2458 = vpop.f32.mrf.mxu0
      %v2459 = vadd.f32 %v1222, %v2458
      %v2460 = vpop.f32.mrf.mxu0
      %v2461 = vadd.f32 %v1224, %v2460
      %v2462 = vpop.f32.mrf.mxu0
      %v2463 = vadd.f32 %v1226, %v2462
      %2464 = vmatprep.mubr.bf16.mxu0 0
      %2465 = vmatmul.mubr.bf16.gmra.mxu0 %v729
      %v2466 = vpop.f32.mrf.mxu0
      %v2467 = vadd.f32 %v1230, %v2466
      %v2468 = vpop.f32.mrf.mxu0
      %v2469 = vadd.f32 %v1232, %v2468
      %v2470 = vpop.f32.mrf.mxu0
      %v2471 = vadd.f32 %v1234, %v2470
      %v2472 = vpop.f32.mrf.mxu0
      %v2473 = vadd.f32 %v1236, %v2472
      %2474 = vmatprep.mubr.bf16.mxu0 0
      %2475 = vmatmul.mubr.bf16.gmra.mxu0 %v732
      %v2476 = vpop.f32.mrf.mxu0
      %v2477 = vadd.f32 %v1240, %v2476
      %v2478 = vpop.f32.mrf.mxu0
      %v2479 = vadd.f32 %v1242, %v2478
      %v2480 = vpop.f32.mrf.mxu0
      %v2481 = vadd.f32 %v1244, %v2480
      %v2482 = vpop.f32.mrf.mxu0
      %v2483 = vadd.f32 %v1246, %v2482
      %2484 = vmatprep.mubr.bf16.mxu0 0
      %2485 = vmatmul.mubr.bf16.gmra.mxu0 %v735
      %v2486 = vpop.f32.mrf.mxu0
      %v2487 = vadd.f32 %v1250, %v2486
      %v2488 = vpop.f32.mrf.mxu0
      %v2489 = vadd.f32 %v1252, %v2488
      %v2490 = vpop.f32.mrf.mxu0
      %v2491 = vadd.f32 %v1254, %v2490
      %v2492 = vpop.f32.mrf.mxu0
      %v2493 = vadd.f32 %v1256, %v2492
      %2494 = vmatprep.mubr.bf16.mxu0 0
      %2495 = vmatmul.mubr.bf16.gmra.mxu0 %v738
      %v2496 = vpop.f32.mrf.mxu0
      %v2497 = vadd.f32 %v1260, %v2496
      %v2498 = vpop.f32.mrf.mxu0
      %v2499 = vadd.f32 %v1262, %v2498
      %v2500 = vpop.f32.mrf.mxu0
      %v2501 = vadd.f32 %v1264, %v2500
      %v2502 = vpop.f32.mrf.mxu0
      %v2503 = vadd.f32 %v1266, %v2502
      %2504 = vmatprep.mubr.bf16.mxu0 0
      %2505 = vmatmul.mubr.bf16.gmra.mxu0 %v741
      %v2506 = vpop.f32.mrf.mxu0
      %v2507 = vadd.f32 %v1270, %v2506
      %v2508 = vpop.f32.mrf.mxu0
      %v2509 = vadd.f32 %v1272, %v2508
      %v2510 = vpop.f32.mrf.mxu0
      %v2511 = vadd.f32 %v1274, %v2510
      %v2512 = vpop.f32.mrf.mxu0
      %v2513 = vadd.f32 %v1276, %v2512
      %2514 = vmatprep.mubr.bf16.mxu0 0
      %2515 = vmatmul.mubr.bf16.gmra.mxu0 %v744
      %v2516 = vpop.f32.mrf.mxu0
      %v2517 = vadd.f32 %v1280, %v2516
      %v2518 = vpop.f32.mrf.mxu0
      %v2519 = vadd.f32 %v1282, %v2518
      %v2520 = vpop.f32.mrf.mxu0
      %v2521 = vadd.f32 %v1284, %v2520
      %v2522 = vpop.f32.mrf.mxu0
      %v2523 = vadd.f32 %v1286, %v2522
      %2524 = vmatprep.mubr.bf16.mxu0 0
      %2525 = vmatmul.mubr.bf16.gmra.mxu0 %v747
      %v2526 = vpop.f32.mrf.mxu0
      %v2527 = vadd.f32 %v1290, %v2526
      %v2528 = vpop.f32.mrf.mxu0
      %v2529 = vadd.f32 %v1292, %v2528
      %v2530 = vpop.f32.mrf.mxu0
      %v2531 = vadd.f32 %v1294, %v2530
      %v2532 = vpop.f32.mrf.mxu0
      %v2533 = vadd.f32 %v1296, %v2532
      %2534 = vmatprep.mubr.bf16.mxu0 0
      %2535 = vmatmul.mubr.bf16.gmra.mxu0 %v750
      %v2536 = vpop.f32.mrf.mxu0
      %v2537 = vadd.f32 %v1300, %v2536
      %v2538 = vpop.f32.mrf.mxu0
      %v2539 = vadd.f32 %v1302, %v2538
      %v2540 = vpop.f32.mrf.mxu0
      %v2541 = vadd.f32 %v1304, %v2540
      %v2542 = vpop.f32.mrf.mxu0
      %v2543 = vadd.f32 %v1306, %v2542
      %2544 = vmatprep.mubr.bf16.mxu0 0
      %2545 = vmatmul.mubr.bf16.gmra.mxu0 %v753
      %v2546 = vpop.f32.mrf.mxu0
      %v2547 = vadd.f32 %v1310, %v2546
      %v2548 = vpop.f32.mrf.mxu0
      %v2549 = vadd.f32 %v1312, %v2548
      %v2550 = vpop.f32.mrf.mxu0
      %v2551 = vadd.f32 %v1314, %v2550
      %v2552 = vpop.f32.mrf.mxu0
      %v2553 = vadd.f32 %v1316, %v2552
      %2554 = vmatprep.mubr.bf16.mxu0 0
      %2555 = vmatmul.mubr.bf16.gmra.mxu0 %v756
      %v2556 = vpop.f32.mrf.mxu0
      %v2557 = vadd.f32 %v1320, %v2556
      %v2558 = vpop.f32.mrf.mxu0
      %v2559 = vadd.f32 %v1322, %v2558
      %v2560 = vpop.f32.mrf.mxu0
      %v2561 = vadd.f32 %v1324, %v2560
      %v2562 = vpop.f32.mrf.mxu0
      %v2563 = vadd.f32 %v1326, %v2562
      %2564 = vmatprep.mubr.bf16.mxu0 0
      %2565 = vmatmul.mubr.bf16.gmra.mxu0 %v759
      %v2566 = vpop.f32.mrf.mxu0
      %v2567 = vadd.f32 %v1330, %v2566
      %v2568 = vpop.f32.mrf.mxu0
      %v2569 = vadd.f32 %v1332, %v2568
      %v2570 = vpop.f32.mrf.mxu0
      %v2571 = vadd.f32 %v1334, %v2570
      %v2572 = vpop.f32.mrf.mxu0
      %v2573 = vadd.f32 %v1336, %v2572
      %2574 = vmatprep.mubr.bf16.mxu0 0
      %2575 = vmatmul.mubr.bf16.gmra.mxu0 %v762
      %v2576 = vpop.f32.mrf.mxu0
      %v2577 = vadd.f32 %v1340, %v2576
      %v2578 = vpop.f32.mrf.mxu0
      %v2579 = vadd.f32 %v1342, %v2578
      %v2580 = vpop.f32.mrf.mxu0
      %v2581 = vadd.f32 %v1344, %v2580
      %v2582 = vpop.f32.mrf.mxu0
      %v2583 = vadd.f32 %v1346, %v2582
      %2584 = vmatprep.mubr.bf16.mxu0 0
      %2585 = vmatmul.mubr.bf16.gmra.mxu0 %v765
      %v2586 = vpop.f32.mrf.mxu0
      %v2587 = vadd.f32 %v1350, %v2586
      %v2588 = vpop.f32.mrf.mxu0
      %v2589 = vadd.f32 %v1352, %v2588
      %v2590 = vpop.f32.mrf.mxu0
      %v2591 = vadd.f32 %v1354, %v2590
      %v2592 = vpop.f32.mrf.mxu0
      %v2593 = vadd.f32 %v1356, %v2592
      %2594 = vmatprep.mubr.bf16.mxu0 0
      %2595 = vmatmul.mubr.bf16.gmra.mxu0 %v768
      %v2596 = vpop.f32.mrf.mxu0
      %v2597 = vadd.f32 %v1360, %v2596
      %v2598 = vpop.f32.mrf.mxu0
      %v2599 = vadd.f32 %v1362, %v2598
      %v2600 = vpop.f32.mrf.mxu0
      %v2601 = vadd.f32 %v1364, %v2600
      %v2602 = vpop.f32.mrf.mxu0
      %v2603 = vadd.f32 %v1366, %v2602
      %2604 = vmatprep.mubr.bf16.mxu0 0
      %2605 = vmatmul.mubr.bf16.gmra.mxu0 %v771
      %v2606 = vpop.f32.mrf.mxu0
      %v2607 = vadd.f32 %v1370, %v2606
      %v2608 = vpop.f32.mrf.mxu0
      %v2609 = vadd.f32 %v1372, %v2608
      %v2610 = vpop.f32.mrf.mxu0
      %v2611 = vadd.f32 %v1374, %v2610
      %v2612 = vpop.f32.mrf.mxu0
      %v2613 = vadd.f32 %v1376, %v2612
      %2614 = vmatprep.mubr.bf16.mxu0 0
      %2615 = vmatmul.mubr.bf16.gmra.mxu0 %v774
      %v2616 = vpop.f32.mrf.mxu0
      %v2617 = vadd.f32 %v1380, %v2616
      %v2618 = vpop.f32.mrf.mxu0
      %v2619 = vadd.f32 %v1382, %v2618
      %v2620 = vpop.f32.mrf.mxu0
      %v2621 = vadd.f32 %v1384, %v2620
      %v2622 = vpop.f32.mrf.mxu0
      %v2623 = vadd.f32 %v1386, %v2622
      %2624 = vdwg.mxu0
      %2625 = vmatprep.subr.bf16.mxu0 0
      %2626 = vmatpush1.bf16.msra.mxu0 0
      %2627 = vmatprep.subr.bf16.mxu0 0
      %2628 = vmatpush1.bf16.msra.mxu0 0
      %2629 = vmatprep.subr.bf16.mxu0 0
      %2630 = vmatpush1.bf16.msra.mxu0 0
      %2631 = vmatprep.subr.bf16.mxu0 0
      %2632 = vmatpush1.bf16.msra.mxu0 0
      %2633 = vmatprep.subr.bf16.mxu0 0
      %2634 = vmatpush1.bf16.msra.mxu0 0
      %2635 = vmatprep.subr.bf16.mxu0 0
      %2636 = vmatpush1.bf16.msra.mxu0 0
      %2637 = vmatprep.subr.bf16.mxu0 %v2030
      %2638 = vmatpush1.bf16.msra.mxu0 %v2027
      %2639 = vmatprep.subr.bf16.mxu0 %v2008
      %2640 = vmatpush1.bf16.msra.mxu0 %v2007
      %2641 = vmatprep.subr.bf16.mxu0 0
      %2642 = vmatpush2.bf16.msra.mxu0 0
      %2643 = vmatprep.subr.bf16.mxu0 0
      %2644 = vmatpush2.bf16.msra.mxu0 0
      %2645 = vmatprep.subr.bf16.mxu0 0
      %2646 = vmatpush2.bf16.msra.mxu0 0
      %2647 = vmatprep.subr.bf16.mxu0 0
      %2648 = vmatpush2.bf16.msra.mxu0 0
      %2649 = vmatprep.subr.bf16.mxu0 0
      %2650 = vmatpush2.bf16.msra.mxu0 0
      %2651 = vmatprep.subr.bf16.mxu0 0
      %2652 = vmatpush2.bf16.msra.mxu0 0
      %2653 = vmatprep.subr.bf16.mxu0 0
      %2654 = vmatpush2.bf16.msra.mxu0 0
      %2655 = vmatprep.subr.bf16.mxu0 0
      %2656 = vmatpush2.bf16.msra.mxu0 0
      %2657 = vmatprep.mubr.bf16.mxu0 0
      %2658 = vmatmul.mubr.bf16.gmra.mxu0 %v2018
      %v2659 = vpop.f32.mrf.mxu0
      %v2660 = vadd.f32 %v1423, %v2659
      %v2661 = vpop.f32.mrf.mxu0
      %v2662 = vadd.f32 %v1425, %v2661
      %v2663 = vpop.f32.mrf.mxu0
      %v2664 = vadd.f32 %v1427, %v2663
      %v2665 = vpop.f32.mrf.mxu0
      %v2666 = vadd.f32 %v1429, %v2665
      %2667 = vmatprep.mubr.bf16.mxu0 0
      %2668 = vmatmul.mubr.bf16.gmra.mxu0 %v2018
      %v2669 = vpop.f32.mrf.mxu0
      %v2670 = vadd.f32 %v1433, %v2669
      %v2671 = vpop.f32.mrf.mxu0
      %v2672 = vadd.f32 %v1435, %v2671
      %v2673 = vpop.f32.mrf.mxu0
      %v2674 = vadd.f32 %v1437, %v2673
      %v2675 = vpop.f32.mrf.mxu0
      %v2676 = vadd.f32 %v1439, %v2675
      %2677 = vmatprep.mubr.bf16.mxu0 0
      %2678 = vmatmul.mubr.bf16.gmra.mxu0 %v615
      %v2679 = vpop.f32.mrf.mxu0
      %v2680 = vadd.f32 %v1443, %v2679
      %v2681 = vpop.f32.mrf.mxu0
      %v2682 = vadd.f32 %v1445, %v2681
      %v2683 = vpop.f32.mrf.mxu0
      %v2684 = vadd.f32 %v1447, %v2683
      %v2685 = vpop.f32.mrf.mxu0
      %v2686 = vadd.f32 %v1449, %v2685
      %2687 = vmatprep.mubr.bf16.mxu0 0
      %2688 = vmatmul.mubr.bf16.gmra.mxu0 %v618
      %v2689 = vpop.f32.mrf.mxu0
      %v2690 = vadd.f32 %v1453, %v2689
      %v2691 = vpop.f32.mrf.mxu0
      %v2692 = vadd.f32 %v1455, %v2691
      %v2693 = vpop.f32.mrf.mxu0
      %v2694 = vadd.f32 %v1457, %v2693
      %v2695 = vpop.f32.mrf.mxu0
      %v2696 = vadd.f32 %v1459, %v2695
      %2697 = vmatprep.mubr.bf16.mxu0 0
      %2698 = vmatmul.mubr.bf16.gmra.mxu0 %v621
      %v2699 = vpop.f32.mrf.mxu0
      %v2700 = vadd.f32 %v1463, %v2699
      %v2701 = vpop.f32.mrf.mxu0
      %v2702 = vadd.f32 %v1465, %v2701
      %v2703 = vpop.f32.mrf.mxu0
      %v2704 = vadd.f32 %v1467, %v2703
      %v2705 = vpop.f32.mrf.mxu0
      %v2706 = vadd.f32 %v1469, %v2705
      %2707 = vmatprep.mubr.bf16.mxu0 0
      %2708 = vmatmul.mubr.bf16.gmra.mxu0 %v624
      %v2709 = vpop.f32.mrf.mxu0
      %v2710 = vadd.f32 %v1473, %v2709
      %v2711 = vpop.f32.mrf.mxu0
      %v2712 = vadd.f32 %v1475, %v2711
      %v2713 = vpop.f32.mrf.mxu0
      %v2714 = vadd.f32 %v1477, %v2713
      %v2715 = vpop.f32.mrf.mxu0
      %v2716 = vadd.f32 %v1479, %v2715
      %2717 = vmatprep.mubr.bf16.mxu0 0
      %2718 = vmatmul.mubr.bf16.gmra.mxu0 %v627
      %v2719 = vpop.f32.mrf.mxu0
      %v2720 = vadd.f32 %v1483, %v2719
      %v2721 = vpop.f32.mrf.mxu0
      %v2722 = vadd.f32 %v1485, %v2721
      %v2723 = vpop.f32.mrf.mxu0
      %v2724 = vadd.f32 %v1487, %v2723
      %v2725 = vpop.f32.mrf.mxu0
      %v2726 = vadd.f32 %v1489, %v2725
      %2727 = vmatprep.mubr.bf16.mxu0 0
      %2728 = vmatmul.mubr.bf16.gmra.mxu0 %v630
      %v2729 = vpop.f32.mrf.mxu0
      %v2730 = vadd.f32 %v1493, %v2729
      %v2731 = vpop.f32.mrf.mxu0
      %v2732 = vadd.f32 %v1495, %v2731
      %v2733 = vpop.f32.mrf.mxu0
      %v2734 = vadd.f32 %v1497, %v2733
      %v2735 = vpop.f32.mrf.mxu0
      %v2736 = vadd.f32 %v1499, %v2735
      %2737 = vmatprep.mubr.bf16.mxu0 0
      %2738 = vmatmul.mubr.bf16.gmra.mxu0 %v633
      %v2739 = vpop.f32.mrf.mxu0
      %v2740 = vadd.f32 %v1503, %v2739
      %v2741 = vpop.f32.mrf.mxu0
      %v2742 = vadd.f32 %v1505, %v2741
      %v2743 = vpop.f32.mrf.mxu0
      %v2744 = vadd.f32 %v1507, %v2743
      %v2745 = vpop.f32.mrf.mxu0
      %v2746 = vadd.f32 %v1509, %v2745
      %2747 = vmatprep.mubr.bf16.mxu0 0
      %2748 = vmatmul.mubr.bf16.gmra.mxu0 %v636
      %v2749 = vpop.f32.mrf.mxu0
      %v2750 = vadd.f32 %v1513, %v2749
      %v2751 = vpop.f32.mrf.mxu0
      %v2752 = vadd.f32 %v1515, %v2751
      %v2753 = vpop.f32.mrf.mxu0
      %v2754 = vadd.f32 %v1517, %v2753
      %v2755 = vpop.f32.mrf.mxu0
      %v2756 = vadd.f32 %v1519, %v2755
      %2757 = vmatprep.mubr.bf16.mxu0 0
      %2758 = vmatmul.mubr.bf16.gmra.mxu0 %v639
      %v2759 = vpop.f32.mrf.mxu0
      %v2760 = vadd.f32 %v1523, %v2759
      %v2761 = vpop.f32.mrf.mxu0
      %v2762 = vadd.f32 %v1525, %v2761
      %v2763 = vpop.f32.mrf.mxu0
      %v2764 = vadd.f32 %v1527, %v2763
      %v2765 = vpop.f32.mrf.mxu0
      %v2766 = vadd.f32 %v1529, %v2765
      %2767 = vmatprep.mubr.bf16.mxu0 0
      %2768 = vmatmul.mubr.bf16.gmra.mxu0 %v642
      %v2769 = vpop.f32.mrf.mxu0
      %v2770 = vadd.f32 %v1533, %v2769
      %v2771 = vpop.f32.mrf.mxu0
      %v2772 = vadd.f32 %v1535, %v2771
      %v2773 = vpop.f32.mrf.mxu0
      %v2774 = vadd.f32 %v1537, %v2773
      %v2775 = vpop.f32.mrf.mxu0
      %v2776 = vadd.f32 %v1539, %v2775
      %2777 = vmatprep.mubr.bf16.mxu0 0
      %2778 = vmatmul.mubr.bf16.gmra.mxu0 %v645
      %v2779 = vpop.f32.mrf.mxu0
      %v2780 = vadd.f32 %v1543, %v2779
      %v2781 = vpop.f32.mrf.mxu0
      %v2782 = vadd.f32 %v1545, %v2781
      %v2783 = vpop.f32.mrf.mxu0
      %v2784 = vadd.f32 %v1547, %v2783
      %v2785 = vpop.f32.mrf.mxu0
      %v2786 = vadd.f32 %v1549, %v2785
      %2787 = vmatprep.mubr.bf16.mxu0 0
      %2788 = vmatmul.mubr.bf16.gmra.mxu0 %v648
      %v2789 = vpop.f32.mrf.mxu0
      %v2790 = vadd.f32 %v1553, %v2789
      %v2791 = vpop.f32.mrf.mxu0
      %v2792 = vadd.f32 %v1555, %v2791
      %v2793 = vpop.f32.mrf.mxu0
      %v2794 = vadd.f32 %v1557, %v2793
      %v2795 = vpop.f32.mrf.mxu0
      %v2796 = vadd.f32 %v1559, %v2795
      %2797 = vmatprep.mubr.bf16.mxu0 0
      %2798 = vmatmul.mubr.bf16.gmra.mxu0 %v651
      %v2799 = vpop.f32.mrf.mxu0
      %v2800 = vadd.f32 %v1563, %v2799
      %v2801 = vpop.f32.mrf.mxu0
      %v2802 = vadd.f32 %v1565, %v2801
      %v2803 = vpop.f32.mrf.mxu0
      %v2804 = vadd.f32 %v1567, %v2803
      %v2805 = vpop.f32.mrf.mxu0
      %v2806 = vadd.f32 %v1569, %v2805
      %2807 = vmatprep.mubr.bf16.mxu0 0
      %2808 = vmatmul.mubr.bf16.gmra.mxu0 %v654
      %v2809 = vpop.f32.mrf.mxu0
      %v2810 = vadd.f32 %v1573, %v2809
      %v2811 = vpop.f32.mrf.mxu0
      %v2812 = vadd.f32 %v1575, %v2811
      %v2813 = vpop.f32.mrf.mxu0
      %v2814 = vadd.f32 %v1577, %v2813
      %v2815 = vpop.f32.mrf.mxu0
      %v2816 = vadd.f32 %v1579, %v2815
      %2817 = vmatprep.mubr.bf16.mxu0 0
      %2818 = vmatmul.mubr.bf16.gmra.mxu0 %v657
      %v2819 = vpop.f32.mrf.mxu0
      %v2820 = vadd.f32 %v1583, %v2819
      %v2821 = vpop.f32.mrf.mxu0
      %v2822 = vadd.f32 %v1585, %v2821
      %v2823 = vpop.f32.mrf.mxu0
      %v2824 = vadd.f32 %v1587, %v2823
      %v2825 = vpop.f32.mrf.mxu0
      %v2826 = vadd.f32 %v1589, %v2825
      %2827 = vmatprep.mubr.bf16.mxu0 0
      %2828 = vmatmul.mubr.bf16.gmra.mxu0 %v660
      %v2829 = vpop.f32.mrf.mxu0
      %v2830 = vadd.f32 %v1593, %v2829
      %v2831 = vpop.f32.mrf.mxu0
      %v2832 = vadd.f32 %v1595, %v2831
      %v2833 = vpop.f32.mrf.mxu0
      %v2834 = vadd.f32 %v1597, %v2833
      %v2835 = vpop.f32.mrf.mxu0
      %v2836 = vadd.f32 %v1599, %v2835
      %2837 = vmatprep.mubr.bf16.mxu0 0
      %2838 = vmatmul.mubr.bf16.gmra.mxu0 %v663
      %v2839 = vpop.f32.mrf.mxu0
      %v2840 = vadd.f32 %v1603, %v2839
      %v2841 = vpop.f32.mrf.mxu0
      %v2842 = vadd.f32 %v1605, %v2841
      %v2843 = vpop.f32.mrf.mxu0
      %v2844 = vadd.f32 %v1607, %v2843
      %v2845 = vpop.f32.mrf.mxu0
      %v2846 = vadd.f32 %v1609, %v2845
      %2847 = vmatprep.mubr.bf16.mxu0 0
      %2848 = vmatmul.mubr.bf16.gmra.mxu0 %v666
      %v2849 = vpop.f32.mrf.mxu0
      %v2850 = vadd.f32 %v1613, %v2849
      %v2851 = vpop.f32.mrf.mxu0
      %v2852 = vadd.f32 %v1615, %v2851
      %v2853 = vpop.f32.mrf.mxu0
      %v2854 = vadd.f32 %v1617, %v2853
      %v2855 = vpop.f32.mrf.mxu0
      %v2856 = vadd.f32 %v1619, %v2855
      %2857 = vmatprep.mubr.bf16.mxu0 0
      %2858 = vmatmul.mubr.bf16.gmra.mxu0 %v669
      %v2859 = vpop.f32.mrf.mxu0
      %v2860 = vadd.f32 %v1623, %v2859
      %v2861 = vpop.f32.mrf.mxu0
      %v2862 = vadd.f32 %v1625, %v2861
      %v2863 = vpop.f32.mrf.mxu0
      %v2864 = vadd.f32 %v1627, %v2863
      %v2865 = vpop.f32.mrf.mxu0
      %v2866 = vadd.f32 %v1629, %v2865
      %2867 = vmatprep.mubr.bf16.mxu0 0
      %2868 = vmatmul.mubr.bf16.gmra.mxu0 %v672
      %v2869 = vpop.f32.mrf.mxu0
      %v2870 = vadd.f32 %v1633, %v2869
      %v2871 = vpop.f32.mrf.mxu0
      %v2872 = vadd.f32 %v1635, %v2871
      %v2873 = vpop.f32.mrf.mxu0
      %v2874 = vadd.f32 %v1637, %v2873
      %v2875 = vpop.f32.mrf.mxu0
      %v2876 = vadd.f32 %v1639, %v2875
      %2877 = vmatprep.mubr.bf16.mxu0 0
      %2878 = vmatmul.mubr.bf16.gmra.mxu0 %v675
      %v2879 = vpop.f32.mrf.mxu0
      %v2880 = vadd.f32 %v1643, %v2879
      %v2881 = vpop.f32.mrf.mxu0
      %v2882 = vadd.f32 %v1645, %v2881
      %v2883 = vpop.f32.mrf.mxu0
      %v2884 = vadd.f32 %v1647, %v2883
      %v2885 = vpop.f32.mrf.mxu0
      %v2886 = vadd.f32 %v1649, %v2885
      %2887 = vmatprep.mubr.bf16.mxu0 0
      %2888 = vmatmul.mubr.bf16.gmra.mxu0 %v678
      %v2889 = vpop.f32.mrf.mxu0
      %v2890 = vadd.f32 %v1653, %v2889
      %v2891 = vpop.f32.mrf.mxu0
      %v2892 = vadd.f32 %v1655, %v2891
      %v2893 = vpop.f32.mrf.mxu0
      %v2894 = vadd.f32 %v1657, %v2893
      %v2895 = vpop.f32.mrf.mxu0
      %v2896 = vadd.f32 %v1659, %v2895
      %2897 = vmatprep.mubr.bf16.mxu0 0
      %2898 = vmatmul.mubr.bf16.gmra.mxu0 %v681
      %v2899 = vpop.f32.mrf.mxu0
      %v2900 = vadd.f32 %v1663, %v2899
      %v2901 = vpop.f32.mrf.mxu0
      %v2902 = vadd.f32 %v1665, %v2901
      %v2903 = vpop.f32.mrf.mxu0
      %v2904 = vadd.f32 %v1667, %v2903
      %v2905 = vpop.f32.mrf.mxu0
      %v2906 = vadd.f32 %v1669, %v2905
      %2907 = vmatprep.mubr.bf16.mxu0 0
      %2908 = vmatmul.mubr.bf16.gmra.mxu0 %v684
      %v2909 = vpop.f32.mrf.mxu0
      %v2910 = vadd.f32 %v1673, %v2909
      %v2911 = vpop.f32.mrf.mxu0
      %v2912 = vadd.f32 %v1675, %v2911
      %v2913 = vpop.f32.mrf.mxu0
      %v2914 = vadd.f32 %v1677, %v2913
      %v2915 = vpop.f32.mrf.mxu0
      %v2916 = vadd.f32 %v1679, %v2915
      %2917 = vmatprep.mubr.bf16.mxu0 0
      %2918 = vmatmul.mubr.bf16.gmra.mxu0 %v687
      %v2919 = vpop.f32.mrf.mxu0
      %v2920 = vadd.f32 %v1683, %v2919
      %v2921 = vpop.f32.mrf.mxu0
      %v2922 = vadd.f32 %v1685, %v2921
      %v2923 = vpop.f32.mrf.mxu0
      %v2924 = vadd.f32 %v1687, %v2923
      %v2925 = vpop.f32.mrf.mxu0
      %v2926 = vadd.f32 %v1689, %v2925
      %2927 = vmatprep.mubr.bf16.mxu0 0
      %2928 = vmatmul.mubr.bf16.gmra.mxu0 %v690
      %v2929 = vpop.f32.mrf.mxu0
      %v2930 = vadd.f32 %v1693, %v2929
      %v2931 = vpop.f32.mrf.mxu0
      %v2932 = vadd.f32 %v1695, %v2931
      %v2933 = vpop.f32.mrf.mxu0
      %v2934 = vadd.f32 %v1697, %v2933
      %v2935 = vpop.f32.mrf.mxu0
      %v2936 = vadd.f32 %v1699, %v2935
      %2937 = vmatprep.mubr.bf16.mxu0 0
      %2938 = vmatmul.mubr.bf16.gmra.mxu0 %v693
      %v2939 = vpop.f32.mrf.mxu0
      %v2940 = vadd.f32 %v1703, %v2939
      %v2941 = vpop.f32.mrf.mxu0
      %v2942 = vadd.f32 %v1705, %v2941
      %v2943 = vpop.f32.mrf.mxu0
      %v2944 = vadd.f32 %v1707, %v2943
      %v2945 = vpop.f32.mrf.mxu0
      %v2946 = vadd.f32 %v1709, %v2945
      %2947 = vmatprep.mubr.bf16.mxu0 0
      %2948 = vmatmul.mubr.bf16.gmra.mxu0 %v696
      %v2949 = vpop.f32.mrf.mxu0
      %v2950 = vadd.f32 %v1713, %v2949
      %v2951 = vpop.f32.mrf.mxu0
      %v2952 = vadd.f32 %v1715, %v2951
      %v2953 = vpop.f32.mrf.mxu0
      %v2954 = vadd.f32 %v1717, %v2953
      %v2955 = vpop.f32.mrf.mxu0
      %v2956 = vadd.f32 %v1719, %v2955
      %2957 = vmatprep.mubr.bf16.mxu0 0
      %2958 = vmatmul.mubr.bf16.gmra.mxu0 %v699
      %v2959 = vpop.f32.mrf.mxu0
      %v2960 = vadd.f32 %v1723, %v2959
      %v2961 = vpop.f32.mrf.mxu0
      %v2962 = vadd.f32 %v1725, %v2961
      %v2963 = vpop.f32.mrf.mxu0
      %v2964 = vadd.f32 %v1727, %v2963
      %v2965 = vpop.f32.mrf.mxu0
      %v2966 = vadd.f32 %v1729, %v2965
      %2967 = vmatprep.mubr.bf16.mxu0 0
      %2968 = vmatmul.mubr.bf16.gmra.mxu0 %v702
      %v2969 = vpop.f32.mrf.mxu0
      %v2970 = vadd.f32 %v1733, %v2969
      %v2971 = vpop.f32.mrf.mxu0
      %v2972 = vadd.f32 %v1735, %v2971
      %v2973 = vpop.f32.mrf.mxu0
      %v2974 = vadd.f32 %v1737, %v2973
      %v2975 = vpop.f32.mrf.mxu0
      %v2976 = vadd.f32 %v1739, %v2975
      %2977 = vmatprep.mubr.bf16.mxu0 0
      %2978 = vmatmul.mubr.bf16.gmra.mxu0 %v705
      %v2979 = vpop.f32.mrf.mxu0
      %v2980 = vadd.f32 %v1743, %v2979
      %v2981 = vpop.f32.mrf.mxu0
      %v2982 = vadd.f32 %v1745, %v2981
      %v2983 = vpop.f32.mrf.mxu0
      %v2984 = vadd.f32 %v1747, %v2983
      %v2985 = vpop.f32.mrf.mxu0
      %v2986 = vadd.f32 %v1749, %v2985
      %2987 = vmatprep.mubr.bf16.mxu0 0
      %2988 = vmatmul.mubr.bf16.gmra.mxu0 %v708
      %v2989 = vpop.f32.mrf.mxu0
      %v2990 = vadd.f32 %v1753, %v2989
      %v2991 = vpop.f32.mrf.mxu0
      %v2992 = vadd.f32 %v1755, %v2991
      %v2993 = vpop.f32.mrf.mxu0
      %v2994 = vadd.f32 %v1757, %v2993
      %v2995 = vpop.f32.mrf.mxu0
      %v2996 = vadd.f32 %v1759, %v2995
      %2997 = vmatprep.mubr.bf16.mxu0 0
      %2998 = vmatmul.mubr.bf16.gmra.mxu0 %v711
      %v2999 = vpop.f32.mrf.mxu0
      %v3000 = vadd.f32 %v1763, %v2999
      %v3001 = vpop.f32.mrf.mxu0
      %v3002 = vadd.f32 %v1765, %v3001
      %v3003 = vpop.f32.mrf.mxu0
      %v3004 = vadd.f32 %v1767, %v3003
      %v3005 = vpop.f32.mrf.mxu0
      %v3006 = vadd.f32 %v1769, %v3005
      %3007 = vmatprep.mubr.bf16.mxu0 0
      %3008 = vmatmul.mubr.bf16.gmra.mxu0 %v714
      %v3009 = vpop.f32.mrf.mxu0
      %v3010 = vadd.f32 %v1773, %v3009
      %v3011 = vpop.f32.mrf.mxu0
      %v3012 = vadd.f32 %v1775, %v3011
      %v3013 = vpop.f32.mrf.mxu0
      %v3014 = vadd.f32 %v1777, %v3013
      %v3015 = vpop.f32.mrf.mxu0
      %v3016 = vadd.f32 %v1779, %v3015
      %3017 = vmatprep.mubr.bf16.mxu0 0
      %3018 = vmatmul.mubr.bf16.gmra.mxu0 %v717
      %v3019 = vpop.f32.mrf.mxu0
      %v3020 = vadd.f32 %v1783, %v3019
      %v3021 = vpop.f32.mrf.mxu0
      %v3022 = vadd.f32 %v1785, %v3021
      %v3023 = vpop.f32.mrf.mxu0
      %v3024 = vadd.f32 %v1787, %v3023
      %v3025 = vpop.f32.mrf.mxu0
      %v3026 = vadd.f32 %v1789, %v3025
      %3027 = vmatprep.mubr.bf16.mxu0 0
      %3028 = vmatmul.mubr.bf16.gmra.mxu0 %v720
      %v3029 = vpop.f32.mrf.mxu0
      %v3030 = vadd.f32 %v1793, %v3029
      %v3031 = vpop.f32.mrf.mxu0
      %v3032 = vadd.f32 %v1795, %v3031
      %v3033 = vpop.f32.mrf.mxu0
      %v3034 = vadd.f32 %v1797, %v3033
      %v3035 = vpop.f32.mrf.mxu0
      %v3036 = vadd.f32 %v1799, %v3035
      %3037 = vmatprep.mubr.bf16.mxu0 0
      %3038 = vmatmul.mubr.bf16.gmra.mxu0 %v723
      %v3039 = vpop.f32.mrf.mxu0
      %v3040 = vadd.f32 %v1803, %v3039
      %v3041 = vpop.f32.mrf.mxu0
      %v3042 = vadd.f32 %v1805, %v3041
      %v3043 = vpop.f32.mrf.mxu0
      %v3044 = vadd.f32 %v1807, %v3043
      %v3045 = vpop.f32.mrf.mxu0
      %v3046 = vadd.f32 %v1809, %v3045
      %3047 = vmatprep.mubr.bf16.mxu0 0
      %3048 = vmatmul.mubr.bf16.gmra.mxu0 %v726
      %v3049 = vpop.f32.mrf.mxu0
      %v3050 = vadd.f32 %v1813, %v3049
      %v3051 = vpop.f32.mrf.mxu0
      %v3052 = vadd.f32 %v1815, %v3051
      %v3053 = vpop.f32.mrf.mxu0
      %v3054 = vadd.f32 %v1817, %v3053
      %v3055 = vpop.f32.mrf.mxu0
      %v3056 = vadd.f32 %v1819, %v3055
      %3057 = vmatprep.mubr.bf16.mxu0 0
      %3058 = vmatmul.mubr.bf16.gmra.mxu0 %v729
      %v3059 = vpop.f32.mrf.mxu0
      %v3060 = vadd.f32 %v1823, %v3059
      %v3061 = vpop.f32.mrf.mxu0
      %v3062 = vadd.f32 %v1825, %v3061
      %v3063 = vpop.f32.mrf.mxu0
      %v3064 = vadd.f32 %v1827, %v3063
      %v3065 = vpop.f32.mrf.mxu0
      %v3066 = vadd.f32 %v1829, %v3065
      %3067 = vmatprep.mubr.bf16.mxu0 0
      %3068 = vmatmul.mubr.bf16.gmra.mxu0 %v732
      %v3069 = vpop.f32.mrf.mxu0
      %v3070 = vadd.f32 %v1833, %v3069
      %v3071 = vpop.f32.mrf.mxu0
      %v3072 = vadd.f32 %v1835, %v3071
      %v3073 = vpop.f32.mrf.mxu0
      %v3074 = vadd.f32 %v1837, %v3073
      %v3075 = vpop.f32.mrf.mxu0
      %v3076 = vadd.f32 %v1839, %v3075
      %3077 = vmatprep.mubr.bf16.mxu0 0
      %3078 = vmatmul.mubr.bf16.gmra.mxu0 %v735
      %v3079 = vpop.f32.mrf.mxu0
      %v3080 = vadd.f32 %v1843, %v3079
      %v3081 = vpop.f32.mrf.mxu0
      %v3082 = vadd.f32 %v1845, %v3081
      %v3083 = vpop.f32.mrf.mxu0
      %v3084 = vadd.f32 %v1847, %v3083
      %v3085 = vpop.f32.mrf.mxu0
      %v3086 = vadd.f32 %v1849, %v3085
      %3087 = vmatprep.mubr.bf16.mxu0 0
      %3088 = vmatmul.mubr.bf16.gmra.mxu0 %v738
      %v3089 = vpop.f32.mrf.mxu0
      %v3090 = vadd.f32 %v1853, %v3089
      %v3091 = vpop.f32.mrf.mxu0
      %v3092 = vadd.f32 %v1855, %v3091
      %v3093 = vpop.f32.mrf.mxu0
      %v3094 = vadd.f32 %v1857, %v3093
      %v3095 = vpop.f32.mrf.mxu0
      %v3096 = vadd.f32 %v1859, %v3095
      %3097 = vmatprep.mubr.bf16.mxu0 0
      %3098 = vmatmul.mubr.bf16.gmra.mxu0 %v741
      %v3099 = vpop.f32.mrf.mxu0
      %v3100 = vadd.f32 %v1863, %v3099
      %v3101 = vpop.f32.mrf.mxu0
      %v3102 = vadd.f32 %v1865, %v3101
      %v3103 = vpop.f32.mrf.mxu0
      %v3104 = vadd.f32 %v1867, %v3103
      %v3105 = vpop.f32.mrf.mxu0
      %v3106 = vadd.f32 %v1869, %v3105
      %3107 = vmatprep.mubr.bf16.mxu0 0
      %3108 = vmatmul.mubr.bf16.gmra.mxu0 %v744
      %v3109 = vpop.f32.mrf.mxu0
      %v3110 = vadd.f32 %v1873, %v3109
      %v3111 = vpop.f32.mrf.mxu0
      %v3112 = vadd.f32 %v1875, %v3111
      %v3113 = vpop.f32.mrf.mxu0
      %v3114 = vadd.f32 %v1877, %v3113
      %v3115 = vpop.f32.mrf.mxu0
      %v3116 = vadd.f32 %v1879, %v3115
      %3117 = vmatprep.mubr.bf16.mxu0 0
      %3118 = vmatmul.mubr.bf16.gmra.mxu0 %v747
      %v3119 = vpop.f32.mrf.mxu0
      %v3120 = vadd.f32 %v1883, %v3119
      %v3121 = vpop.f32.mrf.mxu0
      %v3122 = vadd.f32 %v1885, %v3121
      %v3123 = vpop.f32.mrf.mxu0
      %v3124 = vadd.f32 %v1887, %v3123
      %v3125 = vpop.f32.mrf.mxu0
      %v3126 = vadd.f32 %v1889, %v3125
      %3127 = vmatprep.mubr.bf16.mxu0 0
      %3128 = vmatmul.mubr.bf16.gmra.mxu0 %v750
      %v3129 = vpop.f32.mrf.mxu0
      %v3130 = vadd.f32 %v1893, %v3129
      %v3131 = vpop.f32.mrf.mxu0
      %v3132 = vadd.f32 %v1895, %v3131
      %v3133 = vpop.f32.mrf.mxu0
      %v3134 = vadd.f32 %v1897, %v3133
      %v3135 = vpop.f32.mrf.mxu0
      %v3136 = vadd.f32 %v1899, %v3135
      %3137 = vmatprep.mubr.bf16.mxu0 0
      %3138 = vmatmul.mubr.bf16.gmra.mxu0 %v753
      %v3139 = vpop.f32.mrf.mxu0
      %v3140 = vadd.f32 %v1903, %v3139
      %v3141 = vpop.f32.mrf.mxu0
      %v3142 = vadd.f32 %v1905, %v3141
      %v3143 = vpop.f32.mrf.mxu0
      %v3144 = vadd.f32 %v1907, %v3143
      %v3145 = vpop.f32.mrf.mxu0
      %v3146 = vadd.f32 %v1909, %v3145
      %3147 = vmatprep.mubr.bf16.mxu0 0
      %3148 = vmatmul.mubr.bf16.gmra.mxu0 %v756
      %v3149 = vpop.f32.mrf.mxu0
      %v3150 = vadd.f32 %v1913, %v3149
      %v3151 = vpop.f32.mrf.mxu0
      %v3152 = vadd.f32 %v1915, %v3151
      %v3153 = vpop.f32.mrf.mxu0
      %v3154 = vadd.f32 %v1917, %v3153
      %v3155 = vpop.f32.mrf.mxu0
      %v3156 = vadd.f32 %v1919, %v3155
      %3157 = vmatprep.mubr.bf16.mxu0 0
      %3158 = vmatmul.mubr.bf16.gmra.mxu0 %v759
      %v3159 = vpop.f32.mrf.mxu0
      %v3160 = vadd.f32 %v1923, %v3159
      %v3161 = vpop.f32.mrf.mxu0
      %v3162 = vadd.f32 %v1925, %v3161
      %v3163 = vpop.f32.mrf.mxu0
      %v3164 = vadd.f32 %v1927, %v3163
      %v3165 = vpop.f32.mrf.mxu0
      %v3166 = vadd.f32 %v1929, %v3165
      %3167 = vmatprep.mubr.bf16.mxu0 0
      %3168 = vmatmul.mubr.bf16.gmra.mxu0 %v762
      %v3169 = vpop.f32.mrf.mxu0
      %v3170 = vadd.f32 %v1933, %v3169
      %v3171 = vpop.f32.mrf.mxu0
      %v3172 = vadd.f32 %v1935, %v3171
      %v3173 = vpop.f32.mrf.mxu0
      %v3174 = vadd.f32 %v1937, %v3173
      %v3175 = vpop.f32.mrf.mxu0
      %v3176 = vadd.f32 %v1939, %v3175
      %3177 = vmatprep.mubr.bf16.mxu0 0
      %3178 = vmatmul.mubr.bf16.gmra.mxu0 %v765
      %v3179 = vpop.f32.mrf.mxu0
      %v3180 = vadd.f32 %v1943, %v3179
      %v3181 = vpop.f32.mrf.mxu0
      %v3182 = vadd.f32 %v1945, %v3181
      %v3183 = vpop.f32.mrf.mxu0
      %v3184 = vadd.f32 %v1947, %v3183
      %v3185 = vpop.f32.mrf.mxu0
      %v3186 = vadd.f32 %v1949, %v3185
      %3187 = vmatprep.mubr.bf16.mxu0 0
      %3188 = vmatmul.mubr.bf16.gmra.mxu0 %v768
      %v3189 = vpop.f32.mrf.mxu0
      %v3190 = vadd.f32 %v1953, %v3189
      %v3191 = vpop.f32.mrf.mxu0
      %v3192 = vadd.f32 %v1955, %v3191
      %v3193 = vpop.f32.mrf.mxu0
      %v3194 = vadd.f32 %v1957, %v3193
      %v3195 = vpop.f32.mrf.mxu0
      %v3196 = vadd.f32 %v1959, %v3195
      %3197 = vmatprep.mubr.bf16.mxu0 0
      %3198 = vmatmul.mubr.bf16.gmra.mxu0 %v771
      %v3199 = vpop.f32.mrf.mxu0
      %v3200 = vadd.f32 %v1963, %v3199
      %v3201 = vpop.f32.mrf.mxu0
      %v3202 = vadd.f32 %v1965, %v3201
      %v3203 = vpop.f32.mrf.mxu0
      %v3204 = vadd.f32 %v1967, %v3203
      %v3205 = vpop.f32.mrf.mxu0
      %v3206 = vadd.f32 %v1969, %v3205
      %3207 = vmatprep.mubr.bf16.mxu0 0
      %3208 = vmatmul.mubr.bf16.gmra.mxu0 %v774
      %v3209 = vpop.f32.mrf.mxu0
      %v3210 = vadd.f32 %v1973, %v3209
      %v3211 = vpop.f32.mrf.mxu0
      %v3212 = vadd.f32 %v1975, %v3211
      %v3213 = vpop.f32.mrf.mxu0
      %v3214 = vadd.f32 %v1977, %v3213
      %v3215 = vpop.f32.mrf.mxu0
      %v3216 = vadd.f32 %v1979, %v3215
      %3217 = vdwg.mxu0
      %s3218 = scalar_lea.vmem %s1, 128
      %v3219 = vld [vmem:[%s3218] sm:$0xff]
      %v3220 = vld [vmem:[%s3218 + $0x8] sm:$0xff]
      %v3221 = vld [vmem:[%s3218 + $0x10] sm:$0xff]
      %v3222 = vld [vmem:[%s3218 + $0x18] sm:$0xff]
      %v3223 = vld [vmem:[%s3218 + $0x20] sm:$0xff]
      %v3224 = vld [vmem:[%s3218 + $0x28] sm:$0xff]
      %v3225 = vld [vmem:[%s3218 + $0x30] sm:$0x33]
      %v3226 = vld [vmem:[%s3218 + $0x38] sm:$0x33]
      %v3235 = vunpack.c.l.b16 %v3219
      %v3236 = vunpack.c.h.b16 %v3219
      %v3237 = vunpack.c.l.b16 %v3220
      %v3238 = vunpack.c.h.b16 %v3220
      %v3239 = vunpack.c.l.b16 %v3221
      %v3240 = vunpack.c.h.b16 %v3221
      %v3241 = vunpack.c.l.b16 %v3222
      %v3242 = vunpack.c.h.b16 %v3222
      %v3243 = vunpack.c.l.b16 %v3223
      %v3244 = vunpack.c.h.b16 %v3223
      %v3245 = vunpack.c.l.b16 %v3224
      %v3246 = vunpack.c.h.b16 %v3224
      %v3247 = vunpack.c.l.b16 %v3225
      %v3248 = vunpack.c.h.b16 %v3225
      %v3249 = vunpack.c.l.b16 %v3226
      %v3250 = vunpack.c.h.b16 %v3226
      %v3251 = vpack.c.b16 %v3239, %v3235
      %v3252 = vpack.c.b16 %v3240, %v3236
      %v3253 = vpack.c.b16 %v3241, %v3237
      %v3254 = vpack.c.b16 %v3242, %v3238
      %v3255 = vpack.c.b16 %v3247, %v3243
      %v3256 = vpack.c.b16 %v3248, %v3244
      %v3257 = vpack.c.b16 %v3249, %v3245
      %v3258 = vpack.c.b16 %v3250, %v3246
      %v3264 = vsel %vm782, %v3255, 0
      %v3267 = vsel %vm782, %v3256, 0
      %v3270 = vsel %vm782, %v3257, 0
      %v3273 = vsel %vm782, %v3258, 0
      %3275 = vmatprep.subr.bf16.mxu0 0
      %3276 = vmatpush1.bf16.msra.mxu0 0
      %3277 = vmatprep.subr.bf16.mxu0 0
      %3278 = vmatpush1.bf16.msra.mxu0 0
      %3279 = vmatprep.subr.bf16.mxu0 0
      %3280 = vmatpush1.bf16.msra.mxu0 0
      %3281 = vmatprep.subr.bf16.mxu0 0
      %3282 = vmatpush1.bf16.msra.mxu0 0
      %3283 = vmatprep.subr.bf16.mxu0 0
      %3284 = vmatpush1.bf16.msra.mxu0 0
      %3285 = vmatprep.subr.bf16.mxu0 0
      %3286 = vmatpush1.bf16.msra.mxu0 0
      %3287 = vmatprep.subr.bf16.mxu0 %v3267
      %3288 = vmatpush1.bf16.msra.mxu0 %v3264
      %3289 = vmatprep.subr.bf16.mxu0 %v3252
      %3290 = vmatpush1.bf16.msra.mxu0 %v3251
      %3291 = vmatprep.subr.bf16.mxu0 0
      %3292 = vmatpush2.bf16.msra.mxu0 0
      %3293 = vmatprep.subr.bf16.mxu0 0
      %3294 = vmatpush2.bf16.msra.mxu0 0
      %3295 = vmatprep.subr.bf16.mxu0 0
      %3296 = vmatpush2.bf16.msra.mxu0 0
      %3297 = vmatprep.subr.bf16.mxu0 0
      %3298 = vmatpush2.bf16.msra.mxu0 0
      %3299 = vmatprep.subr.bf16.mxu0 0
      %3300 = vmatpush2.bf16.msra.mxu0 0
      %3301 = vmatprep.subr.bf16.mxu0 0
      %3302 = vmatpush2.bf16.msra.mxu0 0
      %3303 = vmatprep.subr.bf16.mxu0 0
      %3304 = vmatpush2.bf16.msra.mxu0 0
      %3305 = vmatprep.subr.bf16.mxu0 0
      %3306 = vmatpush2.bf16.msra.mxu0 0
      %3307 = vmatprep.mubr.bf16.mxu0 0
      %3308 = vmatmul.mubr.bf16.gmra.mxu0 %v621
      %v3309 = vpop.f32.mrf.mxu0
      %v3310 = vadd.f32 0.0, %v3309
      %v3311 = vpop.f32.mrf.mxu0
      %v3312 = vadd.f32 0.0, %v3311
      %v3313 = vpop.f32.mrf.mxu0
      %v3314 = vadd.f32 0.0, %v3313
      %v3315 = vpop.f32.mrf.mxu0
      %v3316 = vadd.f32 0.0, %v3315
      %3317 = vmatprep.mubr.bf16.mxu0 0
      %3318 = vmatmul.mubr.bf16.gmra.mxu0 %v624
      %v3319 = vpop.f32.mrf.mxu0
      %v3320 = vadd.f32 0.0, %v3319
      %v3321 = vpop.f32.mrf.mxu0
      %v3322 = vadd.f32 0.0, %v3321
      %v3323 = vpop.f32.mrf.mxu0
      %v3324 = vadd.f32 0.0, %v3323
      %v3325 = vpop.f32.mrf.mxu0
      %v3326 = vadd.f32 0.0, %v3325
      %3327 = vmatprep.mubr.bf16.mxu0 0
      %3328 = vmatmul.mubr.bf16.gmra.mxu0 %v627
      %v3329 = vpop.f32.mrf.mxu0
      %v3330 = vadd.f32 0.0, %v3329
      %v3331 = vpop.f32.mrf.mxu0
      %v3332 = vadd.f32 0.0, %v3331
      %v3333 = vpop.f32.mrf.mxu0
      %v3334 = vadd.f32 0.0, %v3333
      %v3335 = vpop.f32.mrf.mxu0
      %v3336 = vadd.f32 0.0, %v3335
      %3337 = vmatprep.mubr.bf16.mxu0 0
      %3338 = vmatmul.mubr.bf16.gmra.mxu0 %v630
      %v3339 = vpop.f32.mrf.mxu0
      %v3340 = vadd.f32 0.0, %v3339
      %v3341 = vpop.f32.mrf.mxu0
      %v3342 = vadd.f32 0.0, %v3341
      %v3343 = vpop.f32.mrf.mxu0
      %v3344 = vadd.f32 0.0, %v3343
      %v3345 = vpop.f32.mrf.mxu0
      %v3346 = vadd.f32 0.0, %v3345
      %3347 = vmatprep.mubr.bf16.mxu0 0
      %3348 = vmatmul.mubr.bf16.gmra.mxu0 %v633
      %v3349 = vpop.f32.mrf.mxu0
      %v3350 = vadd.f32 0.0, %v3349
      %v3351 = vpop.f32.mrf.mxu0
      %v3352 = vadd.f32 0.0, %v3351
      %v3353 = vpop.f32.mrf.mxu0
      %v3354 = vadd.f32 0.0, %v3353
      %v3355 = vpop.f32.mrf.mxu0
      %v3356 = vadd.f32 0.0, %v3355
      %3357 = vmatprep.mubr.bf16.mxu0 0
      %3358 = vmatmul.mubr.bf16.gmra.mxu0 %v636
      %v3359 = vpop.f32.mrf.mxu0
      %v3360 = vadd.f32 0.0, %v3359
      %v3361 = vpop.f32.mrf.mxu0
      %v3362 = vadd.f32 0.0, %v3361
      %v3363 = vpop.f32.mrf.mxu0
      %v3364 = vadd.f32 0.0, %v3363
      %v3365 = vpop.f32.mrf.mxu0
      %v3366 = vadd.f32 0.0, %v3365
      %3367 = vmatprep.mubr.bf16.mxu0 0
      %3368 = vmatmul.mubr.bf16.gmra.mxu0 %v639
      %v3369 = vpop.f32.mrf.mxu0
      %v3370 = vadd.f32 0.0, %v3369
      %v3371 = vpop.f32.mrf.mxu0
      %v3372 = vadd.f32 0.0, %v3371
      %v3373 = vpop.f32.mrf.mxu0
      %v3374 = vadd.f32 0.0, %v3373
      %v3375 = vpop.f32.mrf.mxu0
      %v3376 = vadd.f32 0.0, %v3375
      %3377 = vmatprep.mubr.bf16.mxu0 0
      %3378 = vmatmul.mubr.bf16.gmra.mxu0 %v642
      %v3379 = vpop.f32.mrf.mxu0
      %v3380 = vadd.f32 0.0, %v3379
      %v3381 = vpop.f32.mrf.mxu0
      %v3382 = vadd.f32 0.0, %v3381
      %v3383 = vpop.f32.mrf.mxu0
      %v3384 = vadd.f32 0.0, %v3383
      %v3385 = vpop.f32.mrf.mxu0
      %v3386 = vadd.f32 0.0, %v3385
      %3387 = vmatprep.mubr.bf16.mxu0 0
      %3388 = vmatmul.mubr.bf16.gmra.mxu0 %v645
      %v3389 = vpop.f32.mrf.mxu0
      %v3390 = vadd.f32 0.0, %v3389
      %v3391 = vpop.f32.mrf.mxu0
      %v3392 = vadd.f32 0.0, %v3391
      %v3393 = vpop.f32.mrf.mxu0
      %v3394 = vadd.f32 0.0, %v3393
      %v3395 = vpop.f32.mrf.mxu0
      %v3396 = vadd.f32 0.0, %v3395
      %3397 = vmatprep.mubr.bf16.mxu0 0
      %3398 = vmatmul.mubr.bf16.gmra.mxu0 %v648
      %v3399 = vpop.f32.mrf.mxu0
      %v3400 = vadd.f32 0.0, %v3399
      %v3401 = vpop.f32.mrf.mxu0
      %v3402 = vadd.f32 0.0, %v3401
      %v3403 = vpop.f32.mrf.mxu0
      %v3404 = vadd.f32 0.0, %v3403
      %v3405 = vpop.f32.mrf.mxu0
      %v3406 = vadd.f32 0.0, %v3405
      %3407 = vmatprep.mubr.bf16.mxu0 0
      %3408 = vmatmul.mubr.bf16.gmra.mxu0 %v651
      %v3409 = vpop.f32.mrf.mxu0
      %v3410 = vadd.f32 0.0, %v3409
      %v3411 = vpop.f32.mrf.mxu0
      %v3412 = vadd.f32 0.0, %v3411
      %v3413 = vpop.f32.mrf.mxu0
      %v3414 = vadd.f32 0.0, %v3413
      %v3415 = vpop.f32.mrf.mxu0
      %v3416 = vadd.f32 0.0, %v3415
      %3417 = vmatprep.mubr.bf16.mxu0 0
      %3418 = vmatmul.mubr.bf16.gmra.mxu0 %v654
      %v3419 = vpop.f32.mrf.mxu0
      %v3420 = vadd.f32 0.0, %v3419
      %v3421 = vpop.f32.mrf.mxu0
      %v3422 = vadd.f32 0.0, %v3421
      %v3423 = vpop.f32.mrf.mxu0
      %v3424 = vadd.f32 0.0, %v3423
      %v3425 = vpop.f32.mrf.mxu0
      %v3426 = vadd.f32 0.0, %v3425
      %3427 = vmatprep.mubr.bf16.mxu0 0
      %3428 = vmatmul.mubr.bf16.gmra.mxu0 %v657
      %v3429 = vpop.f32.mrf.mxu0
      %v3430 = vadd.f32 0.0, %v3429
      %v3431 = vpop.f32.mrf.mxu0
      %v3432 = vadd.f32 0.0, %v3431
      %v3433 = vpop.f32.mrf.mxu0
      %v3434 = vadd.f32 0.0, %v3433
      %v3435 = vpop.f32.mrf.mxu0
      %v3436 = vadd.f32 0.0, %v3435
      %3437 = vmatprep.mubr.bf16.mxu0 0
      %3438 = vmatmul.mubr.bf16.gmra.mxu0 %v660
      %v3439 = vpop.f32.mrf.mxu0
      %v3440 = vadd.f32 0.0, %v3439
      %v3441 = vpop.f32.mrf.mxu0
      %v3442 = vadd.f32 0.0, %v3441
      %v3443 = vpop.f32.mrf.mxu0
      %v3444 = vadd.f32 0.0, %v3443
      %v3445 = vpop.f32.mrf.mxu0
      %v3446 = vadd.f32 0.0, %v3445
      %3447 = vmatprep.mubr.bf16.mxu0 0
      %3448 = vmatmul.mubr.bf16.gmra.mxu0 %v663
      %v3449 = vpop.f32.mrf.mxu0
      %v3450 = vadd.f32 0.0, %v3449
      %v3451 = vpop.f32.mrf.mxu0
      %v3452 = vadd.f32 0.0, %v3451
      %v3453 = vpop.f32.mrf.mxu0
      %v3454 = vadd.f32 0.0, %v3453
      %v3455 = vpop.f32.mrf.mxu0
      %v3456 = vadd.f32 0.0, %v3455
      %3457 = vmatprep.mubr.bf16.mxu0 0
      %3458 = vmatmul.mubr.bf16.gmra.mxu0 %v666
      %v3459 = vpop.f32.mrf.mxu0
      %v3460 = vadd.f32 0.0, %v3459
      %v3461 = vpop.f32.mrf.mxu0
      %v3462 = vadd.f32 0.0, %v3461
      %v3463 = vpop.f32.mrf.mxu0
      %v3464 = vadd.f32 0.0, %v3463
      %v3465 = vpop.f32.mrf.mxu0
      %v3466 = vadd.f32 0.0, %v3465
      %3467 = vmatprep.mubr.bf16.mxu0 0
      %3468 = vmatmul.mubr.bf16.gmra.mxu0 %v669
      %v3469 = vpop.f32.mrf.mxu0
      %v3470 = vadd.f32 0.0, %v3469
      %v3471 = vpop.f32.mrf.mxu0
      %v3472 = vadd.f32 0.0, %v3471
      %v3473 = vpop.f32.mrf.mxu0
      %v3474 = vadd.f32 0.0, %v3473
      %v3475 = vpop.f32.mrf.mxu0
      %v3476 = vadd.f32 0.0, %v3475
      %3477 = vmatprep.mubr.bf16.mxu0 0
      %3478 = vmatmul.mubr.bf16.gmra.mxu0 %v672
      %v3479 = vpop.f32.mrf.mxu0
      %v3480 = vadd.f32 0.0, %v3479
      %v3481 = vpop.f32.mrf.mxu0
      %v3482 = vadd.f32 0.0, %v3481
      %v3483 = vpop.f32.mrf.mxu0
      %v3484 = vadd.f32 0.0, %v3483
      %v3485 = vpop.f32.mrf.mxu0
      %v3486 = vadd.f32 0.0, %v3485
      %3487 = vmatprep.mubr.bf16.mxu0 0
      %3488 = vmatmul.mubr.bf16.gmra.mxu0 %v675
      %v3489 = vpop.f32.mrf.mxu0
      %v3490 = vadd.f32 0.0, %v3489
      %v3491 = vpop.f32.mrf.mxu0
      %v3492 = vadd.f32 0.0, %v3491
      %v3493 = vpop.f32.mrf.mxu0
      %v3494 = vadd.f32 0.0, %v3493
      %v3495 = vpop.f32.mrf.mxu0
      %v3496 = vadd.f32 0.0, %v3495
      %3497 = vmatprep.mubr.bf16.mxu0 0
      %3498 = vmatmul.mubr.bf16.gmra.mxu0 %v678
      %v3499 = vpop.f32.mrf.mxu0
      %v3500 = vadd.f32 0.0, %v3499
      %v3501 = vpop.f32.mrf.mxu0
      %v3502 = vadd.f32 0.0, %v3501
      %v3503 = vpop.f32.mrf.mxu0
      %v3504 = vadd.f32 0.0, %v3503
      %v3505 = vpop.f32.mrf.mxu0
      %v3506 = vadd.f32 0.0, %v3505
      %3507 = vmatprep.mubr.bf16.mxu0 0
      %3508 = vmatmul.mubr.bf16.gmra.mxu0 %v681
      %v3509 = vpop.f32.mrf.mxu0
      %v3510 = vadd.f32 0.0, %v3509
      %v3511 = vpop.f32.mrf.mxu0
      %v3512 = vadd.f32 0.0, %v3511
      %v3513 = vpop.f32.mrf.mxu0
      %v3514 = vadd.f32 0.0, %v3513
      %v3515 = vpop.f32.mrf.mxu0
      %v3516 = vadd.f32 0.0, %v3515
      %3517 = vmatprep.mubr.bf16.mxu0 0
      %3518 = vmatmul.mubr.bf16.gmra.mxu0 %v684
      %v3519 = vpop.f32.mrf.mxu0
      %v3520 = vadd.f32 0.0, %v3519
      %v3521 = vpop.f32.mrf.mxu0
      %v3522 = vadd.f32 0.0, %v3521
      %v3523 = vpop.f32.mrf.mxu0
      %v3524 = vadd.f32 0.0, %v3523
      %v3525 = vpop.f32.mrf.mxu0
      %v3526 = vadd.f32 0.0, %v3525
      %3527 = vmatprep.mubr.bf16.mxu0 0
      %3528 = vmatmul.mubr.bf16.gmra.mxu0 %v687
      %v3529 = vpop.f32.mrf.mxu0
      %v3530 = vadd.f32 0.0, %v3529
      %v3531 = vpop.f32.mrf.mxu0
      %v3532 = vadd.f32 0.0, %v3531
      %v3533 = vpop.f32.mrf.mxu0
      %v3534 = vadd.f32 0.0, %v3533
      %v3535 = vpop.f32.mrf.mxu0
      %v3536 = vadd.f32 0.0, %v3535
      %3537 = vmatprep.mubr.bf16.mxu0 0
      %3538 = vmatmul.mubr.bf16.gmra.mxu0 %v690
      %v3539 = vpop.f32.mrf.mxu0
      %v3540 = vadd.f32 0.0, %v3539
      %v3541 = vpop.f32.mrf.mxu0
      %v3542 = vadd.f32 0.0, %v3541
      %v3543 = vpop.f32.mrf.mxu0
      %v3544 = vadd.f32 0.0, %v3543
      %v3545 = vpop.f32.mrf.mxu0
      %v3546 = vadd.f32 0.0, %v3545
      %3547 = vmatprep.mubr.bf16.mxu0 0
      %3548 = vmatmul.mubr.bf16.gmra.mxu0 %v693
      %v3549 = vpop.f32.mrf.mxu0
      %v3550 = vadd.f32 0.0, %v3549
      %v3551 = vpop.f32.mrf.mxu0
      %v3552 = vadd.f32 0.0, %v3551
      %v3553 = vpop.f32.mrf.mxu0
      %v3554 = vadd.f32 0.0, %v3553
      %v3555 = vpop.f32.mrf.mxu0
      %v3556 = vadd.f32 0.0, %v3555
      %3557 = vmatprep.mubr.bf16.mxu0 0
      %3558 = vmatmul.mubr.bf16.gmra.mxu0 %v696
      %v3559 = vpop.f32.mrf.mxu0
      %v3560 = vadd.f32 0.0, %v3559
      %v3561 = vpop.f32.mrf.mxu0
      %v3562 = vadd.f32 0.0, %v3561
      %v3563 = vpop.f32.mrf.mxu0
      %v3564 = vadd.f32 0.0, %v3563
      %v3565 = vpop.f32.mrf.mxu0
      %v3566 = vadd.f32 0.0, %v3565
      %3567 = vmatprep.mubr.bf16.mxu0 0
      %3568 = vmatmul.mubr.bf16.gmra.mxu0 %v699
      %v3569 = vpop.f32.mrf.mxu0
      %v3570 = vadd.f32 0.0, %v3569
      %v3571 = vpop.f32.mrf.mxu0
      %v3572 = vadd.f32 0.0, %v3571
      %v3573 = vpop.f32.mrf.mxu0
      %v3574 = vadd.f32 0.0, %v3573
      %v3575 = vpop.f32.mrf.mxu0
      %v3576 = vadd.f32 0.0, %v3575
      %3577 = vmatprep.mubr.bf16.mxu0 0
      %3578 = vmatmul.mubr.bf16.gmra.mxu0 %v702
      %v3579 = vpop.f32.mrf.mxu0
      %v3580 = vadd.f32 0.0, %v3579
      %v3581 = vpop.f32.mrf.mxu0
      %v3582 = vadd.f32 0.0, %v3581
      %v3583 = vpop.f32.mrf.mxu0
      %v3584 = vadd.f32 0.0, %v3583
      %v3585 = vpop.f32.mrf.mxu0
      %v3586 = vadd.f32 0.0, %v3585
      %3587 = vmatprep.mubr.bf16.mxu0 0
      %3588 = vmatmul.mubr.bf16.gmra.mxu0 %v705
      %v3589 = vpop.f32.mrf.mxu0
      %v3590 = vadd.f32 0.0, %v3589
      %v3591 = vpop.f32.mrf.mxu0
      %v3592 = vadd.f32 0.0, %v3591
      %v3593 = vpop.f32.mrf.mxu0
      %v3594 = vadd.f32 0.0, %v3593
      %v3595 = vpop.f32.mrf.mxu0
      %v3596 = vadd.f32 0.0, %v3595
      %3597 = vmatprep.mubr.bf16.mxu0 0
      %3598 = vmatmul.mubr.bf16.gmra.mxu0 %v708
      %v3599 = vpop.f32.mrf.mxu0
      %v3600 = vadd.f32 0.0, %v3599
      %v3601 = vpop.f32.mrf.mxu0
      %v3602 = vadd.f32 0.0, %v3601
      %v3603 = vpop.f32.mrf.mxu0
      %v3604 = vadd.f32 0.0, %v3603
      %v3605 = vpop.f32.mrf.mxu0
      %v3606 = vadd.f32 0.0, %v3605
      %3607 = vmatprep.mubr.bf16.mxu0 0
      %3608 = vmatmul.mubr.bf16.gmra.mxu0 %v711
      %v3609 = vpop.f32.mrf.mxu0
      %v3610 = vadd.f32 0.0, %v3609
      %v3611 = vpop.f32.mrf.mxu0
      %v3612 = vadd.f32 0.0, %v3611
      %v3613 = vpop.f32.mrf.mxu0
      %v3614 = vadd.f32 0.0, %v3613
      %v3615 = vpop.f32.mrf.mxu0
      %v3616 = vadd.f32 0.0, %v3615
      %3617 = vmatprep.mubr.bf16.mxu0 0
      %3618 = vmatmul.mubr.bf16.gmra.mxu0 %v714
      %v3619 = vpop.f32.mrf.mxu0
      %v3620 = vadd.f32 0.0, %v3619
      %v3621 = vpop.f32.mrf.mxu0
      %v3622 = vadd.f32 0.0, %v3621
      %v3623 = vpop.f32.mrf.mxu0
      %v3624 = vadd.f32 0.0, %v3623
      %v3625 = vpop.f32.mrf.mxu0
      %v3626 = vadd.f32 0.0, %v3625
      %3627 = vmatprep.mubr.bf16.mxu0 0
      %3628 = vmatmul.mubr.bf16.gmra.mxu0 %v717
      %v3629 = vpop.f32.mrf.mxu0
      %v3630 = vadd.f32 0.0, %v3629
      %v3631 = vpop.f32.mrf.mxu0
      %v3632 = vadd.f32 0.0, %v3631
      %v3633 = vpop.f32.mrf.mxu0
      %v3634 = vadd.f32 0.0, %v3633
      %v3635 = vpop.f32.mrf.mxu0
      %v3636 = vadd.f32 0.0, %v3635
      %3637 = vmatprep.mubr.bf16.mxu0 0
      %3638 = vmatmul.mubr.bf16.gmra.mxu0 %v720
      %v3639 = vpop.f32.mrf.mxu0
      %v3640 = vadd.f32 0.0, %v3639
      %v3641 = vpop.f32.mrf.mxu0
      %v3642 = vadd.f32 0.0, %v3641
      %v3643 = vpop.f32.mrf.mxu0
      %v3644 = vadd.f32 0.0, %v3643
      %v3645 = vpop.f32.mrf.mxu0
      %v3646 = vadd.f32 0.0, %v3645
      %3647 = vmatprep.mubr.bf16.mxu0 0
      %3648 = vmatmul.mubr.bf16.gmra.mxu0 %v723
      %v3649 = vpop.f32.mrf.mxu0
      %v3650 = vadd.f32 0.0, %v3649
      %v3651 = vpop.f32.mrf.mxu0
      %v3652 = vadd.f32 0.0, %v3651
      %v3653 = vpop.f32.mrf.mxu0
      %v3654 = vadd.f32 0.0, %v3653
      %v3655 = vpop.f32.mrf.mxu0
      %v3656 = vadd.f32 0.0, %v3655
      %3657 = vmatprep.mubr.bf16.mxu0 0
      %3658 = vmatmul.mubr.bf16.gmra.mxu0 %v726
      %v3659 = vpop.f32.mrf.mxu0
      %v3660 = vadd.f32 0.0, %v3659
      %v3661 = vpop.f32.mrf.mxu0
      %v3662 = vadd.f32 0.0, %v3661
      %v3663 = vpop.f32.mrf.mxu0
      %v3664 = vadd.f32 0.0, %v3663
      %v3665 = vpop.f32.mrf.mxu0
      %v3666 = vadd.f32 0.0, %v3665
      %3667 = vmatprep.mubr.bf16.mxu0 0
      %3668 = vmatmul.mubr.bf16.gmra.mxu0 %v729
      %v3669 = vpop.f32.mrf.mxu0
      %v3670 = vadd.f32 0.0, %v3669
      %v3671 = vpop.f32.mrf.mxu0
      %v3672 = vadd.f32 0.0, %v3671
      %v3673 = vpop.f32.mrf.mxu0
      %v3674 = vadd.f32 0.0, %v3673
      %v3675 = vpop.f32.mrf.mxu0
      %v3676 = vadd.f32 0.0, %v3675
      %3677 = vmatprep.mubr.bf16.mxu0 0
      %3678 = vmatmul.mubr.bf16.gmra.mxu0 %v732
      %v3679 = vpop.f32.mrf.mxu0
      %v3680 = vadd.f32 0.0, %v3679
      %v3681 = vpop.f32.mrf.mxu0
      %v3682 = vadd.f32 0.0, %v3681
      %v3683 = vpop.f32.mrf.mxu0
      %v3684 = vadd.f32 0.0, %v3683
      %v3685 = vpop.f32.mrf.mxu0
      %v3686 = vadd.f32 0.0, %v3685
      %3687 = vmatprep.mubr.bf16.mxu0 0
      %3688 = vmatmul.mubr.bf16.gmra.mxu0 %v735
      %v3689 = vpop.f32.mrf.mxu0
      %v3690 = vadd.f32 0.0, %v3689
      %v3691 = vpop.f32.mrf.mxu0
      %v3692 = vadd.f32 0.0, %v3691
      %v3693 = vpop.f32.mrf.mxu0
      %v3694 = vadd.f32 0.0, %v3693
      %v3695 = vpop.f32.mrf.mxu0
      %v3696 = vadd.f32 0.0, %v3695
      %3697 = vmatprep.mubr.bf16.mxu0 0
      %3698 = vmatmul.mubr.bf16.gmra.mxu0 %v738
      %v3699 = vpop.f32.mrf.mxu0
      %v3700 = vadd.f32 0.0, %v3699
      %v3701 = vpop.f32.mrf.mxu0
      %v3702 = vadd.f32 0.0, %v3701
      %v3703 = vpop.f32.mrf.mxu0
      %v3704 = vadd.f32 0.0, %v3703
      %v3705 = vpop.f32.mrf.mxu0
      %v3706 = vadd.f32 0.0, %v3705
      %3707 = vmatprep.mubr.bf16.mxu0 0
      %3708 = vmatmul.mubr.bf16.gmra.mxu0 %v741
      %v3709 = vpop.f32.mrf.mxu0
      %v3710 = vadd.f32 0.0, %v3709
      %v3711 = vpop.f32.mrf.mxu0
      %v3712 = vadd.f32 0.0, %v3711
      %v3713 = vpop.f32.mrf.mxu0
      %v3714 = vadd.f32 0.0, %v3713
      %v3715 = vpop.f32.mrf.mxu0
      %v3716 = vadd.f32 0.0, %v3715
      %3717 = vmatprep.mubr.bf16.mxu0 0
      %3718 = vmatmul.mubr.bf16.gmra.mxu0 %v744
      %v3719 = vpop.f32.mrf.mxu0
      %v3720 = vadd.f32 0.0, %v3719
      %v3721 = vpop.f32.mrf.mxu0
      %v3722 = vadd.f32 0.0, %v3721
      %v3723 = vpop.f32.mrf.mxu0
      %v3724 = vadd.f32 0.0, %v3723
      %v3725 = vpop.f32.mrf.mxu0
      %v3726 = vadd.f32 0.0, %v3725
      %3727 = vmatprep.mubr.bf16.mxu0 0
      %3728 = vmatmul.mubr.bf16.gmra.mxu0 %v747
      %v3729 = vpop.f32.mrf.mxu0
      %v3730 = vadd.f32 0.0, %v3729
      %v3731 = vpop.f32.mrf.mxu0
      %v3732 = vadd.f32 0.0, %v3731
      %v3733 = vpop.f32.mrf.mxu0
      %v3734 = vadd.f32 0.0, %v3733
      %v3735 = vpop.f32.mrf.mxu0
      %v3736 = vadd.f32 0.0, %v3735
      %3737 = vmatprep.mubr.bf16.mxu0 0
      %3738 = vmatmul.mubr.bf16.gmra.mxu0 %v750
      %v3739 = vpop.f32.mrf.mxu0
      %v3740 = vadd.f32 0.0, %v3739
      %v3741 = vpop.f32.mrf.mxu0
      %v3742 = vadd.f32 0.0, %v3741
      %v3743 = vpop.f32.mrf.mxu0
      %v3744 = vadd.f32 0.0, %v3743
      %v3745 = vpop.f32.mrf.mxu0
      %v3746 = vadd.f32 0.0, %v3745
      %3747 = vmatprep.mubr.bf16.mxu0 0
      %3748 = vmatmul.mubr.bf16.gmra.mxu0 %v753
      %v3749 = vpop.f32.mrf.mxu0
      %v3750 = vadd.f32 0.0, %v3749
      %v3751 = vpop.f32.mrf.mxu0
      %v3752 = vadd.f32 0.0, %v3751
      %v3753 = vpop.f32.mrf.mxu0
      %v3754 = vadd.f32 0.0, %v3753
      %v3755 = vpop.f32.mrf.mxu0
      %v3756 = vadd.f32 0.0, %v3755
      %3757 = vmatprep.mubr.bf16.mxu0 0
      %3758 = vmatmul.mubr.bf16.gmra.mxu0 %v756
      %v3759 = vpop.f32.mrf.mxu0
      %v3760 = vadd.f32 0.0, %v3759
      %v3761 = vpop.f32.mrf.mxu0
      %v3762 = vadd.f32 0.0, %v3761
      %v3763 = vpop.f32.mrf.mxu0
      %v3764 = vadd.f32 0.0, %v3763
      %v3765 = vpop.f32.mrf.mxu0
      %v3766 = vadd.f32 0.0, %v3765
      %3767 = vmatprep.mubr.bf16.mxu0 0
      %3768 = vmatmul.mubr.bf16.gmra.mxu0 %v759
      %v3769 = vpop.f32.mrf.mxu0
      %v3770 = vadd.f32 0.0, %v3769
      %v3771 = vpop.f32.mrf.mxu0
      %v3772 = vadd.f32 0.0, %v3771
      %v3773 = vpop.f32.mrf.mxu0
      %v3774 = vadd.f32 0.0, %v3773
      %v3775 = vpop.f32.mrf.mxu0
      %v3776 = vadd.f32 0.0, %v3775
      %3777 = vmatprep.mubr.bf16.mxu0 0
      %3778 = vmatmul.mubr.bf16.gmra.mxu0 %v762
      %v3779 = vpop.f32.mrf.mxu0
      %v3780 = vadd.f32 0.0, %v3779
      %v3781 = vpop.f32.mrf.mxu0
      %v3782 = vadd.f32 0.0, %v3781
      %v3783 = vpop.f32.mrf.mxu0
      %v3784 = vadd.f32 0.0, %v3783
      %v3785 = vpop.f32.mrf.mxu0
      %v3786 = vadd.f32 0.0, %v3785
      %3787 = vmatprep.mubr.bf16.mxu0 0
      %3788 = vmatmul.mubr.bf16.gmra.mxu0 %v765
      %v3789 = vpop.f32.mrf.mxu0
      %v3790 = vadd.f32 0.0, %v3789
      %v3791 = vpop.f32.mrf.mxu0
      %v3792 = vadd.f32 0.0, %v3791
      %v3793 = vpop.f32.mrf.mxu0
      %v3794 = vadd.f32 0.0, %v3793
      %v3795 = vpop.f32.mrf.mxu0
      %v3796 = vadd.f32 0.0, %v3795
      %3797 = vmatprep.mubr.bf16.mxu0 0
      %3798 = vmatmul.mubr.bf16.gmra.mxu0 %v768
      %v3799 = vpop.f32.mrf.mxu0
      %v3800 = vadd.f32 0.0, %v3799
      %v3801 = vpop.f32.mrf.mxu0
      %v3802 = vadd.f32 0.0, %v3801
      %v3803 = vpop.f32.mrf.mxu0
      %v3804 = vadd.f32 0.0, %v3803
      %v3805 = vpop.f32.mrf.mxu0
      %v3806 = vadd.f32 0.0, %v3805
      %3807 = vmatprep.mubr.bf16.mxu0 0
      %3808 = vmatmul.mubr.bf16.gmra.mxu0 %v771
      %v3809 = vpop.f32.mrf.mxu0
      %v3810 = vadd.f32 0.0, %v3809
      %v3811 = vpop.f32.mrf.mxu0
      %v3812 = vadd.f32 0.0, %v3811
      %v3813 = vpop.f32.mrf.mxu0
      %v3814 = vadd.f32 0.0, %v3813
      %v3815 = vpop.f32.mrf.mxu0
      %v3816 = vadd.f32 0.0, %v3815
      %3817 = vmatprep.mubr.bf16.mxu0 0
      %3818 = vmatmul.mubr.bf16.gmra.mxu0 %v774
      %v3819 = vpop.f32.mrf.mxu0
      %v3820 = vadd.f32 0.0, %v3819
      %v3821 = vpop.f32.mrf.mxu0
      %v3822 = vadd.f32 0.0, %v3821
      %v3823 = vpop.f32.mrf.mxu0
      %v3824 = vadd.f32 0.0, %v3823
      %v3825 = vpop.f32.mrf.mxu0
      %v3826 = vadd.f32 0.0, %v3825
      %3827 = vmatprep.mubr.bf16.mxu0 0
      %3828 = vmatmul.mubr.bf16.gmra.mxu0 %v777
      %v3829 = vpop.f32.mrf.mxu0
      %v3830 = vadd.f32 0.0, %v3829
      %v3831 = vpop.f32.mrf.mxu0
      %v3832 = vadd.f32 0.0, %v3831
      %v3833 = vpop.f32.mrf.mxu0
      %v3834 = vadd.f32 0.0, %v3833
      %v3835 = vpop.f32.mrf.mxu0
      %v3836 = vadd.f32 0.0, %v3835
      %3837 = vmatprep.mubr.bf16.mxu0 0
      %3838 = vmatmul.mubr.bf16.gmra.mxu0 %v780
      %v3839 = vpop.f32.mrf.mxu0
      %v3840 = vadd.f32 0.0, %v3839
      %v3841 = vpop.f32.mrf.mxu0
      %v3842 = vadd.f32 0.0, %v3841
      %v3843 = vpop.f32.mrf.mxu0
      %v3844 = vadd.f32 0.0, %v3843
      %v3845 = vpop.f32.mrf.mxu0
      %v3846 = vadd.f32 0.0, %v3845
      %3847 = vmatprep.mubr.bf16.mxu0 0
      %3848 = vmatmul.mubr.bf16.gmra.mxu0 %v2018
      %v3849 = vpop.f32.mrf.mxu0
      %v3850 = vadd.f32 0.0, %v3849
      %v3851 = vpop.f32.mrf.mxu0
      %v3852 = vadd.f32 0.0, %v3851
      %v3853 = vpop.f32.mrf.mxu0
      %v3854 = vadd.f32 0.0, %v3853
      %v3855 = vpop.f32.mrf.mxu0
      %v3856 = vadd.f32 0.0, %v3855
      %3857 = vmatprep.mubr.bf16.mxu0 0
      %3858 = vmatmul.mubr.bf16.gmra.mxu0 %v2018
      %v3859 = vpop.f32.mrf.mxu0
      %v3860 = vadd.f32 0.0, %v3859
      %v3861 = vpop.f32.mrf.mxu0
      %v3862 = vadd.f32 0.0, %v3861
      %v3863 = vpop.f32.mrf.mxu0
      %v3864 = vadd.f32 0.0, %v3863
      %v3865 = vpop.f32.mrf.mxu0
      %v3866 = vadd.f32 0.0, %v3865
      %3867 = vdwg.mxu0
      %3868 = vmatprep.subr.bf16.mxu0 0
      %3869 = vmatpush1.bf16.msra.mxu0 0
      %3870 = vmatprep.subr.bf16.mxu0 0
      %3871 = vmatpush1.bf16.msra.mxu0 0
      %3872 = vmatprep.subr.bf16.mxu0 0
      %3873 = vmatpush1.bf16.msra.mxu0 0
      %3874 = vmatprep.subr.bf16.mxu0 0
      %3875 = vmatpush1.bf16.msra.mxu0 0
      %3876 = vmatprep.subr.bf16.mxu0 0
      %3877 = vmatpush1.bf16.msra.mxu0 0
      %3878 = vmatprep.subr.bf16.mxu0 0
      %3879 = vmatpush1.bf16.msra.mxu0 0
      %3880 = vmatprep.subr.bf16.mxu0 %v3273
      %3881 = vmatpush1.bf16.msra.mxu0 %v3270
      %3882 = vmatprep.subr.bf16.mxu0 %v3254
      %3883 = vmatpush1.bf16.msra.mxu0 %v3253
      %3884 = vmatprep.subr.bf16.mxu0 0
      %3885 = vmatpush2.bf16.msra.mxu0 0
      %3886 = vmatprep.subr.bf16.mxu0 0
      %3887 = vmatpush2.bf16.msra.mxu0 0
      %3888 = vmatprep.subr.bf16.mxu0 0
      %3889 = vmatpush2.bf16.msra.mxu0 0
      %3890 = vmatprep.subr.bf16.mxu0 0
      %3891 = vmatpush2.bf16.msra.mxu0 0
      %3892 = vmatprep.subr.bf16.mxu0 0
      %3893 = vmatpush2.bf16.msra.mxu0 0
      %3894 = vmatprep.subr.bf16.mxu0 0
      %3895 = vmatpush2.bf16.msra.mxu0 0
      %3896 = vmatprep.subr.bf16.mxu0 0
      %3897 = vmatpush2.bf16.msra.mxu0 0
      %3898 = vmatprep.subr.bf16.mxu0 0
      %3899 = vmatpush2.bf16.msra.mxu0 0
      %3900 = vmatprep.mubr.bf16.mxu0 0
      %3901 = vmatmul.mubr.bf16.gmra.mxu0 %v621
      %v3902 = vpop.f32.mrf.mxu0
      %v3903 = vadd.f32 0.0, %v3902
      %v3904 = vpop.f32.mrf.mxu0
      %v3905 = vadd.f32 0.0, %v3904
      %v3906 = vpop.f32.mrf.mxu0
      %v3907 = vadd.f32 0.0, %v3906
      %v3908 = vpop.f32.mrf.mxu0
      %v3909 = vadd.f32 0.0, %v3908
      %3910 = vmatprep.mubr.bf16.mxu0 0
      %3911 = vmatmul.mubr.bf16.gmra.mxu0 %v624
      %v3912 = vpop.f32.mrf.mxu0
      %v3913 = vadd.f32 0.0, %v3912
      %v3914 = vpop.f32.mrf.mxu0
      %v3915 = vadd.f32 0.0, %v3914
      %v3916 = vpop.f32.mrf.mxu0
      %v3917 = vadd.f32 0.0, %v3916
      %v3918 = vpop.f32.mrf.mxu0
      %v3919 = vadd.f32 0.0, %v3918
      %3920 = vmatprep.mubr.bf16.mxu0 0
      %3921 = vmatmul.mubr.bf16.gmra.mxu0 %v627
      %v3922 = vpop.f32.mrf.mxu0
      %v3923 = vadd.f32 0.0, %v3922
      %v3924 = vpop.f32.mrf.mxu0
      %v3925 = vadd.f32 0.0, %v3924
      %v3926 = vpop.f32.mrf.mxu0
      %v3927 = vadd.f32 0.0, %v3926
      %v3928 = vpop.f32.mrf.mxu0
      %v3929 = vadd.f32 0.0, %v3928
      %3930 = vmatprep.mubr.bf16.mxu0 0
      %3931 = vmatmul.mubr.bf16.gmra.mxu0 %v630
      %v3932 = vpop.f32.mrf.mxu0
      %v3933 = vadd.f32 0.0, %v3932
      %v3934 = vpop.f32.mrf.mxu0
      %v3935 = vadd.f32 0.0, %v3934
      %v3936 = vpop.f32.mrf.mxu0
      %v3937 = vadd.f32 0.0, %v3936
      %v3938 = vpop.f32.mrf.mxu0
      %v3939 = vadd.f32 0.0, %v3938
      %3940 = vmatprep.mubr.bf16.mxu0 0
      %3941 = vmatmul.mubr.bf16.gmra.mxu0 %v633
      %v3942 = vpop.f32.mrf.mxu0
      %v3943 = vadd.f32 0.0, %v3942
      %v3944 = vpop.f32.mrf.mxu0
      %v3945 = vadd.f32 0.0, %v3944
      %v3946 = vpop.f32.mrf.mxu0
      %v3947 = vadd.f32 0.0, %v3946
      %v3948 = vpop.f32.mrf.mxu0
      %v3949 = vadd.f32 0.0, %v3948
      %3950 = vmatprep.mubr.bf16.mxu0 0
      %3951 = vmatmul.mubr.bf16.gmra.mxu0 %v636
      %v3952 = vpop.f32.mrf.mxu0
      %v3953 = vadd.f32 0.0, %v3952
      %v3954 = vpop.f32.mrf.mxu0
      %v3955 = vadd.f32 0.0, %v3954
      %v3956 = vpop.f32.mrf.mxu0
      %v3957 = vadd.f32 0.0, %v3956
      %v3958 = vpop.f32.mrf.mxu0
      %v3959 = vadd.f32 0.0, %v3958
      %3960 = vmatprep.mubr.bf16.mxu0 0
      %3961 = vmatmul.mubr.bf16.gmra.mxu0 %v639
      %v3962 = vpop.f32.mrf.mxu0
      %v3963 = vadd.f32 0.0, %v3962
      %v3964 = vpop.f32.mrf.mxu0
      %v3965 = vadd.f32 0.0, %v3964
      %v3966 = vpop.f32.mrf.mxu0
      %v3967 = vadd.f32 0.0, %v3966
      %v3968 = vpop.f32.mrf.mxu0
      %v3969 = vadd.f32 0.0, %v3968
      %3970 = vmatprep.mubr.bf16.mxu0 0
      %3971 = vmatmul.mubr.bf16.gmra.mxu0 %v642
      %v3972 = vpop.f32.mrf.mxu0
      %v3973 = vadd.f32 0.0, %v3972
      %v3974 = vpop.f32.mrf.mxu0
      %v3975 = vadd.f32 0.0, %v3974
      %v3976 = vpop.f32.mrf.mxu0
      %v3977 = vadd.f32 0.0, %v3976
      %v3978 = vpop.f32.mrf.mxu0
      %v3979 = vadd.f32 0.0, %v3978
      %3980 = vmatprep.mubr.bf16.mxu0 0
      %3981 = vmatmul.mubr.bf16.gmra.mxu0 %v645
      %v3982 = vpop.f32.mrf.mxu0
      %v3983 = vadd.f32 0.0, %v3982
      %v3984 = vpop.f32.mrf.mxu0
      %v3985 = vadd.f32 0.0, %v3984
      %v3986 = vpop.f32.mrf.mxu0
      %v3987 = vadd.f32 0.0, %v3986
      %v3988 = vpop.f32.mrf.mxu0
      %v3989 = vadd.f32 0.0, %v3988
      %3990 = vmatprep.mubr.bf16.mxu0 0
      %3991 = vmatmul.mubr.bf16.gmra.mxu0 %v648
      %v3992 = vpop.f32.mrf.mxu0
      %v3993 = vadd.f32 0.0, %v3992
      %v3994 = vpop.f32.mrf.mxu0
      %v3995 = vadd.f32 0.0, %v3994
      %v3996 = vpop.f32.mrf.mxu0
      %v3997 = vadd.f32 0.0, %v3996
      %v3998 = vpop.f32.mrf.mxu0
      %v3999 = vadd.f32 0.0, %v3998
      %4000 = vmatprep.mubr.bf16.mxu0 0
      %4001 = vmatmul.mubr.bf16.gmra.mxu0 %v651
      %v4002 = vpop.f32.mrf.mxu0
      %v4003 = vadd.f32 0.0, %v4002
      %v4004 = vpop.f32.mrf.mxu0
      %v4005 = vadd.f32 0.0, %v4004
      %v4006 = vpop.f32.mrf.mxu0
      %v4007 = vadd.f32 0.0, %v4006
      %v4008 = vpop.f32.mrf.mxu0
      %v4009 = vadd.f32 0.0, %v4008
      %4010 = vmatprep.mubr.bf16.mxu0 0
      %4011 = vmatmul.mubr.bf16.gmra.mxu0 %v654
      %v4012 = vpop.f32.mrf.mxu0
      %v4013 = vadd.f32 0.0, %v4012
      %v4014 = vpop.f32.mrf.mxu0
      %v4015 = vadd.f32 0.0, %v4014
      %v4016 = vpop.f32.mrf.mxu0
      %v4017 = vadd.f32 0.0, %v4016
      %v4018 = vpop.f32.mrf.mxu0
      %v4019 = vadd.f32 0.0, %v4018
      %4020 = vmatprep.mubr.bf16.mxu0 0
      %4021 = vmatmul.mubr.bf16.gmra.mxu0 %v657
      %v4022 = vpop.f32.mrf.mxu0
      %v4023 = vadd.f32 0.0, %v4022
      %v4024 = vpop.f32.mrf.mxu0
      %v4025 = vadd.f32 0.0, %v4024
      %v4026 = vpop.f32.mrf.mxu0
      %v4027 = vadd.f32 0.0, %v4026
      %v4028 = vpop.f32.mrf.mxu0
      %v4029 = vadd.f32 0.0, %v4028
      %4030 = vmatprep.mubr.bf16.mxu0 0
      %4031 = vmatmul.mubr.bf16.gmra.mxu0 %v660
      %v4032 = vpop.f32.mrf.mxu0
      %v4033 = vadd.f32 0.0, %v4032
      %v4034 = vpop.f32.mrf.mxu0
      %v4035 = vadd.f32 0.0, %v4034
      %v4036 = vpop.f32.mrf.mxu0
      %v4037 = vadd.f32 0.0, %v4036
      %v4038 = vpop.f32.mrf.mxu0
      %v4039 = vadd.f32 0.0, %v4038
      %4040 = vmatprep.mubr.bf16.mxu0 0
      %4041 = vmatmul.mubr.bf16.gmra.mxu0 %v663
      %v4042 = vpop.f32.mrf.mxu0
      %v4043 = vadd.f32 0.0, %v4042
      %v4044 = vpop.f32.mrf.mxu0
      %v4045 = vadd.f32 0.0, %v4044
      %v4046 = vpop.f32.mrf.mxu0
      %v4047 = vadd.f32 0.0, %v4046
      %v4048 = vpop.f32.mrf.mxu0
      %v4049 = vadd.f32 0.0, %v4048
      %4050 = vmatprep.mubr.bf16.mxu0 0
      %4051 = vmatmul.mubr.bf16.gmra.mxu0 %v666
      %v4052 = vpop.f32.mrf.mxu0
      %v4053 = vadd.f32 0.0, %v4052
      %v4054 = vpop.f32.mrf.mxu0
      %v4055 = vadd.f32 0.0, %v4054
      %v4056 = vpop.f32.mrf.mxu0
      %v4057 = vadd.f32 0.0, %v4056
      %v4058 = vpop.f32.mrf.mxu0
      %v4059 = vadd.f32 0.0, %v4058
      %4060 = vmatprep.mubr.bf16.mxu0 0
      %4061 = vmatmul.mubr.bf16.gmra.mxu0 %v669
      %v4062 = vpop.f32.mrf.mxu0
      %v4063 = vadd.f32 0.0, %v4062
      %v4064 = vpop.f32.mrf.mxu0
      %v4065 = vadd.f32 0.0, %v4064
      %v4066 = vpop.f32.mrf.mxu0
      %v4067 = vadd.f32 0.0, %v4066
      %v4068 = vpop.f32.mrf.mxu0
      %v4069 = vadd.f32 0.0, %v4068
      %4070 = vmatprep.mubr.bf16.mxu0 0
      %4071 = vmatmul.mubr.bf16.gmra.mxu0 %v672
      %v4072 = vpop.f32.mrf.mxu0
      %v4073 = vadd.f32 0.0, %v4072
      %v4074 = vpop.f32.mrf.mxu0
      %v4075 = vadd.f32 0.0, %v4074
      %v4076 = vpop.f32.mrf.mxu0
      %v4077 = vadd.f32 0.0, %v4076
      %v4078 = vpop.f32.mrf.mxu0
      %v4079 = vadd.f32 0.0, %v4078
      %4080 = vmatprep.mubr.bf16.mxu0 0
      %4081 = vmatmul.mubr.bf16.gmra.mxu0 %v675
      %v4082 = vpop.f32.mrf.mxu0
      %v4083 = vadd.f32 0.0, %v4082
      %v4084 = vpop.f32.mrf.mxu0
      %v4085 = vadd.f32 0.0, %v4084
      %v4086 = vpop.f32.mrf.mxu0
      %v4087 = vadd.f32 0.0, %v4086
      %v4088 = vpop.f32.mrf.mxu0
      %v4089 = vadd.f32 0.0, %v4088
      %4090 = vmatprep.mubr.bf16.mxu0 0
      %4091 = vmatmul.mubr.bf16.gmra.mxu0 %v678
      %v4092 = vpop.f32.mrf.mxu0
      %v4093 = vadd.f32 0.0, %v4092
      %v4094 = vpop.f32.mrf.mxu0
      %v4095 = vadd.f32 0.0, %v4094
      %v4096 = vpop.f32.mrf.mxu0
      %v4097 = vadd.f32 0.0, %v4096
      %v4098 = vpop.f32.mrf.mxu0
      %v4099 = vadd.f32 0.0, %v4098
      %4100 = vmatprep.mubr.bf16.mxu0 0
      %4101 = vmatmul.mubr.bf16.gmra.mxu0 %v681
      %v4102 = vpop.f32.mrf.mxu0
      %v4103 = vadd.f32 0.0, %v4102
      %v4104 = vpop.f32.mrf.mxu0
      %v4105 = vadd.f32 0.0, %v4104
      %v4106 = vpop.f32.mrf.mxu0
      %v4107 = vadd.f32 0.0, %v4106
      %v4108 = vpop.f32.mrf.mxu0
      %v4109 = vadd.f32 0.0, %v4108
      %4110 = vmatprep.mubr.bf16.mxu0 0
      %4111 = vmatmul.mubr.bf16.gmra.mxu0 %v684
      %v4112 = vpop.f32.mrf.mxu0
      %v4113 = vadd.f32 0.0, %v4112
      %v4114 = vpop.f32.mrf.mxu0
      %v4115 = vadd.f32 0.0, %v4114
      %v4116 = vpop.f32.mrf.mxu0
      %v4117 = vadd.f32 0.0, %v4116
      %v4118 = vpop.f32.mrf.mxu0
      %v4119 = vadd.f32 0.0, %v4118
      %4120 = vmatprep.mubr.bf16.mxu0 0
      %4121 = vmatmul.mubr.bf16.gmra.mxu0 %v687
      %v4122 = vpop.f32.mrf.mxu0
      %v4123 = vadd.f32 0.0, %v4122
      %v4124 = vpop.f32.mrf.mxu0
      %v4125 = vadd.f32 0.0, %v4124
      %v4126 = vpop.f32.mrf.mxu0
      %v4127 = vadd.f32 0.0, %v4126
      %v4128 = vpop.f32.mrf.mxu0
      %v4129 = vadd.f32 0.0, %v4128
      %4130 = vmatprep.mubr.bf16.mxu0 0
      %4131 = vmatmul.mubr.bf16.gmra.mxu0 %v690
      %v4132 = vpop.f32.mrf.mxu0
      %v4133 = vadd.f32 0.0, %v4132
      %v4134 = vpop.f32.mrf.mxu0
      %v4135 = vadd.f32 0.0, %v4134
      %v4136 = vpop.f32.mrf.mxu0
      %v4137 = vadd.f32 0.0, %v4136
      %v4138 = vpop.f32.mrf.mxu0
      %v4139 = vadd.f32 0.0, %v4138
      %4140 = vmatprep.mubr.bf16.mxu0 0
      %4141 = vmatmul.mubr.bf16.gmra.mxu0 %v693
      %v4142 = vpop.f32.mrf.mxu0
      %v4143 = vadd.f32 0.0, %v4142
      %v4144 = vpop.f32.mrf.mxu0
      %v4145 = vadd.f32 0.0, %v4144
      %v4146 = vpop.f32.mrf.mxu0
      %v4147 = vadd.f32 0.0, %v4146
      %v4148 = vpop.f32.mrf.mxu0
      %v4149 = vadd.f32 0.0, %v4148
      %4150 = vmatprep.mubr.bf16.mxu0 0
      %4151 = vmatmul.mubr.bf16.gmra.mxu0 %v696
      %v4152 = vpop.f32.mrf.mxu0
      %v4153 = vadd.f32 0.0, %v4152
      %v4154 = vpop.f32.mrf.mxu0
      %v4155 = vadd.f32 0.0, %v4154
      %v4156 = vpop.f32.mrf.mxu0
      %v4157 = vadd.f32 0.0, %v4156
      %v4158 = vpop.f32.mrf.mxu0
      %v4159 = vadd.f32 0.0, %v4158
      %4160 = vmatprep.mubr.bf16.mxu0 0
      %4161 = vmatmul.mubr.bf16.gmra.mxu0 %v699
      %v4162 = vpop.f32.mrf.mxu0
      %v4163 = vadd.f32 0.0, %v4162
      %v4164 = vpop.f32.mrf.mxu0
      %v4165 = vadd.f32 0.0, %v4164
      %v4166 = vpop.f32.mrf.mxu0
      %v4167 = vadd.f32 0.0, %v4166
      %v4168 = vpop.f32.mrf.mxu0
      %v4169 = vadd.f32 0.0, %v4168
      %4170 = vmatprep.mubr.bf16.mxu0 0
      %4171 = vmatmul.mubr.bf16.gmra.mxu0 %v702
      %v4172 = vpop.f32.mrf.mxu0
      %v4173 = vadd.f32 0.0, %v4172
      %v4174 = vpop.f32.mrf.mxu0
      %v4175 = vadd.f32 0.0, %v4174
      %v4176 = vpop.f32.mrf.mxu0
      %v4177 = vadd.f32 0.0, %v4176
      %v4178 = vpop.f32.mrf.mxu0
      %v4179 = vadd.f32 0.0, %v4178
      %4180 = vmatprep.mubr.bf16.mxu0 0
      %4181 = vmatmul.mubr.bf16.gmra.mxu0 %v705
      %v4182 = vpop.f32.mrf.mxu0
      %v4183 = vadd.f32 0.0, %v4182
      %v4184 = vpop.f32.mrf.mxu0
      %v4185 = vadd.f32 0.0, %v4184
      %v4186 = vpop.f32.mrf.mxu0
      %v4187 = vadd.f32 0.0, %v4186
      %v4188 = vpop.f32.mrf.mxu0
      %v4189 = vadd.f32 0.0, %v4188
      %4190 = vmatprep.mubr.bf16.mxu0 0
      %4191 = vmatmul.mubr.bf16.gmra.mxu0 %v708
      %v4192 = vpop.f32.mrf.mxu0
      %v4193 = vadd.f32 0.0, %v4192
      %v4194 = vpop.f32.mrf.mxu0
      %v4195 = vadd.f32 0.0, %v4194
      %v4196 = vpop.f32.mrf.mxu0
      %v4197 = vadd.f32 0.0, %v4196
      %v4198 = vpop.f32.mrf.mxu0
      %v4199 = vadd.f32 0.0, %v4198
      %4200 = vmatprep.mubr.bf16.mxu0 0
      %4201 = vmatmul.mubr.bf16.gmra.mxu0 %v711
      %v4202 = vpop.f32.mrf.mxu0
      %v4203 = vadd.f32 0.0, %v4202
      %v4204 = vpop.f32.mrf.mxu0
      %v4205 = vadd.f32 0.0, %v4204
      %v4206 = vpop.f32.mrf.mxu0
      %v4207 = vadd.f32 0.0, %v4206
      %v4208 = vpop.f32.mrf.mxu0
      %v4209 = vadd.f32 0.0, %v4208
      %4210 = vmatprep.mubr.bf16.mxu0 0
      %4211 = vmatmul.mubr.bf16.gmra.mxu0 %v714
      %v4212 = vpop.f32.mrf.mxu0
      %v4213 = vadd.f32 0.0, %v4212
      %v4214 = vpop.f32.mrf.mxu0
      %v4215 = vadd.f32 0.0, %v4214
      %v4216 = vpop.f32.mrf.mxu0
      %v4217 = vadd.f32 0.0, %v4216
      %v4218 = vpop.f32.mrf.mxu0
      %v4219 = vadd.f32 0.0, %v4218
      %4220 = vmatprep.mubr.bf16.mxu0 0
      %4221 = vmatmul.mubr.bf16.gmra.mxu0 %v717
      %v4222 = vpop.f32.mrf.mxu0
      %v4223 = vadd.f32 0.0, %v4222
      %v4224 = vpop.f32.mrf.mxu0
      %v4225 = vadd.f32 0.0, %v4224
      %v4226 = vpop.f32.mrf.mxu0
      %v4227 = vadd.f32 0.0, %v4226
      %v4228 = vpop.f32.mrf.mxu0
      %v4229 = vadd.f32 0.0, %v4228
      %4230 = vmatprep.mubr.bf16.mxu0 0
      %4231 = vmatmul.mubr.bf16.gmra.mxu0 %v720
      %v4232 = vpop.f32.mrf.mxu0
      %v4233 = vadd.f32 0.0, %v4232
      %v4234 = vpop.f32.mrf.mxu0
      %v4235 = vadd.f32 0.0, %v4234
      %v4236 = vpop.f32.mrf.mxu0
      %v4237 = vadd.f32 0.0, %v4236
      %v4238 = vpop.f32.mrf.mxu0
      %v4239 = vadd.f32 0.0, %v4238
      %4240 = vmatprep.mubr.bf16.mxu0 0
      %4241 = vmatmul.mubr.bf16.gmra.mxu0 %v723
      %v4242 = vpop.f32.mrf.mxu0
      %v4243 = vadd.f32 0.0, %v4242
      %v4244 = vpop.f32.mrf.mxu0
      %v4245 = vadd.f32 0.0, %v4244
      %v4246 = vpop.f32.mrf.mxu0
      %v4247 = vadd.f32 0.0, %v4246
      %v4248 = vpop.f32.mrf.mxu0
      %v4249 = vadd.f32 0.0, %v4248
      %4250 = vmatprep.mubr.bf16.mxu0 0
      %4251 = vmatmul.mubr.bf16.gmra.mxu0 %v726
      %v4252 = vpop.f32.mrf.mxu0
      %v4253 = vadd.f32 0.0, %v4252
      %v4254 = vpop.f32.mrf.mxu0
      %v4255 = vadd.f32 0.0, %v4254
      %v4256 = vpop.f32.mrf.mxu0
      %v4257 = vadd.f32 0.0, %v4256
      %v4258 = vpop.f32.mrf.mxu0
      %v4259 = vadd.f32 0.0, %v4258
      %4260 = vmatprep.mubr.bf16.mxu0 0
      %4261 = vmatmul.mubr.bf16.gmra.mxu0 %v729
      %v4262 = vpop.f32.mrf.mxu0
      %v4263 = vadd.f32 0.0, %v4262
      %v4264 = vpop.f32.mrf.mxu0
      %v4265 = vadd.f32 0.0, %v4264
      %v4266 = vpop.f32.mrf.mxu0
      %v4267 = vadd.f32 0.0, %v4266
      %v4268 = vpop.f32.mrf.mxu0
      %v4269 = vadd.f32 0.0, %v4268
      %4270 = vmatprep.mubr.bf16.mxu0 0
      %4271 = vmatmul.mubr.bf16.gmra.mxu0 %v732
      %v4272 = vpop.f32.mrf.mxu0
      %v4273 = vadd.f32 0.0, %v4272
      %v4274 = vpop.f32.mrf.mxu0
      %v4275 = vadd.f32 0.0, %v4274
      %v4276 = vpop.f32.mrf.mxu0
      %v4277 = vadd.f32 0.0, %v4276
      %v4278 = vpop.f32.mrf.mxu0
      %v4279 = vadd.f32 0.0, %v4278
      %4280 = vmatprep.mubr.bf16.mxu0 0
      %4281 = vmatmul.mubr.bf16.gmra.mxu0 %v735
      %v4282 = vpop.f32.mrf.mxu0
      %v4283 = vadd.f32 0.0, %v4282
      %v4284 = vpop.f32.mrf.mxu0
      %v4285 = vadd.f32 0.0, %v4284
      %v4286 = vpop.f32.mrf.mxu0
      %v4287 = vadd.f32 0.0, %v4286
      %v4288 = vpop.f32.mrf.mxu0
      %v4289 = vadd.f32 0.0, %v4288
      %4290 = vmatprep.mubr.bf16.mxu0 0
      %4291 = vmatmul.mubr.bf16.gmra.mxu0 %v738
      %v4292 = vpop.f32.mrf.mxu0
      %v4293 = vadd.f32 0.0, %v4292
      %v4294 = vpop.f32.mrf.mxu0
      %v4295 = vadd.f32 0.0, %v4294
      %v4296 = vpop.f32.mrf.mxu0
      %v4297 = vadd.f32 0.0, %v4296
      %v4298 = vpop.f32.mrf.mxu0
      %v4299 = vadd.f32 0.0, %v4298
      %4300 = vmatprep.mubr.bf16.mxu0 0
      %4301 = vmatmul.mubr.bf16.gmra.mxu0 %v741
      %v4302 = vpop.f32.mrf.mxu0
      %v4303 = vadd.f32 0.0, %v4302
      %v4304 = vpop.f32.mrf.mxu0
      %v4305 = vadd.f32 0.0, %v4304
      %v4306 = vpop.f32.mrf.mxu0
      %v4307 = vadd.f32 0.0, %v4306
      %v4308 = vpop.f32.mrf.mxu0
      %v4309 = vadd.f32 0.0, %v4308
      %4310 = vmatprep.mubr.bf16.mxu0 0
      %4311 = vmatmul.mubr.bf16.gmra.mxu0 %v744
      %v4312 = vpop.f32.mrf.mxu0
      %v4313 = vadd.f32 0.0, %v4312
      %v4314 = vpop.f32.mrf.mxu0
      %v4315 = vadd.f32 0.0, %v4314
      %v4316 = vpop.f32.mrf.mxu0
      %v4317 = vadd.f32 0.0, %v4316
      %v4318 = vpop.f32.mrf.mxu0
      %v4319 = vadd.f32 0.0, %v4318
      %4320 = vmatprep.mubr.bf16.mxu0 0
      %4321 = vmatmul.mubr.bf16.gmra.mxu0 %v747
      %v4322 = vpop.f32.mrf.mxu0
      %v4323 = vadd.f32 0.0, %v4322
      %v4324 = vpop.f32.mrf.mxu0
      %v4325 = vadd.f32 0.0, %v4324
      %v4326 = vpop.f32.mrf.mxu0
      %v4327 = vadd.f32 0.0, %v4326
      %v4328 = vpop.f32.mrf.mxu0
      %v4329 = vadd.f32 0.0, %v4328
      %4330 = vmatprep.mubr.bf16.mxu0 0
      %4331 = vmatmul.mubr.bf16.gmra.mxu0 %v750
      %v4332 = vpop.f32.mrf.mxu0
      %v4333 = vadd.f32 0.0, %v4332
      %v4334 = vpop.f32.mrf.mxu0
      %v4335 = vadd.f32 0.0, %v4334
      %v4336 = vpop.f32.mrf.mxu0
      %v4337 = vadd.f32 0.0, %v4336
      %v4338 = vpop.f32.mrf.mxu0
      %v4339 = vadd.f32 0.0, %v4338
      %4340 = vmatprep.mubr.bf16.mxu0 0
      %4341 = vmatmul.mubr.bf16.gmra.mxu0 %v753
      %v4342 = vpop.f32.mrf.mxu0
      %v4343 = vadd.f32 0.0, %v4342
      %v4344 = vpop.f32.mrf.mxu0
      %v4345 = vadd.f32 0.0, %v4344
      %v4346 = vpop.f32.mrf.mxu0
      %v4347 = vadd.f32 0.0, %v4346
      %v4348 = vpop.f32.mrf.mxu0
      %v4349 = vadd.f32 0.0, %v4348
      %4350 = vmatprep.mubr.bf16.mxu0 0
      %4351 = vmatmul.mubr.bf16.gmra.mxu0 %v756
      %v4352 = vpop.f32.mrf.mxu0
      %v4353 = vadd.f32 0.0, %v4352
      %v4354 = vpop.f32.mrf.mxu0
      %v4355 = vadd.f32 0.0, %v4354
      %v4356 = vpop.f32.mrf.mxu0
      %v4357 = vadd.f32 0.0, %v4356
      %v4358 = vpop.f32.mrf.mxu0
      %v4359 = vadd.f32 0.0, %v4358
      %4360 = vmatprep.mubr.bf16.mxu0 0
      %4361 = vmatmul.mubr.bf16.gmra.mxu0 %v759
      %v4362 = vpop.f32.mrf.mxu0
      %v4363 = vadd.f32 0.0, %v4362
      %v4364 = vpop.f32.mrf.mxu0
      %v4365 = vadd.f32 0.0, %v4364
      %v4366 = vpop.f32.mrf.mxu0
      %v4367 = vadd.f32 0.0, %v4366
      %v4368 = vpop.f32.mrf.mxu0
      %v4369 = vadd.f32 0.0, %v4368
      %4370 = vmatprep.mubr.bf16.mxu0 0
      %4371 = vmatmul.mubr.bf16.gmra.mxu0 %v762
      %v4372 = vpop.f32.mrf.mxu0
      %v4373 = vadd.f32 0.0, %v4372
      %v4374 = vpop.f32.mrf.mxu0
      %v4375 = vadd.f32 0.0, %v4374
      %v4376 = vpop.f32.mrf.mxu0
      %v4377 = vadd.f32 0.0, %v4376
      %v4378 = vpop.f32.mrf.mxu0
      %v4379 = vadd.f32 0.0, %v4378
      %4380 = vmatprep.mubr.bf16.mxu0 0
      %4381 = vmatmul.mubr.bf16.gmra.mxu0 %v765
      %v4382 = vpop.f32.mrf.mxu0
      %v4383 = vadd.f32 0.0, %v4382
      %v4384 = vpop.f32.mrf.mxu0
      %v4385 = vadd.f32 0.0, %v4384
      %v4386 = vpop.f32.mrf.mxu0
      %v4387 = vadd.f32 0.0, %v4386
      %v4388 = vpop.f32.mrf.mxu0
      %v4389 = vadd.f32 0.0, %v4388
      %4390 = vmatprep.mubr.bf16.mxu0 0
      %4391 = vmatmul.mubr.bf16.gmra.mxu0 %v768
      %v4392 = vpop.f32.mrf.mxu0
      %v4393 = vadd.f32 0.0, %v4392
      %v4394 = vpop.f32.mrf.mxu0
      %v4395 = vadd.f32 0.0, %v4394
      %v4396 = vpop.f32.mrf.mxu0
      %v4397 = vadd.f32 0.0, %v4396
      %v4398 = vpop.f32.mrf.mxu0
      %v4399 = vadd.f32 0.0, %v4398
      %4400 = vmatprep.mubr.bf16.mxu0 0
      %4401 = vmatmul.mubr.bf16.gmra.mxu0 %v771
      %v4402 = vpop.f32.mrf.mxu0
      %v4403 = vadd.f32 0.0, %v4402
      %v4404 = vpop.f32.mrf.mxu0
      %v4405 = vadd.f32 0.0, %v4404
      %v4406 = vpop.f32.mrf.mxu0
      %v4407 = vadd.f32 0.0, %v4406
      %v4408 = vpop.f32.mrf.mxu0
      %v4409 = vadd.f32 0.0, %v4408
      %4410 = vmatprep.mubr.bf16.mxu0 0
      %4411 = vmatmul.mubr.bf16.gmra.mxu0 %v774
      %v4412 = vpop.f32.mrf.mxu0
      %v4413 = vadd.f32 0.0, %v4412
      %v4414 = vpop.f32.mrf.mxu0
      %v4415 = vadd.f32 0.0, %v4414
      %v4416 = vpop.f32.mrf.mxu0
      %v4417 = vadd.f32 0.0, %v4416
      %v4418 = vpop.f32.mrf.mxu0
      %v4419 = vadd.f32 0.0, %v4418
      %4420 = vmatprep.mubr.bf16.mxu0 0
      %4421 = vmatmul.mubr.bf16.gmra.mxu0 %v777
      %v4422 = vpop.f32.mrf.mxu0
      %v4423 = vadd.f32 0.0, %v4422
      %v4424 = vpop.f32.mrf.mxu0
      %v4425 = vadd.f32 0.0, %v4424
      %v4426 = vpop.f32.mrf.mxu0
      %v4427 = vadd.f32 0.0, %v4426
      %v4428 = vpop.f32.mrf.mxu0
      %v4429 = vadd.f32 0.0, %v4428
      %4430 = vmatprep.mubr.bf16.mxu0 0
      %4431 = vmatmul.mubr.bf16.gmra.mxu0 %v780
      %v4432 = vpop.f32.mrf.mxu0
      %v4433 = vadd.f32 0.0, %v4432
      %v4434 = vpop.f32.mrf.mxu0
      %v4435 = vadd.f32 0.0, %v4434
      %v4436 = vpop.f32.mrf.mxu0
      %v4437 = vadd.f32 0.0, %v4436
      %v4438 = vpop.f32.mrf.mxu0
      %v4439 = vadd.f32 0.0, %v4438
      %4440 = vmatprep.mubr.bf16.mxu0 0
      %4441 = vmatmul.mubr.bf16.gmra.mxu0 %v2018
      %v4442 = vpop.f32.mrf.mxu0
      %v4443 = vadd.f32 0.0, %v4442
      %v4444 = vpop.f32.mrf.mxu0
      %v4445 = vadd.f32 0.0, %v4444
      %v4446 = vpop.f32.mrf.mxu0
      %v4447 = vadd.f32 0.0, %v4446
      %v4448 = vpop.f32.mrf.mxu0
      %v4449 = vadd.f32 0.0, %v4448
      %4450 = vmatprep.mubr.bf16.mxu0 0
      %4451 = vmatmul.mubr.bf16.gmra.mxu0 %v2018
      %v4452 = vpop.f32.mrf.mxu0
      %v4453 = vadd.f32 0.0, %v4452
      %v4454 = vpop.f32.mrf.mxu0
      %v4455 = vadd.f32 0.0, %v4454
      %v4456 = vpop.f32.mrf.mxu0
      %v4457 = vadd.f32 0.0, %v4456
      %v4458 = vpop.f32.mrf.mxu0
      %v4459 = vadd.f32 0.0, %v4458
      %4460 = vdwg.mxu0
      %v4461 = vadd.f32 %v2067, %v3310
      %v4462 = vadd.f32 %v2069, %v3312
      %v4463 = vadd.f32 %v2660, %v3903
      %v4464 = vadd.f32 %v2662, %v3905
      %v4465 = vadd.f32 %v2071, %v3314
      %v4466 = vadd.f32 %v2073, %v3316
      %v4467 = vadd.f32 %v2664, %v3907
      %v4468 = vadd.f32 %v2666, %v3909
      %v4469 = vadd.f32 %v2077, %v3320
      %v4470 = vadd.f32 %v2079, %v3322
      %v4471 = vadd.f32 %v2670, %v3913
      %v4472 = vadd.f32 %v2672, %v3915
      %v4473 = vadd.f32 %v2081, %v3324
      %v4474 = vadd.f32 %v2083, %v3326
      %v4475 = vadd.f32 %v2674, %v3917
      %v4476 = vadd.f32 %v2676, %v3919
      %v4477 = vadd.f32 %v2087, %v3330
      %v4478 = vadd.f32 %v2089, %v3332
      %v4479 = vadd.f32 %v2680, %v3923
      %v4480 = vadd.f32 %v2682, %v3925
      %v4481 = vadd.f32 %v2091, %v3334
      %v4482 = vadd.f32 %v2093, %v3336
      %v4483 = vadd.f32 %v2684, %v3927
      %v4484 = vadd.f32 %v2686, %v3929
      %v4485 = vadd.f32 %v2097, %v3340
      %v4486 = vadd.f32 %v2099, %v3342
      %v4487 = vadd.f32 %v2690, %v3933
      %v4488 = vadd.f32 %v2692, %v3935
      %v4489 = vadd.f32 %v2101, %v3344
      %v4490 = vadd.f32 %v2103, %v3346
      %v4491 = vadd.f32 %v2694, %v3937
      %v4492 = vadd.f32 %v2696, %v3939
      %v4493 = vadd.f32 %v2107, %v3350
      %v4494 = vadd.f32 %v2109, %v3352
      %v4495 = vadd.f32 %v2700, %v3943
      %v4496 = vadd.f32 %v2702, %v3945
      %v4497 = vadd.f32 %v2111, %v3354
      %v4498 = vadd.f32 %v2113, %v3356
      %v4499 = vadd.f32 %v2704, %v3947
      %v4500 = vadd.f32 %v2706, %v3949
      %v4501 = vadd.f32 %v2117, %v3360
      %v4502 = vadd.f32 %v2119, %v3362
      %v4503 = vadd.f32 %v2710, %v3953
      %v4504 = vadd.f32 %v2712, %v3955
      %v4505 = vadd.f32 %v2121, %v3364
      %v4506 = vadd.f32 %v2123, %v3366
      %v4507 = vadd.f32 %v2714, %v3957
      %v4508 = vadd.f32 %v2716, %v3959
      %v4509 = vadd.f32 %v2127, %v3370
      %v4510 = vadd.f32 %v2129, %v3372
      %v4511 = vadd.f32 %v2720, %v3963
      %v4512 = vadd.f32 %v2722, %v3965
      %v4513 = vadd.f32 %v2131, %v3374
      %v4514 = vadd.f32 %v2133, %v3376
      %v4515 = vadd.f32 %v2724, %v3967
      %v4516 = vadd.f32 %v2726, %v3969
      %v4517 = vadd.f32 %v2137, %v3380
      %v4518 = vadd.f32 %v2139, %v3382
      %v4519 = vadd.f32 %v2730, %v3973
      %v4520 = vadd.f32 %v2732, %v3975
      %v4521 = vadd.f32 %v2141, %v3384
      %v4522 = vadd.f32 %v2143, %v3386
      %v4523 = vadd.f32 %v2734, %v3977
      %v4524 = vadd.f32 %v2736, %v3979
      %v4525 = vadd.f32 %v2147, %v3390
      %v4526 = vadd.f32 %v2149, %v3392
      %v4527 = vadd.f32 %v2740, %v3983
      %v4528 = vadd.f32 %v2742, %v3985
      %v4529 = vadd.f32 %v2151, %v3394
      %v4530 = vadd.f32 %v2153, %v3396
      %v4531 = vadd.f32 %v2744, %v3987
      %v4532 = vadd.f32 %v2746, %v3989
      %v4533 = vadd.f32 %v2157, %v3400
      %v4534 = vadd.f32 %v2159, %v3402
      %v4535 = vadd.f32 %v2750, %v3993
      %v4536 = vadd.f32 %v2752, %v3995
      %v4537 = vadd.f32 %v2161, %v3404
      %v4538 = vadd.f32 %v2163, %v3406
      %v4539 = vadd.f32 %v2754, %v3997
      %v4540 = vadd.f32 %v2756, %v3999
      %v4541 = vadd.f32 %v2167, %v3410
      %v4542 = vadd.f32 %v2169, %v3412
      %v4543 = vadd.f32 %v2760, %v4003
      %v4544 = vadd.f32 %v2762, %v4005
      %v4545 = vadd.f32 %v2171, %v3414
      %v4546 = vadd.f32 %v2173, %v3416
      %v4547 = vadd.f32 %v2764, %v4007
      %v4548 = vadd.f32 %v2766, %v4009
      %v4549 = vadd.f32 %v2177, %v3420
      %v4550 = vadd.f32 %v2179, %v3422
      %v4551 = vadd.f32 %v2770, %v4013
      %v4552 = vadd.f32 %v2772, %v4015
      %v4553 = vadd.f32 %v2181, %v3424
      %v4554 = vadd.f32 %v2183, %v3426
      %v4555 = vadd.f32 %v2774, %v4017
      %v4556 = vadd.f32 %v2776, %v4019
      %v4557 = vadd.f32 %v2187, %v3430
      %v4558 = vadd.f32 %v2189, %v3432
      %v4559 = vadd.f32 %v2780, %v4023
      %v4560 = vadd.f32 %v2782, %v4025
      %v4561 = vadd.f32 %v2191, %v3434
      %v4562 = vadd.f32 %v2193, %v3436
      %v4563 = vadd.f32 %v2784, %v4027
      %v4564 = vadd.f32 %v2786, %v4029
      %v4565 = vadd.f32 %v2197, %v3440
      %v4566 = vadd.f32 %v2199, %v3442
      %v4567 = vadd.f32 %v2790, %v4033
      %v4568 = vadd.f32 %v2792, %v4035
      %v4569 = vadd.f32 %v2201, %v3444
      %v4570 = vadd.f32 %v2203, %v3446
      %v4571 = vadd.f32 %v2794, %v4037
      %v4572 = vadd.f32 %v2796, %v4039
      %v4573 = vadd.f32 %v2207, %v3450
      %v4574 = vadd.f32 %v2209, %v3452
      %v4575 = vadd.f32 %v2800, %v4043
      %v4576 = vadd.f32 %v2802, %v4045
      %v4577 = vadd.f32 %v2211, %v3454
      %v4578 = vadd.f32 %v2213, %v3456
      %v4579 = vadd.f32 %v2804, %v4047
      %v4580 = vadd.f32 %v2806, %v4049
      %v4581 = vadd.f32 %v2217, %v3460
      %v4582 = vadd.f32 %v2219, %v3462
      %v4583 = vadd.f32 %v2810, %v4053
      %v4584 = vadd.f32 %v2812, %v4055
      %v4585 = vadd.f32 %v2221, %v3464
      %v4586 = vadd.f32 %v2223, %v3466
      %v4587 = vadd.f32 %v2814, %v4057
      %v4588 = vadd.f32 %v2816, %v4059
      %v4589 = vadd.f32 %v2227, %v3470
      %v4590 = vadd.f32 %v2229, %v3472
      %v4591 = vadd.f32 %v2820, %v4063
      %v4592 = vadd.f32 %v2822, %v4065
      %v4593 = vadd.f32 %v2231, %v3474
      %v4594 = vadd.f32 %v2233, %v3476
      %v4595 = vadd.f32 %v2824, %v4067
      %v4596 = vadd.f32 %v2826, %v4069
      %v4597 = vadd.f32 %v2237, %v3480
      %v4598 = vadd.f32 %v2239, %v3482
      %v4599 = vadd.f32 %v2830, %v4073
      %v4600 = vadd.f32 %v2832, %v4075
      %v4601 = vadd.f32 %v2241, %v3484
      %v4602 = vadd.f32 %v2243, %v3486
      %v4603 = vadd.f32 %v2834, %v4077
      %v4604 = vadd.f32 %v2836, %v4079
      %v4605 = vadd.f32 %v2247, %v3490
      %v4606 = vadd.f32 %v2249, %v3492
      %v4607 = vadd.f32 %v2840, %v4083
      %v4608 = vadd.f32 %v2842, %v4085
      %v4609 = vadd.f32 %v2251, %v3494
      %v4610 = vadd.f32 %v2253, %v3496
      %v4611 = vadd.f32 %v2844, %v4087
      %v4612 = vadd.f32 %v2846, %v4089
      %v4613 = vadd.f32 %v2257, %v3500
      %v4614 = vadd.f32 %v2259, %v3502
      %v4615 = vadd.f32 %v2850, %v4093
      %v4616 = vadd.f32 %v2852, %v4095
      %v4617 = vadd.f32 %v2261, %v3504
      %v4618 = vadd.f32 %v2263, %v3506
      %v4619 = vadd.f32 %v2854, %v4097
      %v4620 = vadd.f32 %v2856, %v4099
      %v4621 = vadd.f32 %v2267, %v3510
      %v4622 = vadd.f32 %v2269, %v3512
      %v4623 = vadd.f32 %v2860, %v4103
      %v4624 = vadd.f32 %v2862, %v4105
      %v4625 = vadd.f32 %v2271, %v3514
      %v4626 = vadd.f32 %v2273, %v3516
      %v4627 = vadd.f32 %v2864, %v4107
      %v4628 = vadd.f32 %v2866, %v4109
      %v4629 = vadd.f32 %v2277, %v3520
      %v4630 = vadd.f32 %v2279, %v3522
      %v4631 = vadd.f32 %v2870, %v4113
      %v4632 = vadd.f32 %v2872, %v4115
      %v4633 = vadd.f32 %v2281, %v3524
      %v4634 = vadd.f32 %v2283, %v3526
      %v4635 = vadd.f32 %v2874, %v4117
      %v4636 = vadd.f32 %v2876, %v4119
      %v4637 = vadd.f32 %v2287, %v3530
      %v4638 = vadd.f32 %v2289, %v3532
      %v4639 = vadd.f32 %v2880, %v4123
      %v4640 = vadd.f32 %v2882, %v4125
      %v4641 = vadd.f32 %v2291, %v3534
      %v4642 = vadd.f32 %v2293, %v3536
      %v4643 = vadd.f32 %v2884, %v4127
      %v4644 = vadd.f32 %v2886, %v4129
      %v4645 = vadd.f32 %v2297, %v3540
      %v4646 = vadd.f32 %v2299, %v3542
      %v4647 = vadd.f32 %v2890, %v4133
      %v4648 = vadd.f32 %v2892, %v4135
      %v4649 = vadd.f32 %v2301, %v3544
      %v4650 = vadd.f32 %v2303, %v3546
      %v4651 = vadd.f32 %v2894, %v4137
      %v4652 = vadd.f32 %v2896, %v4139
      %v4653 = vadd.f32 %v2307, %v3550
      %v4654 = vadd.f32 %v2309, %v3552
      %v4655 = vadd.f32 %v2900, %v4143
      %v4656 = vadd.f32 %v2902, %v4145
      %v4657 = vadd.f32 %v2311, %v3554
      %v4658 = vadd.f32 %v2313, %v3556
      %v4659 = vadd.f32 %v2904, %v4147
      %v4660 = vadd.f32 %v2906, %v4149
      %v4661 = vadd.f32 %v2317, %v3560
      %v4662 = vadd.f32 %v2319, %v3562
      %v4663 = vadd.f32 %v2910, %v4153
      %v4664 = vadd.f32 %v2912, %v4155
      %v4665 = vadd.f32 %v2321, %v3564
      %v4666 = vadd.f32 %v2323, %v3566
      %v4667 = vadd.f32 %v2914, %v4157
      %v4668 = vadd.f32 %v2916, %v4159
      %v4669 = vadd.f32 %v2327, %v3570
      %v4670 = vadd.f32 %v2329, %v3572
      %v4671 = vadd.f32 %v2920, %v4163
      %v4672 = vadd.f32 %v2922, %v4165
      %v4673 = vadd.f32 %v2331, %v3574
      %v4674 = vadd.f32 %v2333, %v3576
      %v4675 = vadd.f32 %v2924, %v4167
      %v4676 = vadd.f32 %v2926, %v4169
      %v4677 = vadd.f32 %v2337, %v3580
      %v4678 = vadd.f32 %v2339, %v3582
      %v4679 = vadd.f32 %v2930, %v4173
      %v4680 = vadd.f32 %v2932, %v4175
      %v4681 = vadd.f32 %v2341, %v3584
      %v4682 = vadd.f32 %v2343, %v3586
      %v4683 = vadd.f32 %v2934, %v4177
      %v4684 = vadd.f32 %v2936, %v4179
      %v4685 = vadd.f32 %v2347, %v3590
      %v4686 = vadd.f32 %v2349, %v3592
      %v4687 = vadd.f32 %v2940, %v4183
      %v4688 = vadd.f32 %v2942, %v4185
      %v4689 = vadd.f32 %v2351, %v3594
      %v4690 = vadd.f32 %v2353, %v3596
      %v4691 = vadd.f32 %v2944, %v4187
      %v4692 = vadd.f32 %v2946, %v4189
      %v4693 = vadd.f32 %v2357, %v3600
      %v4694 = vadd.f32 %v2359, %v3602
      %v4695 = vadd.f32 %v2950, %v4193
      %v4696 = vadd.f32 %v2952, %v4195
      %v4697 = vadd.f32 %v2361, %v3604
      %v4698 = vadd.f32 %v2363, %v3606
      %v4699 = vadd.f32 %v2954, %v4197
      %v4700 = vadd.f32 %v2956, %v4199
      %v4701 = vadd.f32 %v2367, %v3610
      %v4702 = vadd.f32 %v2369, %v3612
      %v4703 = vadd.f32 %v2960, %v4203
      %v4704 = vadd.f32 %v2962, %v4205
      %v4705 = vadd.f32 %v2371, %v3614
      %v4706 = vadd.f32 %v2373, %v3616
      %v4707 = vadd.f32 %v2964, %v4207
      %v4708 = vadd.f32 %v2966, %v4209
      %v4709 = vadd.f32 %v2377, %v3620
      %v4710 = vadd.f32 %v2379, %v3622
      %v4711 = vadd.f32 %v2970, %v4213
      %v4712 = vadd.f32 %v2972, %v4215
      %v4713 = vadd.f32 %v2381, %v3624
      %v4714 = vadd.f32 %v2383, %v3626
      %v4715 = vadd.f32 %v2974, %v4217
      %v4716 = vadd.f32 %v2976, %v4219
      %v4717 = vadd.f32 %v2387, %v3630
      %v4718 = vadd.f32 %v2389, %v3632
      %v4719 = vadd.f32 %v2980, %v4223
      %v4720 = vadd.f32 %v2982, %v4225
      %v4721 = vadd.f32 %v2391, %v3634
      %v4722 = vadd.f32 %v2393, %v3636
      %v4723 = vadd.f32 %v2984, %v4227
      %v4724 = vadd.f32 %v2986, %v4229
      %v4725 = vadd.f32 %v2397, %v3640
      %v4726 = vadd.f32 %v2399, %v3642
      %v4727 = vadd.f32 %v2990, %v4233
      %v4728 = vadd.f32 %v2992, %v4235
      %v4729 = vadd.f32 %v2401, %v3644
      %v4730 = vadd.f32 %v2403, %v3646
      %v4731 = vadd.f32 %v2994, %v4237
      %v4732 = vadd.f32 %v2996, %v4239
      %v4733 = vadd.f32 %v2407, %v3650
      %v4734 = vadd.f32 %v2409, %v3652
      %v4735 = vadd.f32 %v3000, %v4243
      %v4736 = vadd.f32 %v3002, %v4245
      %v4737 = vadd.f32 %v2411, %v3654
      %v4738 = vadd.f32 %v2413, %v3656
      %v4739 = vadd.f32 %v3004, %v4247
      %v4740 = vadd.f32 %v3006, %v4249
      %v4741 = vadd.f32 %v2417, %v3660
      %v4742 = vadd.f32 %v2419, %v3662
      %v4743 = vadd.f32 %v3010, %v4253
      %v4744 = vadd.f32 %v3012, %v4255
      %v4745 = vadd.f32 %v2421, %v3664
      %v4746 = vadd.f32 %v2423, %v3666
      %v4747 = vadd.f32 %v3014, %v4257
      %v4748 = vadd.f32 %v3016, %v4259
      %v4749 = vadd.f32 %v2427, %v3670
      %v4750 = vadd.f32 %v2429, %v3672
      %v4751 = vadd.f32 %v3020, %v4263
      %v4752 = vadd.f32 %v3022, %v4265
      %v4753 = vadd.f32 %v2431, %v3674
      %v4754 = vadd.f32 %v2433, %v3676
      %v4755 = vadd.f32 %v3024, %v4267
      %v4756 = vadd.f32 %v3026, %v4269
      %v4757 = vadd.f32 %v2437, %v3680
      %v4758 = vadd.f32 %v2439, %v3682
      %v4759 = vadd.f32 %v3030, %v4273
      %v4760 = vadd.f32 %v3032, %v4275
      %v4761 = vadd.f32 %v2441, %v3684
      %v4762 = vadd.f32 %v2443, %v3686
      %v4763 = vadd.f32 %v3034, %v4277
      %v4764 = vadd.f32 %v3036, %v4279
      %v4765 = vadd.f32 %v2447, %v3690
      %v4766 = vadd.f32 %v2449, %v3692
      %v4767 = vadd.f32 %v3040, %v4283
      %v4768 = vadd.f32 %v3042, %v4285
      %v4769 = vadd.f32 %v2451, %v3694
      %v4770 = vadd.f32 %v2453, %v3696
      %v4771 = vadd.f32 %v3044, %v4287
      %v4772 = vadd.f32 %v3046, %v4289
      %v4773 = vadd.f32 %v2457, %v3700
      %v4774 = vadd.f32 %v2459, %v3702
      %v4775 = vadd.f32 %v3050, %v4293
      %v4776 = vadd.f32 %v3052, %v4295
      %v4777 = vadd.f32 %v2461, %v3704
      %v4778 = vadd.f32 %v2463, %v3706
      %v4779 = vadd.f32 %v3054, %v4297
      %v4780 = vadd.f32 %v3056, %v4299
      %v4781 = vadd.f32 %v2467, %v3710
      %v4782 = vadd.f32 %v2469, %v3712
      %v4783 = vadd.f32 %v3060, %v4303
      %v4784 = vadd.f32 %v3062, %v4305
      %v4785 = vadd.f32 %v2471, %v3714
      %v4786 = vadd.f32 %v2473, %v3716
      %v4787 = vadd.f32 %v3064, %v4307
      %v4788 = vadd.f32 %v3066, %v4309
      %v4789 = vadd.f32 %v2477, %v3720
      %v4790 = vadd.f32 %v2479, %v3722
      %v4791 = vadd.f32 %v3070, %v4313
      %v4792 = vadd.f32 %v3072, %v4315
      %v4793 = vadd.f32 %v2481, %v3724
      %v4794 = vadd.f32 %v2483, %v3726
      %v4795 = vadd.f32 %v3074, %v4317
      %v4796 = vadd.f32 %v3076, %v4319
      %v4797 = vadd.f32 %v2487, %v3730
      %v4798 = vadd.f32 %v2489, %v3732
      %v4799 = vadd.f32 %v3080, %v4323
      %v4800 = vadd.f32 %v3082, %v4325
      %v4801 = vadd.f32 %v2491, %v3734
      %v4802 = vadd.f32 %v2493, %v3736
      %v4803 = vadd.f32 %v3084, %v4327
      %v4804 = vadd.f32 %v3086, %v4329
      %v4805 = vadd.f32 %v2497, %v3740
      %v4806 = vadd.f32 %v2499, %v3742
      %v4807 = vadd.f32 %v3090, %v4333
      %v4808 = vadd.f32 %v3092, %v4335
      %v4809 = vadd.f32 %v2501, %v3744
      %v4810 = vadd.f32 %v2503, %v3746
      %v4811 = vadd.f32 %v3094, %v4337
      %v4812 = vadd.f32 %v3096, %v4339
      %v4813 = vadd.f32 %v2507, %v3750
      %v4814 = vadd.f32 %v2509, %v3752
      %v4815 = vadd.f32 %v3100, %v4343
      %v4816 = vadd.f32 %v3102, %v4345
      %v4817 = vadd.f32 %v2511, %v3754
      %v4818 = vadd.f32 %v2513, %v3756
      %v4819 = vadd.f32 %v3104, %v4347
      %v4820 = vadd.f32 %v3106, %v4349
      %v4821 = vadd.f32 %v2517, %v3760
      %v4822 = vadd.f32 %v2519, %v3762
      %v4823 = vadd.f32 %v3110, %v4353
      %v4824 = vadd.f32 %v3112, %v4355
      %v4825 = vadd.f32 %v2521, %v3764
      %v4826 = vadd.f32 %v2523, %v3766
      %v4827 = vadd.f32 %v3114, %v4357
      %v4828 = vadd.f32 %v3116, %v4359
      %v4829 = vadd.f32 %v2527, %v3770
      %v4830 = vadd.f32 %v2529, %v3772
      %v4831 = vadd.f32 %v3120, %v4363
      %v4832 = vadd.f32 %v3122, %v4365
      %v4833 = vadd.f32 %v2531, %v3774
      %v4834 = vadd.f32 %v2533, %v3776
      %v4835 = vadd.f32 %v3124, %v4367
      %v4836 = vadd.f32 %v3126, %v4369
      %v4837 = vadd.f32 %v2537, %v3780
      %v4838 = vadd.f32 %v2539, %v3782
      %v4839 = vadd.f32 %v3130, %v4373
      %v4840 = vadd.f32 %v3132, %v4375
      %v4841 = vadd.f32 %v2541, %v3784
      %v4842 = vadd.f32 %v2543, %v3786
      %v4843 = vadd.f32 %v3134, %v4377
      %v4844 = vadd.f32 %v3136, %v4379
      %v4845 = vadd.f32 %v2547, %v3790
      %v4846 = vadd.f32 %v2549, %v3792
      %v4847 = vadd.f32 %v3140, %v4383
      %v4848 = vadd.f32 %v3142, %v4385
      %v4849 = vadd.f32 %v2551, %v3794
      %v4850 = vadd.f32 %v2553, %v3796
      %v4851 = vadd.f32 %v3144, %v4387
      %v4852 = vadd.f32 %v3146, %v4389
      %v4853 = vadd.f32 %v2557, %v3800
      %v4854 = vadd.f32 %v2559, %v3802
      %v4855 = vadd.f32 %v3150, %v4393
      %v4856 = vadd.f32 %v3152, %v4395
      %v4857 = vadd.f32 %v2561, %v3804
      %v4858 = vadd.f32 %v2563, %v3806
      %v4859 = vadd.f32 %v3154, %v4397
      %v4860 = vadd.f32 %v3156, %v4399
      %v4861 = vadd.f32 %v2567, %v3810
      %v4862 = vadd.f32 %v2569, %v3812
      %v4863 = vadd.f32 %v3160, %v4403
      %v4864 = vadd.f32 %v3162, %v4405
      %v4865 = vadd.f32 %v2571, %v3814
      %v4866 = vadd.f32 %v2573, %v3816
      %v4867 = vadd.f32 %v3164, %v4407
      %v4868 = vadd.f32 %v3166, %v4409
      %v4869 = vadd.f32 %v2577, %v3820
      %v4870 = vadd.f32 %v2579, %v3822
      %v4871 = vadd.f32 %v3170, %v4413
      %v4872 = vadd.f32 %v3172, %v4415
      %v4873 = vadd.f32 %v2581, %v3824
      %v4874 = vadd.f32 %v2583, %v3826
      %v4875 = vadd.f32 %v3174, %v4417
      %v4876 = vadd.f32 %v3176, %v4419
      %v4877 = vadd.f32 %v2587, %v3830
      %v4878 = vadd.f32 %v2589, %v3832
      %v4879 = vadd.f32 %v3180, %v4423
      %v4880 = vadd.f32 %v3182, %v4425
      %v4881 = vadd.f32 %v2591, %v3834
      %v4882 = vadd.f32 %v2593, %v3836
      %v4883 = vadd.f32 %v3184, %v4427
      %v4884 = vadd.f32 %v3186, %v4429
      %v4885 = vadd.f32 %v2597, %v3840
      %v4886 = vadd.f32 %v2599, %v3842
      %v4887 = vadd.f32 %v3190, %v4433
      %v4888 = vadd.f32 %v3192, %v4435
      %v4889 = vadd.f32 %v2601, %v3844
      %v4890 = vadd.f32 %v2603, %v3846
      %v4891 = vadd.f32 %v3194, %v4437
      %v4892 = vadd.f32 %v3196, %v4439
      %v4893 = vadd.f32 %v2607, %v3850
      %v4894 = vadd.f32 %v2609, %v3852
      %v4895 = vadd.f32 %v3200, %v4443
      %v4896 = vadd.f32 %v3202, %v4445
      %v4897 = vadd.f32 %v2611, %v3854
      %v4898 = vadd.f32 %v2613, %v3856
      %v4899 = vadd.f32 %v3204, %v4447
      %v4900 = vadd.f32 %v3206, %v4449
      %v4901 = vadd.f32 %v2617, %v3860
      %v4902 = vadd.f32 %v2619, %v3862
      %v4903 = vadd.f32 %v3210, %v4453
      %v4904 = vadd.f32 %v3212, %v4455
      %v4905 = vadd.f32 %v2621, %v3864
      %v4906 = vadd.f32 %v2623, %v3866
      %v4907 = vadd.f32 %v3214, %v4457
      %v4908 = vadd.f32 %v3216, %v4459
      %v4909 = vld [vmem:[%s2] sm:$0xf]
      %v4911 = vlaneseq
      %v4912 = vshrl.u32 %v4911, 7
      %v4913 = vsub.s32 0, %v4912
      %v4914 = vrot.slane %v4909, %v4913
      %v4915 = vlaneseq
      %v4916 = vshrl.u32 %v4915, 7
      %v4917 = vsub.s32 1, %v4916
      %v4918 = vrot.slane %v4909, %v4917
      %v4919 = vlaneseq
      %v4920 = vshrl.u32 %v4919, 7
      %v4921 = vsub.s32 2, %v4920
      %v4922 = vrot.slane %v4909, %v4921
      %v4923 = vlaneseq
      %v4924 = vshrl.u32 %v4923, 7
      %v4925 = vsub.s32 3, %v4924
      %v4926 = vrot.slane %v4909, %v4925
      %v4931 = vadd.f32 %v4461, %v4914
      %v4932 = vadd.f32 %v4462, %v4918
      %v4933 = vadd.f32 %v4463, %v4922
      %v4934 = vadd.f32 %v4464, %v4926
      %v4935 = vadd.f32 %v4465, %v4914
      %v4936 = vadd.f32 %v4466, %v4918
      %v4937 = vadd.f32 %v4467, %v4922
      %v4938 = vadd.f32 %v4468, %v4926
      %v4939 = vadd.f32 %v4469, %v4914
      %v4940 = vadd.f32 %v4470, %v4918
      %v4941 = vadd.f32 %v4471, %v4922
      %v4942 = vadd.f32 %v4472, %v4926
      %v4943 = vadd.f32 %v4473, %v4914
      %v4944 = vadd.f32 %v4474, %v4918
      %v4945 = vadd.f32 %v4475, %v4922
      %v4946 = vadd.f32 %v4476, %v4926
      %v4947 = vadd.f32 %v4477, %v4914
      %v4948 = vadd.f32 %v4478, %v4918
      %v4949 = vadd.f32 %v4479, %v4922
      %v4950 = vadd.f32 %v4480, %v4926
      %v4951 = vadd.f32 %v4481, %v4914
      %v4952 = vadd.f32 %v4482, %v4918
      %v4953 = vadd.f32 %v4483, %v4922
      %v4954 = vadd.f32 %v4484, %v4926
      %v4955 = vadd.f32 %v4485, %v4914
      %v4956 = vadd.f32 %v4486, %v4918
      %v4957 = vadd.f32 %v4487, %v4922
      %v4958 = vadd.f32 %v4488, %v4926
      %v4959 = vadd.f32 %v4489, %v4914
      %v4960 = vadd.f32 %v4490, %v4918
      %v4961 = vadd.f32 %v4491, %v4922
      %v4962 = vadd.f32 %v4492, %v4926
      %v4963 = vadd.f32 %v4493, %v4914
      %v4964 = vadd.f32 %v4494, %v4918
      %v4965 = vadd.f32 %v4495, %v4922
      %v4966 = vadd.f32 %v4496, %v4926
      %v4967 = vadd.f32 %v4497, %v4914
      %v4968 = vadd.f32 %v4498, %v4918
      %v4969 = vadd.f32 %v4499, %v4922
      %v4970 = vadd.f32 %v4500, %v4926
      %v4971 = vadd.f32 %v4501, %v4914
      %v4972 = vadd.f32 %v4502, %v4918
      %v4973 = vadd.f32 %v4503, %v4922
      %v4974 = vadd.f32 %v4504, %v4926
      %v4975 = vadd.f32 %v4505, %v4914
      %v4976 = vadd.f32 %v4506, %v4918
      %v4977 = vadd.f32 %v4507, %v4922
      %v4978 = vadd.f32 %v4508, %v4926
      %v4979 = vadd.f32 %v4509, %v4914
      %v4980 = vadd.f32 %v4510, %v4918
      %v4981 = vadd.f32 %v4511, %v4922
      %v4982 = vadd.f32 %v4512, %v4926
      %v4983 = vadd.f32 %v4513, %v4914
      %v4984 = vadd.f32 %v4514, %v4918
      %v4985 = vadd.f32 %v4515, %v4922
      %v4986 = vadd.f32 %v4516, %v4926
      %v4987 = vadd.f32 %v4517, %v4914
      %v4988 = vadd.f32 %v4518, %v4918
      %v4989 = vadd.f32 %v4519, %v4922
      %v4990 = vadd.f32 %v4520, %v4926
      %v4991 = vadd.f32 %v4521, %v4914
      %v4992 = vadd.f32 %v4522, %v4918
      %v4993 = vadd.f32 %v4523, %v4922
      %v4994 = vadd.f32 %v4524, %v4926
      %v4995 = vadd.f32 %v4525, %v4914
      %v4996 = vadd.f32 %v4526, %v4918
      %v4997 = vadd.f32 %v4527, %v4922
      %v4998 = vadd.f32 %v4528, %v4926
      %v4999 = vadd.f32 %v4529, %v4914
      %v5000 = vadd.f32 %v4530, %v4918
      %v5001 = vadd.f32 %v4531, %v4922
      %v5002 = vadd.f32 %v4532, %v4926
      %v5003 = vadd.f32 %v4533, %v4914
      %v5004 = vadd.f32 %v4534, %v4918
      %v5005 = vadd.f32 %v4535, %v4922
      %v5006 = vadd.f32 %v4536, %v4926
      %v5007 = vadd.f32 %v4537, %v4914
      %v5008 = vadd.f32 %v4538, %v4918
      %v5009 = vadd.f32 %v4539, %v4922
      %v5010 = vadd.f32 %v4540, %v4926
      %v5011 = vadd.f32 %v4541, %v4914
      %v5012 = vadd.f32 %v4542, %v4918
      %v5013 = vadd.f32 %v4543, %v4922
      %v5014 = vadd.f32 %v4544, %v4926
      %v5015 = vadd.f32 %v4545, %v4914
      %v5016 = vadd.f32 %v4546, %v4918
      %v5017 = vadd.f32 %v4547, %v4922
      %v5018 = vadd.f32 %v4548, %v4926
      %v5019 = vadd.f32 %v4549, %v4914
      %v5020 = vadd.f32 %v4550, %v4918
      %v5021 = vadd.f32 %v4551, %v4922
      %v5022 = vadd.f32 %v4552, %v4926
      %v5023 = vadd.f32 %v4553, %v4914
      %v5024 = vadd.f32 %v4554, %v4918
      %v5025 = vadd.f32 %v4555, %v4922
      %v5026 = vadd.f32 %v4556, %v4926
      %v5027 = vadd.f32 %v4557, %v4914
      %v5028 = vadd.f32 %v4558, %v4918
      %v5029 = vadd.f32 %v4559, %v4922
      %v5030 = vadd.f32 %v4560, %v4926
      %v5031 = vadd.f32 %v4561, %v4914
      %v5032 = vadd.f32 %v4562, %v4918
      %v5033 = vadd.f32 %v4563, %v4922
      %v5034 = vadd.f32 %v4564, %v4926
      %v5035 = vadd.f32 %v4565, %v4914
      %v5036 = vadd.f32 %v4566, %v4918
      %v5037 = vadd.f32 %v4567, %v4922
      %v5038 = vadd.f32 %v4568, %v4926
      %v5039 = vadd.f32 %v4569, %v4914
      %v5040 = vadd.f32 %v4570, %v4918
      %v5041 = vadd.f32 %v4571, %v4922
      %v5042 = vadd.f32 %v4572, %v4926
      %v5043 = vadd.f32 %v4573, %v4914
      %v5044 = vadd.f32 %v4574, %v4918
      %v5045 = vadd.f32 %v4575, %v4922
      %v5046 = vadd.f32 %v4576, %v4926
      %v5047 = vadd.f32 %v4577, %v4914
      %v5048 = vadd.f32 %v4578, %v4918
      %v5049 = vadd.f32 %v4579, %v4922
      %v5050 = vadd.f32 %v4580, %v4926
      %v5051 = vadd.f32 %v4581, %v4914
      %v5052 = vadd.f32 %v4582, %v4918
      %v5053 = vadd.f32 %v4583, %v4922
      %v5054 = vadd.f32 %v4584, %v4926
      %v5055 = vadd.f32 %v4585, %v4914
      %v5056 = vadd.f32 %v4586, %v4918
      %v5057 = vadd.f32 %v4587, %v4922
      %v5058 = vadd.f32 %v4588, %v4926
      %v5059 = vadd.f32 %v4589, %v4914
      %v5060 = vadd.f32 %v4590, %v4918
      %v5061 = vadd.f32 %v4591, %v4922
      %v5062 = vadd.f32 %v4592, %v4926
      %v5063 = vadd.f32 %v4593, %v4914
      %v5064 = vadd.f32 %v4594, %v4918
      %v5065 = vadd.f32 %v4595, %v4922
      %v5066 = vadd.f32 %v4596, %v4926
      %v5067 = vadd.f32 %v4597, %v4914
      %v5068 = vadd.f32 %v4598, %v4918
      %v5069 = vadd.f32 %v4599, %v4922
      %v5070 = vadd.f32 %v4600, %v4926
      %v5071 = vadd.f32 %v4601, %v4914
      %v5072 = vadd.f32 %v4602, %v4918
      %v5073 = vadd.f32 %v4603, %v4922
      %v5074 = vadd.f32 %v4604, %v4926
      %v5075 = vadd.f32 %v4605, %v4914
      %v5076 = vadd.f32 %v4606, %v4918
      %v5077 = vadd.f32 %v4607, %v4922
      %v5078 = vadd.f32 %v4608, %v4926
      %v5079 = vadd.f32 %v4609, %v4914
      %v5080 = vadd.f32 %v4610, %v4918
      %v5081 = vadd.f32 %v4611, %v4922
      %v5082 = vadd.f32 %v4612, %v4926
      %v5083 = vadd.f32 %v4613, %v4914
      %v5084 = vadd.f32 %v4614, %v4918
      %v5085 = vadd.f32 %v4615, %v4922
      %v5086 = vadd.f32 %v4616, %v4926
      %v5087 = vadd.f32 %v4617, %v4914
      %v5088 = vadd.f32 %v4618, %v4918
      %v5089 = vadd.f32 %v4619, %v4922
      %v5090 = vadd.f32 %v4620, %v4926
      %v5091 = vadd.f32 %v4621, %v4914
      %v5092 = vadd.f32 %v4622, %v4918
      %v5093 = vadd.f32 %v4623, %v4922
      %v5094 = vadd.f32 %v4624, %v4926
      %v5095 = vadd.f32 %v4625, %v4914
      %v5096 = vadd.f32 %v4626, %v4918
      %v5097 = vadd.f32 %v4627, %v4922
      %v5098 = vadd.f32 %v4628, %v4926
      %v5099 = vadd.f32 %v4629, %v4914
      %v5100 = vadd.f32 %v4630, %v4918
      %v5101 = vadd.f32 %v4631, %v4922
      %v5102 = vadd.f32 %v4632, %v4926
      %v5103 = vadd.f32 %v4633, %v4914
      %v5104 = vadd.f32 %v4634, %v4918
      %v5105 = vadd.f32 %v4635, %v4922
      %v5106 = vadd.f32 %v4636, %v4926
      %v5107 = vadd.f32 %v4637, %v4914
      %v5108 = vadd.f32 %v4638, %v4918
      %v5109 = vadd.f32 %v4639, %v4922
      %v5110 = vadd.f32 %v4640, %v4926
      %v5111 = vadd.f32 %v4641, %v4914
      %v5112 = vadd.f32 %v4642, %v4918
      %v5113 = vadd.f32 %v4643, %v4922
      %v5114 = vadd.f32 %v4644, %v4926
      %v5115 = vadd.f32 %v4645, %v4914
      %v5116 = vadd.f32 %v4646, %v4918
      %v5117 = vadd.f32 %v4647, %v4922
      %v5118 = vadd.f32 %v4648, %v4926
      %v5119 = vadd.f32 %v4649, %v4914
      %v5120 = vadd.f32 %v4650, %v4918
      %v5121 = vadd.f32 %v4651, %v4922
      %v5122 = vadd.f32 %v4652, %v4926
      %v5123 = vadd.f32 %v4653, %v4914
      %v5124 = vadd.f32 %v4654, %v4918
      %v5125 = vadd.f32 %v4655, %v4922
      %v5126 = vadd.f32 %v4656, %v4926
      %v5127 = vadd.f32 %v4657, %v4914
      %v5128 = vadd.f32 %v4658, %v4918
      %v5129 = vadd.f32 %v4659, %v4922
      %v5130 = vadd.f32 %v4660, %v4926
      %v5131 = vadd.f32 %v4661, %v4914
      %v5132 = vadd.f32 %v4662, %v4918
      %v5133 = vadd.f32 %v4663, %v4922
      %v5134 = vadd.f32 %v4664, %v4926
      %v5135 = vadd.f32 %v4665, %v4914
      %v5136 = vadd.f32 %v4666, %v4918
      %v5137 = vadd.f32 %v4667, %v4922
      %v5138 = vadd.f32 %v4668, %v4926
      %v5139 = vadd.f32 %v4669, %v4914
      %v5140 = vadd.f32 %v4670, %v4918
      %v5141 = vadd.f32 %v4671, %v4922
      %v5142 = vadd.f32 %v4672, %v4926
      %v5143 = vadd.f32 %v4673, %v4914
      %v5144 = vadd.f32 %v4674, %v4918
      %v5145 = vadd.f32 %v4675, %v4922
      %v5146 = vadd.f32 %v4676, %v4926
      %v5147 = vadd.f32 %v4677, %v4914
      %v5148 = vadd.f32 %v4678, %v4918
      %v5149 = vadd.f32 %v4679, %v4922
      %v5150 = vadd.f32 %v4680, %v4926
      %v5151 = vadd.f32 %v4681, %v4914
      %v5152 = vadd.f32 %v4682, %v4918
      %v5153 = vadd.f32 %v4683, %v4922
      %v5154 = vadd.f32 %v4684, %v4926
      %v5155 = vadd.f32 %v4685, %v4914
      %v5156 = vadd.f32 %v4686, %v4918
      %v5157 = vadd.f32 %v4687, %v4922
      %v5158 = vadd.f32 %v4688, %v4926
      %v5159 = vadd.f32 %v4689, %v4914
      %v5160 = vadd.f32 %v4690, %v4918
      %v5161 = vadd.f32 %v4691, %v4922
      %v5162 = vadd.f32 %v4692, %v4926
      %v5163 = vadd.f32 %v4693, %v4914
      %v5164 = vadd.f32 %v4694, %v4918
      %v5165 = vadd.f32 %v4695, %v4922
      %v5166 = vadd.f32 %v4696, %v4926
      %v5167 = vadd.f32 %v4697, %v4914
      %v5168 = vadd.f32 %v4698, %v4918
      %v5169 = vadd.f32 %v4699, %v4922
      %v5170 = vadd.f32 %v4700, %v4926
      %v5171 = vadd.f32 %v4701, %v4914
      %v5172 = vadd.f32 %v4702, %v4918
      %v5173 = vadd.f32 %v4703, %v4922
      %v5174 = vadd.f32 %v4704, %v4926
      %v5175 = vadd.f32 %v4705, %v4914
      %v5176 = vadd.f32 %v4706, %v4918
      %v5177 = vadd.f32 %v4707, %v4922
      %v5178 = vadd.f32 %v4708, %v4926
      %v5179 = vadd.f32 %v4709, %v4914
      %v5180 = vadd.f32 %v4710, %v4918
      %v5181 = vadd.f32 %v4711, %v4922
      %v5182 = vadd.f32 %v4712, %v4926
      %v5183 = vadd.f32 %v4713, %v4914
      %v5184 = vadd.f32 %v4714, %v4918
      %v5185 = vadd.f32 %v4715, %v4922
      %v5186 = vadd.f32 %v4716, %v4926
      %v5187 = vadd.f32 %v4717, %v4914
      %v5188 = vadd.f32 %v4718, %v4918
      %v5189 = vadd.f32 %v4719, %v4922
      %v5190 = vadd.f32 %v4720, %v4926
      %v5191 = vadd.f32 %v4721, %v4914
      %v5192 = vadd.f32 %v4722, %v4918
      %v5193 = vadd.f32 %v4723, %v4922
      %v5194 = vadd.f32 %v4724, %v4926
      %v5195 = vadd.f32 %v4725, %v4914
      %v5196 = vadd.f32 %v4726, %v4918
      %v5197 = vadd.f32 %v4727, %v4922
      %v5198 = vadd.f32 %v4728, %v4926
      %v5199 = vadd.f32 %v4729, %v4914
      %v5200 = vadd.f32 %v4730, %v4918
      %v5201 = vadd.f32 %v4731, %v4922
      %v5202 = vadd.f32 %v4732, %v4926
      %v5203 = vadd.f32 %v4733, %v4914
      %v5204 = vadd.f32 %v4734, %v4918
      %v5205 = vadd.f32 %v4735, %v4922
      %v5206 = vadd.f32 %v4736, %v4926
      %v5207 = vadd.f32 %v4737, %v4914
      %v5208 = vadd.f32 %v4738, %v4918
      %v5209 = vadd.f32 %v4739, %v4922
      %v5210 = vadd.f32 %v4740, %v4926
      %v5211 = vadd.f32 %v4741, %v4914
      %v5212 = vadd.f32 %v4742, %v4918
      %v5213 = vadd.f32 %v4743, %v4922
      %v5214 = vadd.f32 %v4744, %v4926
      %v5215 = vadd.f32 %v4745, %v4914
      %v5216 = vadd.f32 %v4746, %v4918
      %v5217 = vadd.f32 %v4747, %v4922
      %v5218 = vadd.f32 %v4748, %v4926
      %v5219 = vadd.f32 %v4749, %v4914
      %v5220 = vadd.f32 %v4750, %v4918
      %v5221 = vadd.f32 %v4751, %v4922
      %v5222 = vadd.f32 %v4752, %v4926
      %v5223 = vadd.f32 %v4753, %v4914
      %v5224 = vadd.f32 %v4754, %v4918
      %v5225 = vadd.f32 %v4755, %v4922
      %v5226 = vadd.f32 %v4756, %v4926
      %v5227 = vadd.f32 %v4757, %v4914
      %v5228 = vadd.f32 %v4758, %v4918
      %v5229 = vadd.f32 %v4759, %v4922
      %v5230 = vadd.f32 %v4760, %v4926
      %v5231 = vadd.f32 %v4761, %v4914
      %v5232 = vadd.f32 %v4762, %v4918
      %v5233 = vadd.f32 %v4763, %v4922
      %v5234 = vadd.f32 %v4764, %v4926
      %v5235 = vadd.f32 %v4765, %v4914
      %v5236 = vadd.f32 %v4766, %v4918
      %v5237 = vadd.f32 %v4767, %v4922
      %v5238 = vadd.f32 %v4768, %v4926
      %v5239 = vadd.f32 %v4769, %v4914
      %v5240 = vadd.f32 %v4770, %v4918
      %v5241 = vadd.f32 %v4771, %v4922
      %v5242 = vadd.f32 %v4772, %v4926
      %v5243 = vadd.f32 %v4773, %v4914
      %v5244 = vadd.f32 %v4774, %v4918
      %v5245 = vadd.f32 %v4775, %v4922
      %v5246 = vadd.f32 %v4776, %v4926
      %v5247 = vadd.f32 %v4777, %v4914
      %v5248 = vadd.f32 %v4778, %v4918
      %v5249 = vadd.f32 %v4779, %v4922
      %v5250 = vadd.f32 %v4780, %v4926
      %v5251 = vadd.f32 %v4781, %v4914
      %v5252 = vadd.f32 %v4782, %v4918
      %v5253 = vadd.f32 %v4783, %v4922
      %v5254 = vadd.f32 %v4784, %v4926
      %v5255 = vadd.f32 %v4785, %v4914
      %v5256 = vadd.f32 %v4786, %v4918
      %v5257 = vadd.f32 %v4787, %v4922
      %v5258 = vadd.f32 %v4788, %v4926
      %v5259 = vadd.f32 %v4789, %v4914
      %v5260 = vadd.f32 %v4790, %v4918
      %v5261 = vadd.f32 %v4791, %v4922
      %v5262 = vadd.f32 %v4792, %v4926
      %v5263 = vadd.f32 %v4793, %v4914
      %v5264 = vadd.f32 %v4794, %v4918
      %v5265 = vadd.f32 %v4795, %v4922
      %v5266 = vadd.f32 %v4796, %v4926
      %v5267 = vadd.f32 %v4797, %v4914
      %v5268 = vadd.f32 %v4798, %v4918
      %v5269 = vadd.f32 %v4799, %v4922
      %v5270 = vadd.f32 %v4800, %v4926
      %v5271 = vadd.f32 %v4801, %v4914
      %v5272 = vadd.f32 %v4802, %v4918
      %v5273 = vadd.f32 %v4803, %v4922
      %v5274 = vadd.f32 %v4804, %v4926
      %v5275 = vadd.f32 %v4805, %v4914
      %v5276 = vadd.f32 %v4806, %v4918
      %v5277 = vadd.f32 %v4807, %v4922
      %v5278 = vadd.f32 %v4808, %v4926
      %v5279 = vadd.f32 %v4809, %v4914
      %v5280 = vadd.f32 %v4810, %v4918
      %v5281 = vadd.f32 %v4811, %v4922
      %v5282 = vadd.f32 %v4812, %v4926
      %v5283 = vadd.f32 %v4813, %v4914
      %v5284 = vadd.f32 %v4814, %v4918
      %v5285 = vadd.f32 %v4815, %v4922
      %v5286 = vadd.f32 %v4816, %v4926
      %v5287 = vadd.f32 %v4817, %v4914
      %v5288 = vadd.f32 %v4818, %v4918
      %v5289 = vadd.f32 %v4819, %v4922
      %v5290 = vadd.f32 %v4820, %v4926
      %v5291 = vadd.f32 %v4821, %v4914
      %v5292 = vadd.f32 %v4822, %v4918
      %v5293 = vadd.f32 %v4823, %v4922
      %v5294 = vadd.f32 %v4824, %v4926
      %v5295 = vadd.f32 %v4825, %v4914
      %v5296 = vadd.f32 %v4826, %v4918
      %v5297 = vadd.f32 %v4827, %v4922
      %v5298 = vadd.f32 %v4828, %v4926
      %v5299 = vadd.f32 %v4829, %v4914
      %v5300 = vadd.f32 %v4830, %v4918
      %v5301 = vadd.f32 %v4831, %v4922
      %v5302 = vadd.f32 %v4832, %v4926
      %v5303 = vadd.f32 %v4833, %v4914
      %v5304 = vadd.f32 %v4834, %v4918
      %v5305 = vadd.f32 %v4835, %v4922
      %v5306 = vadd.f32 %v4836, %v4926
      %v5307 = vadd.f32 %v4837, %v4914
      %v5308 = vadd.f32 %v4838, %v4918
      %v5309 = vadd.f32 %v4839, %v4922
      %v5310 = vadd.f32 %v4840, %v4926
      %v5311 = vadd.f32 %v4841, %v4914
      %v5312 = vadd.f32 %v4842, %v4918
      %v5313 = vadd.f32 %v4843, %v4922
      %v5314 = vadd.f32 %v4844, %v4926
      %v5315 = vadd.f32 %v4845, %v4914
      %v5316 = vadd.f32 %v4846, %v4918
      %v5317 = vadd.f32 %v4847, %v4922
      %v5318 = vadd.f32 %v4848, %v4926
      %v5319 = vadd.f32 %v4849, %v4914
      %v5320 = vadd.f32 %v4850, %v4918
      %v5321 = vadd.f32 %v4851, %v4922
      %v5322 = vadd.f32 %v4852, %v4926
      %v5323 = vadd.f32 %v4853, %v4914
      %v5324 = vadd.f32 %v4854, %v4918
      %v5325 = vadd.f32 %v4855, %v4922
      %v5326 = vadd.f32 %v4856, %v4926
      %v5327 = vadd.f32 %v4857, %v4914
      %v5328 = vadd.f32 %v4858, %v4918
      %v5329 = vadd.f32 %v4859, %v4922
      %v5330 = vadd.f32 %v4860, %v4926
      %v5331 = vadd.f32 %v4861, %v4914
      %v5332 = vadd.f32 %v4862, %v4918
      %v5333 = vadd.f32 %v4863, %v4922
      %v5334 = vadd.f32 %v4864, %v4926
      %v5335 = vadd.f32 %v4865, %v4914
      %v5336 = vadd.f32 %v4866, %v4918
      %v5337 = vadd.f32 %v4867, %v4922
      %v5338 = vadd.f32 %v4868, %v4926
      %v5339 = vadd.f32 %v4869, %v4914
      %v5340 = vadd.f32 %v4870, %v4918
      %v5341 = vadd.f32 %v4871, %v4922
      %v5342 = vadd.f32 %v4872, %v4926
      %v5343 = vadd.f32 %v4873, %v4914
      %v5344 = vadd.f32 %v4874, %v4918
      %v5345 = vadd.f32 %v4875, %v4922
      %v5346 = vadd.f32 %v4876, %v4926
      %v5347 = vadd.f32 %v4877, %v4914
      %v5348 = vadd.f32 %v4878, %v4918
      %v5349 = vadd.f32 %v4879, %v4922
      %v5350 = vadd.f32 %v4880, %v4926
      %v5351 = vadd.f32 %v4881, %v4914
      %v5352 = vadd.f32 %v4882, %v4918
      %v5353 = vadd.f32 %v4883, %v4922
      %v5354 = vadd.f32 %v4884, %v4926
      %v5355 = vadd.f32 %v4885, %v4914
      %v5356 = vadd.f32 %v4886, %v4918
      %v5357 = vadd.f32 %v4887, %v4922
      %v5358 = vadd.f32 %v4888, %v4926
      %v5359 = vadd.f32 %v4889, %v4914
      %v5360 = vadd.f32 %v4890, %v4918
      %v5361 = vadd.f32 %v4891, %v4922
      %v5362 = vadd.f32 %v4892, %v4926
      %v5363 = vadd.f32 %v4893, %v4914
      %v5364 = vadd.f32 %v4894, %v4918
      %v5365 = vadd.f32 %v4895, %v4922
      %v5366 = vadd.f32 %v4896, %v4926
      %v5367 = vadd.f32 %v4897, %v4914
      %v5368 = vadd.f32 %v4898, %v4918
      %v5369 = vadd.f32 %v4899, %v4922
      %v5370 = vadd.f32 %v4900, %v4926
      %v5371 = vadd.f32 %v4901, %v4914
      %v5372 = vadd.f32 %v4902, %v4918
      %v5373 = vadd.f32 %v4903, %v4922
      %v5374 = vadd.f32 %v4904, %v4926
      %v5375 = vadd.f32 %v4905, %v4914
      %v5376 = vadd.f32 %v4906, %v4918
      %v5377 = vadd.f32 %v4907, %v4922
      %v5378 = vadd.f32 %v4908, %v4926
      %v5379 = vmax.f32 %v4931, 0.0
      %v5380 = vmax.f32 %v4932, 0.0
      %v5381 = vmax.f32 %v4933, 0.0
      %v5382 = vmax.f32 %v4934, 0.0
      %v5383 = vmax.f32 %v4935, 0.0
      %v5384 = vmax.f32 %v4936, 0.0
      %v5385 = vmax.f32 %v4937, 0.0
      %v5386 = vmax.f32 %v4938, 0.0
      %v5387 = vmax.f32 %v4939, 0.0
      %v5388 = vmax.f32 %v4940, 0.0
      %v5389 = vmax.f32 %v4941, 0.0
      %v5390 = vmax.f32 %v4942, 0.0
      %v5391 = vmax.f32 %v4943, 0.0
      %v5392 = vmax.f32 %v4944, 0.0
      %v5393 = vmax.f32 %v4945, 0.0
      %v5394 = vmax.f32 %v4946, 0.0
      %v5395 = vmax.f32 %v4947, 0.0
      %v5396 = vmax.f32 %v4948, 0.0
      %v5397 = vmax.f32 %v4949, 0.0
      %v5398 = vmax.f32 %v4950, 0.0
      %v5399 = vmax.f32 %v4951, 0.0
      %v5400 = vmax.f32 %v4952, 0.0
      %v5401 = vmax.f32 %v4953, 0.0
      %v5402 = vmax.f32 %v4954, 0.0
      %v5403 = vmax.f32 %v4955, 0.0
      %v5404 = vmax.f32 %v4956, 0.0
      %v5405 = vmax.f32 %v4957, 0.0
      %v5406 = vmax.f32 %v4958, 0.0
      %v5407 = vmax.f32 %v4959, 0.0
      %v5408 = vmax.f32 %v4960, 0.0
      %v5409 = vmax.f32 %v4961, 0.0
      %v5410 = vmax.f32 %v4962, 0.0
      %v5411 = vmax.f32 %v4963, 0.0
      %v5412 = vmax.f32 %v4964, 0.0
      %v5413 = vmax.f32 %v4965, 0.0
      %v5414 = vmax.f32 %v4966, 0.0
      %v5415 = vmax.f32 %v4967, 0.0
      %v5416 = vmax.f32 %v4968, 0.0
      %v5417 = vmax.f32 %v4969, 0.0
      %v5418 = vmax.f32 %v4970, 0.0
      %v5419 = vmax.f32 %v4971, 0.0
      %v5420 = vmax.f32 %v4972, 0.0
      %v5421 = vmax.f32 %v4973, 0.0
      %v5422 = vmax.f32 %v4974, 0.0
      %v5423 = vmax.f32 %v4975, 0.0
      %v5424 = vmax.f32 %v4976, 0.0
      %v5425 = vmax.f32 %v4977, 0.0
      %v5426 = vmax.f32 %v4978, 0.0
      %v5427 = vmax.f32 %v4979, 0.0
      %v5428 = vmax.f32 %v4980, 0.0
      %v5429 = vmax.f32 %v4981, 0.0
      %v5430 = vmax.f32 %v4982, 0.0
      %v5431 = vmax.f32 %v4983, 0.0
      %v5432 = vmax.f32 %v4984, 0.0
      %v5433 = vmax.f32 %v4985, 0.0
      %v5434 = vmax.f32 %v4986, 0.0
      %v5435 = vmax.f32 %v4987, 0.0
      %v5436 = vmax.f32 %v4988, 0.0
      %v5437 = vmax.f32 %v4989, 0.0
      %v5438 = vmax.f32 %v4990, 0.0
      %v5439 = vmax.f32 %v4991, 0.0
      %v5440 = vmax.f32 %v4992, 0.0
      %v5441 = vmax.f32 %v4993, 0.0
      %v5442 = vmax.f32 %v4994, 0.0
      %v5443 = vmax.f32 %v4995, 0.0
      %v5444 = vmax.f32 %v4996, 0.0
      %v5445 = vmax.f32 %v4997, 0.0
      %v5446 = vmax.f32 %v4998, 0.0
      %v5447 = vmax.f32 %v4999, 0.0
      %v5448 = vmax.f32 %v5000, 0.0
      %v5449 = vmax.f32 %v5001, 0.0
      %v5450 = vmax.f32 %v5002, 0.0
      %v5451 = vmax.f32 %v5003, 0.0
      %v5452 = vmax.f32 %v5004, 0.0
      %v5453 = vmax.f32 %v5005, 0.0
      %v5454 = vmax.f32 %v5006, 0.0
      %v5455 = vmax.f32 %v5007, 0.0
      %v5456 = vmax.f32 %v5008, 0.0
      %v5457 = vmax.f32 %v5009, 0.0
      %v5458 = vmax.f32 %v5010, 0.0
      %v5459 = vmax.f32 %v5011, 0.0
      %v5460 = vmax.f32 %v5012, 0.0
      %v5461 = vmax.f32 %v5013, 0.0
      %v5462 = vmax.f32 %v5014, 0.0
      %v5463 = vmax.f32 %v5015, 0.0
      %v5464 = vmax.f32 %v5016, 0.0
      %v5465 = vmax.f32 %v5017, 0.0
      %v5466 = vmax.f32 %v5018, 0.0
      %v5467 = vmax.f32 %v5019, 0.0
      %v5468 = vmax.f32 %v5020, 0.0
      %v5469 = vmax.f32 %v5021, 0.0
      %v5470 = vmax.f32 %v5022, 0.0
      %v5471 = vmax.f32 %v5023, 0.0
      %v5472 = vmax.f32 %v5024, 0.0
      %v5473 = vmax.f32 %v5025, 0.0
      %v5474 = vmax.f32 %v5026, 0.0
      %v5475 = vmax.f32 %v5027, 0.0
      %v5476 = vmax.f32 %v5028, 0.0
      %v5477 = vmax.f32 %v5029, 0.0
      %v5478 = vmax.f32 %v5030, 0.0
      %v5479 = vmax.f32 %v5031, 0.0
      %v5480 = vmax.f32 %v5032, 0.0
      %v5481 = vmax.f32 %v5033, 0.0
      %v5482 = vmax.f32 %v5034, 0.0
      %v5483 = vmax.f32 %v5035, 0.0
      %v5484 = vmax.f32 %v5036, 0.0
      %v5485 = vmax.f32 %v5037, 0.0
      %v5486 = vmax.f32 %v5038, 0.0
      %v5487 = vmax.f32 %v5039, 0.0
      %v5488 = vmax.f32 %v5040, 0.0
      %v5489 = vmax.f32 %v5041, 0.0
      %v5490 = vmax.f32 %v5042, 0.0
      %v5491 = vmax.f32 %v5043, 0.0
      %v5492 = vmax.f32 %v5044, 0.0
      %v5493 = vmax.f32 %v5045, 0.0
      %v5494 = vmax.f32 %v5046, 0.0
      %v5495 = vmax.f32 %v5047, 0.0
      %v5496 = vmax.f32 %v5048, 0.0
      %v5497 = vmax.f32 %v5049, 0.0
      %v5498 = vmax.f32 %v5050, 0.0
      %v5499 = vmax.f32 %v5051, 0.0
      %v5500 = vmax.f32 %v5052, 0.0
      %v5501 = vmax.f32 %v5053, 0.0
      %v5502 = vmax.f32 %v5054, 0.0
      %v5503 = vmax.f32 %v5055, 0.0
      %v5504 = vmax.f32 %v5056, 0.0
      %v5505 = vmax.f32 %v5057, 0.0
      %v5506 = vmax.f32 %v5058, 0.0
      %v5507 = vmax.f32 %v5059, 0.0
      %v5508 = vmax.f32 %v5060, 0.0
      %v5509 = vmax.f32 %v5061, 0.0
      %v5510 = vmax.f32 %v5062, 0.0
      %v5511 = vmax.f32 %v5063, 0.0
      %v5512 = vmax.f32 %v5064, 0.0
      %v5513 = vmax.f32 %v5065, 0.0
      %v5514 = vmax.f32 %v5066, 0.0
      %v5515 = vmax.f32 %v5067, 0.0
      %v5516 = vmax.f32 %v5068, 0.0
      %v5517 = vmax.f32 %v5069, 0.0
      %v5518 = vmax.f32 %v5070, 0.0
      %v5519 = vmax.f32 %v5071, 0.0
      %v5520 = vmax.f32 %v5072, 0.0
      %v5521 = vmax.f32 %v5073, 0.0
      %v5522 = vmax.f32 %v5074, 0.0
      %v5523 = vmax.f32 %v5075, 0.0
      %v5524 = vmax.f32 %v5076, 0.0
      %v5525 = vmax.f32 %v5077, 0.0
      %v5526 = vmax.f32 %v5078, 0.0
      %v5527 = vmax.f32 %v5079, 0.0
      %v5528 = vmax.f32 %v5080, 0.0
      %v5529 = vmax.f32 %v5081, 0.0
      %v5530 = vmax.f32 %v5082, 0.0
      %v5531 = vmax.f32 %v5083, 0.0
      %v5532 = vmax.f32 %v5084, 0.0
      %v5533 = vmax.f32 %v5085, 0.0
      %v5534 = vmax.f32 %v5086, 0.0
      %v5535 = vmax.f32 %v5087, 0.0
      %v5536 = vmax.f32 %v5088, 0.0
      %v5537 = vmax.f32 %v5089, 0.0
      %v5538 = vmax.f32 %v5090, 0.0
      %v5539 = vmax.f32 %v5091, 0.0
      %v5540 = vmax.f32 %v5092, 0.0
      %v5541 = vmax.f32 %v5093, 0.0
      %v5542 = vmax.f32 %v5094, 0.0
      %v5543 = vmax.f32 %v5095, 0.0
      %v5544 = vmax.f32 %v5096, 0.0
      %v5545 = vmax.f32 %v5097, 0.0
      %v5546 = vmax.f32 %v5098, 0.0
      %v5547 = vmax.f32 %v5099, 0.0
      %v5548 = vmax.f32 %v5100, 0.0
      %v5549 = vmax.f32 %v5101, 0.0
      %v5550 = vmax.f32 %v5102, 0.0
      %v5551 = vmax.f32 %v5103, 0.0
      %v5552 = vmax.f32 %v5104, 0.0
      %v5553 = vmax.f32 %v5105, 0.0
      %v5554 = vmax.f32 %v5106, 0.0
      %v5555 = vmax.f32 %v5107, 0.0
      %v5556 = vmax.f32 %v5108, 0.0
      %v5557 = vmax.f32 %v5109, 0.0
      %v5558 = vmax.f32 %v5110, 0.0
      %v5559 = vmax.f32 %v5111, 0.0
      %v5560 = vmax.f32 %v5112, 0.0
      %v5561 = vmax.f32 %v5113, 0.0
      %v5562 = vmax.f32 %v5114, 0.0
      %v5563 = vmax.f32 %v5115, 0.0
      %v5564 = vmax.f32 %v5116, 0.0
      %v5565 = vmax.f32 %v5117, 0.0
      %v5566 = vmax.f32 %v5118, 0.0
      %v5567 = vmax.f32 %v5119, 0.0
      %v5568 = vmax.f32 %v5120, 0.0
      %v5569 = vmax.f32 %v5121, 0.0
      %v5570 = vmax.f32 %v5122, 0.0
      %v5571 = vmax.f32 %v5123, 0.0
      %v5572 = vmax.f32 %v5124, 0.0
      %v5573 = vmax.f32 %v5125, 0.0
      %v5574 = vmax.f32 %v5126, 0.0
      %v5575 = vmax.f32 %v5127, 0.0
      %v5576 = vmax.f32 %v5128, 0.0
      %v5577 = vmax.f32 %v5129, 0.0
      %v5578 = vmax.f32 %v5130, 0.0
      %v5579 = vmax.f32 %v5131, 0.0
      %v5580 = vmax.f32 %v5132, 0.0
      %v5581 = vmax.f32 %v5133, 0.0
      %v5582 = vmax.f32 %v5134, 0.0
      %v5583 = vmax.f32 %v5135, 0.0
      %v5584 = vmax.f32 %v5136, 0.0
      %v5585 = vmax.f32 %v5137, 0.0
      %v5586 = vmax.f32 %v5138, 0.0
      %v5587 = vmax.f32 %v5139, 0.0
      %v5588 = vmax.f32 %v5140, 0.0
      %v5589 = vmax.f32 %v5141, 0.0
      %v5590 = vmax.f32 %v5142, 0.0
      %v5591 = vmax.f32 %v5143, 0.0
      %v5592 = vmax.f32 %v5144, 0.0
      %v5593 = vmax.f32 %v5145, 0.0
      %v5594 = vmax.f32 %v5146, 0.0
      %v5595 = vmax.f32 %v5147, 0.0
      %v5596 = vmax.f32 %v5148, 0.0
      %v5597 = vmax.f32 %v5149, 0.0
      %v5598 = vmax.f32 %v5150, 0.0
      %v5599 = vmax.f32 %v5151, 0.0
      %v5600 = vmax.f32 %v5152, 0.0
      %v5601 = vmax.f32 %v5153, 0.0
      %v5602 = vmax.f32 %v5154, 0.0
      %v5603 = vmax.f32 %v5155, 0.0
      %v5604 = vmax.f32 %v5156, 0.0
      %v5605 = vmax.f32 %v5157, 0.0
      %v5606 = vmax.f32 %v5158, 0.0
      %v5607 = vmax.f32 %v5159, 0.0
      %v5608 = vmax.f32 %v5160, 0.0
      %v5609 = vmax.f32 %v5161, 0.0
      %v5610 = vmax.f32 %v5162, 0.0
      %v5611 = vmax.f32 %v5163, 0.0
      %v5612 = vmax.f32 %v5164, 0.0
      %v5613 = vmax.f32 %v5165, 0.0
      %v5614 = vmax.f32 %v5166, 0.0
      %v5615 = vmax.f32 %v5167, 0.0
      %v5616 = vmax.f32 %v5168, 0.0
      %v5617 = vmax.f32 %v5169, 0.0
      %v5618 = vmax.f32 %v5170, 0.0
      %v5619 = vmax.f32 %v5171, 0.0
      %v5620 = vmax.f32 %v5172, 0.0
      %v5621 = vmax.f32 %v5173, 0.0
      %v5622 = vmax.f32 %v5174, 0.0
      %v5623 = vmax.f32 %v5175, 0.0
      %v5624 = vmax.f32 %v5176, 0.0
      %v5625 = vmax.f32 %v5177, 0.0
      %v5626 = vmax.f32 %v5178, 0.0
      %v5627 = vmax.f32 %v5179, 0.0
      %v5628 = vmax.f32 %v5180, 0.0
      %v5629 = vmax.f32 %v5181, 0.0
      %v5630 = vmax.f32 %v5182, 0.0
      %v5631 = vmax.f32 %v5183, 0.0
      %v5632 = vmax.f32 %v5184, 0.0
      %v5633 = vmax.f32 %v5185, 0.0
      %v5634 = vmax.f32 %v5186, 0.0
      %v5635 = vmax.f32 %v5187, 0.0
      %v5636 = vmax.f32 %v5188, 0.0
      %v5637 = vmax.f32 %v5189, 0.0
      %v5638 = vmax.f32 %v5190, 0.0
      %v5639 = vmax.f32 %v5191, 0.0
      %v5640 = vmax.f32 %v5192, 0.0
      %v5641 = vmax.f32 %v5193, 0.0
      %v5642 = vmax.f32 %v5194, 0.0
      %v5643 = vmax.f32 %v5195, 0.0
      %v5644 = vmax.f32 %v5196, 0.0
      %v5645 = vmax.f32 %v5197, 0.0
      %v5646 = vmax.f32 %v5198, 0.0
      %v5647 = vmax.f32 %v5199, 0.0
      %v5648 = vmax.f32 %v5200, 0.0
      %v5649 = vmax.f32 %v5201, 0.0
      %v5650 = vmax.f32 %v5202, 0.0
      %v5651 = vmax.f32 %v5203, 0.0
      %v5652 = vmax.f32 %v5204, 0.0
      %v5653 = vmax.f32 %v5205, 0.0
      %v5654 = vmax.f32 %v5206, 0.0
      %v5655 = vmax.f32 %v5207, 0.0
      %v5656 = vmax.f32 %v5208, 0.0
      %v5657 = vmax.f32 %v5209, 0.0
      %v5658 = vmax.f32 %v5210, 0.0
      %v5659 = vmax.f32 %v5211, 0.0
      %v5660 = vmax.f32 %v5212, 0.0
      %v5661 = vmax.f32 %v5213, 0.0
      %v5662 = vmax.f32 %v5214, 0.0
      %v5663 = vmax.f32 %v5215, 0.0
      %v5664 = vmax.f32 %v5216, 0.0
      %v5665 = vmax.f32 %v5217, 0.0
      %v5666 = vmax.f32 %v5218, 0.0
      %v5667 = vmax.f32 %v5219, 0.0
      %v5668 = vmax.f32 %v5220, 0.0
      %v5669 = vmax.f32 %v5221, 0.0
      %v5670 = vmax.f32 %v5222, 0.0
      %v5671 = vmax.f32 %v5223, 0.0
      %v5672 = vmax.f32 %v5224, 0.0
      %v5673 = vmax.f32 %v5225, 0.0
      %v5674 = vmax.f32 %v5226, 0.0
      %v5675 = vmax.f32 %v5227, 0.0
      %v5676 = vmax.f32 %v5228, 0.0
      %v5677 = vmax.f32 %v5229, 0.0
      %v5678 = vmax.f32 %v5230, 0.0
      %v5679 = vmax.f32 %v5231, 0.0
      %v5680 = vmax.f32 %v5232, 0.0
      %v5681 = vmax.f32 %v5233, 0.0
      %v5682 = vmax.f32 %v5234, 0.0
      %v5683 = vmax.f32 %v5235, 0.0
      %v5684 = vmax.f32 %v5236, 0.0
      %v5685 = vmax.f32 %v5237, 0.0
      %v5686 = vmax.f32 %v5238, 0.0
      %v5687 = vmax.f32 %v5239, 0.0
      %v5688 = vmax.f32 %v5240, 0.0
      %v5689 = vmax.f32 %v5241, 0.0
      %v5690 = vmax.f32 %v5242, 0.0
      %v5691 = vmax.f32 %v5243, 0.0
      %v5692 = vmax.f32 %v5244, 0.0
      %v5693 = vmax.f32 %v5245, 0.0
      %v5694 = vmax.f32 %v5246, 0.0
      %v5695 = vmax.f32 %v5247, 0.0
      %v5696 = vmax.f32 %v5248, 0.0
      %v5697 = vmax.f32 %v5249, 0.0
      %v5698 = vmax.f32 %v5250, 0.0
      %v5699 = vmax.f32 %v5251, 0.0
      %v5700 = vmax.f32 %v5252, 0.0
      %v5701 = vmax.f32 %v5253, 0.0
      %v5702 = vmax.f32 %v5254, 0.0
      %v5703 = vmax.f32 %v5255, 0.0
      %v5704 = vmax.f32 %v5256, 0.0
      %v5705 = vmax.f32 %v5257, 0.0
      %v5706 = vmax.f32 %v5258, 0.0
      %v5707 = vmax.f32 %v5259, 0.0
      %v5708 = vmax.f32 %v5260, 0.0
      %v5709 = vmax.f32 %v5261, 0.0
      %v5710 = vmax.f32 %v5262, 0.0
      %v5711 = vmax.f32 %v5263, 0.0
      %v5712 = vmax.f32 %v5264, 0.0
      %v5713 = vmax.f32 %v5265, 0.0
      %v5714 = vmax.f32 %v5266, 0.0
      %v5715 = vmax.f32 %v5267, 0.0
      %v5716 = vmax.f32 %v5268, 0.0
      %v5717 = vmax.f32 %v5269, 0.0
      %v5718 = vmax.f32 %v5270, 0.0
      %v5719 = vmax.f32 %v5271, 0.0
      %v5720 = vmax.f32 %v5272, 0.0
      %v5721 = vmax.f32 %v5273, 0.0
      %v5722 = vmax.f32 %v5274, 0.0
      %v5723 = vmax.f32 %v5275, 0.0
      %v5724 = vmax.f32 %v5276, 0.0
      %v5725 = vmax.f32 %v5277, 0.0
      %v5726 = vmax.f32 %v5278, 0.0
      %v5727 = vmax.f32 %v5279, 0.0
      %v5728 = vmax.f32 %v5280, 0.0
      %v5729 = vmax.f32 %v5281, 0.0
      %v5730 = vmax.f32 %v5282, 0.0
      %v5731 = vmax.f32 %v5283, 0.0
      %v5732 = vmax.f32 %v5284, 0.0
      %v5733 = vmax.f32 %v5285, 0.0
      %v5734 = vmax.f32 %v5286, 0.0
      %v5735 = vmax.f32 %v5287, 0.0
      %v5736 = vmax.f32 %v5288, 0.0
      %v5737 = vmax.f32 %v5289, 0.0
      %v5738 = vmax.f32 %v5290, 0.0
      %v5739 = vmax.f32 %v5291, 0.0
      %v5740 = vmax.f32 %v5292, 0.0
      %v5741 = vmax.f32 %v5293, 0.0
      %v5742 = vmax.f32 %v5294, 0.0
      %v5743 = vmax.f32 %v5295, 0.0
      %v5744 = vmax.f32 %v5296, 0.0
      %v5745 = vmax.f32 %v5297, 0.0
      %v5746 = vmax.f32 %v5298, 0.0
      %v5747 = vmax.f32 %v5299, 0.0
      %v5748 = vmax.f32 %v5300, 0.0
      %v5749 = vmax.f32 %v5301, 0.0
      %v5750 = vmax.f32 %v5302, 0.0
      %v5751 = vmax.f32 %v5303, 0.0
      %v5752 = vmax.f32 %v5304, 0.0
      %v5753 = vmax.f32 %v5305, 0.0
      %v5754 = vmax.f32 %v5306, 0.0
      %v5755 = vmax.f32 %v5307, 0.0
      %v5756 = vmax.f32 %v5308, 0.0
      %v5757 = vmax.f32 %v5309, 0.0
      %v5758 = vmax.f32 %v5310, 0.0
      %v5759 = vmax.f32 %v5311, 0.0
      %v5760 = vmax.f32 %v5312, 0.0
      %v5761 = vmax.f32 %v5313, 0.0
      %v5762 = vmax.f32 %v5314, 0.0
      %v5763 = vmax.f32 %v5315, 0.0
      %v5764 = vmax.f32 %v5316, 0.0
      %v5765 = vmax.f32 %v5317, 0.0
      %v5766 = vmax.f32 %v5318, 0.0
      %v5767 = vmax.f32 %v5319, 0.0
      %v5768 = vmax.f32 %v5320, 0.0
      %v5769 = vmax.f32 %v5321, 0.0
      %v5770 = vmax.f32 %v5322, 0.0
      %v5771 = vmax.f32 %v5323, 0.0
      %v5772 = vmax.f32 %v5324, 0.0
      %v5773 = vmax.f32 %v5325, 0.0
      %v5774 = vmax.f32 %v5326, 0.0
      %v5775 = vmax.f32 %v5327, 0.0
      %v5776 = vmax.f32 %v5328, 0.0
      %v5777 = vmax.f32 %v5329, 0.0
      %v5778 = vmax.f32 %v5330, 0.0
      %v5779 = vmax.f32 %v5331, 0.0
      %v5780 = vmax.f32 %v5332, 0.0
      %v5781 = vmax.f32 %v5333, 0.0
      %v5782 = vmax.f32 %v5334, 0.0
      %v5783 = vmax.f32 %v5335, 0.0
      %v5784 = vmax.f32 %v5336, 0.0
      %v5785 = vmax.f32 %v5337, 0.0
      %v5786 = vmax.f32 %v5338, 0.0
      %v5787 = vmax.f32 %v5339, 0.0
      %v5788 = vmax.f32 %v5340, 0.0
      %v5789 = vmax.f32 %v5341, 0.0
      %v5790 = vmax.f32 %v5342, 0.0
      %v5791 = vmax.f32 %v5343, 0.0
      %v5792 = vmax.f32 %v5344, 0.0
      %v5793 = vmax.f32 %v5345, 0.0
      %v5794 = vmax.f32 %v5346, 0.0
      %v5795 = vmax.f32 %v5347, 0.0
      %v5796 = vmax.f32 %v5348, 0.0
      %v5797 = vmax.f32 %v5349, 0.0
      %v5798 = vmax.f32 %v5350, 0.0
      %v5799 = vmax.f32 %v5351, 0.0
      %v5800 = vmax.f32 %v5352, 0.0
      %v5801 = vmax.f32 %v5353, 0.0
      %v5802 = vmax.f32 %v5354, 0.0
      %v5803 = vmax.f32 %v5355, 0.0
      %v5804 = vmax.f32 %v5356, 0.0
      %v5805 = vmax.f32 %v5357, 0.0
      %v5806 = vmax.f32 %v5358, 0.0
      %v5807 = vmax.f32 %v5359, 0.0
      %v5808 = vmax.f32 %v5360, 0.0
      %v5809 = vmax.f32 %v5361, 0.0
      %v5810 = vmax.f32 %v5362, 0.0
      %v5811 = vmax.f32 %v5363, 0.0
      %v5812 = vmax.f32 %v5364, 0.0
      %v5813 = vmax.f32 %v5365, 0.0
      %v5814 = vmax.f32 %v5366, 0.0
      %v5815 = vmax.f32 %v5367, 0.0
      %v5816 = vmax.f32 %v5368, 0.0
      %v5817 = vmax.f32 %v5369, 0.0
      %v5818 = vmax.f32 %v5370, 0.0
      %v5819 = vmax.f32 %v5371, 0.0
      %v5820 = vmax.f32 %v5372, 0.0
      %v5821 = vmax.f32 %v5373, 0.0
      %v5822 = vmax.f32 %v5374, 0.0
      %v5823 = vmax.f32 %v5375, 0.0
      %v5824 = vmax.f32 %v5376, 0.0
      %v5825 = vmax.f32 %v5377, 0.0
      %v5826 = vmax.f32 %v5378, 0.0
      %v5827 = vmax.f32 %v5379, %v5381
      %v5828 = vmax.f32 %v5380, %v5382
      %v5829 = vmax.f32 %v5383, %v5385
      %v5830 = vmax.f32 %v5384, %v5386
      %v5831 = vmax.f32 %v5387, %v5389
      %v5832 = vmax.f32 %v5388, %v5390
      %v5833 = vmax.f32 %v5391, %v5393
      %v5834 = vmax.f32 %v5392, %v5394
      %v5835 = vmax.f32 %v5395, %v5397
      %v5836 = vmax.f32 %v5396, %v5398
      %v5837 = vmax.f32 %v5399, %v5401
      %v5838 = vmax.f32 %v5400, %v5402
      %v5839 = vmax.f32 %v5403, %v5405
      %v5840 = vmax.f32 %v5404, %v5406
      %v5841 = vmax.f32 %v5407, %v5409
      %v5842 = vmax.f32 %v5408, %v5410
      %v5843 = vmax.f32 %v5411, %v5413
      %v5844 = vmax.f32 %v5412, %v5414
      %v5845 = vmax.f32 %v5415, %v5417
      %v5846 = vmax.f32 %v5416, %v5418
      %v5847 = vmax.f32 %v5419, %v5421
      %v5848 = vmax.f32 %v5420, %v5422
      %v5849 = vmax.f32 %v5423, %v5425
      %v5850 = vmax.f32 %v5424, %v5426
      %v5851 = vmax.f32 %v5427, %v5429
      %v5852 = vmax.f32 %v5428, %v5430
      %v5853 = vmax.f32 %v5431, %v5433
      %v5854 = vmax.f32 %v5432, %v5434
      %v5855 = vmax.f32 %v5435, %v5437
      %v5856 = vmax.f32 %v5436, %v5438
      %v5857 = vmax.f32 %v5439, %v5441
      %v5858 = vmax.f32 %v5440, %v5442
      %v5859 = vmax.f32 %v5443, %v5445
      %v5860 = vmax.f32 %v5444, %v5446
      %v5861 = vmax.f32 %v5447, %v5449
      %v5862 = vmax.f32 %v5448, %v5450
      %v5863 = vmax.f32 %v5451, %v5453
      %v5864 = vmax.f32 %v5452, %v5454
      %v5865 = vmax.f32 %v5455, %v5457
      %v5866 = vmax.f32 %v5456, %v5458
      %v5867 = vmax.f32 %v5459, %v5461
      %v5868 = vmax.f32 %v5460, %v5462
      %v5869 = vmax.f32 %v5463, %v5465
      %v5870 = vmax.f32 %v5464, %v5466
      %v5871 = vmax.f32 %v5467, %v5469
      %v5872 = vmax.f32 %v5468, %v5470
      %v5873 = vmax.f32 %v5471, %v5473
      %v5874 = vmax.f32 %v5472, %v5474
      %v5875 = vmax.f32 %v5475, %v5477
      %v5876 = vmax.f32 %v5476, %v5478
      %v5877 = vmax.f32 %v5479, %v5481
      %v5878 = vmax.f32 %v5480, %v5482
      %v5879 = vmax.f32 %v5483, %v5485
      %v5880 = vmax.f32 %v5484, %v5486
      %v5881 = vmax.f32 %v5487, %v5489
      %v5882 = vmax.f32 %v5488, %v5490
      %v5883 = vmax.f32 %v5491, %v5493
      %v5884 = vmax.f32 %v5492, %v5494
      %v5885 = vmax.f32 %v5495, %v5497
      %v5886 = vmax.f32 %v5496, %v5498
      %v5887 = vmax.f32 %v5499, %v5501
      %v5888 = vmax.f32 %v5500, %v5502
      %v5889 = vmax.f32 %v5503, %v5505
      %v5890 = vmax.f32 %v5504, %v5506
      %v5891 = vmax.f32 %v5507, %v5509
      %v5892 = vmax.f32 %v5508, %v5510
      %v5893 = vmax.f32 %v5511, %v5513
      %v5894 = vmax.f32 %v5512, %v5514
      %v5895 = vmax.f32 %v5515, %v5517
      %v5896 = vmax.f32 %v5516, %v5518
      %v5897 = vmax.f32 %v5519, %v5521
      %v5898 = vmax.f32 %v5520, %v5522
      %v5899 = vmax.f32 %v5523, %v5525
      %v5900 = vmax.f32 %v5524, %v5526
      %v5901 = vmax.f32 %v5527, %v5529
      %v5902 = vmax.f32 %v5528, %v5530
      %v5903 = vmax.f32 %v5531, %v5533
      %v5904 = vmax.f32 %v5532, %v5534
      %v5905 = vmax.f32 %v5535, %v5537
      %v5906 = vmax.f32 %v5536, %v5538
      %v5907 = vmax.f32 %v5539, %v5541
      %v5908 = vmax.f32 %v5540, %v5542
      %v5909 = vmax.f32 %v5543, %v5545
      %v5910 = vmax.f32 %v5544, %v5546
      %v5911 = vmax.f32 %v5547, %v5549
      %v5912 = vmax.f32 %v5548, %v5550
      %v5913 = vmax.f32 %v5551, %v5553
      %v5914 = vmax.f32 %v5552, %v5554
      %v5915 = vmax.f32 %v5555, %v5557
      %v5916 = vmax.f32 %v5556, %v5558
      %v5917 = vmax.f32 %v5559, %v5561
      %v5918 = vmax.f32 %v5560, %v5562
      %v5919 = vmax.f32 %v5563, %v5565
      %v5920 = vmax.f32 %v5564, %v5566
      %v5921 = vmax.f32 %v5567, %v5569
      %v5922 = vmax.f32 %v5568, %v5570
      %v5923 = vmax.f32 %v5571, %v5573
      %v5924 = vmax.f32 %v5572, %v5574
      %v5925 = vmax.f32 %v5575, %v5577
      %v5926 = vmax.f32 %v5576, %v5578
      %v5927 = vmax.f32 %v5579, %v5581
      %v5928 = vmax.f32 %v5580, %v5582
      %v5929 = vmax.f32 %v5583, %v5585
      %v5930 = vmax.f32 %v5584, %v5586
      %v5931 = vmax.f32 %v5587, %v5589
      %v5932 = vmax.f32 %v5588, %v5590
      %v5933 = vmax.f32 %v5591, %v5593
      %v5934 = vmax.f32 %v5592, %v5594
      %v5935 = vmax.f32 %v5595, %v5597
      %v5936 = vmax.f32 %v5596, %v5598
      %v5937 = vmax.f32 %v5599, %v5601
      %v5938 = vmax.f32 %v5600, %v5602
      %v5939 = vmax.f32 %v5603, %v5605
      %v5940 = vmax.f32 %v5604, %v5606
      %v5941 = vmax.f32 %v5607, %v5609
      %v5942 = vmax.f32 %v5608, %v5610
      %v5943 = vmax.f32 %v5611, %v5613
      %v5944 = vmax.f32 %v5612, %v5614
      %v5945 = vmax.f32 %v5615, %v5617
      %v5946 = vmax.f32 %v5616, %v5618
      %v5947 = vmax.f32 %v5619, %v5621
      %v5948 = vmax.f32 %v5620, %v5622
      %v5949 = vmax.f32 %v5623, %v5625
      %v5950 = vmax.f32 %v5624, %v5626
      %v5951 = vmax.f32 %v5627, %v5629
      %v5952 = vmax.f32 %v5628, %v5630
      %v5953 = vmax.f32 %v5631, %v5633
      %v5954 = vmax.f32 %v5632, %v5634
      %v5955 = vmax.f32 %v5635, %v5637
      %v5956 = vmax.f32 %v5636, %v5638
      %v5957 = vmax.f32 %v5639, %v5641
      %v5958 = vmax.f32 %v5640, %v5642
      %v5959 = vmax.f32 %v5643, %v5645
      %v5960 = vmax.f32 %v5644, %v5646
      %v5961 = vmax.f32 %v5647, %v5649
      %v5962 = vmax.f32 %v5648, %v5650
      %v5963 = vmax.f32 %v5651, %v5653
      %v5964 = vmax.f32 %v5652, %v5654
      %v5965 = vmax.f32 %v5655, %v5657
      %v5966 = vmax.f32 %v5656, %v5658
      %v5967 = vmax.f32 %v5659, %v5661
      %v5968 = vmax.f32 %v5660, %v5662
      %v5969 = vmax.f32 %v5663, %v5665
      %v5970 = vmax.f32 %v5664, %v5666
      %v5971 = vmax.f32 %v5667, %v5669
      %v5972 = vmax.f32 %v5668, %v5670
      %v5973 = vmax.f32 %v5671, %v5673
      %v5974 = vmax.f32 %v5672, %v5674
      %v5975 = vmax.f32 %v5675, %v5677
      %v5976 = vmax.f32 %v5676, %v5678
      %v5977 = vmax.f32 %v5679, %v5681
      %v5978 = vmax.f32 %v5680, %v5682
      %v5979 = vmax.f32 %v5683, %v5685
      %v5980 = vmax.f32 %v5684, %v5686
      %v5981 = vmax.f32 %v5687, %v5689
      %v5982 = vmax.f32 %v5688, %v5690
      %v5983 = vmax.f32 %v5691, %v5693
      %v5984 = vmax.f32 %v5692, %v5694
      %v5985 = vmax.f32 %v5695, %v5697
      %v5986 = vmax.f32 %v5696, %v5698
      %v5987 = vmax.f32 %v5699, %v5701
      %v5988 = vmax.f32 %v5700, %v5702
      %v5989 = vmax.f32 %v5703, %v5705
      %v5990 = vmax.f32 %v5704, %v5706
      %v5991 = vmax.f32 %v5707, %v5709
      %v5992 = vmax.f32 %v5708, %v5710
      %v5993 = vmax.f32 %v5711, %v5713
      %v5994 = vmax.f32 %v5712, %v5714
      %v5995 = vmax.f32 %v5715, %v5717
      %v5996 = vmax.f32 %v5716, %v5718
      %v5997 = vmax.f32 %v5719, %v5721
      %v5998 = vmax.f32 %v5720, %v5722
      %v5999 = vmax.f32 %v5723, %v5725
      %v6000 = vmax.f32 %v5724, %v5726
      %v6001 = vmax.f32 %v5727, %v5729
      %v6002 = vmax.f32 %v5728, %v5730
      %v6003 = vmax.f32 %v5731, %v5733
      %v6004 = vmax.f32 %v5732, %v5734
      %v6005 = vmax.f32 %v5735, %v5737
      %v6006 = vmax.f32 %v5736, %v5738
      %v6007 = vmax.f32 %v5739, %v5741
      %v6008 = vmax.f32 %v5740, %v5742
      %v6009 = vmax.f32 %v5743, %v5745
      %v6010 = vmax.f32 %v5744, %v5746
      %v6011 = vmax.f32 %v5747, %v5749
      %v6012 = vmax.f32 %v5748, %v5750
      %v6013 = vmax.f32 %v5751, %v5753
      %v6014 = vmax.f32 %v5752, %v5754
      %v6015 = vmax.f32 %v5755, %v5757
      %v6016 = vmax.f32 %v5756, %v5758
      %v6017 = vmax.f32 %v5759, %v5761
      %v6018 = vmax.f32 %v5760, %v5762
      %v6019 = vmax.f32 %v5763, %v5765
      %v6020 = vmax.f32 %v5764, %v5766
      %v6021 = vmax.f32 %v5767, %v5769
      %v6022 = vmax.f32 %v5768, %v5770
      %v6023 = vmax.f32 %v5771, %v5773
      %v6024 = vmax.f32 %v5772, %v5774
      %v6025 = vmax.f32 %v5775, %v5777
      %v6026 = vmax.f32 %v5776, %v5778
      %v6027 = vmax.f32 %v5779, %v5781
      %v6028 = vmax.f32 %v5780, %v5782
      %v6029 = vmax.f32 %v5783, %v5785
      %v6030 = vmax.f32 %v5784, %v5786
      %v6031 = vmax.f32 %v5787, %v5789
      %v6032 = vmax.f32 %v5788, %v5790
      %v6033 = vmax.f32 %v5791, %v5793
      %v6034 = vmax.f32 %v5792, %v5794
      %v6035 = vmax.f32 %v5795, %v5797
      %v6036 = vmax.f32 %v5796, %v5798
      %v6037 = vmax.f32 %v5799, %v5801
      %v6038 = vmax.f32 %v5800, %v5802
      %v6039 = vmax.f32 %v5803, %v5805
      %v6040 = vmax.f32 %v5804, %v5806
      %v6041 = vmax.f32 %v5807, %v5809
      %v6042 = vmax.f32 %v5808, %v5810
      %v6043 = vmax.f32 %v5811, %v5813
      %v6044 = vmax.f32 %v5812, %v5814
      %v6045 = vmax.f32 %v5815, %v5817
      %v6046 = vmax.f32 %v5816, %v5818
      %v6047 = vmax.f32 %v5819, %v5821
      %v6048 = vmax.f32 %v5820, %v5822
      %v6049 = vmax.f32 %v5823, %v5825
      %v6050 = vmax.f32 %v5824, %v5826
      %v6051 = vmax.f32 %v5827, %v5835
      %v6052 = vmax.f32 %v5828, %v5836
      %v6053 = vmax.f32 %v5829, %v5837
      %v6054 = vmax.f32 %v5830, %v5838
      %v6055 = vmax.f32 %v5831, %v5839
      %v6056 = vmax.f32 %v5832, %v5840
      %v6057 = vmax.f32 %v5833, %v5841
      %v6058 = vmax.f32 %v5834, %v5842
      %v6059 = vmax.f32 %v5843, %v5851
      %v6060 = vmax.f32 %v5844, %v5852
      %v6061 = vmax.f32 %v5845, %v5853
      %v6062 = vmax.f32 %v5846, %v5854
      %v6063 = vmax.f32 %v5847, %v5855
      %v6064 = vmax.f32 %v5848, %v5856
      %v6065 = vmax.f32 %v5849, %v5857
      %v6066 = vmax.f32 %v5850, %v5858
      %v6067 = vmax.f32 %v5859, %v5867
      %v6068 = vmax.f32 %v5860, %v5868
      %v6069 = vmax.f32 %v5861, %v5869
      %v6070 = vmax.f32 %v5862, %v5870
      %v6071 = vmax.f32 %v5863, %v5871
      %v6072 = vmax.f32 %v5864, %v5872
      %v6073 = vmax.f32 %v5865, %v5873
      %v6074 = vmax.f32 %v5866, %v5874
      %v6075 = vmax.f32 %v5875, %v5883
      %v6076 = vmax.f32 %v5876, %v5884
      %v6077 = vmax.f32 %v5877, %v5885
      %v6078 = vmax.f32 %v5878, %v5886
      %v6079 = vmax.f32 %v5879, %v5887
      %v6080 = vmax.f32 %v5880, %v5888
      %v6081 = vmax.f32 %v5881, %v5889
      %v6082 = vmax.f32 %v5882, %v5890
      %v6083 = vmax.f32 %v5891, %v5899
      %v6084 = vmax.f32 %v5892, %v5900
      %v6085 = vmax.f32 %v5893, %v5901
      %v6086 = vmax.f32 %v5894, %v5902
      %v6087 = vmax.f32 %v5895, %v5903
      %v6088 = vmax.f32 %v5896, %v5904
      %v6089 = vmax.f32 %v5897, %v5905
      %v6090 = vmax.f32 %v5898, %v5906
      %v6091 = vmax.f32 %v5907, %v5915
      %v6092 = vmax.f32 %v5908, %v5916
      %v6093 = vmax.f32 %v5909, %v5917
      %v6094 = vmax.f32 %v5910, %v5918
      %v6095 = vmax.f32 %v5911, %v5919
      %v6096 = vmax.f32 %v5912, %v5920
      %v6097 = vmax.f32 %v5913, %v5921
      %v6098 = vmax.f32 %v5914, %v5922
      %v6099 = vmax.f32 %v5923, %v5931
      %v6100 = vmax.f32 %v5924, %v5932
      %v6101 = vmax.f32 %v5925, %v5933
      %v6102 = vmax.f32 %v5926, %v5934
      %v6103 = vmax.f32 %v5927, %v5935
      %v6104 = vmax.f32 %v5928, %v5936
      %v6105 = vmax.f32 %v5929, %v5937
      %v6106 = vmax.f32 %v5930, %v5938
      %v6107 = vmax.f32 %v5939, %v5947
      %v6108 = vmax.f32 %v5940, %v5948
      %v6109 = vmax.f32 %v5941, %v5949
      %v6110 = vmax.f32 %v5942, %v5950
      %v6111 = vmax.f32 %v5943, %v5951
      %v6112 = vmax.f32 %v5944, %v5952
      %v6113 = vmax.f32 %v5945, %v5953
      %v6114 = vmax.f32 %v5946, %v5954
      %v6115 = vmax.f32 %v5955, %v5963
      %v6116 = vmax.f32 %v5956, %v5964
      %v6117 = vmax.f32 %v5957, %v5965
      %v6118 = vmax.f32 %v5958, %v5966
      %v6119 = vmax.f32 %v5959, %v5967
      %v6120 = vmax.f32 %v5960, %v5968
      %v6121 = vmax.f32 %v5961, %v5969
      %v6122 = vmax.f32 %v5962, %v5970
      %v6123 = vmax.f32 %v5971, %v5979
      %v6124 = vmax.f32 %v5972, %v5980
      %v6125 = vmax.f32 %v5973, %v5981
      %v6126 = vmax.f32 %v5974, %v5982
      %v6127 = vmax.f32 %v5975, %v5983
      %v6128 = vmax.f32 %v5976, %v5984
      %v6129 = vmax.f32 %v5977, %v5985
      %v6130 = vmax.f32 %v5978, %v5986
      %v6131 = vmax.f32 %v5987, %v5995
      %v6132 = vmax.f32 %v5988, %v5996
      %v6133 = vmax.f32 %v5989, %v5997
      %v6134 = vmax.f32 %v5990, %v5998
      %v6135 = vmax.f32 %v5991, %v5999
      %v6136 = vmax.f32 %v5992, %v6000
      %v6137 = vmax.f32 %v5993, %v6001
      %v6138 = vmax.f32 %v5994, %v6002
      %v6139 = vmax.f32 %v6003, %v6011
      %v6140 = vmax.f32 %v6004, %v6012
      %v6141 = vmax.f32 %v6005, %v6013
      %v6142 = vmax.f32 %v6006, %v6014
      %v6143 = vmax.f32 %v6007, %v6015
      %v6144 = vmax.f32 %v6008, %v6016
      %v6145 = vmax.f32 %v6009, %v6017
      %v6146 = vmax.f32 %v6010, %v6018
      %v6147 = vmax.f32 %v6019, %v6027
      %v6148 = vmax.f32 %v6020, %v6028
      %v6149 = vmax.f32 %v6021, %v6029
      %v6150 = vmax.f32 %v6022, %v6030
      %v6151 = vmax.f32 %v6023, %v6031
      %v6152 = vmax.f32 %v6024, %v6032
      %v6153 = vmax.f32 %v6025, %v6033
      %v6154 = vmax.f32 %v6026, %v6034
      %v6155 = vmax.f32 %v6035, %v6043
      %v6156 = vmax.f32 %v6036, %v6044
      %v6157 = vmax.f32 %v6037, %v6045
      %v6158 = vmax.f32 %v6038, %v6046
      %v6159 = vmax.f32 %v6039, %v6047
      %v6160 = vmax.f32 %v6040, %v6048
      %v6161 = vmax.f32 %v6041, %v6049
      %v6162 = vmax.f32 %v6042, %v6050
      %v6163 = vpack.c.bf16 %v6053, %v6051
      %v6164 = vpack.c.bf16 %v6054, %v6052
      %v6165 = vpack.c.bf16 %v6057, %v6055
      %v6166 = vpack.c.bf16 %v6058, %v6056
      %v6167 = vpack.c.bf16 %v6061, %v6059
      %v6168 = vpack.c.bf16 %v6062, %v6060
      %v6169 = vpack.c.bf16 %v6065, %v6063
      %v6170 = vpack.c.bf16 %v6066, %v6064
      %v6171 = vpack.c.bf16 %v6069, %v6067
      %v6172 = vpack.c.bf16 %v6070, %v6068
      %v6173 = vpack.c.bf16 %v6073, %v6071
      %v6174 = vpack.c.bf16 %v6074, %v6072
      %v6175 = vpack.c.bf16 %v6077, %v6075
      %v6176 = vpack.c.bf16 %v6078, %v6076
      %v6177 = vpack.c.bf16 %v6081, %v6079
      %v6178 = vpack.c.bf16 %v6082, %v6080
      %v6179 = vpack.c.bf16 %v6085, %v6083
      %v6180 = vpack.c.bf16 %v6086, %v6084
      %v6181 = vpack.c.bf16 %v6089, %v6087
      %v6182 = vpack.c.bf16 %v6090, %v6088
      %v6183 = vpack.c.bf16 %v6093, %v6091
      %v6184 = vpack.c.bf16 %v6094, %v6092
      %v6185 = vpack.c.bf16 %v6097, %v6095
      %v6186 = vpack.c.bf16 %v6098, %v6096
      %v6187 = vpack.c.bf16 %v6101, %v6099
      %v6188 = vpack.c.bf16 %v6102, %v6100
      %v6189 = vpack.c.bf16 %v6105, %v6103
      %v6190 = vpack.c.bf16 %v6106, %v6104
      %v6191 = vpack.c.bf16 %v6109, %v6107
      %v6192 = vpack.c.bf16 %v6110, %v6108
      %v6193 = vpack.c.bf16 %v6113, %v6111
      %v6194 = vpack.c.bf16 %v6114, %v6112
      %v6195 = vpack.c.bf16 %v6117, %v6115
      %v6196 = vpack.c.bf16 %v6118, %v6116
      %v6197 = vpack.c.bf16 %v6121, %v6119
      %v6198 = vpack.c.bf16 %v6122, %v6120
      %v6199 = vpack.c.bf16 %v6125, %v6123
      %v6200 = vpack.c.bf16 %v6126, %v6124
      %v6201 = vpack.c.bf16 %v6129, %v6127
      %v6202 = vpack.c.bf16 %v6130, %v6128
      %v6203 = vpack.c.bf16 %v6133, %v6131
      %v6204 = vpack.c.bf16 %v6134, %v6132
      %v6205 = vpack.c.bf16 %v6137, %v6135
      %v6206 = vpack.c.bf16 %v6138, %v6136
      %v6207 = vpack.c.bf16 %v6141, %v6139
      %v6208 = vpack.c.bf16 %v6142, %v6140
      %v6209 = vpack.c.bf16 %v6145, %v6143
      %v6210 = vpack.c.bf16 %v6146, %v6144
      %v6211 = vpack.c.bf16 %v6149, %v6147
      %v6212 = vpack.c.bf16 %v6150, %v6148
      %v6213 = vpack.c.bf16 %v6153, %v6151
      %v6214 = vpack.c.bf16 %v6154, %v6152
      %v6215 = vpack.c.bf16 %v6157, %v6155
      %v6216 = vpack.c.bf16 %v6158, %v6156
      %v6217 = vpack.c.bf16 %v6161, %v6159
      %v6218 = vpack.c.bf16 %v6162, %v6160
      %v6219 = vld [vmem:[%s3] sm:$0xff]
      %v6220 = vld [vmem:[%s3 + $0x8] sm:$0xff]
      %v6221 = vld [vmem:[%s3 + $0x10] sm:$0xff]
      %v6222 = vld [vmem:[%s3 + $0x18] sm:$0xff]
      %v6223 = vld [vmem:[%s3 + $0x20] sm:$0xff]
      %v6224 = vld [vmem:[%s3 + $0x28] sm:$0xff]
      %v6225 = vld [vmem:[%s3 + $0x30] sm:$0xff]
      %v6226 = vld [vmem:[%s3 + $0x38] sm:$0xff]
      %v6227 = vld [vmem:[%s3 + $0x40] sm:$0xff]
      %v6228 = vld [vmem:[%s3 + $0x48] sm:$0xff]
      %v6229 = vld [vmem:[%s3 + $0x50] sm:$0xff]
      %v6230 = vld [vmem:[%s3 + $0x58] sm:$0xff]
      %v6231 = vld [vmem:[%s3 + $0x60] sm:$0xff]
      %v6232 = vld [vmem:[%s3 + $0x68] sm:$0xff]
      %v6233 = vld [vmem:[%s3 + $0x70] sm:$0xff]
      %v6234 = vld [vmem:[%s3 + $0x78] sm:$0xff]
      %v6235 = vld [vmem:[%s3 + $0x80] sm:$0xff]
      %v6236 = vld [vmem:[%s3 + $0x88] sm:$0xff]
      %v6237 = vld [vmem:[%s3 + $0x90] sm:$0xff]
      %v6238 = vld [vmem:[%s3 + $0x98] sm:$0xff]
      %v6239 = vld [vmem:[%s3 + $0xa0] sm:$0xff]
      %v6240 = vld [vmem:[%s3 + $0xa8] sm:$0xff]
      %v6241 = vld [vmem:[%s3 + $0xb0] sm:$0xff]
      %v6242 = vld [vmem:[%s3 + $0xb8] sm:$0xff]
      %v6243 = vld [vmem:[%s3 + $0xc0] sm:$0xff]
      %v6244 = vld [vmem:[%s3 + $0xc8] sm:$0xff]
      %v6245 = vld [vmem:[%s3 + $0xd0] sm:$0xff]
      %v6246 = vld [vmem:[%s3 + $0xd8] sm:$0xff]
      %v6247 = vld [vmem:[%s3 + $0xe0] sm:$0xff]
      %v6248 = vld [vmem:[%s3 + $0xe8] sm:$0xff]
      %v6249 = vld [vmem:[%s3 + $0xf0] sm:$0xff]
      %v6250 = vld [vmem:[%s3 + $0xf8] sm:$0xff]
      %v6251 = vld [vmem:[%s3 + $0x100] sm:$0xff]
      %v6252 = vld [vmem:[%s3 + $0x108] sm:$0xff]
      %v6253 = vld [vmem:[%s3 + $0x110] sm:$0xff]
      %v6254 = vld [vmem:[%s3 + $0x118] sm:$0xff]
      %v6255 = vld [vmem:[%s3 + $0x120] sm:$0xff]
      %v6256 = vld [vmem:[%s3 + $0x128] sm:$0xff]
      %v6257 = vld [vmem:[%s3 + $0x130] sm:$0xff]
      %v6258 = vld [vmem:[%s3 + $0x138] sm:$0xff]
      %v6259 = vld [vmem:[%s3 + $0x140] sm:$0xff]
      %v6260 = vld [vmem:[%s3 + $0x148] sm:$0xff]
      %v6261 = vld [vmem:[%s3 + $0x150] sm:$0xff]
      %v6262 = vld [vmem:[%s3 + $0x158] sm:$0xff]
      %v6263 = vld [vmem:[%s3 + $0x160] sm:$0xff]
      %v6264 = vld [vmem:[%s3 + $0x168] sm:$0xff]
      %v6265 = vld [vmem:[%s3 + $0x170] sm:$0xff]
      %v6266 = vld [vmem:[%s3 + $0x178] sm:$0xff]
      %v6267 = vld [vmem:[%s3 + $0x180] sm:$0xff]
      %v6268 = vld [vmem:[%s3 + $0x188] sm:$0xff]
      %v6269 = vld [vmem:[%s3 + $0x190] sm:$0xff]
      %v6270 = vld [vmem:[%s3 + $0x198] sm:$0xff]
      %v6271 = vld [vmem:[%s3 + $0x1a0] sm:$0xff]
      %v6272 = vld [vmem:[%s3 + $0x1a8] sm:$0xff]
      %v6273 = vld [vmem:[%s3 + $0x1b0] sm:$0xff]
      %v6274 = vld [vmem:[%s3 + $0x1b8] sm:$0xff]
      %v6275 = vld [vmem:[%s3 + $0x1c0] sm:$0xff]
      %v6276 = vld [vmem:[%s3 + $0x1c8] sm:$0xff]
      %v6277 = vld [vmem:[%s3 + $0x1d0] sm:$0xff]
      %v6278 = vld [vmem:[%s3 + $0x1d8] sm:$0xff]
      %v6279 = vld [vmem:[%s3 + $0x1e0] sm:$0xff]
      %v6280 = vld [vmem:[%s3 + $0x1e8] sm:$0xff]
      %v6281 = vld [vmem:[%s3 + $0x1f0] sm:$0xff]
      %v6282 = vld [vmem:[%s3 + $0x1f8] sm:$0xff]
      %v6283 = vld [vmem:[%s3 + $0x200] sm:$0xff]
      %v6284 = vld [vmem:[%s3 + $0x208] sm:$0xff]
      %v6285 = vld [vmem:[%s3 + $0x210] sm:$0xff]
      %v6286 = vld [vmem:[%s3 + $0x218] sm:$0xff]
      %v6287 = vld [vmem:[%s3 + $0x220] sm:$0xff]
      %v6288 = vld [vmem:[%s3 + $0x228] sm:$0xff]
      %v6289 = vld [vmem:[%s3 + $0x230] sm:$0xff]
      %v6290 = vld [vmem:[%s3 + $0x238] sm:$0xff]
      %v6291 = vld [vmem:[%s3 + $0x240] sm:$0xff]
      %v6292 = vld [vmem:[%s3 + $0x248] sm:$0xff]
      %v6293 = vld [vmem:[%s3 + $0x250] sm:$0xff]
      %v6294 = vld [vmem:[%s3 + $0x258] sm:$0xff]
      %v6295 = vld [vmem:[%s3 + $0x260] sm:$0xff]
      %v6296 = vld [vmem:[%s3 + $0x268] sm:$0xff]
      %v6297 = vld [vmem:[%s3 + $0x270] sm:$0xff]
      %v6298 = vld [vmem:[%s3 + $0x278] sm:$0xff]
      %v6299 = vld [vmem:[%s3 + $0x280] sm:$0xff]
      %v6300 = vld [vmem:[%s3 + $0x288] sm:$0xff]
      %v6301 = vld [vmem:[%s3 + $0x290] sm:$0xff]
      %v6302 = vld [vmem:[%s3 + $0x298] sm:$0xff]
      %v6303 = vld [vmem:[%s3 + $0x2a0] sm:$0xff]
      %v6304 = vld [vmem:[%s3 + $0x2a8] sm:$0xff]
      %v6305 = vld [vmem:[%s3 + $0x2b0] sm:$0xff]
      %v6306 = vld [vmem:[%s3 + $0x2b8] sm:$0xff]
      %v6307 = vld [vmem:[%s3 + $0x2c0] sm:$0xff]
      %v6308 = vld [vmem:[%s3 + $0x2c8] sm:$0xff]
      %v6309 = vld [vmem:[%s3 + $0x2d0] sm:$0xff]
      %v6310 = vld [vmem:[%s3 + $0x2d8] sm:$0xff]
      %v6311 = vld [vmem:[%s3 + $0x2e0] sm:$0xff]
      %v6312 = vld [vmem:[%s3 + $0x2e8] sm:$0xff]
      %v6313 = vld [vmem:[%s3 + $0x2f0] sm:$0xff]
      %v6314 = vld [vmem:[%s3 + $0x2f8] sm:$0xff]
      %v6315 = vld [vmem:[%s3 + $0x300] sm:$0xff]
      %v6316 = vld [vmem:[%s3 + $0x308] sm:$0xff]
      %v6317 = vld [vmem:[%s3 + $0x310] sm:$0xff]
      %v6318 = vld [vmem:[%s3 + $0x318] sm:$0xff]
      %v6319 = vld [vmem:[%s3 + $0x320] sm:$0xff]
      %v6320 = vld [vmem:[%s3 + $0x328] sm:$0xff]
      %v6321 = vld [vmem:[%s3 + $0x330] sm:$0xff]
      %v6322 = vld [vmem:[%s3 + $0x338] sm:$0xff]
      %v6323 = vld [vmem:[%s3 + $0x340] sm:$0xff]
      %v6324 = vld [vmem:[%s3 + $0x348] sm:$0xff]
      %v6325 = vld [vmem:[%s3 + $0x350] sm:$0xff]
      %v6326 = vld [vmem:[%s3 + $0x358] sm:$0xff]
      %v6327 = vld [vmem:[%s3 + $0x360] sm:$0xff]
      %v6328 = vld [vmem:[%s3 + $0x368] sm:$0xff]
      %v6329 = vld [vmem:[%s3 + $0x370] sm:$0xff]
      %v6330 = vld [vmem:[%s3 + $0x378] sm:$0xff]
      %v6331 = vld [vmem:[%s3 + $0x380] sm:$0xff]
      %v6332 = vld [vmem:[%s3 + $0x388] sm:$0xff]
      %v6333 = vld [vmem:[%s3 + $0x390] sm:$0xff]
      %v6334 = vld [vmem:[%s3 + $0x398] sm:$0xff]
      %v6335 = vld [vmem:[%s3 + $0x3a0] sm:$0xff]
      %v6336 = vld [vmem:[%s3 + $0x3a8] sm:$0xff]
      %v6337 = vld [vmem:[%s3 + $0x3b0] sm:$0xff]
      %v6338 = vld [vmem:[%s3 + $0x3b8] sm:$0xff]
      %v6339 = vld [vmem:[%s3 + $0x3c0] sm:$0xff]
      %v6340 = vld [vmem:[%s3 + $0x3c8] sm:$0xff]
      %v6341 = vld [vmem:[%s3 + $0x3d0] sm:$0xff]
      %v6342 = vld [vmem:[%s3 + $0x3d8] sm:$0xff]
      %v6343 = vld [vmem:[%s3 + $0x3e0] sm:$0xff]
      %v6344 = vld [vmem:[%s3 + $0x3e8] sm:$0xff]
      %v6345 = vld [vmem:[%s3 + $0x3f0] sm:$0xff]
      %v6346 = vld [vmem:[%s3 + $0x3f8] sm:$0xff]
      %v6347 = vld [vmem:[%s3 + $0x400] sm:$0xff]
      %v6348 = vld [vmem:[%s3 + $0x408] sm:$0xff]
      %v6349 = vld [vmem:[%s3 + $0x410] sm:$0xff]
      %v6350 = vld [vmem:[%s3 + $0x418] sm:$0xff]
      %v6351 = vld [vmem:[%s3 + $0x420] sm:$0xff]
      %v6352 = vld [vmem:[%s3 + $0x428] sm:$0xff]
      %v6353 = vld [vmem:[%s3 + $0x430] sm:$0xff]
      %v6354 = vld [vmem:[%s3 + $0x438] sm:$0xff]
      %v6355 = vld [vmem:[%s3 + $0x440] sm:$0xff]
      %v6356 = vld [vmem:[%s3 + $0x448] sm:$0xff]
      %v6357 = vld [vmem:[%s3 + $0x450] sm:$0xff]
      %v6358 = vld [vmem:[%s3 + $0x458] sm:$0xff]
      %v6359 = vld [vmem:[%s3 + $0x460] sm:$0xff]
      %v6360 = vld [vmem:[%s3 + $0x468] sm:$0xff]
      %v6361 = vld [vmem:[%s3 + $0x470] sm:$0xff]
      %v6362 = vld [vmem:[%s3 + $0x478] sm:$0xff]
      %v6363 = vld [vmem:[%s3 + $0x480] sm:$0xff]
      %v6364 = vld [vmem:[%s3 + $0x488] sm:$0xff]
      %v6365 = vld [vmem:[%s3 + $0x490] sm:$0xff]
      %v6366 = vld [vmem:[%s3 + $0x498] sm:$0xff]
      %v6367 = vld [vmem:[%s3 + $0x4a0] sm:$0xff]
      %v6368 = vld [vmem:[%s3 + $0x4a8] sm:$0xff]
      %v6369 = vld [vmem:[%s3 + $0x4b0] sm:$0xff]
      %v6370 = vld [vmem:[%s3 + $0x4b8] sm:$0xff]
      %v6371 = vld [vmem:[%s3 + $0x4c0] sm:$0xff]
      %v6372 = vld [vmem:[%s3 + $0x4c8] sm:$0xff]
      %v6373 = vld [vmem:[%s3 + $0x4d0] sm:$0xff]
      %v6374 = vld [vmem:[%s3 + $0x4d8] sm:$0xff]
      %v6375 = vld [vmem:[%s3 + $0x4e0] sm:$0xff]
      %v6376 = vld [vmem:[%s3 + $0x4e8] sm:$0xff]
      %v6377 = vld [vmem:[%s3 + $0x4f0] sm:$0xff]
      %v6378 = vld [vmem:[%s3 + $0x4f8] sm:$0xff]
      %v6379 = vld [vmem:[%s3 + $0x500] sm:$0xff]
      %v6380 = vld [vmem:[%s3 + $0x508] sm:$0xff]
      %v6381 = vld [vmem:[%s3 + $0x510] sm:$0xff]
      %v6382 = vld [vmem:[%s3 + $0x518] sm:$0xff]
      %v6383 = vld [vmem:[%s3 + $0x520] sm:$0xff]
      %v6384 = vld [vmem:[%s3 + $0x528] sm:$0xff]
      %v6385 = vld [vmem:[%s3 + $0x530] sm:$0xff]
      %v6386 = vld [vmem:[%s3 + $0x538] sm:$0xff]
      %v6387 = vld [vmem:[%s3 + $0x540] sm:$0xff]
      %v6388 = vld [vmem:[%s3 + $0x548] sm:$0xff]
      %v6389 = vld [vmem:[%s3 + $0x550] sm:$0xff]
      %v6390 = vld [vmem:[%s3 + $0x558] sm:$0xff]
      %v6391 = vld [vmem:[%s3 + $0x560] sm:$0xff]
      %v6392 = vld [vmem:[%s3 + $0x568] sm:$0xff]
      %v6393 = vld [vmem:[%s3 + $0x570] sm:$0xff]
      %v6394 = vld [vmem:[%s3 + $0x578] sm:$0xff]
      %v6395 = vld [vmem:[%s3 + $0x580] sm:$0xff]
      %v6396 = vld [vmem:[%s3 + $0x588] sm:$0xff]
      %v6397 = vld [vmem:[%s3 + $0x590] sm:$0xff]
      %v6398 = vld [vmem:[%s3 + $0x598] sm:$0xff]
      %v6399 = vld [vmem:[%s3 + $0x5a0] sm:$0xff]
      %v6400 = vld [vmem:[%s3 + $0x5a8] sm:$0xff]
      %v6401 = vld [vmem:[%s3 + $0x5b0] sm:$0xff]
      %v6402 = vld [vmem:[%s3 + $0x5b8] sm:$0xff]
      %v6403 = vld [vmem:[%s3 + $0x5c0] sm:$0xff]
      %v6404 = vld [vmem:[%s3 + $0x5c8] sm:$0xff]
      %v6405 = vld [vmem:[%s3 + $0x5d0] sm:$0xff]
      %v6406 = vld [vmem:[%s3 + $0x5d8] sm:$0xff]
      %v6407 = vld [vmem:[%s3 + $0x5e0] sm:$0xff]
      %v6408 = vld [vmem:[%s3 + $0x5e8] sm:$0xff]
      %v6409 = vld [vmem:[%s3 + $0x5f0] sm:$0xff]
      %v6410 = vld [vmem:[%s3 + $0x5f8] sm:$0xff]
      %v6411 = vld [vmem:[%s4] sm:$0xf]
      %v6413 = vlaneseq
      %v6414 = vshrl.u32 %v6413, 7
      %v6415 = vsub.s32 0, %v6414
      %v6416 = vrot.slane %v6411, %v6415
      %v6417 = vlaneseq
      %v6418 = vshrl.u32 %v6417, 7
      %v6419 = vsub.s32 1, %v6418
      %v6420 = vrot.slane %v6411, %v6419
      %v6421 = vlaneseq
      %v6422 = vshrl.u32 %v6421, 7
      %v6423 = vsub.s32 2, %v6422
      %v6424 = vrot.slane %v6411, %v6423
      %v6425 = vlaneseq
      %v6426 = vshrl.u32 %v6425, 7
      %v6427 = vsub.s32 3, %v6426
      %v6428 = vrot.slane %v6411, %v6427
      %v6625 = vunpack.c.l.b16 %v6219
      %v6626 = vunpack.c.h.b16 %v6219
      %v6627 = vunpack.c.l.b16 %v6220
      %v6628 = vunpack.c.h.b16 %v6220
      %v6629 = vunpack.c.l.b16 %v6221
      %v6630 = vunpack.c.h.b16 %v6221
      %v6631 = vunpack.c.l.b16 %v6222
      %v6632 = vunpack.c.h.b16 %v6222
      %v6633 = vunpack.c.l.b16 %v6223
      %v6634 = vunpack.c.h.b16 %v6223
      %v6635 = vunpack.c.l.b16 %v6224
      %v6636 = vunpack.c.h.b16 %v6224
      %v6637 = vunpack.c.l.b16 %v6225
      %v6638 = vunpack.c.h.b16 %v6225
      %v6639 = vunpack.c.l.b16 %v6226
      %v6640 = vunpack.c.h.b16 %v6226
      %v6641 = vunpack.c.l.b16 %v6227
      %v6642 = vunpack.c.h.b16 %v6227
      %v6643 = vunpack.c.l.b16 %v6228
      %v6644 = vunpack.c.h.b16 %v6228
      %v6645 = vunpack.c.l.b16 %v6229
      %v6646 = vunpack.c.h.b16 %v6229
      %v6647 = vunpack.c.l.b16 %v6230
      %v6648 = vunpack.c.h.b16 %v6230
      %v6649 = vunpack.c.l.b16 %v6231
      %v6650 = vunpack.c.h.b16 %v6231
      %v6651 = vunpack.c.l.b16 %v6232
      %v6652 = vunpack.c.h.b16 %v6232
      %v6653 = vunpack.c.l.b16 %v6233
      %v6654 = vunpack.c.h.b16 %v6233
      %v6655 = vunpack.c.l.b16 %v6234
      %v6656 = vunpack.c.h.b16 %v6234
      %v6657 = vunpack.c.l.b16 %v6235
      %v6658 = vunpack.c.h.b16 %v6235
      %v6659 = vunpack.c.l.b16 %v6236
      %v6660 = vunpack.c.h.b16 %v6236
      %v6661 = vunpack.c.l.b16 %v6237
      %v6662 = vunpack.c.h.b16 %v6237
      %v6663 = vunpack.c.l.b16 %v6238
      %v6664 = vunpack.c.h.b16 %v6238
      %v6665 = vunpack.c.l.b16 %v6239
      %v6666 = vunpack.c.h.b16 %v6239
      %v6667 = vunpack.c.l.b16 %v6240
      %v6668 = vunpack.c.h.b16 %v6240
      %v6669 = vunpack.c.l.b16 %v6241
      %v6670 = vunpack.c.h.b16 %v6241
      %v6671 = vunpack.c.l.b16 %v6242
      %v6672 = vunpack.c.h.b16 %v6242
      %v6673 = vunpack.c.l.b16 %v6243
      %v6674 = vunpack.c.h.b16 %v6243
      %v6675 = vunpack.c.l.b16 %v6244
      %v6676 = vunpack.c.h.b16 %v6244
      %v6677 = vunpack.c.l.b16 %v6245
      %v6678 = vunpack.c.h.b16 %v6245
      %v6679 = vunpack.c.l.b16 %v6246
      %v6680 = vunpack.c.h.b16 %v6246
      %v6681 = vunpack.c.l.b16 %v6247
      %v6682 = vunpack.c.h.b16 %v6247
      %v6683 = vunpack.c.l.b16 %v6248
      %v6684 = vunpack.c.h.b16 %v6248
      %v6685 = vunpack.c.l.b16 %v6249
      %v6686 = vunpack.c.h.b16 %v6249
      %v6687 = vunpack.c.l.b16 %v6250
      %v6688 = vunpack.c.h.b16 %v6250
      %v6689 = vunpack.c.l.b16 %v6251
      %v6690 = vunpack.c.h.b16 %v6251
      %v6691 = vunpack.c.l.b16 %v6252
      %v6692 = vunpack.c.h.b16 %v6252
      %v6693 = vunpack.c.l.b16 %v6253
      %v6694 = vunpack.c.h.b16 %v6253
      %v6695 = vunpack.c.l.b16 %v6254
      %v6696 = vunpack.c.h.b16 %v6254
      %v6697 = vunpack.c.l.b16 %v6255
      %v6698 = vunpack.c.h.b16 %v6255
      %v6699 = vunpack.c.l.b16 %v6256
      %v6700 = vunpack.c.h.b16 %v6256
      %v6701 = vunpack.c.l.b16 %v6257
      %v6702 = vunpack.c.h.b16 %v6257
      %v6703 = vunpack.c.l.b16 %v6258
      %v6704 = vunpack.c.h.b16 %v6258
      %v6705 = vunpack.c.l.b16 %v6259
      %v6706 = vunpack.c.h.b16 %v6259
      %v6707 = vunpack.c.l.b16 %v6260
      %v6708 = vunpack.c.h.b16 %v6260
      %v6709 = vunpack.c.l.b16 %v6261
      %v6710 = vunpack.c.h.b16 %v6261
      %v6711 = vunpack.c.l.b16 %v6262
      %v6712 = vunpack.c.h.b16 %v6262
      %v6713 = vunpack.c.l.b16 %v6263
      %v6714 = vunpack.c.h.b16 %v6263
      %v6715 = vunpack.c.l.b16 %v6264
      %v6716 = vunpack.c.h.b16 %v6264
      %v6717 = vunpack.c.l.b16 %v6265
      %v6718 = vunpack.c.h.b16 %v6265
      %v6719 = vunpack.c.l.b16 %v6266
      %v6720 = vunpack.c.h.b16 %v6266
      %v6721 = vunpack.c.l.b16 %v6267
      %v6722 = vunpack.c.h.b16 %v6267
      %v6723 = vunpack.c.l.b16 %v6268
      %v6724 = vunpack.c.h.b16 %v6268
      %v6725 = vunpack.c.l.b16 %v6269
      %v6726 = vunpack.c.h.b16 %v6269
      %v6727 = vunpack.c.l.b16 %v6270
      %v6728 = vunpack.c.h.b16 %v6270
      %v6729 = vunpack.c.l.b16 %v6271
      %v6730 = vunpack.c.h.b16 %v6271
      %v6731 = vunpack.c.l.b16 %v6272
      %v6732 = vunpack.c.h.b16 %v6272
      %v6733 = vunpack.c.l.b16 %v6273
      %v6734 = vunpack.c.h.b16 %v6273
      %v6735 = vunpack.c.l.b16 %v6274
      %v6736 = vunpack.c.h.b16 %v6274
      %v6737 = vunpack.c.l.b16 %v6275
      %v6738 = vunpack.c.h.b16 %v6275
      %v6739 = vunpack.c.l.b16 %v6276
      %v6740 = vunpack.c.h.b16 %v6276
      %v6741 = vunpack.c.l.b16 %v6277
      %v6742 = vunpack.c.h.b16 %v6277
      %v6743 = vunpack.c.l.b16 %v6278
      %v6744 = vunpack.c.h.b16 %v6278
      %v6745 = vunpack.c.l.b16 %v6279
      %v6746 = vunpack.c.h.b16 %v6279
      %v6747 = vunpack.c.l.b16 %v6280
      %v6748 = vunpack.c.h.b16 %v6280
      %v6749 = vunpack.c.l.b16 %v6281
      %v6750 = vunpack.c.h.b16 %v6281
      %v6751 = vunpack.c.l.b16 %v6282
      %v6752 = vunpack.c.h.b16 %v6282
      %v6753 = vunpack.c.l.b16 %v6283
      %v6754 = vunpack.c.h.b16 %v6283
      %v6755 = vunpack.c.l.b16 %v6284
      %v6756 = vunpack.c.h.b16 %v6284
      %v6757 = vunpack.c.l.b16 %v6285
      %v6758 = vunpack.c.h.b16 %v6285
      %v6759 = vunpack.c.l.b16 %v6286
      %v6760 = vunpack.c.h.b16 %v6286
      %v6761 = vunpack.c.l.b16 %v6287
      %v6762 = vunpack.c.h.b16 %v6287
      %v6763 = vunpack.c.l.b16 %v6288
      %v6764 = vunpack.c.h.b16 %v6288
      %v6765 = vunpack.c.l.b16 %v6289
      %v6766 = vunpack.c.h.b16 %v6289
      %v6767 = vunpack.c.l.b16 %v6290
      %v6768 = vunpack.c.h.b16 %v6290
      %v6769 = vunpack.c.l.b16 %v6291
      %v6770 = vunpack.c.h.b16 %v6291
      %v6771 = vunpack.c.l.b16 %v6292
      %v6772 = vunpack.c.h.b16 %v6292
      %v6773 = vunpack.c.l.b16 %v6293
      %v6774 = vunpack.c.h.b16 %v6293
      %v6775 = vunpack.c.l.b16 %v6294
      %v6776 = vunpack.c.h.b16 %v6294
      %v6777 = vunpack.c.l.b16 %v6295
      %v6778 = vunpack.c.h.b16 %v6295
      %v6779 = vunpack.c.l.b16 %v6296
      %v6780 = vunpack.c.h.b16 %v6296
      %v6781 = vunpack.c.l.b16 %v6297
      %v6782 = vunpack.c.h.b16 %v6297
      %v6783 = vunpack.c.l.b16 %v6298
      %v6784 = vunpack.c.h.b16 %v6298
      %v6785 = vunpack.c.l.b16 %v6299
      %v6786 = vunpack.c.h.b16 %v6299
      %v6787 = vunpack.c.l.b16 %v6300
      %v6788 = vunpack.c.h.b16 %v6300
      %v6789 = vunpack.c.l.b16 %v6301
      %v6790 = vunpack.c.h.b16 %v6301
      %v6791 = vunpack.c.l.b16 %v6302
      %v6792 = vunpack.c.h.b16 %v6302
      %v6793 = vunpack.c.l.b16 %v6303
      %v6794 = vunpack.c.h.b16 %v6303
      %v6795 = vunpack.c.l.b16 %v6304
      %v6796 = vunpack.c.h.b16 %v6304
      %v6797 = vunpack.c.l.b16 %v6305
      %v6798 = vunpack.c.h.b16 %v6305
      %v6799 = vunpack.c.l.b16 %v6306
      %v6800 = vunpack.c.h.b16 %v6306
      %v6801 = vunpack.c.l.b16 %v6307
      %v6802 = vunpack.c.h.b16 %v6307
      %v6803 = vunpack.c.l.b16 %v6308
      %v6804 = vunpack.c.h.b16 %v6308
      %v6805 = vunpack.c.l.b16 %v6309
      %v6806 = vunpack.c.h.b16 %v6309
      %v6807 = vunpack.c.l.b16 %v6310
      %v6808 = vunpack.c.h.b16 %v6310
      %v6809 = vunpack.c.l.b16 %v6311
      %v6810 = vunpack.c.h.b16 %v6311
      %v6811 = vunpack.c.l.b16 %v6312
      %v6812 = vunpack.c.h.b16 %v6312
      %v6813 = vunpack.c.l.b16 %v6313
      %v6814 = vunpack.c.h.b16 %v6313
      %v6815 = vunpack.c.l.b16 %v6314
      %v6816 = vunpack.c.h.b16 %v6314
      %v6817 = vunpack.c.l.b16 %v6315
      %v6818 = vunpack.c.h.b16 %v6315
      %v6819 = vunpack.c.l.b16 %v6316
      %v6820 = vunpack.c.h.b16 %v6316
      %v6821 = vunpack.c.l.b16 %v6317
      %v6822 = vunpack.c.h.b16 %v6317
      %v6823 = vunpack.c.l.b16 %v6318
      %v6824 = vunpack.c.h.b16 %v6318
      %v6825 = vunpack.c.l.b16 %v6319
      %v6826 = vunpack.c.h.b16 %v6319
      %v6827 = vunpack.c.l.b16 %v6320
      %v6828 = vunpack.c.h.b16 %v6320
      %v6829 = vunpack.c.l.b16 %v6321
      %v6830 = vunpack.c.h.b16 %v6321
      %v6831 = vunpack.c.l.b16 %v6322
      %v6832 = vunpack.c.h.b16 %v6322
      %v6833 = vunpack.c.l.b16 %v6323
      %v6834 = vunpack.c.h.b16 %v6323
      %v6835 = vunpack.c.l.b16 %v6324
      %v6836 = vunpack.c.h.b16 %v6324
      %v6837 = vunpack.c.l.b16 %v6325
      %v6838 = vunpack.c.h.b16 %v6325
      %v6839 = vunpack.c.l.b16 %v6326
      %v6840 = vunpack.c.h.b16 %v6326
      %v6841 = vunpack.c.l.b16 %v6327
      %v6842 = vunpack.c.h.b16 %v6327
      %v6843 = vunpack.c.l.b16 %v6328
      %v6844 = vunpack.c.h.b16 %v6328
      %v6845 = vunpack.c.l.b16 %v6329
      %v6846 = vunpack.c.h.b16 %v6329
      %v6847 = vunpack.c.l.b16 %v6330
      %v6848 = vunpack.c.h.b16 %v6330
      %v6849 = vunpack.c.l.b16 %v6331
      %v6850 = vunpack.c.h.b16 %v6331
      %v6851 = vunpack.c.l.b16 %v6332
      %v6852 = vunpack.c.h.b16 %v6332
      %v6853 = vunpack.c.l.b16 %v6333
      %v6854 = vunpack.c.h.b16 %v6333
      %v6855 = vunpack.c.l.b16 %v6334
      %v6856 = vunpack.c.h.b16 %v6334
      %v6857 = vunpack.c.l.b16 %v6335
      %v6858 = vunpack.c.h.b16 %v6335
      %v6859 = vunpack.c.l.b16 %v6336
      %v6860 = vunpack.c.h.b16 %v6336
      %v6861 = vunpack.c.l.b16 %v6337
      %v6862 = vunpack.c.h.b16 %v6337
      %v6863 = vunpack.c.l.b16 %v6338
      %v6864 = vunpack.c.h.b16 %v6338
      %v6865 = vunpack.c.l.b16 %v6339
      %v6866 = vunpack.c.h.b16 %v6339
      %v6867 = vunpack.c.l.b16 %v6340
      %v6868 = vunpack.c.h.b16 %v6340
      %v6869 = vunpack.c.l.b16 %v6341
      %v6870 = vunpack.c.h.b16 %v6341
      %v6871 = vunpack.c.l.b16 %v6342
      %v6872 = vunpack.c.h.b16 %v6342
      %v6873 = vunpack.c.l.b16 %v6343
      %v6874 = vunpack.c.h.b16 %v6343
      %v6875 = vunpack.c.l.b16 %v6344
      %v6876 = vunpack.c.h.b16 %v6344
      %v6877 = vunpack.c.l.b16 %v6345
      %v6878 = vunpack.c.h.b16 %v6345
      %v6879 = vunpack.c.l.b16 %v6346
      %v6880 = vunpack.c.h.b16 %v6346
      %v6881 = vunpack.c.l.b16 %v6347
      %v6882 = vunpack.c.h.b16 %v6347
      %v6883 = vunpack.c.l.b16 %v6348
      %v6884 = vunpack.c.h.b16 %v6348
      %v6885 = vunpack.c.l.b16 %v6349
      %v6886 = vunpack.c.h.b16 %v6349
      %v6887 = vunpack.c.l.b16 %v6350
      %v6888 = vunpack.c.h.b16 %v6350
      %v6889 = vunpack.c.l.b16 %v6351
      %v6890 = vunpack.c.h.b16 %v6351
      %v6891 = vunpack.c.l.b16 %v6352
      %v6892 = vunpack.c.h.b16 %v6352
      %v6893 = vunpack.c.l.b16 %v6353
      %v6894 = vunpack.c.h.b16 %v6353
      %v6895 = vunpack.c.l.b16 %v6354
      %v6896 = vunpack.c.h.b16 %v6354
      %v6897 = vunpack.c.l.b16 %v6355
      %v6898 = vunpack.c.h.b16 %v6355
      %v6899 = vunpack.c.l.b16 %v6356
      %v6900 = vunpack.c.h.b16 %v6356
      %v6901 = vunpack.c.l.b16 %v6357
      %v6902 = vunpack.c.h.b16 %v6357
      %v6903 = vunpack.c.l.b16 %v6358
      %v6904 = vunpack.c.h.b16 %v6358
      %v6905 = vunpack.c.l.b16 %v6359
      %v6906 = vunpack.c.h.b16 %v6359
      %v6907 = vunpack.c.l.b16 %v6360
      %v6908 = vunpack.c.h.b16 %v6360
      %v6909 = vunpack.c.l.b16 %v6361
      %v6910 = vunpack.c.h.b16 %v6361
      %v6911 = vunpack.c.l.b16 %v6362
      %v6912 = vunpack.c.h.b16 %v6362
      %v6913 = vunpack.c.l.b16 %v6363
      %v6914 = vunpack.c.h.b16 %v6363
      %v6915 = vunpack.c.l.b16 %v6364
      %v6916 = vunpack.c.h.b16 %v6364
      %v6917 = vunpack.c.l.b16 %v6365
      %v6918 = vunpack.c.h.b16 %v6365
      %v6919 = vunpack.c.l.b16 %v6366
      %v6920 = vunpack.c.h.b16 %v6366
      %v6921 = vunpack.c.l.b16 %v6367
      %v6922 = vunpack.c.h.b16 %v6367
      %v6923 = vunpack.c.l.b16 %v6368
      %v6924 = vunpack.c.h.b16 %v6368
      %v6925 = vunpack.c.l.b16 %v6369
      %v6926 = vunpack.c.h.b16 %v6369
      %v6927 = vunpack.c.l.b16 %v6370
      %v6928 = vunpack.c.h.b16 %v6370
      %v6929 = vunpack.c.l.b16 %v6371
      %v6930 = vunpack.c.h.b16 %v6371
      %v6931 = vunpack.c.l.b16 %v6372
      %v6932 = vunpack.c.h.b16 %v6372
      %v6933 = vunpack.c.l.b16 %v6373
      %v6934 = vunpack.c.h.b16 %v6373
      %v6935 = vunpack.c.l.b16 %v6374
      %v6936 = vunpack.c.h.b16 %v6374
      %v6937 = vunpack.c.l.b16 %v6375
      %v6938 = vunpack.c.h.b16 %v6375
      %v6939 = vunpack.c.l.b16 %v6376
      %v6940 = vunpack.c.h.b16 %v6376
      %v6941 = vunpack.c.l.b16 %v6377
      %v6942 = vunpack.c.h.b16 %v6377
      %v6943 = vunpack.c.l.b16 %v6378
      %v6944 = vunpack.c.h.b16 %v6378
      %v6945 = vunpack.c.l.b16 %v6379
      %v6946 = vunpack.c.h.b16 %v6379
      %v6947 = vunpack.c.l.b16 %v6380
      %v6948 = vunpack.c.h.b16 %v6380
      %v6949 = vunpack.c.l.b16 %v6381
      %v6950 = vunpack.c.h.b16 %v6381
      %v6951 = vunpack.c.l.b16 %v6382
      %v6952 = vunpack.c.h.b16 %v6382
      %v6953 = vunpack.c.l.b16 %v6383
      %v6954 = vunpack.c.h.b16 %v6383
      %v6955 = vunpack.c.l.b16 %v6384
      %v6956 = vunpack.c.h.b16 %v6384
      %v6957 = vunpack.c.l.b16 %v6385
      %v6958 = vunpack.c.h.b16 %v6385
      %v6959 = vunpack.c.l.b16 %v6386
      %v6960 = vunpack.c.h.b16 %v6386
      %v6961 = vunpack.c.l.b16 %v6387
      %v6962 = vunpack.c.h.b16 %v6387
      %v6963 = vunpack.c.l.b16 %v6388
      %v6964 = vunpack.c.h.b16 %v6388
      %v6965 = vunpack.c.l.b16 %v6389
      %v6966 = vunpack.c.h.b16 %v6389
      %v6967 = vunpack.c.l.b16 %v6390
      %v6968 = vunpack.c.h.b16 %v6390
      %v6969 = vunpack.c.l.b16 %v6391
      %v6970 = vunpack.c.h.b16 %v6391
      %v6971 = vunpack.c.l.b16 %v6392
      %v6972 = vunpack.c.h.b16 %v6392
      %v6973 = vunpack.c.l.b16 %v6393
      %v6974 = vunpack.c.h.b16 %v6393
      %v6975 = vunpack.c.l.b16 %v6394
      %v6976 = vunpack.c.h.b16 %v6394
      %v6977 = vunpack.c.l.b16 %v6395
      %v6978 = vunpack.c.h.b16 %v6395
      %v6979 = vunpack.c.l.b16 %v6396
      %v6980 = vunpack.c.h.b16 %v6396
      %v6981 = vunpack.c.l.b16 %v6397
      %v6982 = vunpack.c.h.b16 %v6397
      %v6983 = vunpack.c.l.b16 %v6398
      %v6984 = vunpack.c.h.b16 %v6398
      %v6985 = vunpack.c.l.b16 %v6399
      %v6986 = vunpack.c.h.b16 %v6399
      %v6987 = vunpack.c.l.b16 %v6400
      %v6988 = vunpack.c.h.b16 %v6400
      %v6989 = vunpack.c.l.b16 %v6401
      %v6990 = vunpack.c.h.b16 %v6401
      %v6991 = vunpack.c.l.b16 %v6402
      %v6992 = vunpack.c.h.b16 %v6402
      %v6993 = vunpack.c.l.b16 %v6403
      %v6994 = vunpack.c.h.b16 %v6403
      %v6995 = vunpack.c.l.b16 %v6404
      %v6996 = vunpack.c.h.b16 %v6404
      %v6997 = vunpack.c.l.b16 %v6405
      %v6998 = vunpack.c.h.b16 %v6405
      %v6999 = vunpack.c.l.b16 %v6406
      %v7000 = vunpack.c.h.b16 %v6406
      %v7001 = vunpack.c.l.b16 %v6407
      %v7002 = vunpack.c.h.b16 %v6407
      %v7003 = vunpack.c.l.b16 %v6408
      %v7004 = vunpack.c.h.b16 %v6408
      %v7005 = vunpack.c.l.b16 %v6409
      %v7006 = vunpack.c.h.b16 %v6409
      %v7007 = vunpack.c.l.b16 %v6410
      %v7008 = vunpack.c.h.b16 %v6410
      %v7009 = vpack.c.b16 %v6629, %v6625
      %v7010 = vpack.c.b16 %v6630, %v6626
      %v7011 = vpack.c.b16 %v6631, %v6627
      %v7012 = vpack.c.b16 %v6632, %v6628
      %v7013 = vpack.c.b16 %v6637, %v6633
      %v7014 = vpack.c.b16 %v6638, %v6634
      %v7015 = vpack.c.b16 %v6639, %v6635
      %v7016 = vpack.c.b16 %v6640, %v6636
      %v7017 = vpack.c.b16 %v6645, %v6641
      %v7018 = vpack.c.b16 %v6646, %v6642
      %v7019 = vpack.c.b16 %v6647, %v6643
      %v7020 = vpack.c.b16 %v6648, %v6644
      %v7021 = vpack.c.b16 %v6653, %v6649
      %v7022 = vpack.c.b16 %v6654, %v6650
      %v7023 = vpack.c.b16 %v6655, %v6651
      %v7024 = vpack.c.b16 %v6656, %v6652
      %v7025 = vpack.c.b16 %v6661, %v6657
      %v7026 = vpack.c.b16 %v6662, %v6658
      %v7027 = vpack.c.b16 %v6663, %v6659
      %v7028 = vpack.c.b16 %v6664, %v6660
      %v7029 = vpack.c.b16 %v6669, %v6665
      %v7030 = vpack.c.b16 %v6670, %v6666
      %v7031 = vpack.c.b16 %v6671, %v6667
      %v7032 = vpack.c.b16 %v6672, %v6668
      %v7033 = vpack.c.b16 %v6677, %v6673
      %v7034 = vpack.c.b16 %v6678, %v6674
      %v7035 = vpack.c.b16 %v6679, %v6675
      %v7036 = vpack.c.b16 %v6680, %v6676
      %v7037 = vpack.c.b16 %v6685, %v6681
      %v7038 = vpack.c.b16 %v6686, %v6682
      %v7039 = vpack.c.b16 %v6687, %v6683
      %v7040 = vpack.c.b16 %v6688, %v6684
      %v7041 = vpack.c.b16 %v6693, %v6689
      %v7042 = vpack.c.b16 %v6694, %v6690
      %v7043 = vpack.c.b16 %v6695, %v6691
      %v7044 = vpack.c.b16 %v6696, %v6692
      %v7045 = vpack.c.b16 %v6701, %v6697
      %v7046 = vpack.c.b16 %v6702, %v6698
      %v7047 = vpack.c.b16 %v6703, %v6699
      %v7048 = vpack.c.b16 %v6704, %v6700
      %v7049 = vpack.c.b16 %v6709, %v6705
      %v7050 = vpack.c.b16 %v6710, %v6706
      %v7051 = vpack.c.b16 %v6711, %v6707
      %v7052 = vpack.c.b16 %v6712, %v6708
      %v7053 = vpack.c.b16 %v6717, %v6713
      %v7054 = vpack.c.b16 %v6718, %v6714
      %v7055 = vpack.c.b16 %v6719, %v6715
      %v7056 = vpack.c.b16 %v6720, %v6716
      %v7057 = vpack.c.b16 %v6725, %v6721
      %v7058 = vpack.c.b16 %v6726, %v6722
      %v7059 = vpack.c.b16 %v6727, %v6723
      %v7060 = vpack.c.b16 %v6728, %v6724
      %v7061 = vpack.c.b16 %v6733, %v6729
      %v7062 = vpack.c.b16 %v6734, %v6730
      %v7063 = vpack.c.b16 %v6735, %v6731
      %v7064 = vpack.c.b16 %v6736, %v6732
      %v7065 = vpack.c.b16 %v6741, %v6737
      %v7066 = vpack.c.b16 %v6742, %v6738
      %v7067 = vpack.c.b16 %v6743, %v6739
      %v7068 = vpack.c.b16 %v6744, %v6740
      %v7069 = vpack.c.b16 %v6749, %v6745
      %v7070 = vpack.c.b16 %v6750, %v6746
      %v7071 = vpack.c.b16 %v6751, %v6747
      %v7072 = vpack.c.b16 %v6752, %v6748
      %v7073 = vpack.c.b16 %v6757, %v6753
      %v7074 = vpack.c.b16 %v6758, %v6754
      %v7075 = vpack.c.b16 %v6759, %v6755
      %v7076 = vpack.c.b16 %v6760, %v6756
      %v7077 = vpack.c.b16 %v6765, %v6761
      %v7078 = vpack.c.b16 %v6766, %v6762
      %v7079 = vpack.c.b16 %v6767, %v6763
      %v7080 = vpack.c.b16 %v6768, %v6764
      %v7081 = vpack.c.b16 %v6773, %v6769
      %v7082 = vpack.c.b16 %v6774, %v6770
      %v7083 = vpack.c.b16 %v6775, %v6771
      %v7084 = vpack.c.b16 %v6776, %v6772
      %v7085 = vpack.c.b16 %v6781, %v6777
      %v7086 = vpack.c.b16 %v6782, %v6778
      %v7087 = vpack.c.b16 %v6783, %v6779
      %v7088 = vpack.c.b16 %v6784, %v6780
      %v7089 = vpack.c.b16 %v6789, %v6785
      %v7090 = vpack.c.b16 %v6790, %v6786
      %v7091 = vpack.c.b16 %v6791, %v6787
      %v7092 = vpack.c.b16 %v6792, %v6788
      %v7093 = vpack.c.b16 %v6797, %v6793
      %v7094 = vpack.c.b16 %v6798, %v6794
      %v7095 = vpack.c.b16 %v6799, %v6795
      %v7096 = vpack.c.b16 %v6800, %v6796
      %v7097 = vpack.c.b16 %v6805, %v6801
      %v7098 = vpack.c.b16 %v6806, %v6802
      %v7099 = vpack.c.b16 %v6807, %v6803
      %v7100 = vpack.c.b16 %v6808, %v6804
      %v7101 = vpack.c.b16 %v6813, %v6809
      %v7102 = vpack.c.b16 %v6814, %v6810
      %v7103 = vpack.c.b16 %v6815, %v6811
      %v7104 = vpack.c.b16 %v6816, %v6812
      %v7105 = vpack.c.b16 %v6821, %v6817
      %v7106 = vpack.c.b16 %v6822, %v6818
      %v7107 = vpack.c.b16 %v6823, %v6819
      %v7108 = vpack.c.b16 %v6824, %v6820
      %v7109 = vpack.c.b16 %v6829, %v6825
      %v7110 = vpack.c.b16 %v6830, %v6826
      %v7111 = vpack.c.b16 %v6831, %v6827
      %v7112 = vpack.c.b16 %v6832, %v6828
      %v7113 = vpack.c.b16 %v6837, %v6833
      %v7114 = vpack.c.b16 %v6838, %v6834
      %v7115 = vpack.c.b16 %v6839, %v6835
      %v7116 = vpack.c.b16 %v6840, %v6836
      %v7117 = vpack.c.b16 %v6845, %v6841
      %v7118 = vpack.c.b16 %v6846, %v6842
      %v7119 = vpack.c.b16 %v6847, %v6843
      %v7120 = vpack.c.b16 %v6848, %v6844
      %v7121 = vpack.c.b16 %v6853, %v6849
      %v7122 = vpack.c.b16 %v6854, %v6850
      %v7123 = vpack.c.b16 %v6855, %v6851
      %v7124 = vpack.c.b16 %v6856, %v6852
      %v7125 = vpack.c.b16 %v6861, %v6857
      %v7126 = vpack.c.b16 %v6862, %v6858
      %v7127 = vpack.c.b16 %v6863, %v6859
      %v7128 = vpack.c.b16 %v6864, %v6860
      %v7129 = vpack.c.b16 %v6869, %v6865
      %v7130 = vpack.c.b16 %v6870, %v6866
      %v7131 = vpack.c.b16 %v6871, %v6867
      %v7132 = vpack.c.b16 %v6872, %v6868
      %v7133 = vpack.c.b16 %v6877, %v6873
      %v7134 = vpack.c.b16 %v6878, %v6874
      %v7135 = vpack.c.b16 %v6879, %v6875
      %v7136 = vpack.c.b16 %v6880, %v6876
      %v7137 = vpack.c.b16 %v6885, %v6881
      %v7138 = vpack.c.b16 %v6886, %v6882
      %v7139 = vpack.c.b16 %v6887, %v6883
      %v7140 = vpack.c.b16 %v6888, %v6884
      %v7141 = vpack.c.b16 %v6893, %v6889
      %v7142 = vpack.c.b16 %v6894, %v6890
      %v7143 = vpack.c.b16 %v6895, %v6891
      %v7144 = vpack.c.b16 %v6896, %v6892
      %v7145 = vpack.c.b16 %v6901, %v6897
      %v7146 = vpack.c.b16 %v6902, %v6898
      %v7147 = vpack.c.b16 %v6903, %v6899
      %v7148 = vpack.c.b16 %v6904, %v6900
      %v7149 = vpack.c.b16 %v6909, %v6905
      %v7150 = vpack.c.b16 %v6910, %v6906
      %v7151 = vpack.c.b16 %v6911, %v6907
      %v7152 = vpack.c.b16 %v6912, %v6908
      %v7153 = vpack.c.b16 %v6917, %v6913
      %v7154 = vpack.c.b16 %v6918, %v6914
      %v7155 = vpack.c.b16 %v6919, %v6915
      %v7156 = vpack.c.b16 %v6920, %v6916
      %v7157 = vpack.c.b16 %v6925, %v6921
      %v7158 = vpack.c.b16 %v6926, %v6922
      %v7159 = vpack.c.b16 %v6927, %v6923
      %v7160 = vpack.c.b16 %v6928, %v6924
      %v7161 = vpack.c.b16 %v6933, %v6929
      %v7162 = vpack.c.b16 %v6934, %v6930
      %v7163 = vpack.c.b16 %v6935, %v6931
      %v7164 = vpack.c.b16 %v6936, %v6932
      %v7165 = vpack.c.b16 %v6941, %v6937
      %v7166 = vpack.c.b16 %v6942, %v6938
      %v7167 = vpack.c.b16 %v6943, %v6939
      %v7168 = vpack.c.b16 %v6944, %v6940
      %v7169 = vpack.c.b16 %v6949, %v6945
      %v7170 = vpack.c.b16 %v6950, %v6946
      %v7171 = vpack.c.b16 %v6951, %v6947
      %v7172 = vpack.c.b16 %v6952, %v6948
      %v7173 = vpack.c.b16 %v6957, %v6953
      %v7174 = vpack.c.b16 %v6958, %v6954
      %v7175 = vpack.c.b16 %v6959, %v6955
      %v7176 = vpack.c.b16 %v6960, %v6956
      %v7177 = vpack.c.b16 %v6965, %v6961
      %v7178 = vpack.c.b16 %v6966, %v6962
      %v7179 = vpack.c.b16 %v6967, %v6963
      %v7180 = vpack.c.b16 %v6968, %v6964
      %v7181 = vpack.c.b16 %v6973, %v6969
      %v7182 = vpack.c.b16 %v6974, %v6970
      %v7183 = vpack.c.b16 %v6975, %v6971
      %v7184 = vpack.c.b16 %v6976, %v6972
      %v7185 = vpack.c.b16 %v6981, %v6977
      %v7186 = vpack.c.b16 %v6982, %v6978
      %v7187 = vpack.c.b16 %v6983, %v6979
      %v7188 = vpack.c.b16 %v6984, %v6980
      %v7189 = vpack.c.b16 %v6989, %v6985
      %v7190 = vpack.c.b16 %v6990, %v6986
      %v7191 = vpack.c.b16 %v6991, %v6987
      %v7192 = vpack.c.b16 %v6992, %v6988
      %v7193 = vpack.c.b16 %v6997, %v6993
      %v7194 = vpack.c.b16 %v6998, %v6994
      %v7195 = vpack.c.b16 %v6999, %v6995
      %v7196 = vpack.c.b16 %v7000, %v6996
      %v7197 = vpack.c.b16 %v7005, %v7001
      %v7198 = vpack.c.b16 %v7006, %v7002
      %v7199 = vpack.c.b16 %v7007, %v7003
      %v7200 = vpack.c.b16 %v7008, %v7004
      %7393 = vmatprep.subr.bf16.mxu0 %v7038
      %7394 = vmatpush1.bf16.msra.mxu0 %v7037
      %7395 = vmatprep.subr.bf16.mxu0 %v7034
      %7396 = vmatpush1.bf16.msra.mxu0 %v7033
      %7397 = vmatprep.subr.bf16.mxu0 %v7030
      %7398 = vmatpush1.bf16.msra.mxu0 %v7029
      %7399 = vmatprep.subr.bf16.mxu0 %v7026
      %7400 = vmatpush1.bf16.msra.mxu0 %v7025
      %7401 = vmatprep.subr.bf16.mxu0 %v7022
      %7402 = vmatpush1.bf16.msra.mxu0 %v7021
      %7403 = vmatprep.subr.bf16.mxu0 %v7018
      %7404 = vmatpush1.bf16.msra.mxu0 %v7017
      %7405 = vmatprep.subr.bf16.mxu0 %v7014
      %7406 = vmatpush1.bf16.msra.mxu0 %v7013
      %7407 = vmatprep.subr.bf16.mxu0 %v7010
      %7408 = vmatpush1.bf16.msra.mxu0 %v7009
      %7409 = vmatprep.subr.bf16.mxu0 %v7070
      %7410 = vmatpush2.bf16.msra.mxu0 %v7069
      %7411 = vmatprep.subr.bf16.mxu0 %v7066
      %7412 = vmatpush2.bf16.msra.mxu0 %v7065
      %7413 = vmatprep.subr.bf16.mxu0 %v7062
      %7414 = vmatpush2.bf16.msra.mxu0 %v7061
      %7415 = vmatprep.subr.bf16.mxu0 %v7058
      %7416 = vmatpush2.bf16.msra.mxu0 %v7057
      %7417 = vmatprep.subr.bf16.mxu0 %v7054
      %7418 = vmatpush2.bf16.msra.mxu0 %v7053
      %7419 = vmatprep.subr.bf16.mxu0 %v7050
      %7420 = vmatpush2.bf16.msra.mxu0 %v7049
      %7421 = vmatprep.subr.bf16.mxu0 %v7046
      %7422 = vmatpush2.bf16.msra.mxu0 %v7045
      %7423 = vmatprep.subr.bf16.mxu0 %v7042
      %7424 = vmatpush2.bf16.msra.mxu0 %v7041
      %7425 = vmatprep.mubr.bf16.mxu0 %v503
      %7426 = vmatmul.mubr.bf16.gmra.mxu0 %v503
      %v7427 = vpop.f32.mrf.mxu0
      %v7428 = vadd.f32 %v6416, %v7427
      %v7429 = vpop.f32.mrf.mxu0
      %v7430 = vadd.f32 %v6420, %v7429
      %v7431 = vpop.f32.mrf.mxu0
      %v7432 = vadd.f32 %v6416, %v7431
      %v7433 = vpop.f32.mrf.mxu0
      %v7434 = vadd.f32 %v6420, %v7433
      %7435 = vmatprep.mubr.bf16.mxu0 %v503
      %7436 = vmatmul.mubr.bf16.gmra.mxu0 %v503
      %v7437 = vpop.f32.mrf.mxu0
      %v7438 = vadd.f32 %v6416, %v7437
      %v7439 = vpop.f32.mrf.mxu0
      %v7440 = vadd.f32 %v6420, %v7439
      %v7441 = vpop.f32.mrf.mxu0
      %v7442 = vadd.f32 %v6416, %v7441
      %v7443 = vpop.f32.mrf.mxu0
      %v7444 = vadd.f32 %v6420, %v7443
      %7445 = vmatprep.mubr.bf16.mxu0 %v6164
      %7446 = vmatmul.mubr.bf16.gmra.mxu0 %v6163
      %v7447 = vpop.f32.mrf.mxu0
      %v7448 = vadd.f32 %v6416, %v7447
      %v7449 = vpop.f32.mrf.mxu0
      %v7450 = vadd.f32 %v6420, %v7449
      %v7451 = vpop.f32.mrf.mxu0
      %v7452 = vadd.f32 %v6416, %v7451
      %v7453 = vpop.f32.mrf.mxu0
      %v7454 = vadd.f32 %v6420, %v7453
      %7455 = vmatprep.mubr.bf16.mxu0 %v6166
      %7456 = vmatmul.mubr.bf16.gmra.mxu0 %v6165
      %v7457 = vpop.f32.mrf.mxu0
      %v7458 = vadd.f32 %v6416, %v7457
      %v7459 = vpop.f32.mrf.mxu0
      %v7460 = vadd.f32 %v6420, %v7459
      %v7461 = vpop.f32.mrf.mxu0
      %v7462 = vadd.f32 %v6416, %v7461
      %v7463 = vpop.f32.mrf.mxu0
      %v7464 = vadd.f32 %v6420, %v7463
      %7465 = vmatprep.mubr.bf16.mxu0 %v6168
      %7466 = vmatmul.mubr.bf16.gmra.mxu0 %v6167
      %v7467 = vpop.f32.mrf.mxu0
      %v7468 = vadd.f32 %v6416, %v7467
      %v7469 = vpop.f32.mrf.mxu0
      %v7470 = vadd.f32 %v6420, %v7469
      %v7471 = vpop.f32.mrf.mxu0
      %v7472 = vadd.f32 %v6416, %v7471
      %v7473 = vpop.f32.mrf.mxu0
      %v7474 = vadd.f32 %v6420, %v7473
      %7475 = vmatprep.mubr.bf16.mxu0 %v6170
      %7476 = vmatmul.mubr.bf16.gmra.mxu0 %v6169
      %v7477 = vpop.f32.mrf.mxu0
      %v7478 = vadd.f32 %v6416, %v7477
      %v7479 = vpop.f32.mrf.mxu0
      %v7480 = vadd.f32 %v6420, %v7479
      %v7481 = vpop.f32.mrf.mxu0
      %v7482 = vadd.f32 %v6416, %v7481
      %v7483 = vpop.f32.mrf.mxu0
      %v7484 = vadd.f32 %v6420, %v7483
      %7485 = vmatprep.mubr.bf16.mxu0 %v6172
      %7486 = vmatmul.mubr.bf16.gmra.mxu0 %v6171
      %v7487 = vpop.f32.mrf.mxu0
      %v7488 = vadd.f32 %v6416, %v7487
      %v7489 = vpop.f32.mrf.mxu0
      %v7490 = vadd.f32 %v6420, %v7489
      %v7491 = vpop.f32.mrf.mxu0
      %v7492 = vadd.f32 %v6416, %v7491
      %v7493 = vpop.f32.mrf.mxu0
      %v7494 = vadd.f32 %v6420, %v7493
      %7495 = vmatprep.mubr.bf16.mxu0 %v6174
      %7496 = vmatmul.mubr.bf16.gmra.mxu0 %v6173
      %v7497 = vpop.f32.mrf.mxu0
      %v7498 = vadd.f32 %v6416, %v7497
      %v7499 = vpop.f32.mrf.mxu0
      %v7500 = vadd.f32 %v6420, %v7499
      %v7501 = vpop.f32.mrf.mxu0
      %v7502 = vadd.f32 %v6416, %v7501
      %v7503 = vpop.f32.mrf.mxu0
      %v7504 = vadd.f32 %v6420, %v7503
      %7505 = vmatprep.mubr.bf16.mxu0 %v6176
      %7506 = vmatmul.mubr.bf16.gmra.mxu0 %v6175
      %v7507 = vpop.f32.mrf.mxu0
      %v7508 = vadd.f32 %v6416, %v7507
      %v7509 = vpop.f32.mrf.mxu0
      %v7510 = vadd.f32 %v6420, %v7509
      %v7511 = vpop.f32.mrf.mxu0
      %v7512 = vadd.f32 %v6416, %v7511
      %v7513 = vpop.f32.mrf.mxu0
      %v7514 = vadd.f32 %v6420, %v7513
      %7515 = vmatprep.mubr.bf16.mxu0 %v6178
      %7516 = vmatmul.mubr.bf16.gmra.mxu0 %v6177
      %v7517 = vpop.f32.mrf.mxu0
      %v7518 = vadd.f32 %v6416, %v7517
      %v7519 = vpop.f32.mrf.mxu0
      %v7520 = vadd.f32 %v6420, %v7519
      %v7521 = vpop.f32.mrf.mxu0
      %v7522 = vadd.f32 %v6416, %v7521
      %v7523 = vpop.f32.mrf.mxu0
      %v7524 = vadd.f32 %v6420, %v7523
      %7525 = vmatprep.mubr.bf16.mxu0 %v6180
      %7526 = vmatmul.mubr.bf16.gmra.mxu0 %v6179
      %v7527 = vpop.f32.mrf.mxu0
      %v7528 = vadd.f32 %v6416, %v7527
      %v7529 = vpop.f32.mrf.mxu0
      %v7530 = vadd.f32 %v6420, %v7529
      %v7531 = vpop.f32.mrf.mxu0
      %v7532 = vadd.f32 %v6416, %v7531
      %v7533 = vpop.f32.mrf.mxu0
      %v7534 = vadd.f32 %v6420, %v7533
      %7535 = vmatprep.mubr.bf16.mxu0 %v6182
      %7536 = vmatmul.mubr.bf16.gmra.mxu0 %v6181
      %v7537 = vpop.f32.mrf.mxu0
      %v7538 = vadd.f32 %v6416, %v7537
      %v7539 = vpop.f32.mrf.mxu0
      %v7540 = vadd.f32 %v6420, %v7539
      %v7541 = vpop.f32.mrf.mxu0
      %v7542 = vadd.f32 %v6416, %v7541
      %v7543 = vpop.f32.mrf.mxu0
      %v7544 = vadd.f32 %v6420, %v7543
      %7545 = vmatprep.mubr.bf16.mxu0 %v6184
      %7546 = vmatmul.mubr.bf16.gmra.mxu0 %v6183
      %v7547 = vpop.f32.mrf.mxu0
      %v7548 = vadd.f32 %v6416, %v7547
      %v7549 = vpop.f32.mrf.mxu0
      %v7550 = vadd.f32 %v6420, %v7549
      %v7551 = vpop.f32.mrf.mxu0
      %v7552 = vadd.f32 %v6416, %v7551
      %v7553 = vpop.f32.mrf.mxu0
      %v7554 = vadd.f32 %v6420, %v7553
      %7555 = vmatprep.mubr.bf16.mxu0 %v6186
      %7556 = vmatmul.mubr.bf16.gmra.mxu0 %v6185
      %v7557 = vpop.f32.mrf.mxu0
      %v7558 = vadd.f32 %v6416, %v7557
      %v7559 = vpop.f32.mrf.mxu0
      %v7560 = vadd.f32 %v6420, %v7559
      %v7561 = vpop.f32.mrf.mxu0
      %v7562 = vadd.f32 %v6416, %v7561
      %v7563 = vpop.f32.mrf.mxu0
      %v7564 = vadd.f32 %v6420, %v7563
      %7565 = vmatprep.mubr.bf16.mxu0 %v6188
      %7566 = vmatmul.mubr.bf16.gmra.mxu0 %v6187
      %v7567 = vpop.f32.mrf.mxu0
      %v7568 = vadd.f32 %v6416, %v7567
      %v7569 = vpop.f32.mrf.mxu0
      %v7570 = vadd.f32 %v6420, %v7569
      %v7571 = vpop.f32.mrf.mxu0
      %v7572 = vadd.f32 %v6416, %v7571
      %v7573 = vpop.f32.mrf.mxu0
      %v7574 = vadd.f32 %v6420, %v7573
      %7575 = vmatprep.mubr.bf16.mxu0 %v6190
      %7576 = vmatmul.mubr.bf16.gmra.mxu0 %v6189
      %v7577 = vpop.f32.mrf.mxu0
      %v7578 = vadd.f32 %v6416, %v7577
      %v7579 = vpop.f32.mrf.mxu0
      %v7580 = vadd.f32 %v6420, %v7579
      %v7581 = vpop.f32.mrf.mxu0
      %v7582 = vadd.f32 %v6416, %v7581
      %v7583 = vpop.f32.mrf.mxu0
      %v7584 = vadd.f32 %v6420, %v7583
      %7585 = vmatprep.mubr.bf16.mxu0 %v6192
      %7586 = vmatmul.mubr.bf16.gmra.mxu0 %v6191
      %v7587 = vpop.f32.mrf.mxu0
      %v7588 = vadd.f32 %v6416, %v7587
      %v7589 = vpop.f32.mrf.mxu0
      %v7590 = vadd.f32 %v6420, %v7589
      %v7591 = vpop.f32.mrf.mxu0
      %v7592 = vadd.f32 %v6416, %v7591
      %v7593 = vpop.f32.mrf.mxu0
      %v7594 = vadd.f32 %v6420, %v7593
      %7595 = vmatprep.mubr.bf16.mxu0 %v6194
      %7596 = vmatmul.mubr.bf16.gmra.mxu0 %v6193
      %v7597 = vpop.f32.mrf.mxu0
      %v7598 = vadd.f32 %v6416, %v7597
      %v7599 = vpop.f32.mrf.mxu0
      %v7600 = vadd.f32 %v6420, %v7599
      %v7601 = vpop.f32.mrf.mxu0
      %v7602 = vadd.f32 %v6416, %v7601
      %v7603 = vpop.f32.mrf.mxu0
      %v7604 = vadd.f32 %v6420, %v7603
      %7605 = vmatprep.mubr.bf16.mxu0 %v6196
      %7606 = vmatmul.mubr.bf16.gmra.mxu0 %v6195
      %v7607 = vpop.f32.mrf.mxu0
      %v7608 = vadd.f32 %v6416, %v7607
      %v7609 = vpop.f32.mrf.mxu0
      %v7610 = vadd.f32 %v6420, %v7609
      %v7611 = vpop.f32.mrf.mxu0
      %v7612 = vadd.f32 %v6416, %v7611
      %v7613 = vpop.f32.mrf.mxu0
      %v7614 = vadd.f32 %v6420, %v7613
      %7615 = vmatprep.mubr.bf16.mxu0 %v6198
      %7616 = vmatmul.mubr.bf16.gmra.mxu0 %v6197
      %v7617 = vpop.f32.mrf.mxu0
      %v7618 = vadd.f32 %v6416, %v7617
      %v7619 = vpop.f32.mrf.mxu0
      %v7620 = vadd.f32 %v6420, %v7619
      %v7621 = vpop.f32.mrf.mxu0
      %v7622 = vadd.f32 %v6416, %v7621
      %v7623 = vpop.f32.mrf.mxu0
      %v7624 = vadd.f32 %v6420, %v7623
      %7625 = vmatprep.mubr.bf16.mxu0 %v6200
      %7626 = vmatmul.mubr.bf16.gmra.mxu0 %v6199
      %v7627 = vpop.f32.mrf.mxu0
      %v7628 = vadd.f32 %v6416, %v7627
      %v7629 = vpop.f32.mrf.mxu0
      %v7630 = vadd.f32 %v6420, %v7629
      %v7631 = vpop.f32.mrf.mxu0
      %v7632 = vadd.f32 %v6416, %v7631
      %v7633 = vpop.f32.mrf.mxu0
      %v7634 = vadd.f32 %v6420, %v7633
      %7635 = vmatprep.mubr.bf16.mxu0 %v6202
      %7636 = vmatmul.mubr.bf16.gmra.mxu0 %v6201
      %v7637 = vpop.f32.mrf.mxu0
      %v7638 = vadd.f32 %v6416, %v7637
      %v7639 = vpop.f32.mrf.mxu0
      %v7640 = vadd.f32 %v6420, %v7639
      %v7641 = vpop.f32.mrf.mxu0
      %v7642 = vadd.f32 %v6416, %v7641
      %v7643 = vpop.f32.mrf.mxu0
      %v7644 = vadd.f32 %v6420, %v7643
      %7645 = vmatprep.mubr.bf16.mxu0 %v6204
      %7646 = vmatmul.mubr.bf16.gmra.mxu0 %v6203
      %v7647 = vpop.f32.mrf.mxu0
      %v7648 = vadd.f32 %v6416, %v7647
      %v7649 = vpop.f32.mrf.mxu0
      %v7650 = vadd.f32 %v6420, %v7649
      %v7651 = vpop.f32.mrf.mxu0
      %v7652 = vadd.f32 %v6416, %v7651
      %v7653 = vpop.f32.mrf.mxu0
      %v7654 = vadd.f32 %v6420, %v7653
      %7655 = vmatprep.mubr.bf16.mxu0 %v6206
      %7656 = vmatmul.mubr.bf16.gmra.mxu0 %v6205
      %v7657 = vpop.f32.mrf.mxu0
      %v7658 = vadd.f32 %v6416, %v7657
      %v7659 = vpop.f32.mrf.mxu0
      %v7660 = vadd.f32 %v6420, %v7659
      %v7661 = vpop.f32.mrf.mxu0
      %v7662 = vadd.f32 %v6416, %v7661
      %v7663 = vpop.f32.mrf.mxu0
      %v7664 = vadd.f32 %v6420, %v7663
      %7665 = vmatprep.mubr.bf16.mxu0 %v6208
      %7666 = vmatmul.mubr.bf16.gmra.mxu0 %v6207
      %v7667 = vpop.f32.mrf.mxu0
      %v7668 = vadd.f32 %v6416, %v7667
      %v7669 = vpop.f32.mrf.mxu0
      %v7670 = vadd.f32 %v6420, %v7669
      %v7671 = vpop.f32.mrf.mxu0
      %v7672 = vadd.f32 %v6416, %v7671
      %v7673 = vpop.f32.mrf.mxu0
      %v7674 = vadd.f32 %v6420, %v7673
      %7675 = vmatprep.mubr.bf16.mxu0 %v6210
      %7676 = vmatmul.mubr.bf16.gmra.mxu0 %v6209
      %v7677 = vpop.f32.mrf.mxu0
      %v7678 = vadd.f32 %v6416, %v7677
      %v7679 = vpop.f32.mrf.mxu0
      %v7680 = vadd.f32 %v6420, %v7679
      %v7681 = vpop.f32.mrf.mxu0
      %v7682 = vadd.f32 %v6416, %v7681
      %v7683 = vpop.f32.mrf.mxu0
      %v7684 = vadd.f32 %v6420, %v7683
      %7685 = vmatprep.mubr.bf16.mxu0 %v6212
      %7686 = vmatmul.mubr.bf16.gmra.mxu0 %v6211
      %v7687 = vpop.f32.mrf.mxu0
      %v7688 = vadd.f32 %v6416, %v7687
      %v7689 = vpop.f32.mrf.mxu0
      %v7690 = vadd.f32 %v6420, %v7689
      %v7691 = vpop.f32.mrf.mxu0
      %v7692 = vadd.f32 %v6416, %v7691
      %v7693 = vpop.f32.mrf.mxu0
      %v7694 = vadd.f32 %v6420, %v7693
      %7695 = vmatprep.mubr.bf16.mxu0 %v6214
      %7696 = vmatmul.mubr.bf16.gmra.mxu0 %v6213
      %v7697 = vpop.f32.mrf.mxu0
      %v7698 = vadd.f32 %v6416, %v7697
      %v7699 = vpop.f32.mrf.mxu0
      %v7700 = vadd.f32 %v6420, %v7699
      %v7701 = vpop.f32.mrf.mxu0
      %v7702 = vadd.f32 %v6416, %v7701
      %v7703 = vpop.f32.mrf.mxu0
      %v7704 = vadd.f32 %v6420, %v7703
      %7705 = vdwg.mxu0
      %7706 = vmatprep.subr.bf16.mxu0 %v7102
      %7707 = vmatpush1.bf16.msra.mxu0 %v7101
      %7708 = vmatprep.subr.bf16.mxu0 %v7098
      %7709 = vmatpush1.bf16.msra.mxu0 %v7097
      %7710 = vmatprep.subr.bf16.mxu0 %v7094
      %7711 = vmatpush1.bf16.msra.mxu0 %v7093
      %7712 = vmatprep.subr.bf16.mxu0 %v7090
      %7713 = vmatpush1.bf16.msra.mxu0 %v7089
      %7714 = vmatprep.subr.bf16.mxu0 %v7086
      %7715 = vmatpush1.bf16.msra.mxu0 %v7085
      %7716 = vmatprep.subr.bf16.mxu0 %v7082
      %7717 = vmatpush1.bf16.msra.mxu0 %v7081
      %7718 = vmatprep.subr.bf16.mxu0 %v7078
      %7719 = vmatpush1.bf16.msra.mxu0 %v7077
      %7720 = vmatprep.subr.bf16.mxu0 %v7074
      %7721 = vmatpush1.bf16.msra.mxu0 %v7073
      %7722 = vmatprep.subr.bf16.mxu0 %v7134
      %7723 = vmatpush2.bf16.msra.mxu0 %v7133
      %7724 = vmatprep.subr.bf16.mxu0 %v7130
      %7725 = vmatpush2.bf16.msra.mxu0 %v7129
      %7726 = vmatprep.subr.bf16.mxu0 %v7126
      %7727 = vmatpush2.bf16.msra.mxu0 %v7125
      %7728 = vmatprep.subr.bf16.mxu0 %v7122
      %7729 = vmatpush2.bf16.msra.mxu0 %v7121
      %7730 = vmatprep.subr.bf16.mxu0 %v7118
      %7731 = vmatpush2.bf16.msra.mxu0 %v7117
      %7732 = vmatprep.subr.bf16.mxu0 %v7114
      %7733 = vmatpush2.bf16.msra.mxu0 %v7113
      %7734 = vmatprep.subr.bf16.mxu0 %v7110
      %7735 = vmatpush2.bf16.msra.mxu0 %v7109
      %7736 = vmatprep.subr.bf16.mxu0 %v7106
      %7737 = vmatpush2.bf16.msra.mxu0 %v7105
      %7738 = vmatprep.mubr.bf16.mxu0 %v6164
      %7739 = vmatmul.mubr.bf16.gmra.mxu0 %v6163
      %v7740 = vpop.f32.mrf.mxu0
      %v7741 = vadd.f32 %v7428, %v7740
      %v7742 = vpop.f32.mrf.mxu0
      %v7743 = vadd.f32 %v7430, %v7742
      %v7744 = vpop.f32.mrf.mxu0
      %v7745 = vadd.f32 %v7432, %v7744
      %v7746 = vpop.f32.mrf.mxu0
      %v7747 = vadd.f32 %v7434, %v7746
      %7748 = vmatprep.mubr.bf16.mxu0 %v6166
      %7749 = vmatmul.mubr.bf16.gmra.mxu0 %v6165
      %v7750 = vpop.f32.mrf.mxu0
      %v7751 = vadd.f32 %v7438, %v7750
      %v7752 = vpop.f32.mrf.mxu0
      %v7753 = vadd.f32 %v7440, %v7752
      %v7754 = vpop.f32.mrf.mxu0
      %v7755 = vadd.f32 %v7442, %v7754
      %v7756 = vpop.f32.mrf.mxu0
      %v7757 = vadd.f32 %v7444, %v7756
      %7758 = vmatprep.mubr.bf16.mxu0 %v6168
      %7759 = vmatmul.mubr.bf16.gmra.mxu0 %v6167
      %v7760 = vpop.f32.mrf.mxu0
      %v7761 = vadd.f32 %v7448, %v7760
      %v7762 = vpop.f32.mrf.mxu0
      %v7763 = vadd.f32 %v7450, %v7762
      %v7764 = vpop.f32.mrf.mxu0
      %v7765 = vadd.f32 %v7452, %v7764
      %v7766 = vpop.f32.mrf.mxu0
      %v7767 = vadd.f32 %v7454, %v7766
      %7768 = vmatprep.mubr.bf16.mxu0 %v6170
      %7769 = vmatmul.mubr.bf16.gmra.mxu0 %v6169
      %v7770 = vpop.f32.mrf.mxu0
      %v7771 = vadd.f32 %v7458, %v7770
      %v7772 = vpop.f32.mrf.mxu0
      %v7773 = vadd.f32 %v7460, %v7772
      %v7774 = vpop.f32.mrf.mxu0
      %v7775 = vadd.f32 %v7462, %v7774
      %v7776 = vpop.f32.mrf.mxu0
      %v7777 = vadd.f32 %v7464, %v7776
      %7778 = vmatprep.mubr.bf16.mxu0 %v6172
      %7779 = vmatmul.mubr.bf16.gmra.mxu0 %v6171
      %v7780 = vpop.f32.mrf.mxu0
      %v7781 = vadd.f32 %v7468, %v7780
      %v7782 = vpop.f32.mrf.mxu0
      %v7783 = vadd.f32 %v7470, %v7782
      %v7784 = vpop.f32.mrf.mxu0
      %v7785 = vadd.f32 %v7472, %v7784
      %v7786 = vpop.f32.mrf.mxu0
      %v7787 = vadd.f32 %v7474, %v7786
      %7788 = vmatprep.mubr.bf16.mxu0 %v6174
      %7789 = vmatmul.mubr.bf16.gmra.mxu0 %v6173
      %v7790 = vpop.f32.mrf.mxu0
      %v7791 = vadd.f32 %v7478, %v7790
      %v7792 = vpop.f32.mrf.mxu0
      %v7793 = vadd.f32 %v7480, %v7792
      %v7794 = vpop.f32.mrf.mxu0
      %v7795 = vadd.f32 %v7482, %v7794
      %v7796 = vpop.f32.mrf.mxu0
      %v7797 = vadd.f32 %v7484, %v7796
      %7798 = vmatprep.mubr.bf16.mxu0 %v6176
      %7799 = vmatmul.mubr.bf16.gmra.mxu0 %v6175
      %v7800 = vpop.f32.mrf.mxu0
      %v7801 = vadd.f32 %v7488, %v7800
      %v7802 = vpop.f32.mrf.mxu0
      %v7803 = vadd.f32 %v7490, %v7802
      %v7804 = vpop.f32.mrf.mxu0
      %v7805 = vadd.f32 %v7492, %v7804
      %v7806 = vpop.f32.mrf.mxu0
      %v7807 = vadd.f32 %v7494, %v7806
      %7808 = vmatprep.mubr.bf16.mxu0 %v6178
      %7809 = vmatmul.mubr.bf16.gmra.mxu0 %v6177
      %v7810 = vpop.f32.mrf.mxu0
      %v7811 = vadd.f32 %v7498, %v7810
      %v7812 = vpop.f32.mrf.mxu0
      %v7813 = vadd.f32 %v7500, %v7812
      %v7814 = vpop.f32.mrf.mxu0
      %v7815 = vadd.f32 %v7502, %v7814
      %v7816 = vpop.f32.mrf.mxu0
      %v7817 = vadd.f32 %v7504, %v7816
      %7818 = vmatprep.mubr.bf16.mxu0 %v6180
      %7819 = vmatmul.mubr.bf16.gmra.mxu0 %v6179
      %v7820 = vpop.f32.mrf.mxu0
      %v7821 = vadd.f32 %v7508, %v7820
      %v7822 = vpop.f32.mrf.mxu0
      %v7823 = vadd.f32 %v7510, %v7822
      %v7824 = vpop.f32.mrf.mxu0
      %v7825 = vadd.f32 %v7512, %v7824
      %v7826 = vpop.f32.mrf.mxu0
      %v7827 = vadd.f32 %v7514, %v7826
      %7828 = vmatprep.mubr.bf16.mxu0 %v6182
      %7829 = vmatmul.mubr.bf16.gmra.mxu0 %v6181
      %v7830 = vpop.f32.mrf.mxu0
      %v7831 = vadd.f32 %v7518, %v7830
      %v7832 = vpop.f32.mrf.mxu0
      %v7833 = vadd.f32 %v7520, %v7832
      %v7834 = vpop.f32.mrf.mxu0
      %v7835 = vadd.f32 %v7522, %v7834
      %v7836 = vpop.f32.mrf.mxu0
      %v7837 = vadd.f32 %v7524, %v7836
      %7838 = vmatprep.mubr.bf16.mxu0 %v6184
      %7839 = vmatmul.mubr.bf16.gmra.mxu0 %v6183
      %v7840 = vpop.f32.mrf.mxu0
      %v7841 = vadd.f32 %v7528, %v7840
      %v7842 = vpop.f32.mrf.mxu0
      %v7843 = vadd.f32 %v7530, %v7842
      %v7844 = vpop.f32.mrf.mxu0
      %v7845 = vadd.f32 %v7532, %v7844
      %v7846 = vpop.f32.mrf.mxu0
      %v7847 = vadd.f32 %v7534, %v7846
      %7848 = vmatprep.mubr.bf16.mxu0 %v6186
      %7849 = vmatmul.mubr.bf16.gmra.mxu0 %v6185
      %v7850 = vpop.f32.mrf.mxu0
      %v7851 = vadd.f32 %v7538, %v7850
      %v7852 = vpop.f32.mrf.mxu0
      %v7853 = vadd.f32 %v7540, %v7852
      %v7854 = vpop.f32.mrf.mxu0
      %v7855 = vadd.f32 %v7542, %v7854
      %v7856 = vpop.f32.mrf.mxu0
      %v7857 = vadd.f32 %v7544, %v7856
      %7858 = vmatprep.mubr.bf16.mxu0 %v6188
      %7859 = vmatmul.mubr.bf16.gmra.mxu0 %v6187
      %v7860 = vpop.f32.mrf.mxu0
      %v7861 = vadd.f32 %v7548, %v7860
      %v7862 = vpop.f32.mrf.mxu0
      %v7863 = vadd.f32 %v7550, %v7862
      %v7864 = vpop.f32.mrf.mxu0
      %v7865 = vadd.f32 %v7552, %v7864
      %v7866 = vpop.f32.mrf.mxu0
      %v7867 = vadd.f32 %v7554, %v7866
      %7868 = vmatprep.mubr.bf16.mxu0 %v6190
      %7869 = vmatmul.mubr.bf16.gmra.mxu0 %v6189
      %v7870 = vpop.f32.mrf.mxu0
      %v7871 = vadd.f32 %v7558, %v7870
      %v7872 = vpop.f32.mrf.mxu0
      %v7873 = vadd.f32 %v7560, %v7872
      %v7874 = vpop.f32.mrf.mxu0
      %v7875 = vadd.f32 %v7562, %v7874
      %v7876 = vpop.f32.mrf.mxu0
      %v7877 = vadd.f32 %v7564, %v7876
      %7878 = vmatprep.mubr.bf16.mxu0 %v6192
      %7879 = vmatmul.mubr.bf16.gmra.mxu0 %v6191
      %v7880 = vpop.f32.mrf.mxu0
      %v7881 = vadd.f32 %v7568, %v7880
      %v7882 = vpop.f32.mrf.mxu0
      %v7883 = vadd.f32 %v7570, %v7882
      %v7884 = vpop.f32.mrf.mxu0
      %v7885 = vadd.f32 %v7572, %v7884
      %v7886 = vpop.f32.mrf.mxu0
      %v7887 = vadd.f32 %v7574, %v7886
      %7888 = vmatprep.mubr.bf16.mxu0 %v6194
      %7889 = vmatmul.mubr.bf16.gmra.mxu0 %v6193
      %v7890 = vpop.f32.mrf.mxu0
      %v7891 = vadd.f32 %v7578, %v7890
      %v7892 = vpop.f32.mrf.mxu0
      %v7893 = vadd.f32 %v7580, %v7892
      %v7894 = vpop.f32.mrf.mxu0
      %v7895 = vadd.f32 %v7582, %v7894
      %v7896 = vpop.f32.mrf.mxu0
      %v7897 = vadd.f32 %v7584, %v7896
      %7898 = vmatprep.mubr.bf16.mxu0 %v6196
      %7899 = vmatmul.mubr.bf16.gmra.mxu0 %v6195
      %v7900 = vpop.f32.mrf.mxu0
      %v7901 = vadd.f32 %v7588, %v7900
      %v7902 = vpop.f32.mrf.mxu0
      %v7903 = vadd.f32 %v7590, %v7902
      %v7904 = vpop.f32.mrf.mxu0
      %v7905 = vadd.f32 %v7592, %v7904
      %v7906 = vpop.f32.mrf.mxu0
      %v7907 = vadd.f32 %v7594, %v7906
      %7908 = vmatprep.mubr.bf16.mxu0 %v6198
      %7909 = vmatmul.mubr.bf16.gmra.mxu0 %v6197
      %v7910 = vpop.f32.mrf.mxu0
      %v7911 = vadd.f32 %v7598, %v7910
      %v7912 = vpop.f32.mrf.mxu0
      %v7913 = vadd.f32 %v7600, %v7912
      %v7914 = vpop.f32.mrf.mxu0
      %v7915 = vadd.f32 %v7602, %v7914
      %v7916 = vpop.f32.mrf.mxu0
      %v7917 = vadd.f32 %v7604, %v7916
      %7918 = vmatprep.mubr.bf16.mxu0 %v6200
      %7919 = vmatmul.mubr.bf16.gmra.mxu0 %v6199
      %v7920 = vpop.f32.mrf.mxu0
      %v7921 = vadd.f32 %v7608, %v7920
      %v7922 = vpop.f32.mrf.mxu0
      %v7923 = vadd.f32 %v7610, %v7922
      %v7924 = vpop.f32.mrf.mxu0
      %v7925 = vadd.f32 %v7612, %v7924
      %v7926 = vpop.f32.mrf.mxu0
      %v7927 = vadd.f32 %v7614, %v7926
      %7928 = vmatprep.mubr.bf16.mxu0 %v6202
      %7929 = vmatmul.mubr.bf16.gmra.mxu0 %v6201
      %v7930 = vpop.f32.mrf.mxu0
      %v7931 = vadd.f32 %v7618, %v7930
      %v7932 = vpop.f32.mrf.mxu0
      %v7933 = vadd.f32 %v7620, %v7932
      %v7934 = vpop.f32.mrf.mxu0
      %v7935 = vadd.f32 %v7622, %v7934
      %v7936 = vpop.f32.mrf.mxu0
      %v7937 = vadd.f32 %v7624, %v7936
      %7938 = vmatprep.mubr.bf16.mxu0 %v6204
      %7939 = vmatmul.mubr.bf16.gmra.mxu0 %v6203
      %v7940 = vpop.f32.mrf.mxu0
      %v7941 = vadd.f32 %v7628, %v7940
      %v7942 = vpop.f32.mrf.mxu0
      %v7943 = vadd.f32 %v7630, %v7942
      %v7944 = vpop.f32.mrf.mxu0
      %v7945 = vadd.f32 %v7632, %v7944
      %v7946 = vpop.f32.mrf.mxu0
      %v7947 = vadd.f32 %v7634, %v7946
      %7948 = vmatprep.mubr.bf16.mxu0 %v6206
      %7949 = vmatmul.mubr.bf16.gmra.mxu0 %v6205
      %v7950 = vpop.f32.mrf.mxu0
      %v7951 = vadd.f32 %v7638, %v7950
      %v7952 = vpop.f32.mrf.mxu0
      %v7953 = vadd.f32 %v7640, %v7952
      %v7954 = vpop.f32.mrf.mxu0
      %v7955 = vadd.f32 %v7642, %v7954
      %v7956 = vpop.f32.mrf.mxu0
      %v7957 = vadd.f32 %v7644, %v7956
      %7958 = vmatprep.mubr.bf16.mxu0 %v6208
      %7959 = vmatmul.mubr.bf16.gmra.mxu0 %v6207
      %v7960 = vpop.f32.mrf.mxu0
      %v7961 = vadd.f32 %v7648, %v7960
      %v7962 = vpop.f32.mrf.mxu0
      %v7963 = vadd.f32 %v7650, %v7962
      %v7964 = vpop.f32.mrf.mxu0
      %v7965 = vadd.f32 %v7652, %v7964
      %v7966 = vpop.f32.mrf.mxu0
      %v7967 = vadd.f32 %v7654, %v7966
      %7968 = vmatprep.mubr.bf16.mxu0 %v6210
      %7969 = vmatmul.mubr.bf16.gmra.mxu0 %v6209
      %v7970 = vpop.f32.mrf.mxu0
      %v7971 = vadd.f32 %v7658, %v7970
      %v7972 = vpop.f32.mrf.mxu0
      %v7973 = vadd.f32 %v7660, %v7972
      %v7974 = vpop.f32.mrf.mxu0
      %v7975 = vadd.f32 %v7662, %v7974
      %v7976 = vpop.f32.mrf.mxu0
      %v7977 = vadd.f32 %v7664, %v7976
      %7978 = vmatprep.mubr.bf16.mxu0 %v6212
      %7979 = vmatmul.mubr.bf16.gmra.mxu0 %v6211
      %v7980 = vpop.f32.mrf.mxu0
      %v7981 = vadd.f32 %v7668, %v7980
      %v7982 = vpop.f32.mrf.mxu0
      %v7983 = vadd.f32 %v7670, %v7982
      %v7984 = vpop.f32.mrf.mxu0
      %v7985 = vadd.f32 %v7672, %v7984
      %v7986 = vpop.f32.mrf.mxu0
      %v7987 = vadd.f32 %v7674, %v7986
      %7988 = vmatprep.mubr.bf16.mxu0 %v6214
      %7989 = vmatmul.mubr.bf16.gmra.mxu0 %v6213
      %v7990 = vpop.f32.mrf.mxu0
      %v7991 = vadd.f32 %v7678, %v7990
      %v7992 = vpop.f32.mrf.mxu0
      %v7993 = vadd.f32 %v7680, %v7992
      %v7994 = vpop.f32.mrf.mxu0
      %v7995 = vadd.f32 %v7682, %v7994
      %v7996 = vpop.f32.mrf.mxu0
      %v7997 = vadd.f32 %v7684, %v7996
      %7998 = vmatprep.mubr.bf16.mxu0 %v6216
      %7999 = vmatmul.mubr.bf16.gmra.mxu0 %v6215
      %v8000 = vpop.f32.mrf.mxu0
      %v8001 = vadd.f32 %v7688, %v8000
      %v8002 = vpop.f32.mrf.mxu0
      %v8003 = vadd.f32 %v7690, %v8002
      %v8004 = vpop.f32.mrf.mxu0
      %v8005 = vadd.f32 %v7692, %v8004
      %v8006 = vpop.f32.mrf.mxu0
      %v8007 = vadd.f32 %v7694, %v8006
      %8008 = vmatprep.mubr.bf16.mxu0 %v6218
      %8009 = vmatmul.mubr.bf16.gmra.mxu0 %v6217
      %v8010 = vpop.f32.mrf.mxu0
      %v8011 = vadd.f32 %v7698, %v8010
      %v8012 = vpop.f32.mrf.mxu0
      %v8013 = vadd.f32 %v7700, %v8012
      %v8014 = vpop.f32.mrf.mxu0
      %v8015 = vadd.f32 %v7702, %v8014
      %v8016 = vpop.f32.mrf.mxu0
      %v8017 = vadd.f32 %v7704, %v8016
      %8018 = vdwg.mxu0
      %8019 = vmatprep.subr.bf16.mxu0 %v7166
      %8020 = vmatpush1.bf16.msra.mxu0 %v7165
      %8021 = vmatprep.subr.bf16.mxu0 %v7162
      %8022 = vmatpush1.bf16.msra.mxu0 %v7161
      %8023 = vmatprep.subr.bf16.mxu0 %v7158
      %8024 = vmatpush1.bf16.msra.mxu0 %v7157
      %8025 = vmatprep.subr.bf16.mxu0 %v7154
      %8026 = vmatpush1.bf16.msra.mxu0 %v7153
      %8027 = vmatprep.subr.bf16.mxu0 %v7150
      %8028 = vmatpush1.bf16.msra.mxu0 %v7149
      %8029 = vmatprep.subr.bf16.mxu0 %v7146
      %8030 = vmatpush1.bf16.msra.mxu0 %v7145
      %8031 = vmatprep.subr.bf16.mxu0 %v7142
      %8032 = vmatpush1.bf16.msra.mxu0 %v7141
      %8033 = vmatprep.subr.bf16.mxu0 %v7138
      %8034 = vmatpush1.bf16.msra.mxu0 %v7137
      %8035 = vmatprep.subr.bf16.mxu0 %v7198
      %8036 = vmatpush2.bf16.msra.mxu0 %v7197
      %8037 = vmatprep.subr.bf16.mxu0 %v7194
      %8038 = vmatpush2.bf16.msra.mxu0 %v7193
      %8039 = vmatprep.subr.bf16.mxu0 %v7190
      %8040 = vmatpush2.bf16.msra.mxu0 %v7189
      %8041 = vmatprep.subr.bf16.mxu0 %v7186
      %8042 = vmatpush2.bf16.msra.mxu0 %v7185
      %8043 = vmatprep.subr.bf16.mxu0 %v7182
      %8044 = vmatpush2.bf16.msra.mxu0 %v7181
      %8045 = vmatprep.subr.bf16.mxu0 %v7178
      %8046 = vmatpush2.bf16.msra.mxu0 %v7177
      %8047 = vmatprep.subr.bf16.mxu0 %v7174
      %8048 = vmatpush2.bf16.msra.mxu0 %v7173
      %8049 = vmatprep.subr.bf16.mxu0 %v7170
      %8050 = vmatpush2.bf16.msra.mxu0 %v7169
      %8051 = vmatprep.mubr.bf16.mxu0 %v6168
      %8052 = vmatmul.mubr.bf16.gmra.mxu0 %v6167
      %v8053 = vpop.f32.mrf.mxu0
      %v8054 = vadd.f32 %v7741, %v8053
      %v8055 = vpop.f32.mrf.mxu0
      %v8056 = vadd.f32 %v7743, %v8055
      %v8057 = vpop.f32.mrf.mxu0
      %v8058 = vadd.f32 %v7745, %v8057
      %v8059 = vpop.f32.mrf.mxu0
      %v8060 = vadd.f32 %v7747, %v8059
      %8061 = vmatprep.mubr.bf16.mxu0 %v6170
      %8062 = vmatmul.mubr.bf16.gmra.mxu0 %v6169
      %v8063 = vpop.f32.mrf.mxu0
      %v8064 = vadd.f32 %v7751, %v8063
      %v8065 = vpop.f32.mrf.mxu0
      %v8066 = vadd.f32 %v7753, %v8065
      %v8067 = vpop.f32.mrf.mxu0
      %v8068 = vadd.f32 %v7755, %v8067
      %v8069 = vpop.f32.mrf.mxu0
      %v8070 = vadd.f32 %v7757, %v8069
      %8071 = vmatprep.mubr.bf16.mxu0 %v6172
      %8072 = vmatmul.mubr.bf16.gmra.mxu0 %v6171
      %v8073 = vpop.f32.mrf.mxu0
      %v8074 = vadd.f32 %v7761, %v8073
      %v8075 = vpop.f32.mrf.mxu0
      %v8076 = vadd.f32 %v7763, %v8075
      %v8077 = vpop.f32.mrf.mxu0
      %v8078 = vadd.f32 %v7765, %v8077
      %v8079 = vpop.f32.mrf.mxu0
      %v8080 = vadd.f32 %v7767, %v8079
      %8081 = vmatprep.mubr.bf16.mxu0 %v6174
      %8082 = vmatmul.mubr.bf16.gmra.mxu0 %v6173
      %v8083 = vpop.f32.mrf.mxu0
      %v8084 = vadd.f32 %v7771, %v8083
      %v8085 = vpop.f32.mrf.mxu0
      %v8086 = vadd.f32 %v7773, %v8085
      %v8087 = vpop.f32.mrf.mxu0
      %v8088 = vadd.f32 %v7775, %v8087
      %v8089 = vpop.f32.mrf.mxu0
      %v8090 = vadd.f32 %v7777, %v8089
      %8091 = vmatprep.mubr.bf16.mxu0 %v6176
      %8092 = vmatmul.mubr.bf16.gmra.mxu0 %v6175
      %v8093 = vpop.f32.mrf.mxu0
      %v8094 = vadd.f32 %v7781, %v8093
      %v8095 = vpop.f32.mrf.mxu0
      %v8096 = vadd.f32 %v7783, %v8095
      %v8097 = vpop.f32.mrf.mxu0
      %v8098 = vadd.f32 %v7785, %v8097
      %v8099 = vpop.f32.mrf.mxu0
      %v8100 = vadd.f32 %v7787, %v8099
      %8101 = vmatprep.mubr.bf16.mxu0 %v6178
      %8102 = vmatmul.mubr.bf16.gmra.mxu0 %v6177
      %v8103 = vpop.f32.mrf.mxu0
      %v8104 = vadd.f32 %v7791, %v8103
      %v8105 = vpop.f32.mrf.mxu0
      %v8106 = vadd.f32 %v7793, %v8105
      %v8107 = vpop.f32.mrf.mxu0
      %v8108 = vadd.f32 %v7795, %v8107
      %v8109 = vpop.f32.mrf.mxu0
      %v8110 = vadd.f32 %v7797, %v8109
      %8111 = vmatprep.mubr.bf16.mxu0 %v6180
      %8112 = vmatmul.mubr.bf16.gmra.mxu0 %v6179
      %v8113 = vpop.f32.mrf.mxu0
      %v8114 = vadd.f32 %v7801, %v8113
      %v8115 = vpop.f32.mrf.mxu0
      %v8116 = vadd.f32 %v7803, %v8115
      %v8117 = vpop.f32.mrf.mxu0
      %v8118 = vadd.f32 %v7805, %v8117
      %v8119 = vpop.f32.mrf.mxu0
      %v8120 = vadd.f32 %v7807, %v8119
      %8121 = vmatprep.mubr.bf16.mxu0 %v6182
      %8122 = vmatmul.mubr.bf16.gmra.mxu0 %v6181
      %v8123 = vpop.f32.mrf.mxu0
      %v8124 = vadd.f32 %v7811, %v8123
      %v8125 = vpop.f32.mrf.mxu0
      %v8126 = vadd.f32 %v7813, %v8125
      %v8127 = vpop.f32.mrf.mxu0
      %v8128 = vadd.f32 %v7815, %v8127
      %v8129 = vpop.f32.mrf.mxu0
      %v8130 = vadd.f32 %v7817, %v8129
      %8131 = vmatprep.mubr.bf16.mxu0 %v6184
      %8132 = vmatmul.mubr.bf16.gmra.mxu0 %v6183
      %v8133 = vpop.f32.mrf.mxu0
      %v8134 = vadd.f32 %v7821, %v8133
      %v8135 = vpop.f32.mrf.mxu0
      %v8136 = vadd.f32 %v7823, %v8135
      %v8137 = vpop.f32.mrf.mxu0
      %v8138 = vadd.f32 %v7825, %v8137
      %v8139 = vpop.f32.mrf.mxu0
      %v8140 = vadd.f32 %v7827, %v8139
      %8141 = vmatprep.mubr.bf16.mxu0 %v6186
      %8142 = vmatmul.mubr.bf16.gmra.mxu0 %v6185
      %v8143 = vpop.f32.mrf.mxu0
      %v8144 = vadd.f32 %v7831, %v8143
      %v8145 = vpop.f32.mrf.mxu0
      %v8146 = vadd.f32 %v7833, %v8145
      %v8147 = vpop.f32.mrf.mxu0
      %v8148 = vadd.f32 %v7835, %v8147
      %v8149 = vpop.f32.mrf.mxu0
      %v8150 = vadd.f32 %v7837, %v8149
      %8151 = vmatprep.mubr.bf16.mxu0 %v6188
      %8152 = vmatmul.mubr.bf16.gmra.mxu0 %v6187
      %v8153 = vpop.f32.mrf.mxu0
      %v8154 = vadd.f32 %v7841, %v8153
      %v8155 = vpop.f32.mrf.mxu0
      %v8156 = vadd.f32 %v7843, %v8155
      %v8157 = vpop.f32.mrf.mxu0
      %v8158 = vadd.f32 %v7845, %v8157
      %v8159 = vpop.f32.mrf.mxu0
      %v8160 = vadd.f32 %v7847, %v8159
      %8161 = vmatprep.mubr.bf16.mxu0 %v6190
      %8162 = vmatmul.mubr.bf16.gmra.mxu0 %v6189
      %v8163 = vpop.f32.mrf.mxu0
      %v8164 = vadd.f32 %v7851, %v8163
      %v8165 = vpop.f32.mrf.mxu0
      %v8166 = vadd.f32 %v7853, %v8165
      %v8167 = vpop.f32.mrf.mxu0
      %v8168 = vadd.f32 %v7855, %v8167
      %v8169 = vpop.f32.mrf.mxu0
      %v8170 = vadd.f32 %v7857, %v8169
      %8171 = vmatprep.mubr.bf16.mxu0 %v6192
      %8172 = vmatmul.mubr.bf16.gmra.mxu0 %v6191
      %v8173 = vpop.f32.mrf.mxu0
      %v8174 = vadd.f32 %v7861, %v8173
      %v8175 = vpop.f32.mrf.mxu0
      %v8176 = vadd.f32 %v7863, %v8175
      %v8177 = vpop.f32.mrf.mxu0
      %v8178 = vadd.f32 %v7865, %v8177
      %v8179 = vpop.f32.mrf.mxu0
      %v8180 = vadd.f32 %v7867, %v8179
      %8181 = vmatprep.mubr.bf16.mxu0 %v6194
      %8182 = vmatmul.mubr.bf16.gmra.mxu0 %v6193
      %v8183 = vpop.f32.mrf.mxu0
      %v8184 = vadd.f32 %v7871, %v8183
      %v8185 = vpop.f32.mrf.mxu0
      %v8186 = vadd.f32 %v7873, %v8185
      %v8187 = vpop.f32.mrf.mxu0
      %v8188 = vadd.f32 %v7875, %v8187
      %v8189 = vpop.f32.mrf.mxu0
      %v8190 = vadd.f32 %v7877, %v8189
      %8191 = vmatprep.mubr.bf16.mxu0 %v6196
      %8192 = vmatmul.mubr.bf16.gmra.mxu0 %v6195
      %v8193 = vpop.f32.mrf.mxu0
      %v8194 = vadd.f32 %v7881, %v8193
      %v8195 = vpop.f32.mrf.mxu0
      %v8196 = vadd.f32 %v7883, %v8195
      %v8197 = vpop.f32.mrf.mxu0
      %v8198 = vadd.f32 %v7885, %v8197
      %v8199 = vpop.f32.mrf.mxu0
      %v8200 = vadd.f32 %v7887, %v8199
      %8201 = vmatprep.mubr.bf16.mxu0 %v6198
      %8202 = vmatmul.mubr.bf16.gmra.mxu0 %v6197
      %v8203 = vpop.f32.mrf.mxu0
      %v8204 = vadd.f32 %v7891, %v8203
      %v8205 = vpop.f32.mrf.mxu0
      %v8206 = vadd.f32 %v7893, %v8205
      %v8207 = vpop.f32.mrf.mxu0
      %v8208 = vadd.f32 %v7895, %v8207
      %v8209 = vpop.f32.mrf.mxu0
      %v8210 = vadd.f32 %v7897, %v8209
      %8211 = vmatprep.mubr.bf16.mxu0 %v6200
      %8212 = vmatmul.mubr.bf16.gmra.mxu0 %v6199
      %v8213 = vpop.f32.mrf.mxu0
      %v8214 = vadd.f32 %v7901, %v8213
      %v8215 = vpop.f32.mrf.mxu0
      %v8216 = vadd.f32 %v7903, %v8215
      %v8217 = vpop.f32.mrf.mxu0
      %v8218 = vadd.f32 %v7905, %v8217
      %v8219 = vpop.f32.mrf.mxu0
      %v8220 = vadd.f32 %v7907, %v8219
      %8221 = vmatprep.mubr.bf16.mxu0 %v6202
      %8222 = vmatmul.mubr.bf16.gmra.mxu0 %v6201
      %v8223 = vpop.f32.mrf.mxu0
      %v8224 = vadd.f32 %v7911, %v8223
      %v8225 = vpop.f32.mrf.mxu0
      %v8226 = vadd.f32 %v7913, %v8225
      %v8227 = vpop.f32.mrf.mxu0
      %v8228 = vadd.f32 %v7915, %v8227
      %v8229 = vpop.f32.mrf.mxu0
      %v8230 = vadd.f32 %v7917, %v8229
      %8231 = vmatprep.mubr.bf16.mxu0 %v6204
      %8232 = vmatmul.mubr.bf16.gmra.mxu0 %v6203
      %v8233 = vpop.f32.mrf.mxu0
      %v8234 = vadd.f32 %v7921, %v8233
      %v8235 = vpop.f32.mrf.mxu0
      %v8236 = vadd.f32 %v7923, %v8235
      %v8237 = vpop.f32.mrf.mxu0
      %v8238 = vadd.f32 %v7925, %v8237
      %v8239 = vpop.f32.mrf.mxu0
      %v8240 = vadd.f32 %v7927, %v8239
      %8241 = vmatprep.mubr.bf16.mxu0 %v6206
      %8242 = vmatmul.mubr.bf16.gmra.mxu0 %v6205
      %v8243 = vpop.f32.mrf.mxu0
      %v8244 = vadd.f32 %v7931, %v8243
      %v8245 = vpop.f32.mrf.mxu0
      %v8246 = vadd.f32 %v7933, %v8245
      %v8247 = vpop.f32.mrf.mxu0
      %v8248 = vadd.f32 %v7935, %v8247
      %v8249 = vpop.f32.mrf.mxu0
      %v8250 = vadd.f32 %v7937, %v8249
      %8251 = vmatprep.mubr.bf16.mxu0 %v6208
      %8252 = vmatmul.mubr.bf16.gmra.mxu0 %v6207
      %v8253 = vpop.f32.mrf.mxu0
      %v8254 = vadd.f32 %v7941, %v8253
      %v8255 = vpop.f32.mrf.mxu0
      %v8256 = vadd.f32 %v7943, %v8255
      %v8257 = vpop.f32.mrf.mxu0
      %v8258 = vadd.f32 %v7945, %v8257
      %v8259 = vpop.f32.mrf.mxu0
      %v8260 = vadd.f32 %v7947, %v8259
      %8261 = vmatprep.mubr.bf16.mxu0 %v6210
      %8262 = vmatmul.mubr.bf16.gmra.mxu0 %v6209
      %v8263 = vpop.f32.mrf.mxu0
      %v8264 = vadd.f32 %v7951, %v8263
      %v8265 = vpop.f32.mrf.mxu0
      %v8266 = vadd.f32 %v7953, %v8265
      %v8267 = vpop.f32.mrf.mxu0
      %v8268 = vadd.f32 %v7955, %v8267
      %v8269 = vpop.f32.mrf.mxu0
      %v8270 = vadd.f32 %v7957, %v8269
      %8271 = vmatprep.mubr.bf16.mxu0 %v6212
      %8272 = vmatmul.mubr.bf16.gmra.mxu0 %v6211
      %v8273 = vpop.f32.mrf.mxu0
      %v8274 = vadd.f32 %v7961, %v8273
      %v8275 = vpop.f32.mrf.mxu0
      %v8276 = vadd.f32 %v7963, %v8275
      %v8277 = vpop.f32.mrf.mxu0
      %v8278 = vadd.f32 %v7965, %v8277
      %v8279 = vpop.f32.mrf.mxu0
      %v8280 = vadd.f32 %v7967, %v8279
      %8281 = vmatprep.mubr.bf16.mxu0 %v6214
      %8282 = vmatmul.mubr.bf16.gmra.mxu0 %v6213
      %v8283 = vpop.f32.mrf.mxu0
      %v8284 = vadd.f32 %v7971, %v8283
      %v8285 = vpop.f32.mrf.mxu0
      %v8286 = vadd.f32 %v7973, %v8285
      %v8287 = vpop.f32.mrf.mxu0
      %v8288 = vadd.f32 %v7975, %v8287
      %v8289 = vpop.f32.mrf.mxu0
      %v8290 = vadd.f32 %v7977, %v8289
      %8291 = vmatprep.mubr.bf16.mxu0 %v6216
      %8292 = vmatmul.mubr.bf16.gmra.mxu0 %v6215
      %v8293 = vpop.f32.mrf.mxu0
      %v8294 = vadd.f32 %v7981, %v8293
      %v8295 = vpop.f32.mrf.mxu0
      %v8296 = vadd.f32 %v7983, %v8295
      %v8297 = vpop.f32.mrf.mxu0
      %v8298 = vadd.f32 %v7985, %v8297
      %v8299 = vpop.f32.mrf.mxu0
      %v8300 = vadd.f32 %v7987, %v8299
      %8301 = vmatprep.mubr.bf16.mxu0 %v6218
      %8302 = vmatmul.mubr.bf16.gmra.mxu0 %v6217
      %v8303 = vpop.f32.mrf.mxu0
      %v8304 = vadd.f32 %v7991, %v8303
      %v8305 = vpop.f32.mrf.mxu0
      %v8306 = vadd.f32 %v7993, %v8305
      %v8307 = vpop.f32.mrf.mxu0
      %v8308 = vadd.f32 %v7995, %v8307
      %v8309 = vpop.f32.mrf.mxu0
      %v8310 = vadd.f32 %v7997, %v8309
      %8311 = vmatprep.mubr.bf16.mxu0 %v503
      %8312 = vmatmul.mubr.bf16.gmra.mxu0 %v503
      %v8313 = vpop.f32.mrf.mxu0
      %v8314 = vadd.f32 %v8001, %v8313
      %v8315 = vpop.f32.mrf.mxu0
      %v8316 = vadd.f32 %v8003, %v8315
      %v8317 = vpop.f32.mrf.mxu0
      %v8318 = vadd.f32 %v8005, %v8317
      %v8319 = vpop.f32.mrf.mxu0
      %v8320 = vadd.f32 %v8007, %v8319
      %8321 = vmatprep.mubr.bf16.mxu0 %v503
      %8322 = vmatmul.mubr.bf16.gmra.mxu0 %v503
      %v8323 = vpop.f32.mrf.mxu0
      %v8324 = vadd.f32 %v8011, %v8323
      %v8325 = vpop.f32.mrf.mxu0
      %v8326 = vadd.f32 %v8013, %v8325
      %v8327 = vpop.f32.mrf.mxu0
      %v8328 = vadd.f32 %v8015, %v8327
      %v8329 = vpop.f32.mrf.mxu0
      %v8330 = vadd.f32 %v8017, %v8329
      %8331 = vdwg.mxu0
      %8332 = vmatprep.subr.bf16.mxu0 %v7040
      %8333 = vmatpush1.bf16.msra.mxu0 %v7039
      %8334 = vmatprep.subr.bf16.mxu0 %v7036
      %8335 = vmatpush1.bf16.msra.mxu0 %v7035
      %8336 = vmatprep.subr.bf16.mxu0 %v7032
      %8337 = vmatpush1.bf16.msra.mxu0 %v7031
      %8338 = vmatprep.subr.bf16.mxu0 %v7028
      %8339 = vmatpush1.bf16.msra.mxu0 %v7027
      %8340 = vmatprep.subr.bf16.mxu0 %v7024
      %8341 = vmatpush1.bf16.msra.mxu0 %v7023
      %8342 = vmatprep.subr.bf16.mxu0 %v7020
      %8343 = vmatpush1.bf16.msra.mxu0 %v7019
      %8344 = vmatprep.subr.bf16.mxu0 %v7016
      %8345 = vmatpush1.bf16.msra.mxu0 %v7015
      %8346 = vmatprep.subr.bf16.mxu0 %v7012
      %8347 = vmatpush1.bf16.msra.mxu0 %v7011
      %8348 = vmatprep.subr.bf16.mxu0 %v7072
      %8349 = vmatpush2.bf16.msra.mxu0 %v7071
      %8350 = vmatprep.subr.bf16.mxu0 %v7068
      %8351 = vmatpush2.bf16.msra.mxu0 %v7067
      %8352 = vmatprep.subr.bf16.mxu0 %v7064
      %8353 = vmatpush2.bf16.msra.mxu0 %v7063
      %8354 = vmatprep.subr.bf16.mxu0 %v7060
      %8355 = vmatpush2.bf16.msra.mxu0 %v7059
      %8356 = vmatprep.subr.bf16.mxu0 %v7056
      %8357 = vmatpush2.bf16.msra.mxu0 %v7055
      %8358 = vmatprep.subr.bf16.mxu0 %v7052
      %8359 = vmatpush2.bf16.msra.mxu0 %v7051
      %8360 = vmatprep.subr.bf16.mxu0 %v7048
      %8361 = vmatpush2.bf16.msra.mxu0 %v7047
      %8362 = vmatprep.subr.bf16.mxu0 %v7044
      %8363 = vmatpush2.bf16.msra.mxu0 %v7043
      %8364 = vmatprep.mubr.bf16.mxu0 %v503
      %8365 = vmatmul.mubr.bf16.gmra.mxu0 %v503
      %v8366 = vpop.f32.mrf.mxu0
      %v8367 = vadd.f32 %v6424, %v8366
      %v8368 = vpop.f32.mrf.mxu0
      %v8369 = vadd.f32 %v6428, %v8368
      %v8370 = vpop.f32.mrf.mxu0
      %v8371 = vadd.f32 %v6424, %v8370
      %v8372 = vpop.f32.mrf.mxu0
      %v8373 = vadd.f32 %v6428, %v8372
      %8374 = vmatprep.mubr.bf16.mxu0 %v503
      %8375 = vmatmul.mubr.bf16.gmra.mxu0 %v503
      %v8376 = vpop.f32.mrf.mxu0
      %v8377 = vadd.f32 %v6424, %v8376
      %v8378 = vpop.f32.mrf.mxu0
      %v8379 = vadd.f32 %v6428, %v8378
      %v8380 = vpop.f32.mrf.mxu0
      %v8381 = vadd.f32 %v6424, %v8380
      %v8382 = vpop.f32.mrf.mxu0
      %v8383 = vadd.f32 %v6428, %v8382
      %8384 = vmatprep.mubr.bf16.mxu0 %v6164
      %8385 = vmatmul.mubr.bf16.gmra.mxu0 %v6163
      %v8386 = vpop.f32.mrf.mxu0
      %v8387 = vadd.f32 %v6424, %v8386
      %v8388 = vpop.f32.mrf.mxu0
      %v8389 = vadd.f32 %v6428, %v8388
      %v8390 = vpop.f32.mrf.mxu0
      %v8391 = vadd.f32 %v6424, %v8390
      %v8392 = vpop.f32.mrf.mxu0
      %v8393 = vadd.f32 %v6428, %v8392
      %8394 = vmatprep.mubr.bf16.mxu0 %v6166
      %8395 = vmatmul.mubr.bf16.gmra.mxu0 %v6165
      %v8396 = vpop.f32.mrf.mxu0
      %v8397 = vadd.f32 %v6424, %v8396
      %v8398 = vpop.f32.mrf.mxu0
      %v8399 = vadd.f32 %v6428, %v8398
      %v8400 = vpop.f32.mrf.mxu0
      %v8401 = vadd.f32 %v6424, %v8400
      %v8402 = vpop.f32.mrf.mxu0
      %v8403 = vadd.f32 %v6428, %v8402
      %8404 = vmatprep.mubr.bf16.mxu0 %v6168
      %8405 = vmatmul.mubr.bf16.gmra.mxu0 %v6167
      %v8406 = vpop.f32.mrf.mxu0
      %v8407 = vadd.f32 %v6424, %v8406
      %v8408 = vpop.f32.mrf.mxu0
      %v8409 = vadd.f32 %v6428, %v8408
      %v8410 = vpop.f32.mrf.mxu0
      %v8411 = vadd.f32 %v6424, %v8410
      %v8412 = vpop.f32.mrf.mxu0
      %v8413 = vadd.f32 %v6428, %v8412
      %8414 = vmatprep.mubr.bf16.mxu0 %v6170
      %8415 = vmatmul.mubr.bf16.gmra.mxu0 %v6169
      %v8416 = vpop.f32.mrf.mxu0
      %v8417 = vadd.f32 %v6424, %v8416
      %v8418 = vpop.f32.mrf.mxu0
      %v8419 = vadd.f32 %v6428, %v8418
      %v8420 = vpop.f32.mrf.mxu0
      %v8421 = vadd.f32 %v6424, %v8420
      %v8422 = vpop.f32.mrf.mxu0
      %v8423 = vadd.f32 %v6428, %v8422
      %8424 = vmatprep.mubr.bf16.mxu0 %v6172
      %8425 = vmatmul.mubr.bf16.gmra.mxu0 %v6171
      %v8426 = vpop.f32.mrf.mxu0
      %v8427 = vadd.f32 %v6424, %v8426
      %v8428 = vpop.f32.mrf.mxu0
      %v8429 = vadd.f32 %v6428, %v8428
      %v8430 = vpop.f32.mrf.mxu0
      %v8431 = vadd.f32 %v6424, %v8430
      %v8432 = vpop.f32.mrf.mxu0
      %v8433 = vadd.f32 %v6428, %v8432
      %8434 = vmatprep.mubr.bf16.mxu0 %v6174
      %8435 = vmatmul.mubr.bf16.gmra.mxu0 %v6173
      %v8436 = vpop.f32.mrf.mxu0
      %v8437 = vadd.f32 %v6424, %v8436
      %v8438 = vpop.f32.mrf.mxu0
      %v8439 = vadd.f32 %v6428, %v8438
      %v8440 = vpop.f32.mrf.mxu0
      %v8441 = vadd.f32 %v6424, %v8440
      %v8442 = vpop.f32.mrf.mxu0
      %v8443 = vadd.f32 %v6428, %v8442
      %8444 = vmatprep.mubr.bf16.mxu0 %v6176
      %8445 = vmatmul.mubr.bf16.gmra.mxu0 %v6175
      %v8446 = vpop.f32.mrf.mxu0
      %v8447 = vadd.f32 %v6424, %v8446
      %v8448 = vpop.f32.mrf.mxu0
      %v8449 = vadd.f32 %v6428, %v8448
      %v8450 = vpop.f32.mrf.mxu0
      %v8451 = vadd.f32 %v6424, %v8450
      %v8452 = vpop.f32.mrf.mxu0
      %v8453 = vadd.f32 %v6428, %v8452
      %8454 = vmatprep.mubr.bf16.mxu0 %v6178
      %8455 = vmatmul.mubr.bf16.gmra.mxu0 %v6177
      %v8456 = vpop.f32.mrf.mxu0
      %v8457 = vadd.f32 %v6424, %v8456
      %v8458 = vpop.f32.mrf.mxu0
      %v8459 = vadd.f32 %v6428, %v8458
      %v8460 = vpop.f32.mrf.mxu0
      %v8461 = vadd.f32 %v6424, %v8460
      %v8462 = vpop.f32.mrf.mxu0
      %v8463 = vadd.f32 %v6428, %v8462
      %8464 = vmatprep.mubr.bf16.mxu0 %v6180
      %8465 = vmatmul.mubr.bf16.gmra.mxu0 %v6179
      %v8466 = vpop.f32.mrf.mxu0
      %v8467 = vadd.f32 %v6424, %v8466
      %v8468 = vpop.f32.mrf.mxu0
      %v8469 = vadd.f32 %v6428, %v8468
      %v8470 = vpop.f32.mrf.mxu0
      %v8471 = vadd.f32 %v6424, %v8470
      %v8472 = vpop.f32.mrf.mxu0
      %v8473 = vadd.f32 %v6428, %v8472
      %8474 = vmatprep.mubr.bf16.mxu0 %v6182
      %8475 = vmatmul.mubr.bf16.gmra.mxu0 %v6181
      %v8476 = vpop.f32.mrf.mxu0
      %v8477 = vadd.f32 %v6424, %v8476
      %v8478 = vpop.f32.mrf.mxu0
      %v8479 = vadd.f32 %v6428, %v8478
      %v8480 = vpop.f32.mrf.mxu0
      %v8481 = vadd.f32 %v6424, %v8480
      %v8482 = vpop.f32.mrf.mxu0
      %v8483 = vadd.f32 %v6428, %v8482
      %8484 = vmatprep.mubr.bf16.mxu0 %v6184
      %8485 = vmatmul.mubr.bf16.gmra.mxu0 %v6183
      %v8486 = vpop.f32.mrf.mxu0
      %v8487 = vadd.f32 %v6424, %v8486
      %v8488 = vpop.f32.mrf.mxu0
      %v8489 = vadd.f32 %v6428, %v8488
      %v8490 = vpop.f32.mrf.mxu0
      %v8491 = vadd.f32 %v6424, %v8490
      %v8492 = vpop.f32.mrf.mxu0
      %v8493 = vadd.f32 %v6428, %v8492
      %8494 = vmatprep.mubr.bf16.mxu0 %v6186
      %8495 = vmatmul.mubr.bf16.gmra.mxu0 %v6185
      %v8496 = vpop.f32.mrf.mxu0
      %v8497 = vadd.f32 %v6424, %v8496
      %v8498 = vpop.f32.mrf.mxu0
      %v8499 = vadd.f32 %v6428, %v8498
      %v8500 = vpop.f32.mrf.mxu0
      %v8501 = vadd.f32 %v6424, %v8500
      %v8502 = vpop.f32.mrf.mxu0
      %v8503 = vadd.f32 %v6428, %v8502
      %8504 = vmatprep.mubr.bf16.mxu0 %v6188
      %8505 = vmatmul.mubr.bf16.gmra.mxu0 %v6187
      %v8506 = vpop.f32.mrf.mxu0
      %v8507 = vadd.f32 %v6424, %v8506
      %v8508 = vpop.f32.mrf.mxu0
      %v8509 = vadd.f32 %v6428, %v8508
      %v8510 = vpop.f32.mrf.mxu0
      %v8511 = vadd.f32 %v6424, %v8510
      %v8512 = vpop.f32.mrf.mxu0
      %v8513 = vadd.f32 %v6428, %v8512
      %8514 = vmatprep.mubr.bf16.mxu0 %v6190
      %8515 = vmatmul.mubr.bf16.gmra.mxu0 %v6189
      %v8516 = vpop.f32.mrf.mxu0
      %v8517 = vadd.f32 %v6424, %v8516
      %v8518 = vpop.f32.mrf.mxu0
      %v8519 = vadd.f32 %v6428, %v8518
      %v8520 = vpop.f32.mrf.mxu0
      %v8521 = vadd.f32 %v6424, %v8520
      %v8522 = vpop.f32.mrf.mxu0
      %v8523 = vadd.f32 %v6428, %v8522
      %8524 = vmatprep.mubr.bf16.mxu0 %v6192
      %8525 = vmatmul.mubr.bf16.gmra.mxu0 %v6191
      %v8526 = vpop.f32.mrf.mxu0
      %v8527 = vadd.f32 %v6424, %v8526
      %v8528 = vpop.f32.mrf.mxu0
      %v8529 = vadd.f32 %v6428, %v8528
      %v8530 = vpop.f32.mrf.mxu0
      %v8531 = vadd.f32 %v6424, %v8530
      %v8532 = vpop.f32.mrf.mxu0
      %v8533 = vadd.f32 %v6428, %v8532
      %8534 = vmatprep.mubr.bf16.mxu0 %v6194
      %8535 = vmatmul.mubr.bf16.gmra.mxu0 %v6193
      %v8536 = vpop.f32.mrf.mxu0
      %v8537 = vadd.f32 %v6424, %v8536
      %v8538 = vpop.f32.mrf.mxu0
      %v8539 = vadd.f32 %v6428, %v8538
      %v8540 = vpop.f32.mrf.mxu0
      %v8541 = vadd.f32 %v6424, %v8540
      %v8542 = vpop.f32.mrf.mxu0
      %v8543 = vadd.f32 %v6428, %v8542
      %8544 = vmatprep.mubr.bf16.mxu0 %v6196
      %8545 = vmatmul.mubr.bf16.gmra.mxu0 %v6195
      %v8546 = vpop.f32.mrf.mxu0
      %v8547 = vadd.f32 %v6424, %v8546
      %v8548 = vpop.f32.mrf.mxu0
      %v8549 = vadd.f32 %v6428, %v8548
      %v8550 = vpop.f32.mrf.mxu0
      %v8551 = vadd.f32 %v6424, %v8550
      %v8552 = vpop.f32.mrf.mxu0
      %v8553 = vadd.f32 %v6428, %v8552
      %8554 = vmatprep.mubr.bf16.mxu0 %v6198
      %8555 = vmatmul.mubr.bf16.gmra.mxu0 %v6197
      %v8556 = vpop.f32.mrf.mxu0
      %v8557 = vadd.f32 %v6424, %v8556
      %v8558 = vpop.f32.mrf.mxu0
      %v8559 = vadd.f32 %v6428, %v8558
      %v8560 = vpop.f32.mrf.mxu0
      %v8561 = vadd.f32 %v6424, %v8560
      %v8562 = vpop.f32.mrf.mxu0
      %v8563 = vadd.f32 %v6428, %v8562
      %8564 = vmatprep.mubr.bf16.mxu0 %v6200
      %8565 = vmatmul.mubr.bf16.gmra.mxu0 %v6199
      %v8566 = vpop.f32.mrf.mxu0
      %v8567 = vadd.f32 %v6424, %v8566
      %v8568 = vpop.f32.mrf.mxu0
      %v8569 = vadd.f32 %v6428, %v8568
      %v8570 = vpop.f32.mrf.mxu0
      %v8571 = vadd.f32 %v6424, %v8570
      %v8572 = vpop.f32.mrf.mxu0
      %v8573 = vadd.f32 %v6428, %v8572
      %8574 = vmatprep.mubr.bf16.mxu0 %v6202
      %8575 = vmatmul.mubr.bf16.gmra.mxu0 %v6201
      %v8576 = vpop.f32.mrf.mxu0
      %v8577 = vadd.f32 %v6424, %v8576
      %v8578 = vpop.f32.mrf.mxu0
      %v8579 = vadd.f32 %v6428, %v8578
      %v8580 = vpop.f32.mrf.mxu0
      %v8581 = vadd.f32 %v6424, %v8580
      %v8582 = vpop.f32.mrf.mxu0
      %v8583 = vadd.f32 %v6428, %v8582
      %8584 = vmatprep.mubr.bf16.mxu0 %v6204
      %8585 = vmatmul.mubr.bf16.gmra.mxu0 %v6203
      %v8586 = vpop.f32.mrf.mxu0
      %v8587 = vadd.f32 %v6424, %v8586
      %v8588 = vpop.f32.mrf.mxu0
      %v8589 = vadd.f32 %v6428, %v8588
      %v8590 = vpop.f32.mrf.mxu0
      %v8591 = vadd.f32 %v6424, %v8590
      %v8592 = vpop.f32.mrf.mxu0
      %v8593 = vadd.f32 %v6428, %v8592
      %8594 = vmatprep.mubr.bf16.mxu0 %v6206
      %8595 = vmatmul.mubr.bf16.gmra.mxu0 %v6205
      %v8596 = vpop.f32.mrf.mxu0
      %v8597 = vadd.f32 %v6424, %v8596
      %v8598 = vpop.f32.mrf.mxu0
      %v8599 = vadd.f32 %v6428, %v8598
      %v8600 = vpop.f32.mrf.mxu0
      %v8601 = vadd.f32 %v6424, %v8600
      %v8602 = vpop.f32.mrf.mxu0
      %v8603 = vadd.f32 %v6428, %v8602
      %8604 = vmatprep.mubr.bf16.mxu0 %v6208
      %8605 = vmatmul.mubr.bf16.gmra.mxu0 %v6207
      %v8606 = vpop.f32.mrf.mxu0
      %v8607 = vadd.f32 %v6424, %v8606
      %v8608 = vpop.f32.mrf.mxu0
      %v8609 = vadd.f32 %v6428, %v8608
      %v8610 = vpop.f32.mrf.mxu0
      %v8611 = vadd.f32 %v6424, %v8610
      %v8612 = vpop.f32.mrf.mxu0
      %v8613 = vadd.f32 %v6428, %v8612
      %8614 = vmatprep.mubr.bf16.mxu0 %v6210
      %8615 = vmatmul.mubr.bf16.gmra.mxu0 %v6209
      %v8616 = vpop.f32.mrf.mxu0
      %v8617 = vadd.f32 %v6424, %v8616
      %v8618 = vpop.f32.mrf.mxu0
      %v8619 = vadd.f32 %v6428, %v8618
      %v8620 = vpop.f32.mrf.mxu0
      %v8621 = vadd.f32 %v6424, %v8620
      %v8622 = vpop.f32.mrf.mxu0
      %v8623 = vadd.f32 %v6428, %v8622
      %8624 = vmatprep.mubr.bf16.mxu0 %v6212
      %8625 = vmatmul.mubr.bf16.gmra.mxu0 %v6211
      %v8626 = vpop.f32.mrf.mxu0
      %v8627 = vadd.f32 %v6424, %v8626
      %v8628 = vpop.f32.mrf.mxu0
      %v8629 = vadd.f32 %v6428, %v8628
      %v8630 = vpop.f32.mrf.mxu0
      %v8631 = vadd.f32 %v6424, %v8630
      %v8632 = vpop.f32.mrf.mxu0
      %v8633 = vadd.f32 %v6428, %v8632
      %8634 = vmatprep.mubr.bf16.mxu0 %v6214
      %8635 = vmatmul.mubr.bf16.gmra.mxu0 %v6213
      %v8636 = vpop.f32.mrf.mxu0
      %v8637 = vadd.f32 %v6424, %v8636
      %v8638 = vpop.f32.mrf.mxu0
      %v8639 = vadd.f32 %v6428, %v8638
      %v8640 = vpop.f32.mrf.mxu0
      %v8641 = vadd.f32 %v6424, %v8640
      %v8642 = vpop.f32.mrf.mxu0
      %v8643 = vadd.f32 %v6428, %v8642
      %8644 = vdwg.mxu0
      %8645 = vmatprep.subr.bf16.mxu0 %v7104
      %8646 = vmatpush1.bf16.msra.mxu0 %v7103
      %8647 = vmatprep.subr.bf16.mxu0 %v7100
      %8648 = vmatpush1.bf16.msra.mxu0 %v7099
      %8649 = vmatprep.subr.bf16.mxu0 %v7096
      %8650 = vmatpush1.bf16.msra.mxu0 %v7095
      %8651 = vmatprep.subr.bf16.mxu0 %v7092
      %8652 = vmatpush1.bf16.msra.mxu0 %v7091
      %8653 = vmatprep.subr.bf16.mxu0 %v7088
      %8654 = vmatpush1.bf16.msra.mxu0 %v7087
      %8655 = vmatprep.subr.bf16.mxu0 %v7084
      %8656 = vmatpush1.bf16.msra.mxu0 %v7083
      %8657 = vmatprep.subr.bf16.mxu0 %v7080
      %8658 = vmatpush1.bf16.msra.mxu0 %v7079
      %8659 = vmatprep.subr.bf16.mxu0 %v7076
      %8660 = vmatpush1.bf16.msra.mxu0 %v7075
      %8661 = vmatprep.subr.bf16.mxu0 %v7136
      %8662 = vmatpush2.bf16.msra.mxu0 %v7135
      %8663 = vmatprep.subr.bf16.mxu0 %v7132
      %8664 = vmatpush2.bf16.msra.mxu0 %v7131
      %8665 = vmatprep.subr.bf16.mxu0 %v7128
      %8666 = vmatpush2.bf16.msra.mxu0 %v7127
      %8667 = vmatprep.subr.bf16.mxu0 %v7124
      %8668 = vmatpush2.bf16.msra.mxu0 %v7123
      %8669 = vmatprep.subr.bf16.mxu0 %v7120
      %8670 = vmatpush2.bf16.msra.mxu0 %v7119
      %8671 = vmatprep.subr.bf16.mxu0 %v7116
      %8672 = vmatpush2.bf16.msra.mxu0 %v7115
      %8673 = vmatprep.subr.bf16.mxu0 %v7112
      %8674 = vmatpush2.bf16.msra.mxu0 %v7111
      %8675 = vmatprep.subr.bf16.mxu0 %v7108
      %8676 = vmatpush2.bf16.msra.mxu0 %v7107
      %8677 = vmatprep.mubr.bf16.mxu0 %v6164
      %8678 = vmatmul.mubr.bf16.gmra.mxu0 %v6163
      %v8679 = vpop.f32.mrf.mxu0
      %v8680 = vadd.f32 %v8367, %v8679
      %v8681 = vpop.f32.mrf.mxu0
      %v8682 = vadd.f32 %v8369, %v8681
      %v8683 = vpop.f32.mrf.mxu0
      %v8684 = vadd.f32 %v8371, %v8683
      %v8685 = vpop.f32.mrf.mxu0
      %v8686 = vadd.f32 %v8373, %v8685
      %8687 = vmatprep.mubr.bf16.mxu0 %v6166
      %8688 = vmatmul.mubr.bf16.gmra.mxu0 %v6165
      %v8689 = vpop.f32.mrf.mxu0
      %v8690 = vadd.f32 %v8377, %v8689
      %v8691 = vpop.f32.mrf.mxu0
      %v8692 = vadd.f32 %v8379, %v8691
      %v8693 = vpop.f32.mrf.mxu0
      %v8694 = vadd.f32 %v8381, %v8693
      %v8695 = vpop.f32.mrf.mxu0
      %v8696 = vadd.f32 %v8383, %v8695
      %8697 = vmatprep.mubr.bf16.mxu0 %v6168
      %8698 = vmatmul.mubr.bf16.gmra.mxu0 %v6167
      %v8699 = vpop.f32.mrf.mxu0
      %v8700 = vadd.f32 %v8387, %v8699
      %v8701 = vpop.f32.mrf.mxu0
      %v8702 = vadd.f32 %v8389, %v8701
      %v8703 = vpop.f32.mrf.mxu0
      %v8704 = vadd.f32 %v8391, %v8703
      %v8705 = vpop.f32.mrf.mxu0
      %v8706 = vadd.f32 %v8393, %v8705
      %8707 = vmatprep.mubr.bf16.mxu0 %v6170
      %8708 = vmatmul.mubr.bf16.gmra.mxu0 %v6169
      %v8709 = vpop.f32.mrf.mxu0
      %v8710 = vadd.f32 %v8397, %v8709
      %v8711 = vpop.f32.mrf.mxu0
      %v8712 = vadd.f32 %v8399, %v8711
      %v8713 = vpop.f32.mrf.mxu0
      %v8714 = vadd.f32 %v8401, %v8713
      %v8715 = vpop.f32.mrf.mxu0
      %v8716 = vadd.f32 %v8403, %v8715
      %8717 = vmatprep.mubr.bf16.mxu0 %v6172
      %8718 = vmatmul.mubr.bf16.gmra.mxu0 %v6171
      %v8719 = vpop.f32.mrf.mxu0
      %v8720 = vadd.f32 %v8407, %v8719
      %v8721 = vpop.f32.mrf.mxu0
      %v8722 = vadd.f32 %v8409, %v8721
      %v8723 = vpop.f32.mrf.mxu0
      %v8724 = vadd.f32 %v8411, %v8723
      %v8725 = vpop.f32.mrf.mxu0
      %v8726 = vadd.f32 %v8413, %v8725
      %8727 = vmatprep.mubr.bf16.mxu0 %v6174
      %8728 = vmatmul.mubr.bf16.gmra.mxu0 %v6173
      %v8729 = vpop.f32.mrf.mxu0
      %v8730 = vadd.f32 %v8417, %v8729
      %v8731 = vpop.f32.mrf.mxu0
      %v8732 = vadd.f32 %v8419, %v8731
      %v8733 = vpop.f32.mrf.mxu0
      %v8734 = vadd.f32 %v8421, %v8733
      %v8735 = vpop.f32.mrf.mxu0
      %v8736 = vadd.f32 %v8423, %v8735
      %8737 = vmatprep.mubr.bf16.mxu0 %v6176
      %8738 = vmatmul.mubr.bf16.gmra.mxu0 %v6175
      %v8739 = vpop.f32.mrf.mxu0
      %v8740 = vadd.f32 %v8427, %v8739
      %v8741 = vpop.f32.mrf.mxu0
      %v8742 = vadd.f32 %v8429, %v8741
      %v8743 = vpop.f32.mrf.mxu0
      %v8744 = vadd.f32 %v8431, %v8743
      %v8745 = vpop.f32.mrf.mxu0
      %v8746 = vadd.f32 %v8433, %v8745
      %8747 = vmatprep.mubr.bf16.mxu0 %v6178
      %8748 = vmatmul.mubr.bf16.gmra.mxu0 %v6177
      %v8749 = vpop.f32.mrf.mxu0
      %v8750 = vadd.f32 %v8437, %v8749
      %v8751 = vpop.f32.mrf.mxu0
      %v8752 = vadd.f32 %v8439, %v8751
      %v8753 = vpop.f32.mrf.mxu0
      %v8754 = vadd.f32 %v8441, %v8753
      %v8755 = vpop.f32.mrf.mxu0
      %v8756 = vadd.f32 %v8443, %v8755
      %8757 = vmatprep.mubr.bf16.mxu0 %v6180
      %8758 = vmatmul.mubr.bf16.gmra.mxu0 %v6179
      %v8759 = vpop.f32.mrf.mxu0
      %v8760 = vadd.f32 %v8447, %v8759
      %v8761 = vpop.f32.mrf.mxu0
      %v8762 = vadd.f32 %v8449, %v8761
      %v8763 = vpop.f32.mrf.mxu0
      %v8764 = vadd.f32 %v8451, %v8763
      %v8765 = vpop.f32.mrf.mxu0
      %v8766 = vadd.f32 %v8453, %v8765
      %8767 = vmatprep.mubr.bf16.mxu0 %v6182
      %8768 = vmatmul.mubr.bf16.gmra.mxu0 %v6181
      %v8769 = vpop.f32.mrf.mxu0
      %v8770 = vadd.f32 %v8457, %v8769
      %v8771 = vpop.f32.mrf.mxu0
      %v8772 = vadd.f32 %v8459, %v8771
      %v8773 = vpop.f32.mrf.mxu0
      %v8774 = vadd.f32 %v8461, %v8773
      %v8775 = vpop.f32.mrf.mxu0
      %v8776 = vadd.f32 %v8463, %v8775
      %8777 = vmatprep.mubr.bf16.mxu0 %v6184
      %8778 = vmatmul.mubr.bf16.gmra.mxu0 %v6183
      %v8779 = vpop.f32.mrf.mxu0
      %v8780 = vadd.f32 %v8467, %v8779
      %v8781 = vpop.f32.mrf.mxu0
      %v8782 = vadd.f32 %v8469, %v8781
      %v8783 = vpop.f32.mrf.mxu0
      %v8784 = vadd.f32 %v8471, %v8783
      %v8785 = vpop.f32.mrf.mxu0
      %v8786 = vadd.f32 %v8473, %v8785
      %8787 = vmatprep.mubr.bf16.mxu0 %v6186
      %8788 = vmatmul.mubr.bf16.gmra.mxu0 %v6185
      %v8789 = vpop.f32.mrf.mxu0
      %v8790 = vadd.f32 %v8477, %v8789
      %v8791 = vpop.f32.mrf.mxu0
      %v8792 = vadd.f32 %v8479, %v8791
      %v8793 = vpop.f32.mrf.mxu0
      %v8794 = vadd.f32 %v8481, %v8793
      %v8795 = vpop.f32.mrf.mxu0
      %v8796 = vadd.f32 %v8483, %v8795
      %8797 = vmatprep.mubr.bf16.mxu0 %v6188
      %8798 = vmatmul.mubr.bf16.gmra.mxu0 %v6187
      %v8799 = vpop.f32.mrf.mxu0
      %v8800 = vadd.f32 %v8487, %v8799
      %v8801 = vpop.f32.mrf.mxu0
      %v8802 = vadd.f32 %v8489, %v8801
      %v8803 = vpop.f32.mrf.mxu0
      %v8804 = vadd.f32 %v8491, %v8803
      %v8805 = vpop.f32.mrf.mxu0
      %v8806 = vadd.f32 %v8493, %v8805
      %8807 = vmatprep.mubr.bf16.mxu0 %v6190
      %8808 = vmatmul.mubr.bf16.gmra.mxu0 %v6189
      %v8809 = vpop.f32.mrf.mxu0
      %v8810 = vadd.f32 %v8497, %v8809
      %v8811 = vpop.f32.mrf.mxu0
      %v8812 = vadd.f32 %v8499, %v8811
      %v8813 = vpop.f32.mrf.mxu0
      %v8814 = vadd.f32 %v8501, %v8813
      %v8815 = vpop.f32.mrf.mxu0
      %v8816 = vadd.f32 %v8503, %v8815
      %8817 = vmatprep.mubr.bf16.mxu0 %v6192
      %8818 = vmatmul.mubr.bf16.gmra.mxu0 %v6191
      %v8819 = vpop.f32.mrf.mxu0
      %v8820 = vadd.f32 %v8507, %v8819
      %v8821 = vpop.f32.mrf.mxu0
      %v8822 = vadd.f32 %v8509, %v8821
      %v8823 = vpop.f32.mrf.mxu0
      %v8824 = vadd.f32 %v8511, %v8823
      %v8825 = vpop.f32.mrf.mxu0
      %v8826 = vadd.f32 %v8513, %v8825
      %8827 = vmatprep.mubr.bf16.mxu0 %v6194
      %8828 = vmatmul.mubr.bf16.gmra.mxu0 %v6193
      %v8829 = vpop.f32.mrf.mxu0
      %v8830 = vadd.f32 %v8517, %v8829
      %v8831 = vpop.f32.mrf.mxu0
      %v8832 = vadd.f32 %v8519, %v8831
      %v8833 = vpop.f32.mrf.mxu0
      %v8834 = vadd.f32 %v8521, %v8833
      %v8835 = vpop.f32.mrf.mxu0
      %v8836 = vadd.f32 %v8523, %v8835
      %8837 = vmatprep.mubr.bf16.mxu0 %v6196
      %8838 = vmatmul.mubr.bf16.gmra.mxu0 %v6195
      %v8839 = vpop.f32.mrf.mxu0
      %v8840 = vadd.f32 %v8527, %v8839
      %v8841 = vpop.f32.mrf.mxu0
      %v8842 = vadd.f32 %v8529, %v8841
      %v8843 = vpop.f32.mrf.mxu0
      %v8844 = vadd.f32 %v8531, %v8843
      %v8845 = vpop.f32.mrf.mxu0
      %v8846 = vadd.f32 %v8533, %v8845
      %8847 = vmatprep.mubr.bf16.mxu0 %v6198
      %8848 = vmatmul.mubr.bf16.gmra.mxu0 %v6197
      %v8849 = vpop.f32.mrf.mxu0
      %v8850 = vadd.f32 %v8537, %v8849
      %v8851 = vpop.f32.mrf.mxu0
      %v8852 = vadd.f32 %v8539, %v8851
      %v8853 = vpop.f32.mrf.mxu0
      %v8854 = vadd.f32 %v8541, %v8853
      %v8855 = vpop.f32.mrf.mxu0
      %v8856 = vadd.f32 %v8543, %v8855
      %8857 = vmatprep.mubr.bf16.mxu0 %v6200
      %8858 = vmatmul.mubr.bf16.gmra.mxu0 %v6199
      %v8859 = vpop.f32.mrf.mxu0
      %v8860 = vadd.f32 %v8547, %v8859
      %v8861 = vpop.f32.mrf.mxu0
      %v8862 = vadd.f32 %v8549, %v8861
      %v8863 = vpop.f32.mrf.mxu0
      %v8864 = vadd.f32 %v8551, %v8863
      %v8865 = vpop.f32.mrf.mxu0
      %v8866 = vadd.f32 %v8553, %v8865
      %8867 = vmatprep.mubr.bf16.mxu0 %v6202
      %8868 = vmatmul.mubr.bf16.gmra.mxu0 %v6201
      %v8869 = vpop.f32.mrf.mxu0
      %v8870 = vadd.f32 %v8557, %v8869
      %v8871 = vpop.f32.mrf.mxu0
      %v8872 = vadd.f32 %v8559, %v8871
      %v8873 = vpop.f32.mrf.mxu0
      %v8874 = vadd.f32 %v8561, %v8873
      %v8875 = vpop.f32.mrf.mxu0
      %v8876 = vadd.f32 %v8563, %v8875
      %8877 = vmatprep.mubr.bf16.mxu0 %v6204
      %8878 = vmatmul.mubr.bf16.gmra.mxu0 %v6203
      %v8879 = vpop.f32.mrf.mxu0
      %v8880 = vadd.f32 %v8567, %v8879
      %v8881 = vpop.f32.mrf.mxu0
      %v8882 = vadd.f32 %v8569, %v8881
      %v8883 = vpop.f32.mrf.mxu0
      %v8884 = vadd.f32 %v8571, %v8883
      %v8885 = vpop.f32.mrf.mxu0
      %v8886 = vadd.f32 %v8573, %v8885
      %8887 = vmatprep.mubr.bf16.mxu0 %v6206
      %8888 = vmatmul.mubr.bf16.gmra.mxu0 %v6205
      %v8889 = vpop.f32.mrf.mxu0
      %v8890 = vadd.f32 %v8577, %v8889
      %v8891 = vpop.f32.mrf.mxu0
      %v8892 = vadd.f32 %v8579, %v8891
      %v8893 = vpop.f32.mrf.mxu0
      %v8894 = vadd.f32 %v8581, %v8893
      %v8895 = vpop.f32.mrf.mxu0
      %v8896 = vadd.f32 %v8583, %v8895
      %8897 = vmatprep.mubr.bf16.mxu0 %v6208
      %8898 = vmatmul.mubr.bf16.gmra.mxu0 %v6207
      %v8899 = vpop.f32.mrf.mxu0
      %v8900 = vadd.f32 %v8587, %v8899
      %v8901 = vpop.f32.mrf.mxu0
      %v8902 = vadd.f32 %v8589, %v8901
      %v8903 = vpop.f32.mrf.mxu0
      %v8904 = vadd.f32 %v8591, %v8903
      %v8905 = vpop.f32.mrf.mxu0
      %v8906 = vadd.f32 %v8593, %v8905
      %8907 = vmatprep.mubr.bf16.mxu0 %v6210
      %8908 = vmatmul.mubr.bf16.gmra.mxu0 %v6209
      %v8909 = vpop.f32.mrf.mxu0
      %v8910 = vadd.f32 %v8597, %v8909
      %v8911 = vpop.f32.mrf.mxu0
      %v8912 = vadd.f32 %v8599, %v8911
      %v8913 = vpop.f32.mrf.mxu0
      %v8914 = vadd.f32 %v8601, %v8913
      %v8915 = vpop.f32.mrf.mxu0
      %v8916 = vadd.f32 %v8603, %v8915
      %8917 = vmatprep.mubr.bf16.mxu0 %v6212
      %8918 = vmatmul.mubr.bf16.gmra.mxu0 %v6211
      %v8919 = vpop.f32.mrf.mxu0
      %v8920 = vadd.f32 %v8607, %v8919
      %v8921 = vpop.f32.mrf.mxu0
      %v8922 = vadd.f32 %v8609, %v8921
      %v8923 = vpop.f32.mrf.mxu0
      %v8924 = vadd.f32 %v8611, %v8923
      %v8925 = vpop.f32.mrf.mxu0
      %v8926 = vadd.f32 %v8613, %v8925
      %8927 = vmatprep.mubr.bf16.mxu0 %v6214
      %8928 = vmatmul.mubr.bf16.gmra.mxu0 %v6213
      %v8929 = vpop.f32.mrf.mxu0
      %v8930 = vadd.f32 %v8617, %v8929
      %v8931 = vpop.f32.mrf.mxu0
      %v8932 = vadd.f32 %v8619, %v8931
      %v8933 = vpop.f32.mrf.mxu0
      %v8934 = vadd.f32 %v8621, %v8933
      %v8935 = vpop.f32.mrf.mxu0
      %v8936 = vadd.f32 %v8623, %v8935
      %8937 = vmatprep.mubr.bf16.mxu0 %v6216
      %8938 = vmatmul.mubr.bf16.gmra.mxu0 %v6215
      %v8939 = vpop.f32.mrf.mxu0
      %v8940 = vadd.f32 %v8627, %v8939
      %v8941 = vpop.f32.mrf.mxu0
      %v8942 = vadd.f32 %v8629, %v8941
      %v8943 = vpop.f32.mrf.mxu0
      %v8944 = vadd.f32 %v8631, %v8943
      %v8945 = vpop.f32.mrf.mxu0
      %v8946 = vadd.f32 %v8633, %v8945
      %8947 = vmatprep.mubr.bf16.mxu0 %v6218
      %8948 = vmatmul.mubr.bf16.gmra.mxu0 %v6217
      %v8949 = vpop.f32.mrf.mxu0
      %v8950 = vadd.f32 %v8637, %v8949
      %v8951 = vpop.f32.mrf.mxu0
      %v8952 = vadd.f32 %v8639, %v8951
      %v8953 = vpop.f32.mrf.mxu0
      %v8954 = vadd.f32 %v8641, %v8953
      %v8955 = vpop.f32.mrf.mxu0
      %v8956 = vadd.f32 %v8643, %v8955
      %8957 = vdwg.mxu0
      %8958 = vmatprep.subr.bf16.mxu0 %v7168
      %8959 = vmatpush1.bf16.msra.mxu0 %v7167
      %8960 = vmatprep.subr.bf16.mxu0 %v7164
      %8961 = vmatpush1.bf16.msra.mxu0 %v7163
      %8962 = vmatprep.subr.bf16.mxu0 %v7160
      %8963 = vmatpush1.bf16.msra.mxu0 %v7159
      %8964 = vmatprep.subr.bf16.mxu0 %v7156
      %8965 = vmatpush1.bf16.msra.mxu0 %v7155
      %8966 = vmatprep.subr.bf16.mxu0 %v7152
      %8967 = vmatpush1.bf16.msra.mxu0 %v7151
      %8968 = vmatprep.subr.bf16.mxu0 %v7148
      %8969 = vmatpush1.bf16.msra.mxu0 %v7147
      %8970 = vmatprep.subr.bf16.mxu0 %v7144
      %8971 = vmatpush1.bf16.msra.mxu0 %v7143
      %8972 = vmatprep.subr.bf16.mxu0 %v7140
      %8973 = vmatpush1.bf16.msra.mxu0 %v7139
      %8974 = vmatprep.subr.bf16.mxu0 %v7200
      %8975 = vmatpush2.bf16.msra.mxu0 %v7199
      %8976 = vmatprep.subr.bf16.mxu0 %v7196
      %8977 = vmatpush2.bf16.msra.mxu0 %v7195
      %8978 = vmatprep.subr.bf16.mxu0 %v7192
      %8979 = vmatpush2.bf16.msra.mxu0 %v7191
      %8980 = vmatprep.subr.bf16.mxu0 %v7188
      %8981 = vmatpush2.bf16.msra.mxu0 %v7187
      %8982 = vmatprep.subr.bf16.mxu0 %v7184
      %8983 = vmatpush2.bf16.msra.mxu0 %v7183
      %8984 = vmatprep.subr.bf16.mxu0 %v7180
      %8985 = vmatpush2.bf16.msra.mxu0 %v7179
      %8986 = vmatprep.subr.bf16.mxu0 %v7176
      %8987 = vmatpush2.bf16.msra.mxu0 %v7175
      %8988 = vmatprep.subr.bf16.mxu0 %v7172
      %8989 = vmatpush2.bf16.msra.mxu0 %v7171
      %8990 = vmatprep.mubr.bf16.mxu0 %v6168
      %8991 = vmatmul.mubr.bf16.gmra.mxu0 %v6167
      %v8992 = vpop.f32.mrf.mxu0
      %v8993 = vadd.f32 %v8680, %v8992
      %v8994 = vpop.f32.mrf.mxu0
      %v8995 = vadd.f32 %v8682, %v8994
      %v8996 = vpop.f32.mrf.mxu0
      %v8997 = vadd.f32 %v8684, %v8996
      %v8998 = vpop.f32.mrf.mxu0
      %v8999 = vadd.f32 %v8686, %v8998
      %9000 = vmatprep.mubr.bf16.mxu0 %v6170
      %9001 = vmatmul.mubr.bf16.gmra.mxu0 %v6169
      %v9002 = vpop.f32.mrf.mxu0
      %v9003 = vadd.f32 %v8690, %v9002
      %v9004 = vpop.f32.mrf.mxu0
      %v9005 = vadd.f32 %v8692, %v9004
      %v9006 = vpop.f32.mrf.mxu0
      %v9007 = vadd.f32 %v8694, %v9006
      %v9008 = vpop.f32.mrf.mxu0
      %v9009 = vadd.f32 %v8696, %v9008
      %9010 = vmatprep.mubr.bf16.mxu0 %v6172
      %9011 = vmatmul.mubr.bf16.gmra.mxu0 %v6171
      %v9012 = vpop.f32.mrf.mxu0
      %v9013 = vadd.f32 %v8700, %v9012
      %v9014 = vpop.f32.mrf.mxu0
      %v9015 = vadd.f32 %v8702, %v9014
      %v9016 = vpop.f32.mrf.mxu0
      %v9017 = vadd.f32 %v8704, %v9016
      %v9018 = vpop.f32.mrf.mxu0
      %v9019 = vadd.f32 %v8706, %v9018
      %9020 = vmatprep.mubr.bf16.mxu0 %v6174
      %9021 = vmatmul.mubr.bf16.gmra.mxu0 %v6173
      %v9022 = vpop.f32.mrf.mxu0
      %v9023 = vadd.f32 %v8710, %v9022
      %v9024 = vpop.f32.mrf.mxu0
      %v9025 = vadd.f32 %v8712, %v9024
      %v9026 = vpop.f32.mrf.mxu0
      %v9027 = vadd.f32 %v8714, %v9026
      %v9028 = vpop.f32.mrf.mxu0
      %v9029 = vadd.f32 %v8716, %v9028
      %9030 = vmatprep.mubr.bf16.mxu0 %v6176
      %9031 = vmatmul.mubr.bf16.gmra.mxu0 %v6175
      %v9032 = vpop.f32.mrf.mxu0
      %v9033 = vadd.f32 %v8720, %v9032
      %v9034 = vpop.f32.mrf.mxu0
      %v9035 = vadd.f32 %v8722, %v9034
      %v9036 = vpop.f32.mrf.mxu0
      %v9037 = vadd.f32 %v8724, %v9036
      %v9038 = vpop.f32.mrf.mxu0
      %v9039 = vadd.f32 %v8726, %v9038
      %9040 = vmatprep.mubr.bf16.mxu0 %v6178
      %9041 = vmatmul.mubr.bf16.gmra.mxu0 %v6177
      %v9042 = vpop.f32.mrf.mxu0
      %v9043 = vadd.f32 %v8730, %v9042
      %v9044 = vpop.f32.mrf.mxu0
      %v9045 = vadd.f32 %v8732, %v9044
      %v9046 = vpop.f32.mrf.mxu0
      %v9047 = vadd.f32 %v8734, %v9046
      %v9048 = vpop.f32.mrf.mxu0
      %v9049 = vadd.f32 %v8736, %v9048
      %9050 = vmatprep.mubr.bf16.mxu0 %v6180
      %9051 = vmatmul.mubr.bf16.gmra.mxu0 %v6179
      %v9052 = vpop.f32.mrf.mxu0
      %v9053 = vadd.f32 %v8740, %v9052
      %v9054 = vpop.f32.mrf.mxu0
      %v9055 = vadd.f32 %v8742, %v9054
      %v9056 = vpop.f32.mrf.mxu0
      %v9057 = vadd.f32 %v8744, %v9056
      %v9058 = vpop.f32.mrf.mxu0
      %v9059 = vadd.f32 %v8746, %v9058
      %9060 = vmatprep.mubr.bf16.mxu0 %v6182
      %9061 = vmatmul.mubr.bf16.gmra.mxu0 %v6181
      %v9062 = vpop.f32.mrf.mxu0
      %v9063 = vadd.f32 %v8750, %v9062
      %v9064 = vpop.f32.mrf.mxu0
      %v9065 = vadd.f32 %v8752, %v9064
      %v9066 = vpop.f32.mrf.mxu0
      %v9067 = vadd.f32 %v8754, %v9066
      %v9068 = vpop.f32.mrf.mxu0
      %v9069 = vadd.f32 %v8756, %v9068
      %9070 = vmatprep.mubr.bf16.mxu0 %v6184
      %9071 = vmatmul.mubr.bf16.gmra.mxu0 %v6183
      %v9072 = vpop.f32.mrf.mxu0
      %v9073 = vadd.f32 %v8760, %v9072
      %v9074 = vpop.f32.mrf.mxu0
      %v9075 = vadd.f32 %v8762, %v9074
      %v9076 = vpop.f32.mrf.mxu0
      %v9077 = vadd.f32 %v8764, %v9076
      %v9078 = vpop.f32.mrf.mxu0
      %v9079 = vadd.f32 %v8766, %v9078
      %9080 = vmatprep.mubr.bf16.mxu0 %v6186
      %9081 = vmatmul.mubr.bf16.gmra.mxu0 %v6185
      %v9082 = vpop.f32.mrf.mxu0
      %v9083 = vadd.f32 %v8770, %v9082
      %v9084 = vpop.f32.mrf.mxu0
      %v9085 = vadd.f32 %v8772, %v9084
      %v9086 = vpop.f32.mrf.mxu0
      %v9087 = vadd.f32 %v8774, %v9086
      %v9088 = vpop.f32.mrf.mxu0
      %v9089 = vadd.f32 %v8776, %v9088
      %9090 = vmatprep.mubr.bf16.mxu0 %v6188
      %9091 = vmatmul.mubr.bf16.gmra.mxu0 %v6187
      %v9092 = vpop.f32.mrf.mxu0
      %v9093 = vadd.f32 %v8780, %v9092
      %v9094 = vpop.f32.mrf.mxu0
      %v9095 = vadd.f32 %v8782, %v9094
      %v9096 = vpop.f32.mrf.mxu0
      %v9097 = vadd.f32 %v8784, %v9096
      %v9098 = vpop.f32.mrf.mxu0
      %v9099 = vadd.f32 %v8786, %v9098
      %9100 = vmatprep.mubr.bf16.mxu0 %v6190
      %9101 = vmatmul.mubr.bf16.gmra.mxu0 %v6189
      %v9102 = vpop.f32.mrf.mxu0
      %v9103 = vadd.f32 %v8790, %v9102
      %v9104 = vpop.f32.mrf.mxu0
      %v9105 = vadd.f32 %v8792, %v9104
      %v9106 = vpop.f32.mrf.mxu0
      %v9107 = vadd.f32 %v8794, %v9106
      %v9108 = vpop.f32.mrf.mxu0
      %v9109 = vadd.f32 %v8796, %v9108
      %9110 = vmatprep.mubr.bf16.mxu0 %v6192
      %9111 = vmatmul.mubr.bf16.gmra.mxu0 %v6191
      %v9112 = vpop.f32.mrf.mxu0
      %v9113 = vadd.f32 %v8800, %v9112
      %v9114 = vpop.f32.mrf.mxu0
      %v9115 = vadd.f32 %v8802, %v9114
      %v9116 = vpop.f32.mrf.mxu0
      %v9117 = vadd.f32 %v8804, %v9116
      %v9118 = vpop.f32.mrf.mxu0
      %v9119 = vadd.f32 %v8806, %v9118
      %9120 = vmatprep.mubr.bf16.mxu0 %v6194
      %9121 = vmatmul.mubr.bf16.gmra.mxu0 %v6193
      %v9122 = vpop.f32.mrf.mxu0
      %v9123 = vadd.f32 %v8810, %v9122
      %v9124 = vpop.f32.mrf.mxu0
      %v9125 = vadd.f32 %v8812, %v9124
      %v9126 = vpop.f32.mrf.mxu0
      %v9127 = vadd.f32 %v8814, %v9126
      %v9128 = vpop.f32.mrf.mxu0
      %v9129 = vadd.f32 %v8816, %v9128
      %9130 = vmatprep.mubr.bf16.mxu0 %v6196
      %9131 = vmatmul.mubr.bf16.gmra.mxu0 %v6195
      %v9132 = vpop.f32.mrf.mxu0
      %v9133 = vadd.f32 %v8820, %v9132
      %v9134 = vpop.f32.mrf.mxu0
      %v9135 = vadd.f32 %v8822, %v9134
      %v9136 = vpop.f32.mrf.mxu0
      %v9137 = vadd.f32 %v8824, %v9136
      %v9138 = vpop.f32.mrf.mxu0
      %v9139 = vadd.f32 %v8826, %v9138
      %9140 = vmatprep.mubr.bf16.mxu0 %v6198
      %9141 = vmatmul.mubr.bf16.gmra.mxu0 %v6197
      %v9142 = vpop.f32.mrf.mxu0
      %v9143 = vadd.f32 %v8830, %v9142
      %v9144 = vpop.f32.mrf.mxu0
      %v9145 = vadd.f32 %v8832, %v9144
      %v9146 = vpop.f32.mrf.mxu0
      %v9147 = vadd.f32 %v8834, %v9146
      %v9148 = vpop.f32.mrf.mxu0
      %v9149 = vadd.f32 %v8836, %v9148
      %9150 = vmatprep.mubr.bf16.mxu0 %v6200
      %9151 = vmatmul.mubr.bf16.gmra.mxu0 %v6199
      %v9152 = vpop.f32.mrf.mxu0
      %v9153 = vadd.f32 %v8840, %v9152
      %v9154 = vpop.f32.mrf.mxu0
      %v9155 = vadd.f32 %v8842, %v9154
      %v9156 = vpop.f32.mrf.mxu0
      %v9157 = vadd.f32 %v8844, %v9156
      %v9158 = vpop.f32.mrf.mxu0
      %v9159 = vadd.f32 %v8846, %v9158
      %9160 = vmatprep.mubr.bf16.mxu0 %v6202
      %9161 = vmatmul.mubr.bf16.gmra.mxu0 %v6201
      %v9162 = vpop.f32.mrf.mxu0
      %v9163 = vadd.f32 %v8850, %v9162
      %v9164 = vpop.f32.mrf.mxu0
      %v9165 = vadd.f32 %v8852, %v9164
      %v9166 = vpop.f32.mrf.mxu0
      %v9167 = vadd.f32 %v8854, %v9166
      %v9168 = vpop.f32.mrf.mxu0
      %v9169 = vadd.f32 %v8856, %v9168
      %9170 = vmatprep.mubr.bf16.mxu0 %v6204
      %9171 = vmatmul.mubr.bf16.gmra.mxu0 %v6203
      %v9172 = vpop.f32.mrf.mxu0
      %v9173 = vadd.f32 %v8860, %v9172
      %v9174 = vpop.f32.mrf.mxu0
      %v9175 = vadd.f32 %v8862, %v9174
      %v9176 = vpop.f32.mrf.mxu0
      %v9177 = vadd.f32 %v8864, %v9176
      %v9178 = vpop.f32.mrf.mxu0
      %v9179 = vadd.f32 %v8866, %v9178
      %9180 = vmatprep.mubr.bf16.mxu0 %v6206
      %9181 = vmatmul.mubr.bf16.gmra.mxu0 %v6205
      %v9182 = vpop.f32.mrf.mxu0
      %v9183 = vadd.f32 %v8870, %v9182
      %v9184 = vpop.f32.mrf.mxu0
      %v9185 = vadd.f32 %v8872, %v9184
      %v9186 = vpop.f32.mrf.mxu0
      %v9187 = vadd.f32 %v8874, %v9186
      %v9188 = vpop.f32.mrf.mxu0
      %v9189 = vadd.f32 %v8876, %v9188
      %9190 = vmatprep.mubr.bf16.mxu0 %v6208
      %9191 = vmatmul.mubr.bf16.gmra.mxu0 %v6207
      %v9192 = vpop.f32.mrf.mxu0
      %v9193 = vadd.f32 %v8880, %v9192
      %v9194 = vpop.f32.mrf.mxu0
      %v9195 = vadd.f32 %v8882, %v9194
      %v9196 = vpop.f32.mrf.mxu0
      %v9197 = vadd.f32 %v8884, %v9196
      %v9198 = vpop.f32.mrf.mxu0
      %v9199 = vadd.f32 %v8886, %v9198
      %9200 = vmatprep.mubr.bf16.mxu0 %v6210
      %9201 = vmatmul.mubr.bf16.gmra.mxu0 %v6209
      %v9202 = vpop.f32.mrf.mxu0
      %v9203 = vadd.f32 %v8890, %v9202
      %v9204 = vpop.f32.mrf.mxu0
      %v9205 = vadd.f32 %v8892, %v9204
      %v9206 = vpop.f32.mrf.mxu0
      %v9207 = vadd.f32 %v8894, %v9206
      %v9208 = vpop.f32.mrf.mxu0
      %v9209 = vadd.f32 %v8896, %v9208
      %9210 = vmatprep.mubr.bf16.mxu0 %v6212
      %9211 = vmatmul.mubr.bf16.gmra.mxu0 %v6211
      %v9212 = vpop.f32.mrf.mxu0
      %v9213 = vadd.f32 %v8900, %v9212
      %v9214 = vpop.f32.mrf.mxu0
      %v9215 = vadd.f32 %v8902, %v9214
      %v9216 = vpop.f32.mrf.mxu0
      %v9217 = vadd.f32 %v8904, %v9216
      %v9218 = vpop.f32.mrf.mxu0
      %v9219 = vadd.f32 %v8906, %v9218
      %9220 = vmatprep.mubr.bf16.mxu0 %v6214
      %9221 = vmatmul.mubr.bf16.gmra.mxu0 %v6213
      %v9222 = vpop.f32.mrf.mxu0
      %v9223 = vadd.f32 %v8910, %v9222
      %v9224 = vpop.f32.mrf.mxu0
      %v9225 = vadd.f32 %v8912, %v9224
      %v9226 = vpop.f32.mrf.mxu0
      %v9227 = vadd.f32 %v8914, %v9226
      %v9228 = vpop.f32.mrf.mxu0
      %v9229 = vadd.f32 %v8916, %v9228
      %9230 = vmatprep.mubr.bf16.mxu0 %v6216
      %9231 = vmatmul.mubr.bf16.gmra.mxu0 %v6215
      %v9232 = vpop.f32.mrf.mxu0
      %v9233 = vadd.f32 %v8920, %v9232
      %v9234 = vpop.f32.mrf.mxu0
      %v9235 = vadd.f32 %v8922, %v9234
      %v9236 = vpop.f32.mrf.mxu0
      %v9237 = vadd.f32 %v8924, %v9236
      %v9238 = vpop.f32.mrf.mxu0
      %v9239 = vadd.f32 %v8926, %v9238
      %9240 = vmatprep.mubr.bf16.mxu0 %v6218
      %9241 = vmatmul.mubr.bf16.gmra.mxu0 %v6217
      %v9242 = vpop.f32.mrf.mxu0
      %v9243 = vadd.f32 %v8930, %v9242
      %v9244 = vpop.f32.mrf.mxu0
      %v9245 = vadd.f32 %v8932, %v9244
      %v9246 = vpop.f32.mrf.mxu0
      %v9247 = vadd.f32 %v8934, %v9246
      %v9248 = vpop.f32.mrf.mxu0
      %v9249 = vadd.f32 %v8936, %v9248
      %9250 = vmatprep.mubr.bf16.mxu0 %v503
      %9251 = vmatmul.mubr.bf16.gmra.mxu0 %v503
      %v9252 = vpop.f32.mrf.mxu0
      %v9253 = vadd.f32 %v8940, %v9252
      %v9254 = vpop.f32.mrf.mxu0
      %v9255 = vadd.f32 %v8942, %v9254
      %v9256 = vpop.f32.mrf.mxu0
      %v9257 = vadd.f32 %v8944, %v9256
      %v9258 = vpop.f32.mrf.mxu0
      %v9259 = vadd.f32 %v8946, %v9258
      %9260 = vmatprep.mubr.bf16.mxu0 %v503
      %9261 = vmatmul.mubr.bf16.gmra.mxu0 %v503
      %v9262 = vpop.f32.mrf.mxu0
      %v9263 = vadd.f32 %v8950, %v9262
      %v9264 = vpop.f32.mrf.mxu0
      %v9265 = vadd.f32 %v8952, %v9264
      %v9266 = vpop.f32.mrf.mxu0
      %v9267 = vadd.f32 %v8954, %v9266
      %v9268 = vpop.f32.mrf.mxu0
      %v9269 = vadd.f32 %v8956, %v9268
      %9270 = vdwg.mxu0
      %v9271 = vmax.f32 %v8054, 0.0
      %v9272 = vmax.f32 %v8056, 0.0
      %v9273 = vmax.f32 %v8993, 0.0
      %v9274 = vmax.f32 %v8995, 0.0
      %v9275 = vmax.f32 %v8058, 0.0
      %v9276 = vmax.f32 %v8060, 0.0
      %v9277 = vmax.f32 %v8997, 0.0
      %v9278 = vmax.f32 %v8999, 0.0
      %v9279 = vmax.f32 %v8064, 0.0
      %v9280 = vmax.f32 %v8066, 0.0
      %v9281 = vmax.f32 %v9003, 0.0
      %v9282 = vmax.f32 %v9005, 0.0
      %v9283 = vmax.f32 %v8068, 0.0
      %v9284 = vmax.f32 %v8070, 0.0
      %v9285 = vmax.f32 %v9007, 0.0
      %v9286 = vmax.f32 %v9009, 0.0
      %v9287 = vmax.f32 %v8074, 0.0
      %v9288 = vmax.f32 %v8076, 0.0
      %v9289 = vmax.f32 %v9013, 0.0
      %v9290 = vmax.f32 %v9015, 0.0
      %v9291 = vmax.f32 %v8078, 0.0
      %v9292 = vmax.f32 %v8080, 0.0
      %v9293 = vmax.f32 %v9017, 0.0
      %v9294 = vmax.f32 %v9019, 0.0
      %v9295 = vmax.f32 %v8084, 0.0
      %v9296 = vmax.f32 %v8086, 0.0
      %v9297 = vmax.f32 %v9023, 0.0
      %v9298 = vmax.f32 %v9025, 0.0
      %v9299 = vmax.f32 %v8088, 0.0
      %v9300 = vmax.f32 %v8090, 0.0
      %v9301 = vmax.f32 %v9027, 0.0
      %v9302 = vmax.f32 %v9029, 0.0
      %v9303 = vmax.f32 %v8094, 0.0
      %v9304 = vmax.f32 %v8096, 0.0
      %v9305 = vmax.f32 %v9033, 0.0
      %v9306 = vmax.f32 %v9035, 0.0
      %v9307 = vmax.f32 %v8098, 0.0
      %v9308 = vmax.f32 %v8100, 0.0
      %v9309 = vmax.f32 %v9037, 0.0
      %v9310 = vmax.f32 %v9039, 0.0
      %v9311 = vmax.f32 %v8104, 0.0
      %v9312 = vmax.f32 %v8106, 0.0
      %v9313 = vmax.f32 %v9043, 0.0
      %v9314 = vmax.f32 %v9045, 0.0
      %v9315 = vmax.f32 %v8108, 0.0
      %v9316 = vmax.f32 %v8110, 0.0
      %v9317 = vmax.f32 %v9047, 0.0
      %v9318 = vmax.f32 %v9049, 0.0
      %v9319 = vmax.f32 %v8114, 0.0
      %v9320 = vmax.f32 %v8116, 0.0
      %v9321 = vmax.f32 %v9053, 0.0
      %v9322 = vmax.f32 %v9055, 0.0
      %v9323 = vmax.f32 %v8118, 0.0
      %v9324 = vmax.f32 %v8120, 0.0
      %v9325 = vmax.f32 %v9057, 0.0
      %v9326 = vmax.f32 %v9059, 0.0
      %v9327 = vmax.f32 %v8124, 0.0
      %v9328 = vmax.f32 %v8126, 0.0
      %v9329 = vmax.f32 %v9063, 0.0
      %v9330 = vmax.f32 %v9065, 0.0
      %v9331 = vmax.f32 %v8128, 0.0
      %v9332 = vmax.f32 %v8130, 0.0
      %v9333 = vmax.f32 %v9067, 0.0
      %v9334 = vmax.f32 %v9069, 0.0
      %v9335 = vmax.f32 %v8134, 0.0
      %v9336 = vmax.f32 %v8136, 0.0
      %v9337 = vmax.f32 %v9073, 0.0
      %v9338 = vmax.f32 %v9075, 0.0
      %v9339 = vmax.f32 %v8138, 0.0
      %v9340 = vmax.f32 %v8140, 0.0
      %v9341 = vmax.f32 %v9077, 0.0
      %v9342 = vmax.f32 %v9079, 0.0
      %v9343 = vmax.f32 %v8144, 0.0
      %v9344 = vmax.f32 %v8146, 0.0
      %v9345 = vmax.f32 %v9083, 0.0
      %v9346 = vmax.f32 %v9085, 0.0
      %v9347 = vmax.f32 %v8148, 0.0
      %v9348 = vmax.f32 %v8150, 0.0
      %v9349 = vmax.f32 %v9087, 0.0
      %v9350 = vmax.f32 %v9089, 0.0
      %v9351 = vmax.f32 %v8154, 0.0
      %v9352 = vmax.f32 %v8156, 0.0
      %v9353 = vmax.f32 %v9093, 0.0
      %v9354 = vmax.f32 %v9095, 0.0
      %v9355 = vmax.f32 %v8158, 0.0
      %v9356 = vmax.f32 %v8160, 0.0
      %v9357 = vmax.f32 %v9097, 0.0
      %v9358 = vmax.f32 %v9099, 0.0
      %v9359 = vmax.f32 %v8164, 0.0
      %v9360 = vmax.f32 %v8166, 0.0
      %v9361 = vmax.f32 %v9103, 0.0
      %v9362 = vmax.f32 %v9105, 0.0
      %v9363 = vmax.f32 %v8168, 0.0
      %v9364 = vmax.f32 %v8170, 0.0
      %v9365 = vmax.f32 %v9107, 0.0
      %v9366 = vmax.f32 %v9109, 0.0
      %v9367 = vmax.f32 %v8174, 0.0
      %v9368 = vmax.f32 %v8176, 0.0
      %v9369 = vmax.f32 %v9113, 0.0
      %v9370 = vmax.f32 %v9115, 0.0
      %v9371 = vmax.f32 %v8178, 0.0
      %v9372 = vmax.f32 %v8180, 0.0
      %v9373 = vmax.f32 %v9117, 0.0
      %v9374 = vmax.f32 %v9119, 0.0
      %v9375 = vmax.f32 %v8184, 0.0
      %v9376 = vmax.f32 %v8186, 0.0
      %v9377 = vmax.f32 %v9123, 0.0
      %v9378 = vmax.f32 %v9125, 0.0
      %v9379 = vmax.f32 %v8188, 0.0
      %v9380 = vmax.f32 %v8190, 0.0
      %v9381 = vmax.f32 %v9127, 0.0
      %v9382 = vmax.f32 %v9129, 0.0
      %v9383 = vmax.f32 %v8194, 0.0
      %v9384 = vmax.f32 %v8196, 0.0
      %v9385 = vmax.f32 %v9133, 0.0
      %v9386 = vmax.f32 %v9135, 0.0
      %v9387 = vmax.f32 %v8198, 0.0
      %v9388 = vmax.f32 %v8200, 0.0
      %v9389 = vmax.f32 %v9137, 0.0
      %v9390 = vmax.f32 %v9139, 0.0
      %v9391 = vmax.f32 %v8204, 0.0
      %v9392 = vmax.f32 %v8206, 0.0
      %v9393 = vmax.f32 %v9143, 0.0
      %v9394 = vmax.f32 %v9145, 0.0
      %v9395 = vmax.f32 %v8208, 0.0
      %v9396 = vmax.f32 %v8210, 0.0
      %v9397 = vmax.f32 %v9147, 0.0
      %v9398 = vmax.f32 %v9149, 0.0
      %v9399 = vmax.f32 %v8214, 0.0
      %v9400 = vmax.f32 %v8216, 0.0
      %v9401 = vmax.f32 %v9153, 0.0
      %v9402 = vmax.f32 %v9155, 0.0
      %v9403 = vmax.f32 %v8218, 0.0
      %v9404 = vmax.f32 %v8220, 0.0
      %v9405 = vmax.f32 %v9157, 0.0
      %v9406 = vmax.f32 %v9159, 0.0
      %v9407 = vmax.f32 %v8224, 0.0
      %v9408 = vmax.f32 %v8226, 0.0
      %v9409 = vmax.f32 %v9163, 0.0
      %v9410 = vmax.f32 %v9165, 0.0
      %v9411 = vmax.f32 %v8228, 0.0
      %v9412 = vmax.f32 %v8230, 0.0
      %v9413 = vmax.f32 %v9167, 0.0
      %v9414 = vmax.f32 %v9169, 0.0
      %v9415 = vmax.f32 %v8234, 0.0
      %v9416 = vmax.f32 %v8236, 0.0
      %v9417 = vmax.f32 %v9173, 0.0
      %v9418 = vmax.f32 %v9175, 0.0
      %v9419 = vmax.f32 %v8238, 0.0
      %v9420 = vmax.f32 %v8240, 0.0
      %v9421 = vmax.f32 %v9177, 0.0
      %v9422 = vmax.f32 %v9179, 0.0
      %v9423 = vmax.f32 %v8244, 0.0
      %v9424 = vmax.f32 %v8246, 0.0
      %v9425 = vmax.f32 %v9183, 0.0
      %v9426 = vmax.f32 %v9185, 0.0
      %v9427 = vmax.f32 %v8248, 0.0
      %v9428 = vmax.f32 %v8250, 0.0
      %v9429 = vmax.f32 %v9187, 0.0
      %v9430 = vmax.f32 %v9189, 0.0
      %v9431 = vmax.f32 %v8254, 0.0
      %v9432 = vmax.f32 %v8256, 0.0
      %v9433 = vmax.f32 %v9193, 0.0
      %v9434 = vmax.f32 %v9195, 0.0
      %v9435 = vmax.f32 %v8258, 0.0
      %v9436 = vmax.f32 %v8260, 0.0
      %v9437 = vmax.f32 %v9197, 0.0
      %v9438 = vmax.f32 %v9199, 0.0
      %v9439 = vmax.f32 %v8264, 0.0
      %v9440 = vmax.f32 %v8266, 0.0
      %v9441 = vmax.f32 %v9203, 0.0
      %v9442 = vmax.f32 %v9205, 0.0
      %v9443 = vmax.f32 %v8268, 0.0
      %v9444 = vmax.f32 %v8270, 0.0
      %v9445 = vmax.f32 %v9207, 0.0
      %v9446 = vmax.f32 %v9209, 0.0
      %v9447 = vmax.f32 %v8274, 0.0
      %v9448 = vmax.f32 %v8276, 0.0
      %v9449 = vmax.f32 %v9213, 0.0
      %v9450 = vmax.f32 %v9215, 0.0
      %v9451 = vmax.f32 %v8278, 0.0
      %v9452 = vmax.f32 %v8280, 0.0
      %v9453 = vmax.f32 %v9217, 0.0
      %v9454 = vmax.f32 %v9219, 0.0
      %v9455 = vmax.f32 %v8284, 0.0
      %v9456 = vmax.f32 %v8286, 0.0
      %v9457 = vmax.f32 %v9223, 0.0
      %v9458 = vmax.f32 %v9225, 0.0
      %v9459 = vmax.f32 %v8288, 0.0
      %v9460 = vmax.f32 %v8290, 0.0
      %v9461 = vmax.f32 %v9227, 0.0
      %v9462 = vmax.f32 %v9229, 0.0
      %v9463 = vmax.f32 %v8294, 0.0
      %v9464 = vmax.f32 %v8296, 0.0
      %v9465 = vmax.f32 %v9233, 0.0
      %v9466 = vmax.f32 %v9235, 0.0
      %v9467 = vmax.f32 %v8298, 0.0
      %v9468 = vmax.f32 %v8300, 0.0
      %v9469 = vmax.f32 %v9237, 0.0
      %v9470 = vmax.f32 %v9239, 0.0
      %v9471 = vmax.f32 %v8304, 0.0
      %v9472 = vmax.f32 %v8306, 0.0
      %v9473 = vmax.f32 %v9243, 0.0
      %v9474 = vmax.f32 %v9245, 0.0
      %v9475 = vmax.f32 %v8308, 0.0
      %v9476 = vmax.f32 %v8310, 0.0
      %v9477 = vmax.f32 %v9247, 0.0
      %v9478 = vmax.f32 %v9249, 0.0
      %v9479 = vmax.f32 %v8314, 0.0
      %v9480 = vmax.f32 %v8316, 0.0
      %v9481 = vmax.f32 %v9253, 0.0
      %v9482 = vmax.f32 %v9255, 0.0
      %v9483 = vmax.f32 %v8318, 0.0
      %v9484 = vmax.f32 %v8320, 0.0
      %v9485 = vmax.f32 %v9257, 0.0
      %v9486 = vmax.f32 %v9259, 0.0
      %v9487 = vmax.f32 %v8324, 0.0
      %v9488 = vmax.f32 %v8326, 0.0
      %v9489 = vmax.f32 %v9263, 0.0
      %v9490 = vmax.f32 %v9265, 0.0
      %v9491 = vmax.f32 %v8328, 0.0
      %v9492 = vmax.f32 %v8330, 0.0
      %v9493 = vmax.f32 %v9267, 0.0
      %v9494 = vmax.f32 %v9269, 0.0
      %v9495 = vmax.f32 %v9271, %v9273
      %v9496 = vmax.f32 %v9272, %v9274
      %v9497 = vmax.f32 %v9275, %v9277
      %v9498 = vmax.f32 %v9276, %v9278
      %v9499 = vmax.f32 %v9279, %v9281
      %v9500 = vmax.f32 %v9280, %v9282
      %v9501 = vmax.f32 %v9283, %v9285
      %v9502 = vmax.f32 %v9284, %v9286
      %v9503 = vmax.f32 %v9287, %v9289
      %v9504 = vmax.f32 %v9288, %v9290
      %v9505 = vmax.f32 %v9291, %v9293
      %v9506 = vmax.f32 %v9292, %v9294
      %v9507 = vmax.f32 %v9295, %v9297
      %v9508 = vmax.f32 %v9296, %v9298
      %v9509 = vmax.f32 %v9299, %v9301
      %v9510 = vmax.f32 %v9300, %v9302
      %v9511 = vmax.f32 %v9303, %v9305
      %v9512 = vmax.f32 %v9304, %v9306
      %v9513 = vmax.f32 %v9307, %v9309
      %v9514 = vmax.f32 %v9308, %v9310
      %v9515 = vmax.f32 %v9311, %v9313
      %v9516 = vmax.f32 %v9312, %v9314
      %v9517 = vmax.f32 %v9315, %v9317
      %v9518 = vmax.f32 %v9316, %v9318
      %v9519 = vmax.f32 %v9319, %v9321
      %v9520 = vmax.f32 %v9320, %v9322
      %v9521 = vmax.f32 %v9323, %v9325
      %v9522 = vmax.f32 %v9324, %v9326
      %v9523 = vmax.f32 %v9327, %v9329
      %v9524 = vmax.f32 %v9328, %v9330
      %v9525 = vmax.f32 %v9331, %v9333
      %v9526 = vmax.f32 %v9332, %v9334
      %v9527 = vmax.f32 %v9335, %v9337
      %v9528 = vmax.f32 %v9336, %v9338
      %v9529 = vmax.f32 %v9339, %v9341
      %v9530 = vmax.f32 %v9340, %v9342
      %v9531 = vmax.f32 %v9343, %v9345
      %v9532 = vmax.f32 %v9344, %v9346
      %v9533 = vmax.f32 %v9347, %v9349
      %v9534 = vmax.f32 %v9348, %v9350
      %v9535 = vmax.f32 %v9351, %v9353
      %v9536 = vmax.f32 %v9352, %v9354
      %v9537 = vmax.f32 %v9355, %v9357
      %v9538 = vmax.f32 %v9356, %v9358
      %v9539 = vmax.f32 %v9359, %v9361
      %v9540 = vmax.f32 %v9360, %v9362
      %v9541 = vmax.f32 %v9363, %v9365
      %v9542 = vmax.f32 %v9364, %v9366
      %v9543 = vmax.f32 %v9367, %v9369
      %v9544 = vmax.f32 %v9368, %v9370
      %v9545 = vmax.f32 %v9371, %v9373
      %v9546 = vmax.f32 %v9372, %v9374
      %v9547 = vmax.f32 %v9375, %v9377
      %v9548 = vmax.f32 %v9376, %v9378
      %v9549 = vmax.f32 %v9379, %v9381
      %v9550 = vmax.f32 %v9380, %v9382
      %v9551 = vmax.f32 %v9383, %v9385
      %v9552 = vmax.f32 %v9384, %v9386
      %v9553 = vmax.f32 %v9387, %v9389
      %v9554 = vmax.f32 %v9388, %v9390
      %v9555 = vmax.f32 %v9391, %v9393
      %v9556 = vmax.f32 %v9392, %v9394
      %v9557 = vmax.f32 %v9395, %v9397
      %v9558 = vmax.f32 %v9396, %v9398
      %v9559 = vmax.f32 %v9399, %v9401
      %v9560 = vmax.f32 %v9400, %v9402
      %v9561 = vmax.f32 %v9403, %v9405
      %v9562 = vmax.f32 %v9404, %v9406
      %v9563 = vmax.f32 %v9407, %v9409
      %v9564 = vmax.f32 %v9408, %v9410
      %v9565 = vmax.f32 %v9411, %v9413
      %v9566 = vmax.f32 %v9412, %v9414
      %v9567 = vmax.f32 %v9415, %v9417
      %v9568 = vmax.f32 %v9416, %v9418
      %v9569 = vmax.f32 %v9419, %v9421
      %v9570 = vmax.f32 %v9420, %v9422
      %v9571 = vmax.f32 %v9423, %v9425
      %v9572 = vmax.f32 %v9424, %v9426
      %v9573 = vmax.f32 %v9427, %v9429
      %v9574 = vmax.f32 %v9428, %v9430
      %v9575 = vmax.f32 %v9431, %v9433
      %v9576 = vmax.f32 %v9432, %v9434
      %v9577 = vmax.f32 %v9435, %v9437
      %v9578 = vmax.f32 %v9436, %v9438
      %v9579 = vmax.f32 %v9439, %v9441
      %v9580 = vmax.f32 %v9440, %v9442
      %v9581 = vmax.f32 %v9443, %v9445
      %v9582 = vmax.f32 %v9444, %v9446
      %v9583 = vmax.f32 %v9447, %v9449
      %v9584 = vmax.f32 %v9448, %v9450
      %v9585 = vmax.f32 %v9451, %v9453
      %v9586 = vmax.f32 %v9452, %v9454
      %v9587 = vmax.f32 %v9455, %v9457
      %v9588 = vmax.f32 %v9456, %v9458
      %v9589 = vmax.f32 %v9459, %v9461
      %v9590 = vmax.f32 %v9460, %v9462
      %v9591 = vmax.f32 %v9463, %v9465
      %v9592 = vmax.f32 %v9464, %v9466
      %v9593 = vmax.f32 %v9467, %v9469
      %v9594 = vmax.f32 %v9468, %v9470
      %v9595 = vmax.f32 %v9471, %v9473
      %v9596 = vmax.f32 %v9472, %v9474
      %v9597 = vmax.f32 %v9475, %v9477
      %v9598 = vmax.f32 %v9476, %v9478
      %v9599 = vmax.f32 %v9479, %v9481
      %v9600 = vmax.f32 %v9480, %v9482
      %v9601 = vmax.f32 %v9483, %v9485
      %v9602 = vmax.f32 %v9484, %v9486
      %v9603 = vmax.f32 %v9487, %v9489
      %v9604 = vmax.f32 %v9488, %v9490
      %v9605 = vmax.f32 %v9491, %v9493
      %v9606 = vmax.f32 %v9492, %v9494
      %v9607 = vmax.f32 %v9495, %v9503
      %v9608 = vmax.f32 %v9496, %v9504
      %v9609 = vmax.f32 %v9497, %v9505
      %v9610 = vmax.f32 %v9498, %v9506
      %v9611 = vmax.f32 %v9499, %v9507
      %v9612 = vmax.f32 %v9500, %v9508
      %v9613 = vmax.f32 %v9501, %v9509
      %v9614 = vmax.f32 %v9502, %v9510
      %v9615 = vmax.f32 %v9511, %v9519
      %v9616 = vmax.f32 %v9512, %v9520
      %v9617 = vmax.f32 %v9513, %v9521
      %v9618 = vmax.f32 %v9514, %v9522
      %v9619 = vmax.f32 %v9515, %v9523
      %v9620 = vmax.f32 %v9516, %v9524
      %v9621 = vmax.f32 %v9517, %v9525
      %v9622 = vmax.f32 %v9518, %v9526
      %v9623 = vmax.f32 %v9527, %v9535
      %v9624 = vmax.f32 %v9528, %v9536
      %v9625 = vmax.f32 %v9529, %v9537
      %v9626 = vmax.f32 %v9530, %v9538
      %v9627 = vmax.f32 %v9531, %v9539
      %v9628 = vmax.f32 %v9532, %v9540
      %v9629 = vmax.f32 %v9533, %v9541
      %v9630 = vmax.f32 %v9534, %v9542
      %v9631 = vmax.f32 %v9543, %v9551
      %v9632 = vmax.f32 %v9544, %v9552
      %v9633 = vmax.f32 %v9545, %v9553
      %v9634 = vmax.f32 %v9546, %v9554
      %v9635 = vmax.f32 %v9547, %v9555
      %v9636 = vmax.f32 %v9548, %v9556
      %v9637 = vmax.f32 %v9549, %v9557
      %v9638 = vmax.f32 %v9550, %v9558
      %v9639 = vmax.f32 %v9559, %v9567
      %v9640 = vmax.f32 %v9560, %v9568
      %v9641 = vmax.f32 %v9561, %v9569
      %v9642 = vmax.f32 %v9562, %v9570
      %v9643 = vmax.f32 %v9563, %v9571
      %v9644 = vmax.f32 %v9564, %v9572
      %v9645 = vmax.f32 %v9565, %v9573
      %v9646 = vmax.f32 %v9566, %v9574
      %v9647 = vmax.f32 %v9575, %v9583
      %v9648 = vmax.f32 %v9576, %v9584
      %v9649 = vmax.f32 %v9577, %v9585
      %v9650 = vmax.f32 %v9578, %v9586
      %v9651 = vmax.f32 %v9579, %v9587
      %v9652 = vmax.f32 %v9580, %v9588
      %v9653 = vmax.f32 %v9581, %v9589
      %v9654 = vmax.f32 %v9582, %v9590
      %v9655 = vmax.f32 %v9591, %v9599
      %v9656 = vmax.f32 %v9592, %v9600
      %v9657 = vmax.f32 %v9593, %v9601
      %v9658 = vmax.f32 %v9594, %v9602
      %v9659 = vmax.f32 %v9595, %v9603
      %v9660 = vmax.f32 %v9596, %v9604
      %v9661 = vmax.f32 %v9597, %v9605
      %v9662 = vmax.f32 %v9598, %v9606
      %v9663 = vld [vmem:[%s5] sm:$0xf]
      %v9664 = vld [vmem:[%s5 + $0x4] sm:$0xf]
      %v9665 = vld [vmem:[%s5 + $0x8] sm:$0xf]
      %v9666 = vld [vmem:[%s5 + $0xc] sm:$0xf]
      %v9667 = vld [vmem:[%s5 + $0x10] sm:$0xf]
      %v9668 = vld [vmem:[%s5 + $0x14] sm:$0xf]
      %v9669 = vld [vmem:[%s5 + $0x18] sm:$0xf]
      %v9670 = vld [vmem:[%s5 + $0x1c] sm:$0xf]
      %v9671 = vld [vmem:[%s5 + $0x20] sm:$0xf]
      %v9672 = vld [vmem:[%s5 + $0x24] sm:$0xf]
      %v9673 = vld [vmem:[%s5 + $0x28] sm:$0xf]
      %v9674 = vld [vmem:[%s5 + $0x2c] sm:$0xf]
      %v9675 = vld [vmem:[%s5 + $0x30] sm:$0xf]
      %v9676 = vld [vmem:[%s5 + $0x34] sm:$0xf]
      %v9677 = vld [vmem:[%s5 + $0x38] sm:$0xf]
      %v9678 = vld [vmem:[%s5 + $0x3c] sm:$0xf]
      %v9679 = vld [vmem:[%s5 + $0x40] sm:$0xf]
      %v9680 = vld [vmem:[%s5 + $0x44] sm:$0xf]
      %v9681 = vld [vmem:[%s5 + $0x48] sm:$0xf]
      %v9682 = vld [vmem:[%s5 + $0x4c] sm:$0xf]
      %v9683 = vld [vmem:[%s5 + $0x50] sm:$0xf]
      %v9684 = vld [vmem:[%s5 + $0x54] sm:$0xf]
      %v9685 = vld [vmem:[%s5 + $0x58] sm:$0xf]
      %v9686 = vld [vmem:[%s5 + $0x5c] sm:$0xf]
      %v9687 = vld [vmem:[%s5 + $0x60] sm:$0xf]
      %v9688 = vld [vmem:[%s5 + $0x64] sm:$0xf]
      %v9689 = vld [vmem:[%s5 + $0x68] sm:$0xf]
      %v9690 = vld [vmem:[%s5 + $0x6c] sm:$0xf]
      %v9691 = vld [vmem:[%s5 + $0x70] sm:$0xf]
      %v9692 = vld [vmem:[%s5 + $0x74] sm:$0xf]
      %v9693 = vld [vmem:[%s5 + $0x78] sm:$0xf]
      %v9694 = vld [vmem:[%s5 + $0x7c] sm:$0xf]
      %v9695 = vld [vmem:[%s5 + $0x80] sm:$0xf]
      %v9696 = vld [vmem:[%s5 + $0x84] sm:$0xf]
      %v9697 = vld [vmem:[%s5 + $0x88] sm:$0xf]
      %v9698 = vld [vmem:[%s5 + $0x8c] sm:$0xf]
      %v9699 = vld [vmem:[%s5 + $0x90] sm:$0xf]
      %v9700 = vld [vmem:[%s5 + $0x94] sm:$0xf]
      %v9701 = vld [vmem:[%s5 + $0x98] sm:$0xf]
      %v9702 = vld [vmem:[%s5 + $0x9c] sm:$0xf]
      %v9703 = vld [vmem:[%s5 + $0xa0] sm:$0xf]
      %v9704 = vld [vmem:[%s5 + $0xa4] sm:$0xf]
      %v9705 = vld [vmem:[%s5 + $0xa8] sm:$0xf]
      %v9706 = vld [vmem:[%s5 + $0xac] sm:$0xf]
      %v9707 = vld [vmem:[%s5 + $0xb0] sm:$0xf]
      %v9708 = vld [vmem:[%s5 + $0xb4] sm:$0xf]
      %v9709 = vld [vmem:[%s5 + $0xb8] sm:$0xf]
      %v9710 = vld [vmem:[%s5 + $0xbc] sm:$0xf]
      %v9711 = vld [vmem:[%s5 + $0xc0] sm:$0xf]
      %v9712 = vld [vmem:[%s5 + $0xc4] sm:$0xf]
      %v9713 = vld [vmem:[%s5 + $0xc8] sm:$0xf]
      %v9714 = vld [vmem:[%s5 + $0xcc] sm:$0xf]
      %v9715 = vld [vmem:[%s5 + $0xd0] sm:$0xf]
      %v9716 = vld [vmem:[%s5 + $0xd4] sm:$0xf]
      %v9717 = vld [vmem:[%s5 + $0xd8] sm:$0xf]
      %v9718 = vld [vmem:[%s5 + $0xdc] sm:$0xf]
      %v9719 = vld [vmem:[%s5 + $0xe0] sm:$0xf]
      %v9720 = vld [vmem:[%s5 + $0xe4] sm:$0xf]
      %v9721 = vld [vmem:[%s5 + $0xe8] sm:$0xf]
      %v9722 = vld [vmem:[%s5 + $0xec] sm:$0xf]
      %v9723 = vld [vmem:[%s5 + $0xf0] sm:$0xf]
      %v9724 = vld [vmem:[%s5 + $0xf4] sm:$0xf]
      %v9725 = vld [vmem:[%s5 + $0xf8] sm:$0xf]
      %v9726 = vld [vmem:[%s5 + $0xfc] sm:$0xf]
      %v9727 = vld [vmem:[%s5 + $0x100] sm:$0xf]
      %v9728 = vld [vmem:[%s5 + $0x104] sm:$0xf]
      %v9729 = vld [vmem:[%s5 + $0x108] sm:$0xf]
      %v9730 = vld [vmem:[%s5 + $0x10c] sm:$0xf]
      %v9731 = vld [vmem:[%s5 + $0x110] sm:$0xf]
      %v9732 = vld [vmem:[%s5 + $0x114] sm:$0xf]
      %v9733 = vld [vmem:[%s5 + $0x118] sm:$0xf]
      %v9734 = vld [vmem:[%s5 + $0x11c] sm:$0xf]
      %v9735 = vld [vmem:[%s5 + $0x120] sm:$0xf]
      %v9736 = vld [vmem:[%s5 + $0x124] sm:$0xf]
      %v9737 = vld [vmem:[%s5 + $0x128] sm:$0xf]
      %v9738 = vld [vmem:[%s5 + $0x12c] sm:$0xf]
      %v9739 = vld [vmem:[%s5 + $0x130] sm:$0xf]
      %v9740 = vld [vmem:[%s5 + $0x134] sm:$0xf]
      %v9741 = vld [vmem:[%s5 + $0x138] sm:$0xf]
      %v9742 = vld [vmem:[%s5 + $0x13c] sm:$0xf]
      %v9743 = vld [vmem:[%s5 + $0x140] sm:$0xf]
      %v9744 = vld [vmem:[%s5 + $0x144] sm:$0xf]
      %v9745 = vld [vmem:[%s5 + $0x148] sm:$0xf]
      %v9746 = vld [vmem:[%s5 + $0x14c] sm:$0xf]
      %v9747 = vld [vmem:[%s5 + $0x150] sm:$0xf]
      %v9748 = vld [vmem:[%s5 + $0x154] sm:$0xf]
      %v9749 = vld [vmem:[%s5 + $0x158] sm:$0xf]
      %v9750 = vld [vmem:[%s5 + $0x15c] sm:$0xf]
      %v9751 = vld [vmem:[%s5 + $0x160] sm:$0xf]
      %v9752 = vld [vmem:[%s5 + $0x164] sm:$0xf]
      %v9753 = vld [vmem:[%s5 + $0x168] sm:$0xf]
      %v9754 = vld [vmem:[%s5 + $0x16c] sm:$0xf]
      %v9755 = vld [vmem:[%s5 + $0x170] sm:$0xf]
      %v9756 = vld [vmem:[%s5 + $0x174] sm:$0xf]
      %v9757 = vld [vmem:[%s5 + $0x178] sm:$0xf]
      %v9758 = vld [vmem:[%s5 + $0x17c] sm:$0xf]
      %v9759 = vld [vmem:[%s5 + $0x180] sm:$0xf]
      %v9760 = vld [vmem:[%s5 + $0x184] sm:$0xf]
      %v9761 = vld [vmem:[%s5 + $0x188] sm:$0xf]
      %v9762 = vld [vmem:[%s5 + $0x18c] sm:$0xf]
      %v9763 = vld [vmem:[%s5 + $0x190] sm:$0xf]
      %v9764 = vld [vmem:[%s5 + $0x194] sm:$0xf]
      %v9765 = vld [vmem:[%s5 + $0x198] sm:$0xf]
      %v9766 = vld [vmem:[%s5 + $0x19c] sm:$0xf]
      %v9767 = vld [vmem:[%s5 + $0x1a0] sm:$0xf]
      %v9768 = vld [vmem:[%s5 + $0x1a4] sm:$0xf]
      %v9769 = vld [vmem:[%s5 + $0x1a8] sm:$0xf]
      %v9770 = vld [vmem:[%s5 + $0x1ac] sm:$0xf]
      %v9771 = vld [vmem:[%s5 + $0x1b0] sm:$0xf]
      %v9772 = vld [vmem:[%s5 + $0x1b4] sm:$0xf]
      %v9773 = vld [vmem:[%s5 + $0x1b8] sm:$0xf]
      %v9774 = vld [vmem:[%s5 + $0x1bc] sm:$0xf]
      %v9775 = vld [vmem:[%s5 + $0x1c0] sm:$0xf]
      %v9776 = vld [vmem:[%s5 + $0x1c4] sm:$0xf]
      %v9777 = vld [vmem:[%s5 + $0x1c8] sm:$0xf]
      %v9778 = vld [vmem:[%s5 + $0x1cc] sm:$0xf]
      %v9779 = vld [vmem:[%s5 + $0x1d0] sm:$0xf]
      %v9780 = vld [vmem:[%s5 + $0x1d4] sm:$0xf]
      %v9781 = vld [vmem:[%s5 + $0x1d8] sm:$0xf]
      %v9782 = vld [vmem:[%s5 + $0x1dc] sm:$0xf]
      %v9783 = vld [vmem:[%s5 + $0x1e0] sm:$0xf]
      %v9784 = vld [vmem:[%s5 + $0x1e4] sm:$0xf]
      %v9785 = vld [vmem:[%s5 + $0x1e8] sm:$0xf]
      %v9786 = vld [vmem:[%s5 + $0x1ec] sm:$0xf]
      %v9787 = vld [vmem:[%s5 + $0x1f0] sm:$0xf]
      %v9788 = vld [vmem:[%s5 + $0x1f4] sm:$0xf]
      %v9789 = vld [vmem:[%s5 + $0x1f8] sm:$0xf]
      %v9790 = vld [vmem:[%s5 + $0x1fc] sm:$0xf]
      %v9791 = vld [vmem:[%s5 + $0x200] sm:$0xf]
      %v9792 = vld [vmem:[%s5 + $0x204] sm:$0xf]
      %v9793 = vld [vmem:[%s5 + $0x208] sm:$0xf]
      %v9794 = vld [vmem:[%s5 + $0x20c] sm:$0xf]
      %v9795 = vld [vmem:[%s5 + $0x210] sm:$0xf]
      %v9796 = vld [vmem:[%s5 + $0x214] sm:$0xf]
      %v9797 = vld [vmem:[%s5 + $0x218] sm:$0xf]
      %v9798 = vld [vmem:[%s5 + $0x21c] sm:$0xf]
      %v9799 = vld [vmem:[%s5 + $0x220] sm:$0xf]
      %v9800 = vld [vmem:[%s5 + $0x224] sm:$0xf]
      %v9801 = vld [vmem:[%s5 + $0x228] sm:$0xf]
      %v9802 = vld [vmem:[%s5 + $0x22c] sm:$0xf]
      %v9803 = vld [vmem:[%s5 + $0x230] sm:$0xf]
      %v9804 = vld [vmem:[%s5 + $0x234] sm:$0xf]
      %v9805 = vld [vmem:[%s5 + $0x238] sm:$0xf]
      %v9806 = vld [vmem:[%s5 + $0x23c] sm:$0xf]
      %v9807 = vld [vmem:[%s5 + $0x240] sm:$0xf]
      %v9808 = vld [vmem:[%s5 + $0x244] sm:$0xf]
      %v9809 = vld [vmem:[%s5 + $0x248] sm:$0xf]
      %v9810 = vld [vmem:[%s5 + $0x24c] sm:$0xf]
      %v9811 = vld [vmem:[%s5 + $0x250] sm:$0xf]
      %v9812 = vld [vmem:[%s5 + $0x254] sm:$0xf]
      %v9813 = vld [vmem:[%s5 + $0x258] sm:$0xf]
      %v9814 = vld [vmem:[%s5 + $0x25c] sm:$0xf]
      %v9815 = vld [vmem:[%s5 + $0x260] sm:$0xf]
      %v9816 = vld [vmem:[%s5 + $0x264] sm:$0xf]
      %v9817 = vld [vmem:[%s5 + $0x268] sm:$0xf]
      %v9818 = vld [vmem:[%s5 + $0x26c] sm:$0xf]
      %v9819 = vld [vmem:[%s5 + $0x270] sm:$0xf]
      %v9820 = vld [vmem:[%s5 + $0x274] sm:$0xf]
      %v9821 = vld [vmem:[%s5 + $0x278] sm:$0xf]
      %v9822 = vld [vmem:[%s5 + $0x27c] sm:$0xf]
      %v9823 = vld [vmem:[%s5 + $0x280] sm:$0xf]
      %v9824 = vld [vmem:[%s5 + $0x284] sm:$0xf]
      %v9825 = vld [vmem:[%s5 + $0x288] sm:$0xf]
      %v9826 = vld [vmem:[%s5 + $0x28c] sm:$0xf]
      %v9827 = vld [vmem:[%s5 + $0x290] sm:$0xf]
      %v9828 = vld [vmem:[%s5 + $0x294] sm:$0xf]
      %v9829 = vld [vmem:[%s5 + $0x298] sm:$0xf]
      %v9830 = vld [vmem:[%s5 + $0x29c] sm:$0xf]
      %v9831 = vld [vmem:[%s5 + $0x2a0] sm:$0xf]
      %v9832 = vld [vmem:[%s5 + $0x2a4] sm:$0xf]
      %v9833 = vld [vmem:[%s5 + $0x2a8] sm:$0xf]
      %v9834 = vld [vmem:[%s5 + $0x2ac] sm:$0xf]
      %v9835 = vld [vmem:[%s5 + $0x2b0] sm:$0xf]
      %v9836 = vld [vmem:[%s5 + $0x2b4] sm:$0xf]
      %v9837 = vld [vmem:[%s5 + $0x2b8] sm:$0xf]
      %v9838 = vld [vmem:[%s5 + $0x2bc] sm:$0xf]
      %v9839 = vld [vmem:[%s5 + $0x2c0] sm:$0xf]
      %v9840 = vld [vmem:[%s5 + $0x2c4] sm:$0xf]
      %v9841 = vld [vmem:[%s5 + $0x2c8] sm:$0xf]
      %v9842 = vld [vmem:[%s5 + $0x2cc] sm:$0xf]
      %v9843 = vld [vmem:[%s5 + $0x2d0] sm:$0xf]
      %v9844 = vld [vmem:[%s5 + $0x2d4] sm:$0xf]
      %v9845 = vld [vmem:[%s5 + $0x2d8] sm:$0xf]
      %v9846 = vld [vmem:[%s5 + $0x2dc] sm:$0xf]
      %v9847 = vld [vmem:[%s5 + $0x2e0] sm:$0xf]
      %v9848 = vld [vmem:[%s5 + $0x2e4] sm:$0xf]
      %v9849 = vld [vmem:[%s5 + $0x2e8] sm:$0xf]
      %v9850 = vld [vmem:[%s5 + $0x2ec] sm:$0xf]
      %v9851 = vld [vmem:[%s5 + $0x2f0] sm:$0xf]
      %v9852 = vld [vmem:[%s5 + $0x2f4] sm:$0xf]
      %v9853 = vld [vmem:[%s5 + $0x2f8] sm:$0xf]
      %v9854 = vld [vmem:[%s5 + $0x2fc] sm:$0xf]
      %v9855 = vld [vmem:[%s5 + $0x300] sm:$0xf]
      %v9856 = vld [vmem:[%s5 + $0x304] sm:$0xf]
      %v9857 = vld [vmem:[%s5 + $0x308] sm:$0xf]
      %v9858 = vld [vmem:[%s5 + $0x30c] sm:$0xf]
      %v9859 = vld [vmem:[%s5 + $0x310] sm:$0xf]
      %v9860 = vld [vmem:[%s5 + $0x314] sm:$0xf]
      %v9861 = vld [vmem:[%s5 + $0x318] sm:$0xf]
      %v9862 = vld [vmem:[%s5 + $0x31c] sm:$0xf]
      %v9863 = vld [vmem:[%s5 + $0x320] sm:$0xf]
      %v9864 = vld [vmem:[%s5 + $0x324] sm:$0xf]
      %v9865 = vld [vmem:[%s5 + $0x328] sm:$0xf]
      %v9866 = vld [vmem:[%s5 + $0x32c] sm:$0xf]
      %v9867 = vld [vmem:[%s5 + $0x330] sm:$0xf]
      %v9868 = vld [vmem:[%s5 + $0x334] sm:$0xf]
      %v9869 = vld [vmem:[%s5 + $0x338] sm:$0xf]
      %v9870 = vld [vmem:[%s5 + $0x33c] sm:$0xf]
      %v9871 = vld [vmem:[%s5 + $0x340] sm:$0xf]
      %v9872 = vld [vmem:[%s5 + $0x344] sm:$0xf]
      %v9873 = vld [vmem:[%s5 + $0x348] sm:$0xf]
      %v9874 = vld [vmem:[%s5 + $0x34c] sm:$0xf]
      %v9875 = vld [vmem:[%s5 + $0x350] sm:$0xf]
      %v9876 = vld [vmem:[%s5 + $0x354] sm:$0xf]
      %v9877 = vld [vmem:[%s5 + $0x358] sm:$0xf]
      %v9878 = vld [vmem:[%s5 + $0x35c] sm:$0xf]
      %v9879 = vld [vmem:[%s5 + $0x360] sm:$0xf]
      %v9880 = vld [vmem:[%s5 + $0x364] sm:$0xf]
      %v9881 = vld [vmem:[%s5 + $0x368] sm:$0xf]
      %v9882 = vld [vmem:[%s5 + $0x36c] sm:$0xf]
      %v9883 = vld [vmem:[%s5 + $0x370] sm:$0xf]
      %v9884 = vld [vmem:[%s5 + $0x374] sm:$0xf]
      %v9885 = vld [vmem:[%s5 + $0x378] sm:$0xf]
      %v9886 = vld [vmem:[%s5 + $0x37c] sm:$0xf]
      %v9887 = vpack.c.bf16 %v9609, %v9607
      %v9888 = vpack.c.bf16 %v9610, %v9608
      %v9889 = vpack.c.bf16 %v9613, %v9611
      %v9890 = vpack.c.bf16 %v9614, %v9612
      %v9891 = vpack.c.bf16 %v9617, %v9615
      %v9892 = vpack.c.bf16 %v9618, %v9616
      %v9893 = vpack.c.bf16 %v9621, %v9619
      %v9894 = vpack.c.bf16 %v9622, %v9620
      %v9927 = vunpack.c.l.b16 %v9695
      %v9928 = vunpack.c.l.b16 %v9696
      %v9929 = vunpack.c.l.b16 %v9697
      %v9930 = vunpack.c.l.b16 %v9698
      %v9931 = vunpack.c.l.b16 %v9699
      %v9932 = vunpack.c.l.b16 %v9700
      %v9933 = vunpack.c.l.b16 %v9701
      %v9934 = vunpack.c.l.b16 %v9702
      %v9935 = vunpack.c.l.b16 %v9703
      %v9936 = vunpack.c.l.b16 %v9704
      %v9937 = vunpack.c.l.b16 %v9705
      %v9938 = vunpack.c.l.b16 %v9706
      %v9939 = vunpack.c.l.b16 %v9707
      %v9940 = vunpack.c.l.b16 %v9708
      %v9941 = vunpack.c.l.b16 %v9709
      %v9942 = vunpack.c.l.b16 %v9710
      %v9943 = vunpack.c.l.b16 %v9711
      %v9944 = vunpack.c.l.b16 %v9712
      %v9945 = vunpack.c.l.b16 %v9713
      %v9946 = vunpack.c.l.b16 %v9714
      %v9947 = vunpack.c.l.b16 %v9715
      %v9948 = vunpack.c.l.b16 %v9716
      %v9949 = vunpack.c.l.b16 %v9717
      %v9950 = vunpack.c.l.b16 %v9718
      %v9951 = vunpack.c.l.b16 %v9719
      %v9952 = vunpack.c.l.b16 %v9720
      %v9953 = vunpack.c.l.b16 %v9721
      %v9954 = vunpack.c.l.b16 %v9722
      %v9955 = vunpack.c.l.b16 %v9723
      %v9956 = vunpack.c.l.b16 %v9724
      %v9957 = vunpack.c.l.b16 %v9725
      %v9958 = vunpack.c.l.b16 %v9726
      %v9959 = vpack.c.b16 %v9928, %v9927
      %v9960 = vpack.c.b16 %v9930, %v9929
      %v9961 = vpack.c.b16 %v9932, %v9931
      %v9962 = vpack.c.b16 %v9934, %v9933
      %v9963 = vpack.c.b16 %v9936, %v9935
      %v9964 = vpack.c.b16 %v9938, %v9937
      %v9965 = vpack.c.b16 %v9940, %v9939
      %v9966 = vpack.c.b16 %v9942, %v9941
      %v9967 = vpack.c.b16 %v9944, %v9943
      %v9968 = vpack.c.b16 %v9946, %v9945
      %v9969 = vpack.c.b16 %v9948, %v9947
      %v9970 = vpack.c.b16 %v9950, %v9949
      %v9971 = vpack.c.b16 %v9952, %v9951
      %v9972 = vpack.c.b16 %v9954, %v9953
      %v9973 = vpack.c.b16 %v9956, %v9955
      %v9974 = vpack.c.b16 %v9958, %v9957
      %9991 = vmatprep.subr.bf16.mxu0 0
      %9992 = vmatpush1.bf16.msra.mxu0 %v9966
      %9993 = vmatprep.subr.bf16.mxu0 0
      %9994 = vmatpush1.bf16.msra.mxu0 %v9965
      %9995 = vmatprep.subr.bf16.mxu0 0
      %9996 = vmatpush1.bf16.msra.mxu0 %v9964
      %9997 = vmatprep.subr.bf16.mxu0 0
      %9998 = vmatpush1.bf16.msra.mxu0 %v9963
      %9999 = vmatprep.subr.bf16.mxu0 0
      %10000 = vmatpush1.bf16.msra.mxu0 %v9962
      %10001 = vmatprep.subr.bf16.mxu0 0
      %10002 = vmatpush1.bf16.msra.mxu0 %v9961
      %10003 = vmatprep.subr.bf16.mxu0 0
      %10004 = vmatpush1.bf16.msra.mxu0 %v9960
      %10005 = vmatprep.subr.bf16.mxu0 0
      %10006 = vmatpush1.bf16.msra.mxu0 %v9959
      %10007 = vmatprep.subr.bf16.mxu0 0
      %10008 = vmatpush2.bf16.msra.mxu0 %v9974
      %10009 = vmatprep.subr.bf16.mxu0 0
      %10010 = vmatpush2.bf16.msra.mxu0 %v9973
      %10011 = vmatprep.subr.bf16.mxu0 0
      %10012 = vmatpush2.bf16.msra.mxu0 %v9972
      %10013 = vmatprep.subr.bf16.mxu0 0
      %10014 = vmatpush2.bf16.msra.mxu0 %v9971
      %10015 = vmatprep.subr.bf16.mxu0 0
      %10016 = vmatpush2.bf16.msra.mxu0 %v9970
      %10017 = vmatprep.subr.bf16.mxu0 0
      %10018 = vmatpush2.bf16.msra.mxu0 %v9969
      %10019 = vmatprep.subr.bf16.mxu0 0
      %10020 = vmatpush2.bf16.msra.mxu0 %v9968
      %10021 = vmatprep.subr.bf16.mxu0 0
      %10022 = vmatpush2.bf16.msra.mxu0 %v9967
      %10023 = vmatprep.mubr.bf16.mxu0 %v9892
      %10024 = vmatmul.mubr.bf16.gmra.mxu0 %v9891
      %v10025 = vpop.f32.mrf.mxu0
      %v10026 = vadd.f32 0.0, %v10025
      %v10027 = vpop.f32.mrf.mxu0
      %v10028 = vpop.f32.mrf.mxu0
      %v10029 = vadd.f32 0.0, %v10028
      %v10030 = vpop.f32.mrf.mxu0
      %10031 = vmatprep.mubr.bf16.mxu0 %v9894
      %10032 = vmatmul.mubr.bf16.gmra.mxu0 %v9893
      %v10033 = vpop.f32.mrf.mxu0
      %v10034 = vadd.f32 0.0, %v10033
      %v10035 = vpop.f32.mrf.mxu0
      %v10036 = vpop.f32.mrf.mxu0
      %v10037 = vadd.f32 0.0, %v10036
      %v10038 = vpop.f32.mrf.mxu0
      %10039 = vdwg.mxu0
      %v10072 = vunpack.c.l.b16 %v9663
      %v10073 = vunpack.c.l.b16 %v9664
      %v10074 = vunpack.c.l.b16 %v9665
      %v10075 = vunpack.c.l.b16 %v9666
      %v10076 = vunpack.c.l.b16 %v9667
      %v10077 = vunpack.c.l.b16 %v9668
      %v10078 = vunpack.c.l.b16 %v9669
      %v10079 = vunpack.c.l.b16 %v9670
      %v10080 = vunpack.c.l.b16 %v9671
      %v10081 = vunpack.c.l.b16 %v9672
      %v10082 = vunpack.c.l.b16 %v9673
      %v10083 = vunpack.c.l.b16 %v9674
      %v10084 = vunpack.c.l.b16 %v9675
      %v10085 = vunpack.c.l.b16 %v9676
      %v10086 = vunpack.c.l.b16 %v9677
      %v10087 = vunpack.c.l.b16 %v9678
      %v10088 = vunpack.c.l.b16 %v9679
      %v10089 = vunpack.c.l.b16 %v9680
      %v10090 = vunpack.c.l.b16 %v9681
      %v10091 = vunpack.c.l.b16 %v9682
      %v10092 = vunpack.c.l.b16 %v9683
      %v10093 = vunpack.c.l.b16 %v9684
      %v10094 = vunpack.c.l.b16 %v9685
      %v10095 = vunpack.c.l.b16 %v9686
      %v10096 = vunpack.c.l.b16 %v9687
      %v10097 = vunpack.c.l.b16 %v9688
      %v10098 = vunpack.c.l.b16 %v9689
      %v10099 = vunpack.c.l.b16 %v9690
      %v10100 = vunpack.c.l.b16 %v9691
      %v10101 = vunpack.c.l.b16 %v9692
      %v10102 = vunpack.c.l.b16 %v9693
      %v10103 = vunpack.c.l.b16 %v9694
      %v10104 = vpack.c.b16 %v10073, %v10072
      %v10105 = vpack.c.b16 %v10075, %v10074
      %v10106 = vpack.c.b16 %v10077, %v10076
      %v10107 = vpack.c.b16 %v10079, %v10078
      %v10108 = vpack.c.b16 %v10081, %v10080
      %v10109 = vpack.c.b16 %v10083, %v10082
      %v10110 = vpack.c.b16 %v10085, %v10084
      %v10111 = vpack.c.b16 %v10087, %v10086
      %v10112 = vpack.c.b16 %v10089, %v10088
      %v10113 = vpack.c.b16 %v10091, %v10090
      %v10114 = vpack.c.b16 %v10093, %v10092
      %v10115 = vpack.c.b16 %v10095, %v10094
      %v10116 = vpack.c.b16 %v10097, %v10096
      %v10117 = vpack.c.b16 %v10099, %v10098
      %v10118 = vpack.c.b16 %v10101, %v10100
      %v10119 = vpack.c.b16 %v10103, %v10102
      %10136 = vmatprep.subr.bf16.mxu0 0
      %10137 = vmatpush1.bf16.msra.mxu0 %v10111
      %10138 = vmatprep.subr.bf16.mxu0 0
      %10139 = vmatpush1.bf16.msra.mxu0 %v10110
      %10140 = vmatprep.subr.bf16.mxu0 0
      %10141 = vmatpush1.bf16.msra.mxu0 %v10109
      %10142 = vmatprep.subr.bf16.mxu0 0
      %10143 = vmatpush1.bf16.msra.mxu0 %v10108
      %10144 = vmatprep.subr.bf16.mxu0 0
      %10145 = vmatpush1.bf16.msra.mxu0 %v10107
      %10146 = vmatprep.subr.bf16.mxu0 0
      %10147 = vmatpush1.bf16.msra.mxu0 %v10106
      %10148 = vmatprep.subr.bf16.mxu0 0
      %10149 = vmatpush1.bf16.msra.mxu0 %v10105
      %10150 = vmatprep.subr.bf16.mxu0 0
      %10151 = vmatpush1.bf16.msra.mxu0 %v10104
      %10152 = vmatprep.subr.bf16.mxu0 0
      %10153 = vmatpush2.bf16.msra.mxu0 %v10119
      %10154 = vmatprep.subr.bf16.mxu0 0
      %10155 = vmatpush2.bf16.msra.mxu0 %v10118
      %10156 = vmatprep.subr.bf16.mxu0 0
      %10157 = vmatpush2.bf16.msra.mxu0 %v10117
      %10158 = vmatprep.subr.bf16.mxu0 0
      %10159 = vmatpush2.bf16.msra.mxu0 %v10116
      %10160 = vmatprep.subr.bf16.mxu0 0
      %10161 = vmatpush2.bf16.msra.mxu0 %v10115
      %10162 = vmatprep.subr.bf16.mxu0 0
      %10163 = vmatpush2.bf16.msra.mxu0 %v10114
      %10164 = vmatprep.subr.bf16.mxu0 0
      %10165 = vmatpush2.bf16.msra.mxu0 %v10113
      %10166 = vmatprep.subr.bf16.mxu0 0
      %10167 = vmatpush2.bf16.msra.mxu0 %v10112
      %10168 = vmatprep.mubr.bf16.mxu0 %v9888
      %10169 = vmatmul.mubr.bf16.gmra.mxu0 %v9887
      %v10170 = vpop.f32.mrf.mxu0
      %v10171 = vadd.f32 %v10026, %v10170
      %v10172 = vpop.f32.mrf.mxu0
      %v10173 = vpop.f32.mrf.mxu0
      %v10174 = vadd.f32 %v10029, %v10173
      %v10175 = vpop.f32.mrf.mxu0
      %10176 = vmatprep.mubr.bf16.mxu0 %v9890
      %10177 = vmatmul.mubr.bf16.gmra.mxu0 %v9889
      %v10178 = vpop.f32.mrf.mxu0
      %v10179 = vadd.f32 %v10034, %v10178
      %v10180 = vpop.f32.mrf.mxu0
      %v10181 = vpop.f32.mrf.mxu0
      %v10182 = vadd.f32 %v10037, %v10181
      %v10183 = vpop.f32.mrf.mxu0
      %10184 = vdwg.mxu0
      %v10185 = vpack.c.bf16 %v9625, %v9623
      %v10186 = vpack.c.bf16 %v9626, %v9624
      %v10187 = vpack.c.bf16 %v9629, %v9627
      %v10188 = vpack.c.bf16 %v9630, %v9628
      %v10221 = vunpack.c.l.b16 %v9727
      %v10222 = vunpack.c.l.b16 %v9728
      %v10223 = vunpack.c.l.b16 %v9729
      %v10224 = vunpack.c.l.b16 %v9730
      %v10225 = vunpack.c.l.b16 %v9731
      %v10226 = vunpack.c.l.b16 %v9732
      %v10227 = vunpack.c.l.b16 %v9733
      %v10228 = vunpack.c.l.b16 %v9734
      %v10229 = vunpack.c.l.b16 %v9735
      %v10230 = vunpack.c.l.b16 %v9736
      %v10231 = vunpack.c.l.b16 %v9737
      %v10232 = vunpack.c.l.b16 %v9738
      %v10233 = vunpack.c.l.b16 %v9739
      %v10234 = vunpack.c.l.b16 %v9740
      %v10235 = vunpack.c.l.b16 %v9741
      %v10236 = vunpack.c.l.b16 %v9742
      %v10237 = vunpack.c.l.b16 %v9743
      %v10238 = vunpack.c.l.b16 %v9744
      %v10239 = vunpack.c.l.b16 %v9745
      %v10240 = vunpack.c.l.b16 %v9746
      %v10241 = vunpack.c.l.b16 %v9747
      %v10242 = vunpack.c.l.b16 %v9748
      %v10243 = vunpack.c.l.b16 %v9749
      %v10244 = vunpack.c.l.b16 %v9750
      %v10245 = vunpack.c.l.b16 %v9751
      %v10246 = vunpack.c.l.b16 %v9752
      %v10247 = vunpack.c.l.b16 %v9753
      %v10248 = vunpack.c.l.b16 %v9754
      %v10249 = vunpack.c.l.b16 %v9755
      %v10250 = vunpack.c.l.b16 %v9756
      %v10251 = vunpack.c.l.b16 %v9757
      %v10252 = vunpack.c.l.b16 %v9758
      %v10253 = vpack.c.b16 %v10222, %v10221
      %v10254 = vpack.c.b16 %v10224, %v10223
      %v10255 = vpack.c.b16 %v10226, %v10225
      %v10256 = vpack.c.b16 %v10228, %v10227
      %v10257 = vpack.c.b16 %v10230, %v10229
      %v10258 = vpack.c.b16 %v10232, %v10231
      %v10259 = vpack.c.b16 %v10234, %v10233
      %v10260 = vpack.c.b16 %v10236, %v10235
      %v10261 = vpack.c.b16 %v10238, %v10237
      %v10262 = vpack.c.b16 %v10240, %v10239
      %v10263 = vpack.c.b16 %v10242, %v10241
      %v10264 = vpack.c.b16 %v10244, %v10243
      %v10265 = vpack.c.b16 %v10246, %v10245
      %v10266 = vpack.c.b16 %v10248, %v10247
      %v10267 = vpack.c.b16 %v10250, %v10249
      %v10268 = vpack.c.b16 %v10252, %v10251
      %10285 = vmatprep.subr.bf16.mxu0 0
      %10286 = vmatpush1.bf16.msra.mxu0 %v10260
      %10287 = vmatprep.subr.bf16.mxu0 0
      %10288 = vmatpush1.bf16.msra.mxu0 %v10259
      %10289 = vmatprep.subr.bf16.mxu0 0
      %10290 = vmatpush1.bf16.msra.mxu0 %v10258
      %10291 = vmatprep.subr.bf16.mxu0 0
      %10292 = vmatpush1.bf16.msra.mxu0 %v10257
      %10293 = vmatprep.subr.bf16.mxu0 0
      %10294 = vmatpush1.bf16.msra.mxu0 %v10256
      %10295 = vmatprep.subr.bf16.mxu0 0
      %10296 = vmatpush1.bf16.msra.mxu0 %v10255
      %10297 = vmatprep.subr.bf16.mxu0 0
      %10298 = vmatpush1.bf16.msra.mxu0 %v10254
      %10299 = vmatprep.subr.bf16.mxu0 0
      %10300 = vmatpush1.bf16.msra.mxu0 %v10253
      %10301 = vmatprep.subr.bf16.mxu0 0
      %10302 = vmatpush2.bf16.msra.mxu0 %v10268
      %10303 = vmatprep.subr.bf16.mxu0 0
      %10304 = vmatpush2.bf16.msra.mxu0 %v10267
      %10305 = vmatprep.subr.bf16.mxu0 0
      %10306 = vmatpush2.bf16.msra.mxu0 %v10266
      %10307 = vmatprep.subr.bf16.mxu0 0
      %10308 = vmatpush2.bf16.msra.mxu0 %v10265
      %10309 = vmatprep.subr.bf16.mxu0 0
      %10310 = vmatpush2.bf16.msra.mxu0 %v10264
      %10311 = vmatprep.subr.bf16.mxu0 0
      %10312 = vmatpush2.bf16.msra.mxu0 %v10263
      %10313 = vmatprep.subr.bf16.mxu0 0
      %10314 = vmatpush2.bf16.msra.mxu0 %v10262
      %10315 = vmatprep.subr.bf16.mxu0 0
      %10316 = vmatpush2.bf16.msra.mxu0 %v10261
      %10317 = vmatprep.mubr.bf16.mxu0 %v10186
      %10318 = vmatmul.mubr.bf16.gmra.mxu0 %v10185
      %v10319 = vpop.f32.mrf.mxu0
      %v10320 = vadd.f32 0.0, %v10319
      %v10321 = vpop.f32.mrf.mxu0
      %v10322 = vpop.f32.mrf.mxu0
      %v10323 = vadd.f32 0.0, %v10322
      %v10324 = vpop.f32.mrf.mxu0
      %10325 = vmatprep.mubr.bf16.mxu0 %v10188
      %10326 = vmatmul.mubr.bf16.gmra.mxu0 %v10187
      %v10327 = vpop.f32.mrf.mxu0
      %v10328 = vadd.f32 0.0, %v10327
      %v10329 = vpop.f32.mrf.mxu0
      %v10330 = vpop.f32.mrf.mxu0
      %v10331 = vadd.f32 0.0, %v10330
      %v10332 = vpop.f32.mrf.mxu0
      %10333 = vdwg.mxu0
      %v10334 = vadd.f32 %v10171, %v10320
      %v10335 = vadd.f32 %v10174, %v10323
      %v10336 = vadd.f32 %v10179, %v10328
      %v10337 = vadd.f32 %v10182, %v10331
      %v10338 = vpack.c.bf16 %v9633, %v9631
      %v10339 = vpack.c.bf16 %v9634, %v9632
      %v10340 = vpack.c.bf16 %v9637, %v9635
      %v10341 = vpack.c.bf16 %v9638, %v9636
      %v10374 = vunpack.c.l.b16 %v9759
      %v10375 = vunpack.c.l.b16 %v9760
      %v10376 = vunpack.c.l.b16 %v9761
      %v10377 = vunpack.c.l.b16 %v9762
      %v10378 = vunpack.c.l.b16 %v9763
      %v10379 = vunpack.c.l.b16 %v9764
      %v10380 = vunpack.c.l.b16 %v9765
      %v10381 = vunpack.c.l.b16 %v9766
      %v10382 = vunpack.c.l.b16 %v9767
      %v10383 = vunpack.c.l.b16 %v9768
      %v10384 = vunpack.c.l.b16 %v9769
      %v10385 = vunpack.c.l.b16 %v9770
      %v10386 = vunpack.c.l.b16 %v9771
      %v10387 = vunpack.c.l.b16 %v9772
      %v10388 = vunpack.c.l.b16 %v9773
      %v10389 = vunpack.c.l.b16 %v9774
      %v10390 = vunpack.c.l.b16 %v9775
      %v10391 = vunpack.c.l.b16 %v9776
      %v10392 = vunpack.c.l.b16 %v9777
      %v10393 = vunpack.c.l.b16 %v9778
      %v10394 = vunpack.c.l.b16 %v9779
      %v10395 = vunpack.c.l.b16 %v9780
      %v10396 = vunpack.c.l.b16 %v9781
      %v10397 = vunpack.c.l.b16 %v9782
      %v10398 = vunpack.c.l.b16 %v9783
      %v10399 = vunpack.c.l.b16 %v9784
      %v10400 = vunpack.c.l.b16 %v9785
      %v10401 = vunpack.c.l.b16 %v9786
      %v10402 = vunpack.c.l.b16 %v9787
      %v10403 = vunpack.c.l.b16 %v9788
      %v10404 = vunpack.c.l.b16 %v9789
      %v10405 = vunpack.c.l.b16 %v9790
      %v10406 = vpack.c.b16 %v10375, %v10374
      %v10407 = vpack.c.b16 %v10377, %v10376
      %v10408 = vpack.c.b16 %v10379, %v10378
      %v10409 = vpack.c.b16 %v10381, %v10380
      %v10410 = vpack.c.b16 %v10383, %v10382
      %v10411 = vpack.c.b16 %v10385, %v10384
      %v10412 = vpack.c.b16 %v10387, %v10386
      %v10413 = vpack.c.b16 %v10389, %v10388
      %v10414 = vpack.c.b16 %v10391, %v10390
      %v10415 = vpack.c.b16 %v10393, %v10392
      %v10416 = vpack.c.b16 %v10395, %v10394
      %v10417 = vpack.c.b16 %v10397, %v10396
      %v10418 = vpack.c.b16 %v10399, %v10398
      %v10419 = vpack.c.b16 %v10401, %v10400
      %v10420 = vpack.c.b16 %v10403, %v10402
      %v10421 = vpack.c.b16 %v10405, %v10404
      %10438 = vmatprep.subr.bf16.mxu0 0
      %10439 = vmatpush1.bf16.msra.mxu0 %v10413
      %10440 = vmatprep.subr.bf16.mxu0 0
      %10441 = vmatpush1.bf16.msra.mxu0 %v10412
      %10442 = vmatprep.subr.bf16.mxu0 0
      %10443 = vmatpush1.bf16.msra.mxu0 %v10411
      %10444 = vmatprep.subr.bf16.mxu0 0
      %10445 = vmatpush1.bf16.msra.mxu0 %v10410
      %10446 = vmatprep.subr.bf16.mxu0 0
      %10447 = vmatpush1.bf16.msra.mxu0 %v10409
      %10448 = vmatprep.subr.bf16.mxu0 0
      %10449 = vmatpush1.bf16.msra.mxu0 %v10408
      %10450 = vmatprep.subr.bf16.mxu0 0
      %10451 = vmatpush1.bf16.msra.mxu0 %v10407
      %10452 = vmatprep.subr.bf16.mxu0 0
      %10453 = vmatpush1.bf16.msra.mxu0 %v10406
      %10454 = vmatprep.subr.bf16.mxu0 0
      %10455 = vmatpush2.bf16.msra.mxu0 %v10421
      %10456 = vmatprep.subr.bf16.mxu0 0
      %10457 = vmatpush2.bf16.msra.mxu0 %v10420
      %10458 = vmatprep.subr.bf16.mxu0 0
      %10459 = vmatpush2.bf16.msra.mxu0 %v10419
      %10460 = vmatprep.subr.bf16.mxu0 0
      %10461 = vmatpush2.bf16.msra.mxu0 %v10418
      %10462 = vmatprep.subr.bf16.mxu0 0
      %10463 = vmatpush2.bf16.msra.mxu0 %v10417
      %10464 = vmatprep.subr.bf16.mxu0 0
      %10465 = vmatpush2.bf16.msra.mxu0 %v10416
      %10466 = vmatprep.subr.bf16.mxu0 0
      %10467 = vmatpush2.bf16.msra.mxu0 %v10415
      %10468 = vmatprep.subr.bf16.mxu0 0
      %10469 = vmatpush2.bf16.msra.mxu0 %v10414
      %10470 = vmatprep.mubr.bf16.mxu0 %v10339
      %10471 = vmatmul.mubr.bf16.gmra.mxu0 %v10338
      %v10472 = vpop.f32.mrf.mxu0
      %v10473 = vadd.f32 0.0, %v10472
      %v10474 = vpop.f32.mrf.mxu0
      %v10475 = vpop.f32.mrf.mxu0
      %v10476 = vadd.f32 0.0, %v10475
      %v10477 = vpop.f32.mrf.mxu0
      %10478 = vmatprep.mubr.bf16.mxu0 %v10341
      %10479 = vmatmul.mubr.bf16.gmra.mxu0 %v10340
      %v10480 = vpop.f32.mrf.mxu0
      %v10481 = vadd.f32 0.0, %v10480
      %v10482 = vpop.f32.mrf.mxu0
      %v10483 = vpop.f32.mrf.mxu0
      %v10484 = vadd.f32 0.0, %v10483
      %v10485 = vpop.f32.mrf.mxu0
      %10486 = vdwg.mxu0
      %v10487 = vadd.f32 %v10334, %v10473
      %v10488 = vadd.f32 %v10335, %v10476
      %v10489 = vadd.f32 %v10336, %v10481
      %v10490 = vadd.f32 %v10337, %v10484
      %v10491 = vpack.c.bf16 %v9641, %v9639
      %v10492 = vpack.c.bf16 %v9642, %v9640
      %v10493 = vpack.c.bf16 %v9645, %v9643
      %v10494 = vpack.c.bf16 %v9646, %v9644
      %v10527 = vunpack.c.l.b16 %v9791
      %v10528 = vunpack.c.l.b16 %v9792
      %v10529 = vunpack.c.l.b16 %v9793
      %v10530 = vunpack.c.l.b16 %v9794
      %v10531 = vunpack.c.l.b16 %v9795
      %v10532 = vunpack.c.l.b16 %v9796
      %v10533 = vunpack.c.l.b16 %v9797
      %v10534 = vunpack.c.l.b16 %v9798
      %v10535 = vunpack.c.l.b16 %v9799
      %v10536 = vunpack.c.l.b16 %v9800
      %v10537 = vunpack.c.l.b16 %v9801
      %v10538 = vunpack.c.l.b16 %v9802
      %v10539 = vunpack.c.l.b16 %v9803
      %v10540 = vunpack.c.l.b16 %v9804
      %v10541 = vunpack.c.l.b16 %v9805
      %v10542 = vunpack.c.l.b16 %v9806
      %v10543 = vunpack.c.l.b16 %v9807
      %v10544 = vunpack.c.l.b16 %v9808
      %v10545 = vunpack.c.l.b16 %v9809
      %v10546 = vunpack.c.l.b16 %v9810
      %v10547 = vunpack.c.l.b16 %v9811
      %v10548 = vunpack.c.l.b16 %v9812
      %v10549 = vunpack.c.l.b16 %v9813
      %v10550 = vunpack.c.l.b16 %v9814
      %v10551 = vunpack.c.l.b16 %v9815
      %v10552 = vunpack.c.l.b16 %v9816
      %v10553 = vunpack.c.l.b16 %v9817
      %v10554 = vunpack.c.l.b16 %v9818
      %v10555 = vunpack.c.l.b16 %v9819
      %v10556 = vunpack.c.l.b16 %v9820
      %v10557 = vunpack.c.l.b16 %v9821
      %v10558 = vunpack.c.l.b16 %v9822
      %v10559 = vpack.c.b16 %v10528, %v10527
      %v10560 = vpack.c.b16 %v10530, %v10529
      %v10561 = vpack.c.b16 %v10532, %v10531
      %v10562 = vpack.c.b16 %v10534, %v10533
      %v10563 = vpack.c.b16 %v10536, %v10535
      %v10564 = vpack.c.b16 %v10538, %v10537
      %v10565 = vpack.c.b16 %v10540, %v10539
      %v10566 = vpack.c.b16 %v10542, %v10541
      %v10567 = vpack.c.b16 %v10544, %v10543
      %v10568 = vpack.c.b16 %v10546, %v10545
      %v10569 = vpack.c.b16 %v10548, %v10547
      %v10570 = vpack.c.b16 %v10550, %v10549
      %v10571 = vpack.c.b16 %v10552, %v10551
      %v10572 = vpack.c.b16 %v10554, %v10553
      %v10573 = vpack.c.b16 %v10556, %v10555
      %v10574 = vpack.c.b16 %v10558, %v10557
      %10591 = vmatprep.subr.bf16.mxu0 0
      %10592 = vmatpush1.bf16.msra.mxu0 %v10566
      %10593 = vmatprep.subr.bf16.mxu0 0
      %10594 = vmatpush1.bf16.msra.mxu0 %v10565
      %10595 = vmatprep.subr.bf16.mxu0 0
      %10596 = vmatpush1.bf16.msra.mxu0 %v10564
      %10597 = vmatprep.subr.bf16.mxu0 0
      %10598 = vmatpush1.bf16.msra.mxu0 %v10563
      %10599 = vmatprep.subr.bf16.mxu0 0
      %10600 = vmatpush1.bf16.msra.mxu0 %v10562
      %10601 = vmatprep.subr.bf16.mxu0 0
      %10602 = vmatpush1.bf16.msra.mxu0 %v10561
      %10603 = vmatprep.subr.bf16.mxu0 0
      %10604 = vmatpush1.bf16.msra.mxu0 %v10560
      %10605 = vmatprep.subr.bf16.mxu0 0
      %10606 = vmatpush1.bf16.msra.mxu0 %v10559
      %10607 = vmatprep.subr.bf16.mxu0 0
      %10608 = vmatpush2.bf16.msra.mxu0 %v10574
      %10609 = vmatprep.subr.bf16.mxu0 0
      %10610 = vmatpush2.bf16.msra.mxu0 %v10573
      %10611 = vmatprep.subr.bf16.mxu0 0
      %10612 = vmatpush2.bf16.msra.mxu0 %v10572
      %10613 = vmatprep.subr.bf16.mxu0 0
      %10614 = vmatpush2.bf16.msra.mxu0 %v10571
      %10615 = vmatprep.subr.bf16.mxu0 0
      %10616 = vmatpush2.bf16.msra.mxu0 %v10570
      %10617 = vmatprep.subr.bf16.mxu0 0
      %10618 = vmatpush2.bf16.msra.mxu0 %v10569
      %10619 = vmatprep.subr.bf16.mxu0 0
      %10620 = vmatpush2.bf16.msra.mxu0 %v10568
      %10621 = vmatprep.subr.bf16.mxu0 0
      %10622 = vmatpush2.bf16.msra.mxu0 %v10567
      %10623 = vmatprep.mubr.bf16.mxu0 %v10492
      %10624 = vmatmul.mubr.bf16.gmra.mxu0 %v10491
      %v10625 = vpop.f32.mrf.mxu0
      %v10626 = vadd.f32 0.0, %v10625
      %v10627 = vpop.f32.mrf.mxu0
      %v10628 = vpop.f32.mrf.mxu0
      %v10629 = vadd.f32 0.0, %v10628
      %v10630 = vpop.f32.mrf.mxu0
      %10631 = vmatprep.mubr.bf16.mxu0 %v10494
      %10632 = vmatmul.mubr.bf16.gmra.mxu0 %v10493
      %v10633 = vpop.f32.mrf.mxu0
      %v10634 = vadd.f32 0.0, %v10633
      %v10635 = vpop.f32.mrf.mxu0
      %v10636 = vpop.f32.mrf.mxu0
      %v10637 = vadd.f32 0.0, %v10636
      %v10638 = vpop.f32.mrf.mxu0
      %10639 = vdwg.mxu0
      %v10640 = vadd.f32 %v10487, %v10626
      %v10641 = vadd.f32 %v10488, %v10629
      %v10642 = vadd.f32 %v10489, %v10634
      %v10643 = vadd.f32 %v10490, %v10637
      %v10644 = vpack.c.bf16 %v9649, %v9647
      %v10645 = vpack.c.bf16 %v9650, %v9648
      %v10646 = vpack.c.bf16 %v9653, %v9651
      %v10647 = vpack.c.bf16 %v9654, %v9652
      %v10680 = vunpack.c.l.b16 %v9823
      %v10681 = vunpack.c.l.b16 %v9824
      %v10682 = vunpack.c.l.b16 %v9825
      %v10683 = vunpack.c.l.b16 %v9826
      %v10684 = vunpack.c.l.b16 %v9827
      %v10685 = vunpack.c.l.b16 %v9828
      %v10686 = vunpack.c.l.b16 %v9829
      %v10687 = vunpack.c.l.b16 %v9830
      %v10688 = vunpack.c.l.b16 %v9831
      %v10689 = vunpack.c.l.b16 %v9832
      %v10690 = vunpack.c.l.b16 %v9833
      %v10691 = vunpack.c.l.b16 %v9834
      %v10692 = vunpack.c.l.b16 %v9835
      %v10693 = vunpack.c.l.b16 %v9836
      %v10694 = vunpack.c.l.b16 %v9837
      %v10695 = vunpack.c.l.b16 %v9838
      %v10696 = vunpack.c.l.b16 %v9839
      %v10697 = vunpack.c.l.b16 %v9840
      %v10698 = vunpack.c.l.b16 %v9841
      %v10699 = vunpack.c.l.b16 %v9842
      %v10700 = vunpack.c.l.b16 %v9843
      %v10701 = vunpack.c.l.b16 %v9844
      %v10702 = vunpack.c.l.b16 %v9845
      %v10703 = vunpack.c.l.b16 %v9846
      %v10704 = vunpack.c.l.b16 %v9847
      %v10705 = vunpack.c.l.b16 %v9848
      %v10706 = vunpack.c.l.b16 %v9849
      %v10707 = vunpack.c.l.b16 %v9850
      %v10708 = vunpack.c.l.b16 %v9851
      %v10709 = vunpack.c.l.b16 %v9852
      %v10710 = vunpack.c.l.b16 %v9853
      %v10711 = vunpack.c.l.b16 %v9854
      %v10712 = vpack.c.b16 %v10681, %v10680
      %v10713 = vpack.c.b16 %v10683, %v10682
      %v10714 = vpack.c.b16 %v10685, %v10684
      %v10715 = vpack.c.b16 %v10687, %v10686
      %v10716 = vpack.c.b16 %v10689, %v10688
      %v10717 = vpack.c.b16 %v10691, %v10690
      %v10718 = vpack.c.b16 %v10693, %v10692
      %v10719 = vpack.c.b16 %v10695, %v10694
      %v10720 = vpack.c.b16 %v10697, %v10696
      %v10721 = vpack.c.b16 %v10699, %v10698
      %v10722 = vpack.c.b16 %v10701, %v10700
      %v10723 = vpack.c.b16 %v10703, %v10702
      %v10724 = vpack.c.b16 %v10705, %v10704
      %v10725 = vpack.c.b16 %v10707, %v10706
      %v10726 = vpack.c.b16 %v10709, %v10708
      %v10727 = vpack.c.b16 %v10711, %v10710
      %10744 = vmatprep.subr.bf16.mxu0 0
      %10745 = vmatpush1.bf16.msra.mxu0 %v10719
      %10746 = vmatprep.subr.bf16.mxu0 0
      %10747 = vmatpush1.bf16.msra.mxu0 %v10718
      %10748 = vmatprep.subr.bf16.mxu0 0
      %10749 = vmatpush1.bf16.msra.mxu0 %v10717
      %10750 = vmatprep.subr.bf16.mxu0 0
      %10751 = vmatpush1.bf16.msra.mxu0 %v10716
      %10752 = vmatprep.subr.bf16.mxu0 0
      %10753 = vmatpush1.bf16.msra.mxu0 %v10715
      %10754 = vmatprep.subr.bf16.mxu0 0
      %10755 = vmatpush1.bf16.msra.mxu0 %v10714
      %10756 = vmatprep.subr.bf16.mxu0 0
      %10757 = vmatpush1.bf16.msra.mxu0 %v10713
      %10758 = vmatprep.subr.bf16.mxu0 0
      %10759 = vmatpush1.bf16.msra.mxu0 %v10712
      %10760 = vmatprep.subr.bf16.mxu0 0
      %10761 = vmatpush2.bf16.msra.mxu0 %v10727
      %10762 = vmatprep.subr.bf16.mxu0 0
      %10763 = vmatpush2.bf16.msra.mxu0 %v10726
      %10764 = vmatprep.subr.bf16.mxu0 0
      %10765 = vmatpush2.bf16.msra.mxu0 %v10725
      %10766 = vmatprep.subr.bf16.mxu0 0
      %10767 = vmatpush2.bf16.msra.mxu0 %v10724
      %10768 = vmatprep.subr.bf16.mxu0 0
      %10769 = vmatpush2.bf16.msra.mxu0 %v10723
      %10770 = vmatprep.subr.bf16.mxu0 0
      %10771 = vmatpush2.bf16.msra.mxu0 %v10722
      %10772 = vmatprep.subr.bf16.mxu0 0
      %10773 = vmatpush2.bf16.msra.mxu0 %v10721
      %10774 = vmatprep.subr.bf16.mxu0 0
      %10775 = vmatpush2.bf16.msra.mxu0 %v10720
      %10776 = vmatprep.mubr.bf16.mxu0 %v10645
      %10777 = vmatmul.mubr.bf16.gmra.mxu0 %v10644
      %v10778 = vpop.f32.mrf.mxu0
      %v10779 = vadd.f32 0.0, %v10778
      %v10780 = vpop.f32.mrf.mxu0
      %v10781 = vpop.f32.mrf.mxu0
      %v10782 = vadd.f32 0.0, %v10781
      %v10783 = vpop.f32.mrf.mxu0
      %10784 = vmatprep.mubr.bf16.mxu0 %v10647
      %10785 = vmatmul.mubr.bf16.gmra.mxu0 %v10646
      %v10786 = vpop.f32.mrf.mxu0
      %v10787 = vadd.f32 0.0, %v10786
      %v10788 = vpop.f32.mrf.mxu0
      %v10789 = vpop.f32.mrf.mxu0
      %v10790 = vadd.f32 0.0, %v10789
      %v10791 = vpop.f32.mrf.mxu0
      %10792 = vdwg.mxu0
      %v10793 = vadd.f32 %v10640, %v10779
      %v10794 = vadd.f32 %v10641, %v10782
      %v10795 = vadd.f32 %v10642, %v10787
      %v10796 = vadd.f32 %v10643, %v10790
      %v10797 = vpack.c.bf16 %v9657, %v9655
      %v10798 = vpack.c.bf16 %v9658, %v9656
      %v10799 = vpack.c.bf16 %v9661, %v9659
      %v10800 = vpack.c.bf16 %v9662, %v9660
      %v10833 = vunpack.c.l.b16 %v9855
      %v10834 = vunpack.c.l.b16 %v9856
      %v10835 = vunpack.c.l.b16 %v9857
      %v10836 = vunpack.c.l.b16 %v9858
      %v10837 = vunpack.c.l.b16 %v9859
      %v10838 = vunpack.c.l.b16 %v9860
      %v10839 = vunpack.c.l.b16 %v9861
      %v10840 = vunpack.c.l.b16 %v9862
      %v10841 = vunpack.c.l.b16 %v9863
      %v10842 = vunpack.c.l.b16 %v9864
      %v10843 = vunpack.c.l.b16 %v9865
      %v10844 = vunpack.c.l.b16 %v9866
      %v10845 = vunpack.c.l.b16 %v9867
      %v10846 = vunpack.c.l.b16 %v9868
      %v10847 = vunpack.c.l.b16 %v9869
      %v10848 = vunpack.c.l.b16 %v9870
      %v10849 = vunpack.c.l.b16 %v9871
      %v10850 = vunpack.c.l.b16 %v9872
      %v10851 = vunpack.c.l.b16 %v9873
      %v10852 = vunpack.c.l.b16 %v9874
      %v10853 = vunpack.c.l.b16 %v9875
      %v10854 = vunpack.c.l.b16 %v9876
      %v10855 = vunpack.c.l.b16 %v9877
      %v10856 = vunpack.c.l.b16 %v9878
      %v10857 = vunpack.c.l.b16 %v9879
      %v10858 = vunpack.c.l.b16 %v9880
      %v10859 = vunpack.c.l.b16 %v9881
      %v10860 = vunpack.c.l.b16 %v9882
      %v10861 = vunpack.c.l.b16 %v9883
      %v10862 = vunpack.c.l.b16 %v9884
      %v10863 = vunpack.c.l.b16 %v9885
      %v10864 = vunpack.c.l.b16 %v9886
      %v10865 = vpack.c.b16 %v10834, %v10833
      %v10866 = vpack.c.b16 %v10836, %v10835
      %v10867 = vpack.c.b16 %v10838, %v10837
      %v10868 = vpack.c.b16 %v10840, %v10839
      %v10869 = vpack.c.b16 %v10842, %v10841
      %v10870 = vpack.c.b16 %v10844, %v10843
      %v10871 = vpack.c.b16 %v10846, %v10845
      %v10872 = vpack.c.b16 %v10848, %v10847
      %v10873 = vpack.c.b16 %v10850, %v10849
      %v10874 = vpack.c.b16 %v10852, %v10851
      %v10875 = vpack.c.b16 %v10854, %v10853
      %v10876 = vpack.c.b16 %v10856, %v10855
      %v10877 = vpack.c.b16 %v10858, %v10857
      %v10878 = vpack.c.b16 %v10860, %v10859
      %v10879 = vpack.c.b16 %v10862, %v10861
      %v10880 = vpack.c.b16 %v10864, %v10863
      %10897 = vmatprep.subr.bf16.mxu0 0
      %10898 = vmatpush1.bf16.msra.mxu0 %v10872
      %10899 = vmatprep.subr.bf16.mxu0 0
      %10900 = vmatpush1.bf16.msra.mxu0 %v10871
      %10901 = vmatprep.subr.bf16.mxu0 0
      %10902 = vmatpush1.bf16.msra.mxu0 %v10870
      %10903 = vmatprep.subr.bf16.mxu0 0
      %10904 = vmatpush1.bf16.msra.mxu0 %v10869
      %10905 = vmatprep.subr.bf16.mxu0 0
      %10906 = vmatpush1.bf16.msra.mxu0 %v10868
      %10907 = vmatprep.subr.bf16.mxu0 0
      %10908 = vmatpush1.bf16.msra.mxu0 %v10867
      %10909 = vmatprep.subr.bf16.mxu0 0
      %10910 = vmatpush1.bf16.msra.mxu0 %v10866
      %10911 = vmatprep.subr.bf16.mxu0 0
      %10912 = vmatpush1.bf16.msra.mxu0 %v10865
      %10913 = vmatprep.subr.bf16.mxu0 0
      %10914 = vmatpush2.bf16.msra.mxu0 %v10880
      %10915 = vmatprep.subr.bf16.mxu0 0
      %10916 = vmatpush2.bf16.msra.mxu0 %v10879
      %10917 = vmatprep.subr.bf16.mxu0 0
      %10918 = vmatpush2.bf16.msra.mxu0 %v10878
      %10919 = vmatprep.subr.bf16.mxu0 0
      %10920 = vmatpush2.bf16.msra.mxu0 %v10877
      %10921 = vmatprep.subr.bf16.mxu0 0
      %10922 = vmatpush2.bf16.msra.mxu0 %v10876
      %10923 = vmatprep.subr.bf16.mxu0 0
      %10924 = vmatpush2.bf16.msra.mxu0 %v10875
      %10925 = vmatprep.subr.bf16.mxu0 0
      %10926 = vmatpush2.bf16.msra.mxu0 %v10874
      %10927 = vmatprep.subr.bf16.mxu0 0
      %10928 = vmatpush2.bf16.msra.mxu0 %v10873
      %10929 = vmatprep.mubr.bf16.mxu0 %v10798
      %10930 = vmatmul.mubr.bf16.gmra.mxu0 %v10797
      %v10931 = vpop.f32.mrf.mxu0
      %v10932 = vadd.f32 0.0, %v10931
      %v10933 = vpop.f32.mrf.mxu0
      %v10934 = vpop.f32.mrf.mxu0
      %v10935 = vadd.f32 0.0, %v10934
      %v10936 = vpop.f32.mrf.mxu0
      %10937 = vmatprep.mubr.bf16.mxu0 %v10800
      %10938 = vmatmul.mubr.bf16.gmra.mxu0 %v10799
      %v10939 = vpop.f32.mrf.mxu0
      %v10940 = vadd.f32 0.0, %v10939
      %v10941 = vpop.f32.mrf.mxu0
      %v10942 = vpop.f32.mrf.mxu0
      %v10943 = vadd.f32 0.0, %v10942
      %v10944 = vpop.f32.mrf.mxu0
      %10945 = vdwg.mxu0
      %v10946 = vadd.f32 %v10793, %v10932
      %v10947 = vadd.f32 %v10794, %v10935
      %v10948 = vadd.f32 %v10795, %v10940
      %v10949 = vadd.f32 %v10796, %v10943
      %v10950 = vld [vmem:[%s6] sm:$0x1]
      %v10952 = vlaneseq
      %v10953 = vshrl.u32 %v10952, 7
      %v10954 = vsub.s32 0, %v10953
      %v10955 = vrot.slane %v10950, %v10954
      %v10957 = vadd.f32 %v10946, %v10955
      %v10958 = vadd.f32 %v10947, %v10955
      %v10959 = vadd.f32 %v10948, %v10955
      %v10960 = vadd.f32 %v10949, %v10955
      %v10961 = vmax.f32 %v10957, 0.0
      %v10962 = vmax.f32 %v10958, 0.0
      %v10963 = vmax.f32 %v10959, 0.0
      %v10964 = vmax.f32 %v10960, 0.0
      %v10965 = vpack.c.bf16 %v10962, %v10961
      %v10966 = vpack.c.bf16 %v10964, %v10963
      %v10967 = vld [vmem:[%s7] sm:$0xf]
      %v10968 = vld [vmem:[%s7 + $0x4] sm:$0xf]
      %v10969 = vld [vmem:[%s7 + $0x8] sm:$0xf]
      %v10970 = vld [vmem:[%s7 + $0xc] sm:$0xf]
      %v10971 = vld [vmem:[%s8] sm:$0x1]
      %v10973 = vlaneseq
      %v10974 = vshrl.u32 %v10973, 7
      %v10975 = vsub.s32 0, %v10974
      %v10976 = vrot.slane %v10971, %v10975
      %v10982 = vunpack.c.l.b16 %v10967
      %v10983 = vunpack.c.l.b16 %v10968
      %v10984 = vunpack.c.l.b16 %v10969
      %v10985 = vunpack.c.l.b16 %v10970
      %v10986 = vpack.c.b16 %v10983, %v10982
      %v10987 = vpack.c.b16 %v10985, %v10984
      %vm10990 = vcmask 261120
      %v10992 = vsel %vm10990, %v10965, 0
      %v10995 = vsel %vm10990, %v10966, 0
      %10997 = vmatprep.subr.bf16.mxu0 0
      %10998 = vmatpush1.bf16.msra.mxu0 0
      %10999 = vmatprep.subr.bf16.mxu0 0
      %11000 = vmatpush1.bf16.msra.mxu0 0
      %11001 = vmatprep.subr.bf16.mxu0 0
      %11002 = vmatpush1.bf16.msra.mxu0 0
      %11003 = vmatprep.subr.bf16.mxu0 0
      %11004 = vmatpush1.bf16.msra.mxu0 0
      %11005 = vmatprep.subr.bf16.mxu0 0
      %11006 = vmatpush1.bf16.msra.mxu0 0
      %11007 = vmatprep.subr.bf16.mxu0 0
      %11008 = vmatpush1.bf16.msra.mxu0 0
      %11009 = vmatprep.subr.bf16.mxu0 0
      %11010 = vmatpush1.bf16.msra.mxu0 %v10987
      %11011 = vmatprep.subr.bf16.mxu0 0
      %11012 = vmatpush1.bf16.msra.mxu0 %v10986
      %11013 = vmatprep.subr.bf16.mxu0 0
      %11014 = vmatpush2.bf16.msra.mxu0 0
      %11015 = vmatprep.subr.bf16.mxu0 0
      %11016 = vmatpush2.bf16.msra.mxu0 0
      %11017 = vmatprep.subr.bf16.mxu0 0
      %11018 = vmatpush2.bf16.msra.mxu0 0
      %11019 = vmatprep.subr.bf16.mxu0 0
      %11020 = vmatpush2.bf16.msra.mxu0 0
      %11021 = vmatprep.subr.bf16.mxu0 0
      %11022 = vmatpush2.bf16.msra.mxu0 0
      %11023 = vmatprep.subr.bf16.mxu0 0
      %11024 = vmatpush2.bf16.msra.mxu0 0
      %11025 = vmatprep.subr.bf16.mxu0 0
      %11026 = vmatpush2.bf16.msra.mxu0 0
      %11027 = vmatprep.subr.bf16.mxu0 0
      %11028 = vmatpush2.bf16.msra.mxu0 0
      %11029 = vmatprep.mubr.bf16.mxu0 0
      %11030 = vmatmul.mubr.bf16.gmra.mxu0 %v10992
      %v11031 = vpop.f32.mrf.mxu0
      %v11032 = vadd.f32 %v10976, %v11031
      %v11033 = vpop.f32.mrf.mxu0
      %v11034 = vpop.f32.mrf.mxu0
      %v11035 = vadd.f32 %v10976, %v11034
      %v11036 = vpop.f32.mrf.mxu0
      %11037 = vmatprep.mubr.bf16.mxu0 0
      %11038 = vmatmul.mubr.bf16.gmra.mxu0 %v10995
      %v11039 = vpop.f32.mrf.mxu0
      %v11040 = vadd.f32 %v10976, %v11039
      %v11041 = vpop.f32.mrf.mxu0
      %v11042 = vpop.f32.mrf.mxu0
      %v11043 = vadd.f32 %v10976, %v11042
      %v11044 = vpop.f32.mrf.mxu0
      %11045 = vdwg.mxu0
      %v11046 = vmax.f32 %v11032, 0.0
      %v11047 = vmax.f32 %v11035, 0.0
      %v11048 = vmax.f32 %v11040, 0.0
      %v11049 = vmax.f32 %v11043, 0.0
      %v11050 = vpack.c.bf16 %v11047, %v11046
      %v11051 = vpack.c.bf16 %v11049, %v11048
      %v11052 = vld [vmem:[%s9] sm:$0xf]
      %v11053 = vld [vmem:[%s9 + $0x4] sm:$0xf]
      %v11054 = vld [vmem:[%s9 + $0x8] sm:$0xf]
      %v11055 = vld [vmem:[%s9 + $0xc] sm:$0xf]
      %v11056 = vld [vmem:[%s10] sm:$0x1]
      %v11058 = vlaneseq
      %v11059 = vshrl.u32 %v11058, 7
      %v11060 = vsub.s32 0, %v11059
      %v11061 = vrot.slane %v11056, %v11060
      %v11067 = vunpack.c.l.b16 %v11052
      %v11068 = vunpack.c.l.b16 %v11053
      %v11069 = vunpack.c.l.b16 %v11054
      %v11070 = vunpack.c.l.b16 %v11055
      %v11071 = vpack.c.b16 %v11068, %v11067
      %v11072 = vpack.c.b16 %v11070, %v11069
      %v11076 = vsel %vm10990, %v11050, 0
      %v11079 = vsel %vm10990, %v11051, 0
      %11081 = vmatprep.subr.bf16.mxu0 0
      %11082 = vmatpush1.bf16.msra.mxu0 0
      %11083 = vmatprep.subr.bf16.mxu0 0
      %11084 = vmatpush1.bf16.msra.mxu0 0
      %11085 = vmatprep.subr.bf16.mxu0 0
      %11086 = vmatpush1.bf16.msra.mxu0 0
      %11087 = vmatprep.subr.bf16.mxu0 0
      %11088 = vmatpush1.bf16.msra.mxu0 0
      %11089 = vmatprep.subr.bf16.mxu0 0
      %11090 = vmatpush1.bf16.msra.mxu0 0
      %11091 = vmatprep.subr.bf16.mxu0 0
      %11092 = vmatpush1.bf16.msra.mxu0 0
      %11093 = vmatprep.subr.bf16.mxu0 0
      %11094 = vmatpush1.bf16.msra.mxu0 %v11072
      %11095 = vmatprep.subr.bf16.mxu0 0
      %11096 = vmatpush1.bf16.msra.mxu0 %v11071
      %11097 = vmatprep.subr.bf16.mxu0 0
      %11098 = vmatpush2.bf16.msra.mxu0 0
      %11099 = vmatprep.subr.bf16.mxu0 0
      %11100 = vmatpush2.bf16.msra.mxu0 0
      %11101 = vmatprep.subr.bf16.mxu0 0
      %11102 = vmatpush2.bf16.msra.mxu0 0
      %11103 = vmatprep.subr.bf16.mxu0 0
      %11104 = vmatpush2.bf16.msra.mxu0 0
      %11105 = vmatprep.subr.bf16.mxu0 0
      %11106 = vmatpush2.bf16.msra.mxu0 0
      %11107 = vmatprep.subr.bf16.mxu0 0
      %11108 = vmatpush2.bf16.msra.mxu0 0
      %11109 = vmatprep.subr.bf16.mxu0 0
      %11110 = vmatpush2.bf16.msra.mxu0 0
      %11111 = vmatprep.subr.bf16.mxu0 0
      %11112 = vmatpush2.bf16.msra.mxu0 0
      %11113 = vmatprep.mubr.bf16.mxu0 0
      %11114 = vmatmul.mubr.bf16.gmra.mxu0 %v11076
      %v11115 = vpop.f32.mrf.mxu0
      %v11116 = vadd.f32 %v11061, %v11115
      %v11117 = vpop.f32.mrf.mxu0
      %v11118 = vpop.f32.mrf.mxu0
      %v11119 = vadd.f32 %v11061, %v11118
      %v11120 = vpop.f32.mrf.mxu0
      %11121 = vmatprep.mubr.bf16.mxu0 0
      %11122 = vmatmul.mubr.bf16.gmra.mxu0 %v11079
      %v11123 = vpop.f32.mrf.mxu0
      %v11124 = vadd.f32 %v11061, %v11123
      %v11125 = vpop.f32.mrf.mxu0
      %v11126 = vpop.f32.mrf.mxu0
      %v11127 = vadd.f32 %v11061, %v11126
      %v11128 = vpop.f32.mrf.mxu0
      %11129 = vdwg.mxu0
      %11130 = vmax.xlane.f32.xlu0 %v11116
      %v11131 = vpop.xlane.xlu0 %11130
      %11132 = vmax.xlane.f32.xlu0 %v11119
      %v11133 = vpop.xlane.xlu0 %11132
      %11134 = vmax.xlane.f32.xlu0 %v11124
      %v11135 = vpop.xlane.xlu0 %11134
      %11136 = vmax.xlane.f32.xlu0 %v11127
      %v11137 = vpop.xlane.xlu0 %11136
      %v11138 = vsub.f32 %v11116, %v11131
      %v11139 = vsub.f32 %v11119, %v11133
      %v11140 = vsub.f32 %v11124, %v11135
      %v11141 = vsub.f32 %v11127, %v11137
      %v11142 = vmul.f32 %v11138, 1.442695
      %v11143 = vpow.pop %v11142
      %v11144 = vmul.f32 %v11139, 1.442695
      %v11145 = vpow.pop %v11144
      %v11146 = vmul.f32 %v11140, 1.442695
      %v11147 = vpow.pop %v11146
      %v11148 = vmul.f32 %v11141, 1.442695
      %v11149 = vpow.pop %v11148
      %11150 = vadd.xlane.f32.xlu0 %v11143
      %v11151 = vpop.xlane.xlu0 %11150
      %11152 = vadd.xlane.f32.xlu0 %v11145
      %v11153 = vpop.xlane.xlu0 %11152
      %11154 = vadd.xlane.f32.xlu0 %v11147
      %v11155 = vpop.xlane.xlu0 %11154
      %11156 = vadd.xlane.f32.xlu0 %v11149
      %v11157 = vpop.xlane.xlu0 %11156
      %v11158 = vlog2.pop %v11151
      %v11159 = vmul.f32 %v11158, 0.6931472
      %v11160 = vlog2.pop %v11153
      %v11161 = vmul.f32 %v11160, 0.6931472
      %v11162 = vlog2.pop %v11155
      %v11163 = vmul.f32 %v11162, 0.6931472
      %v11164 = vlog2.pop %v11157
      %v11165 = vmul.f32 %v11164, 0.6931472
      %v11166 = vadd.f32 %v11131, %v11159
      %v11167 = vadd.f32 %v11133, %v11161
      %v11168 = vadd.f32 %v11135, %v11163
      %v11169 = vadd.f32 %v11137, %v11165
      %v11170 = vsub.f32 %v11116, %v11166
      %v11171 = vsub.f32 %v11119, %v11167
      %v11172 = vsub.f32 %v11124, %v11168
      %v11173 = vsub.f32 %v11127, %v11169
      %11174 = vst [vmem:[%s388] sm:$0xff] %v11170
      %11175 = vst [vmem:[%s388 + $0x8] sm:$0xff] %v11171
      %11176 = vst [vmem:[%s388 + $0x10] sm:$0xff] %v11172
      %11177 = vst [vmem:[%s388 + $0x18] sm:$0xff] %v11173
      %s11178 = smul.u32 4, %s22
      %p11179 = scmp.lt.s32.totalorder %s11178, 7
      %s11180 = scalar_select %p11179, %s11178, 7
      %s11181 = smul.addr %s11180, 8
      %s11182 = scalar_lea.vmem %s11, %s11181
      // Predicated region
      $region65: #{_lambda_.1} parent=63 // pred_check
        %p11183 = pneg %p276
      $region66: #{_lambda_.1} parent=63 // pred_check_branch
        %11185 = sbr.rel (%p11183) target = $region68
      $region67: #{_lambda_.1} parent=63 // pred_region
        %s11186 = smul.u32 4, %s22
      $region68: #{_lambda_.1} parent=63 // pred_fallthru
        _
    $region64: #{_lambda_.1} parent=5 // pred_fallthru
      _
    %p11187 = scmp.le.s32.totalorder 2, %s17
    // Predicated region
    $region69: #{_lambda_.1} parent=5 // pred_check
      %p11188 = pneg %p11187
    $region70: #{_lambda_.1} parent=5 // pred_check_branch
      %11190 = sbr.rel (%p11188) target = $region72
    $region71: #{_lambda_.1} parent=5 // pred_region
      %s11191 = ssub.s32 %s17, 2
      // Predicated region
      $region73: #{_lambda_.1} parent=71 // pred_check
        %p11192 = pneg %p282
      $region74: #{_lambda_.1} parent=71 // pred_check_branch
        %11194 = sbr.rel (%p11192) target = $region76
      $region75: #{_lambda_.1} parent=71 // pred_region
        %s11195 = smul.u32 4, %s23
        %p11196 = scmp.lt.s32.totalorder %s11195, 7
        %s11197 = scalar_select %p11196, %s11195, 7
        %s11198 = smul.addr %s11197, 8
        %s11199 = scalar_lea.vmem %s11, %s11198
      $region76: #{_lambda_.1} parent=71 // pred_fallthru
        _
    $region72: #{_lambda_.1} parent=5 // pred_fallthru
      _
  $region6: #{_lambda_.1} parent=0 // loop_footer
    %s21 = sadd.s32 1, %s17
  $region7: #{_lambda_.1} parent=0 // loop_footer_branch
    %16 = sbr.rel target = $region3
  $region8: #{_lambda_.1} parent=0 // loop_exit
    _

</llo_original>
